<compile_context>
chip_gen: v7x
topology: tpu7x:2x2x1
jax: 0.10.0
libtpu: 0.0.40
codegen_flags: <defaults>
</compile_context>

<pallas_src>
import jax
import jax.numpy as jnp
from jax.experimental import pallas as pl
from jax.experimental.pallas import tpu as pltpu


LAYER_DIMS = ((50, 2048), (2048, 1024), (1024, 2048), (2048, 512), (512, 512))
LAYER_HAS_BN = (True, True, True, True, False)
LAYER_RELU = (True, True, True, True, False)
BN_EPS = 1e-5
K0_PAD = 128        # first-layer contraction dim padded 50 -> 128
NORM_EPS = 1e-12    # F.normalize eps


# ---------------------------------------------------------------------------
# Kernel
# ---------------------------------------------------------------------------
def _make_fused_mlp_kernel(layer_dims, relu_flags):
    """One kernel for the whole MLP + L2 normalize (weight-streaming fused)."""
    n = len(layer_dims)

    def kernel(*refs):
        s_ref = refs[0]
        shift_refs = refs[1:1 + n]
        w_hbm_refs = refs[1 + n:1 + 2 * n]
        o_ref = refs[1 + 2 * n]
        w_bufs = refs[2 + 2 * n:2 + 3 * n]
        sems = refs[2 + 3 * n]

        # Kick off every weight DMA immediately: the DMA engine streams the
        # full bf16 weight set back-to-back while the MXU consumes it layer
        # by layer (the kernel is HBM-bandwidth bound at B=8).
        copies = []
        for i in range(n):
            cp = pltpu.make_async_copy(w_hbm_refs[i], w_bufs[i], sems.at[i])
            cp.start()
            copies.append(cp)

        act = s_ref[...].astype(jnp.bfloat16)
        y = None
        for i in range(n):
            copies[i].wait()
            # bf16 x bf16 on the MXU, f32 accumulation.
            y = jnp.dot(act, w_bufs[i][...],
                        preferred_element_type=jnp.float32)
            y = y + shift_refs[i][...]          # folded BN shift / Linear bias
            if relu_flags[i]:
                y = jnp.maximum(y, 0.0)
            if i < n - 1:
                act = y.astype(jnp.bfloat16)

        # Fused F.normalize(z, dim=1): row-wise L2 normalization, eps=1e-12.
        norm = jnp.sqrt(jnp.sum(y * y, axis=1, keepdims=True))
        o_ref[...] = (y / jnp.maximum(norm, NORM_EPS)).astype(o_ref.dtype)

    return kernel


# ---------------------------------------------------------------------------
# Wrapper
# ---------------------------------------------------------------------------
def fused_mlp_normalize(s_padded, params):
    """z = F.normalize(mlp(s)); params: tuple of {"w": bf16 (K,N), "shift": f32 (1,N)}."""
    B = s_padded.shape[0]
    dims = tuple(p["w"].shape for p in params)
    n = len(params)
    out_dim = dims[-1][1]

    in_specs = (
        [pl.BlockSpec((B, dims[0][0]), lambda i: (0, 0))]             # s (full block)
        + [pl.BlockSpec((1, d[1]), lambda i: (0, 0)) for d in dims]   # shifts (full blocks)
        + [pl.BlockSpec(memory_space=pl.ANY) for _ in dims]           # weights stay in HBM
    )
    out_specs = pl.BlockSpec((B, out_dim), lambda i: (0, 0))
    scratch_shapes = (
        [pltpu.VMEM(d, jnp.bfloat16) for d in dims]                   # weight landing buffers
        + [pltpu.SemaphoreType.DMA((n,))]
    )

    kernel = _make_fused_mlp_kernel(dims, LAYER_RELU)
    return pl.pallas_call(
        kernel,
        out_shape=jax.ShapeDtypeStruct((B, out_dim), s_padded.dtype),
        grid_spec=pltpu.PrefetchScalarGridSpec(
            num_scalar_prefetch=0,
            grid=(1,),
            in_specs=in_specs,
            out_specs=out_specs,
            scratch_shapes=scratch_shapes,
        ),
        compiler_params=pltpu.CompilerParams(
            dimension_semantics=("arbitrary",),
            vmem_limit_bytes=32 * 1024 * 1024,
        ),
    )(s_padded, *(p["shift"] for p in params), *(p["w"] for p in params))


@jax.jit
def sample_cnn_mlp_forward(x, s, params):
    """Pallas forward of SampleCNNMLP: F.normalize(mlp(s), dim=1).  `x` is
    unused, exactly as in the PyTorch module's forward."""
    del x
    k0 = params[0]["w"].shape[0]
    if s.shape[1] < k0:
        s = jnp.pad(s, ((0, 0), (0, k0 - s.shape[1])))   # tiny (8 x 128) pad
    return fused_mlp_normalize(s, params)


# ---------------------------------------------------------------------------
# Parameter prep (BN folding, scale-into-weights, bf16 cast, K padding)
# ---------------------------------------------------------------------------
def prepare_params(raw_layers, k0_pad=K0_PAD):
    params = []
    for idx, (w_t, b, bn, _relu) in enumerate(raw_layers):
        k, n = w_t.shape
        if bn is None:
            scale = jnp.ones((n,), jnp.float32)
            shift = b
        else:
            gamma, beta, mean, var = bn
            scale = gamma / jnp.sqrt(var + BN_EPS)
            shift = (b - mean) * scale + beta
        w = w_t * scale[None, :]                         # fold BN scale into columns
        if idx == 0 and k < k0_pad:
            w = jnp.pad(w, ((0, k0_pad - k), (0, 0)))    # lane-align first contraction
        params.append({"w": w.astype(jnp.bfloat16),
                       "shift": shift.reshape(1, n).astype(jnp.float32)})
    return tuple(params)


# ---------------------------------------------------------------------------
# References
# ---------------------------------------------------------------------------
def _ref_forward_prepped(s, params):
    """Pure-JAX reference doing the SAME math as the kernel (bf16 operands,
    f32 accumulation) — validates the kernel logic tightly."""
    k0 = params[0]["w"].shape[0]
    z = jnp.pad(s, ((0, 0), (0, k0 - s.shape[1]))).astype(jnp.bfloat16)
    n = len(params)
    y = None
    for i, p in enumerate(params):
        y = jnp.dot(z, p["w"], preferred_element_type=jnp.float32) + p["shift"]
        if LAYER_RELU[i]:
            y = jnp.maximum(y, 0.0)
        if i < n - 1:
            z = y.astype(jnp.bfloat16)
    norm = jnp.sqrt(jnp.sum(y * y, axis=1, keepdims=True))
    return y / jnp.maximum(norm, NORM_EPS)


def _ref_forward_f32(s, raw_layers):
    """Full-f32 eval-mode reference of the PyTorch module (un-folded params)."""
    z = s
    for (w_t, b, bn, relu) in raw_layers:
        z = jnp.dot(z, w_t, precision=jax.lax.Precision.HIGHEST) + b
        if bn is not None:
            gamma, beta, mean, var = bn
            z = (z - mean) / jnp.sqrt(var + BN_EPS) * gamma + beta
        if relu:
            z = jnp.maximum(z, 0.0)
    norm = jnp.sqrt(jnp.sum(z * z, axis=1, keepdims=True))
    return z / jnp.maximum(norm, NORM_EPS)


# ---------------------------------------------------------------------------
# Main
# ---------------------------------------------------------------------------
if __name__ == "__main__":
    key = jax.random.PRNGKey(0)
    B = 8
    key, k_x, k_s = jax.random.split(key, 3)
    x = jax.random.normal(k_x, (B, 512), dtype=jnp.float32)   # unused by forward
    s = jax.random.normal(k_s, (B, LAYER_DIMS[0][0]), dtype=jnp.float32)

    raw_layers = []
    for i, (din, dout) in enumerate(LAYER_DIMS):
        key, kw, kb, kg, kbe, km, kv = jax.random.split(key, 7)
        w_t = jax.random.normal(kw, (din, dout), dtype=jnp.float32) / jnp.sqrt(
            jnp.float32(din))
        b = 0.05 * jax.random.normal(kb, (dout,), dtype=jnp.float32)
        if LAYER_HAS_BN[i]:
            gamma = 1.0 + 0.1 * jax.random.normal(kg, (dout,), dtype=jnp.float32)
            beta = 0.1 * jax.random.normal(kbe, (dout,), dtype=jnp.float32)
            mean = 0.1 * jax.random.normal(km, (dout,), dtype=jnp.float32)
            var = jax.random.uniform(kv, (dout,), dtype=jnp.float32,
                                     minval=0.5, maxval=1.5)
            bn = (gamma, beta, mean, var)
        else:
            bn = None
        raw_layers.append((w_t, b, bn, LAYER_RELU[i]))

    params = prepare_params(raw_layers)

    out = sample_cnn_mlp_forward(x, s, params)
    jax.block_until_ready(out)
    assert out.shape == (B, LAYER_DIMS[-1][1]) and out.dtype == s.dtype

    # Tight check: kernel vs. identical-math pure-JAX reference.
    ref_q = _ref_forward_prepped(s, params)
    err_q = float(jnp.max(jnp.abs(out - ref_q)))
    assert bool(jnp.allclose(out, ref_q, atol=1e-3, rtol=1e-3)), err_q

    # Loose check: kernel (bf16 weights) vs. the full-f32 module semantics —
    # bounds the weight-quantization error endorsed by the perf review.
    ref_f = _ref_forward_f32(s, raw_layers)
    err_f = float(jnp.max(jnp.abs(out - ref_f)))
    assert bool(jnp.allclose(out, ref_f, atol=2e-2, rtol=2e-2)), err_f

    print("KERNEL_OK")
</pallas_src>

<mosaic_0001>
module attributes {stable_mosaic.version = 11 : i64} {
  func.func @kernel(%arg0: i32, %arg1: memref<8x128xf32, #tpu.memory_space<vmem>>, %arg2: memref<1x2048xf32, #tpu.memory_space<vmem>>, %arg3: memref<1x1024xf32, #tpu.memory_space<vmem>>, %arg4: memref<1x2048xf32, #tpu.memory_space<vmem>>, %arg5: memref<1x512xf32, #tpu.memory_space<vmem>>, %arg6: memref<1x512xf32, #tpu.memory_space<vmem>>, %arg7: memref<128x2048xbf16, #tpu.memory_space<any>>, %arg8: memref<2048x1024xbf16, #tpu.memory_space<any>>, %arg9: memref<1024x2048xbf16, #tpu.memory_space<any>>, %arg10: memref<2048x512xbf16, #tpu.memory_space<any>>, %arg11: memref<512x512xbf16, #tpu.memory_space<any>>, %arg12: memref<8x512xf32, #tpu.memory_space<vmem>>, %arg13: memref<128x2048xbf16, #tpu.memory_space<vmem>>, %arg14: memref<2048x1024xbf16, #tpu.memory_space<vmem>>, %arg15: memref<1024x2048xbf16, #tpu.memory_space<vmem>>, %arg16: memref<2048x512xbf16, #tpu.memory_space<vmem>>, %arg17: memref<512x512xbf16, #tpu.memory_space<vmem>>, %arg18: memref<5x!tpu.dma_semaphore, #tpu.memory_space<semaphore_mem>>) attributes {dimension_semantics = [#tpu.dimension_semantics<arbitrary>], iteration_bounds = array<i64: 1>, scalar_prefetch = 0 : i64, scratch_operands = 6 : i64, tpu.core_type = #tpu.core_type<tc>, window_params = [{pipeline_mode = #tpu.pipeline_mode<synchronous>, transform_indices = @transform_0, window_bounds = array<i64: 8, 128>}, {pipeline_mode = #tpu.pipeline_mode<synchronous>, transform_indices = @transform_1, window_bounds = array<i64: 1, 2048>}, {pipeline_mode = #tpu.pipeline_mode<synchronous>, transform_indices = @transform_2, window_bounds = array<i64: 1, 1024>}, {pipeline_mode = #tpu.pipeline_mode<synchronous>, transform_indices = @transform_3, window_bounds = array<i64: 1, 2048>}, {pipeline_mode = #tpu.pipeline_mode<synchronous>, transform_indices = @transform_4, window_bounds = array<i64: 1, 512>}, {pipeline_mode = #tpu.pipeline_mode<synchronous>, transform_indices = @transform_5, window_bounds = array<i64: 1, 512>}, {}, {}, {}, {}, {}, {pipeline_mode = #tpu.pipeline_mode<synchronous>, transform_indices = @transform_11, window_bounds = array<i64: 8, 512>}]} {
    %c0_i32 = arith.constant 0 : i32
    %0 = tpu.memref_slice %arg18[%c0_i32] : memref<5x!tpu.dma_semaphore, #tpu.memory_space<semaphore_mem>> -> memref<1x!tpu.dma_semaphore, #tpu.memory_space<semaphore_mem>>
    %1 = tpu.memref_squeeze %0 : memref<1x!tpu.dma_semaphore, #tpu.memory_space<semaphore_mem>> -> memref<!tpu.dma_semaphore, #tpu.memory_space<semaphore_mem>>
    tpu.enqueue_dma source(%arg7 : memref<128x2048xbf16, #tpu.memory_space<any>>) target(%arg13 : memref<128x2048xbf16, #tpu.memory_space<vmem>>) target_semaphore(%1 : memref<!tpu.dma_semaphore, #tpu.memory_space<semaphore_mem>>)
    %c1_i32 = arith.constant 1 : i32
    %2 = tpu.memref_slice %arg18[%c1_i32] : memref<5x!tpu.dma_semaphore, #tpu.memory_space<semaphore_mem>> -> memref<1x!tpu.dma_semaphore, #tpu.memory_space<semaphore_mem>>
    %3 = tpu.memref_squeeze %2 : memref<1x!tpu.dma_semaphore, #tpu.memory_space<semaphore_mem>> -> memref<!tpu.dma_semaphore, #tpu.memory_space<semaphore_mem>>
    tpu.enqueue_dma source(%arg8 : memref<2048x1024xbf16, #tpu.memory_space<any>>) target(%arg14 : memref<2048x1024xbf16, #tpu.memory_space<vmem>>) target_semaphore(%3 : memref<!tpu.dma_semaphore, #tpu.memory_space<semaphore_mem>>)
    %c2_i32 = arith.constant 2 : i32
    %4 = tpu.memref_slice %arg18[%c2_i32] : memref<5x!tpu.dma_semaphore, #tpu.memory_space<semaphore_mem>> -> memref<1x!tpu.dma_semaphore, #tpu.memory_space<semaphore_mem>>
    %5 = tpu.memref_squeeze %4 : memref<1x!tpu.dma_semaphore, #tpu.memory_space<semaphore_mem>> -> memref<!tpu.dma_semaphore, #tpu.memory_space<semaphore_mem>>
    tpu.enqueue_dma source(%arg9 : memref<1024x2048xbf16, #tpu.memory_space<any>>) target(%arg15 : memref<1024x2048xbf16, #tpu.memory_space<vmem>>) target_semaphore(%5 : memref<!tpu.dma_semaphore, #tpu.memory_space<semaphore_mem>>)
    %c3_i32 = arith.constant 3 : i32
    %6 = tpu.memref_slice %arg18[%c3_i32] : memref<5x!tpu.dma_semaphore, #tpu.memory_space<semaphore_mem>> -> memref<1x!tpu.dma_semaphore, #tpu.memory_space<semaphore_mem>>
    %7 = tpu.memref_squeeze %6 : memref<1x!tpu.dma_semaphore, #tpu.memory_space<semaphore_mem>> -> memref<!tpu.dma_semaphore, #tpu.memory_space<semaphore_mem>>
    tpu.enqueue_dma source(%arg10 : memref<2048x512xbf16, #tpu.memory_space<any>>) target(%arg16 : memref<2048x512xbf16, #tpu.memory_space<vmem>>) target_semaphore(%7 : memref<!tpu.dma_semaphore, #tpu.memory_space<semaphore_mem>>)
    %c4_i32 = arith.constant 4 : i32
    %8 = tpu.memref_slice %arg18[%c4_i32] : memref<5x!tpu.dma_semaphore, #tpu.memory_space<semaphore_mem>> -> memref<1x!tpu.dma_semaphore, #tpu.memory_space<semaphore_mem>>
    %9 = tpu.memref_squeeze %8 : memref<1x!tpu.dma_semaphore, #tpu.memory_space<semaphore_mem>> -> memref<!tpu.dma_semaphore, #tpu.memory_space<semaphore_mem>>
    tpu.enqueue_dma source(%arg11 : memref<512x512xbf16, #tpu.memory_space<any>>) target(%arg17 : memref<512x512xbf16, #tpu.memory_space<vmem>>) target_semaphore(%9 : memref<!tpu.dma_semaphore, #tpu.memory_space<semaphore_mem>>)
    %c0 = arith.constant 0 : index
    %c0_0 = arith.constant 0 : index
    %10 = vector.load %arg1[%c0, %c0_0] : memref<8x128xf32, #tpu.memory_space<vmem>>, vector<8x128xf32>
    %11 = arith.truncf %10 : vector<8x128xf32> to vector<8x128xbf16>
    %c0_i32_1 = arith.constant 0 : i32
    %12 = tpu.memref_slice %arg18[%c0_i32_1] : memref<5x!tpu.dma_semaphore, #tpu.memory_space<semaphore_mem>> -> memref<1x!tpu.dma_semaphore, #tpu.memory_space<semaphore_mem>>
    %13 = tpu.memref_squeeze %12 : memref<1x!tpu.dma_semaphore, #tpu.memory_space<semaphore_mem>> -> memref<!tpu.dma_semaphore, #tpu.memory_space<semaphore_mem>>
    tpu.wait_dma2 semaphore(%13 : memref<!tpu.dma_semaphore, #tpu.memory_space<semaphore_mem>>) src(%arg7 : memref<128x2048xbf16, #tpu.memory_space<any>>) dst(%arg13 : memref<128x2048xbf16, #tpu.memory_space<vmem>>)
    %c0_2 = arith.constant 0 : index
    %c0_3 = arith.constant 0 : index
    %14 = vector.load %arg13[%c0_2, %c0_3] : memref<128x2048xbf16, #tpu.memory_space<vmem>>, vector<128x2048xbf16>
    %cst = arith.constant dense<0.000000e+00> : vector<8x2048xf32>
    %15 = tpu.matmul %11, %14, %cst {dimension_numbers = #tpu.dot_dimension_numbers<[1], [0], [0], [1], [0, 0, 1, 1], [], []>} : vector<8x128xbf16>, vector<128x2048xbf16>, vector<8x2048xf32> -> vector<8x2048xf32>
    %c0_4 = arith.constant 0 : index
    %c0_5 = arith.constant 0 : index
    %16 = vector.load %arg2[%c0_4, %c0_5] : memref<1x2048xf32, #tpu.memory_space<vmem>>, vector<1x2048xf32>
    %17 = vector.broadcast %16 : vector<1x2048xf32> to vector<8x2048xf32>
    %18 = arith.addf %15, %17 : vector<8x2048xf32>
    %cst_6 = arith.constant 0.000000e+00 : f32
    %19 = vector.broadcast %cst_6 : f32 to vector<8x2048xf32>
    %20 = arith.maximumf %18, %19 : vector<8x2048xf32>
    %21 = arith.truncf %20 : vector<8x2048xf32> to vector<8x2048xbf16>
    %c1_i32_7 = arith.constant 1 : i32
    %22 = tpu.memref_slice %arg18[%c1_i32_7] : memref<5x!tpu.dma_semaphore, #tpu.memory_space<semaphore_mem>> -> memref<1x!tpu.dma_semaphore, #tpu.memory_space<semaphore_mem>>
    %23 = tpu.memref_squeeze %22 : memref<1x!tpu.dma_semaphore, #tpu.memory_space<semaphore_mem>> -> memref<!tpu.dma_semaphore, #tpu.memory_space<semaphore_mem>>
    tpu.wait_dma2 semaphore(%23 : memref<!tpu.dma_semaphore, #tpu.memory_space<semaphore_mem>>) src(%arg8 : memref<2048x1024xbf16, #tpu.memory_space<any>>) dst(%arg14 : memref<2048x1024xbf16, #tpu.memory_space<vmem>>)
    %c0_8 = arith.constant 0 : index
    %c0_9 = arith.constant 0 : index
    %24 = vector.load %arg14[%c0_8, %c0_9] : memref<2048x1024xbf16, #tpu.memory_space<vmem>>, vector<2048x1024xbf16>
    %cst_10 = arith.constant dense<0.000000e+00> : vector<8x1024xf32>
    %25 = tpu.matmul %21, %24, %cst_10 {dimension_numbers = #tpu.dot_dimension_numbers<[1], [0], [0], [1], [0, 0, 1, 1], [], []>} : vector<8x2048xbf16>, vector<2048x1024xbf16>, vector<8x1024xf32> -> vector<8x1024xf32>
    %c0_11 = arith.constant 0 : index
    %c0_12 = arith.constant 0 : index
    %26 = vector.load %arg3[%c0_11, %c0_12] : memref<1x1024xf32, #tpu.memory_space<vmem>>, vector<1x1024xf32>
    %27 = vector.broadcast %26 : vector<1x1024xf32> to vector<8x1024xf32>
    %28 = arith.addf %25, %27 : vector<8x1024xf32>
    %cst_13 = arith.constant 0.000000e+00 : f32
    %29 = vector.broadcast %cst_13 : f32 to vector<8x1024xf32>
    %30 = arith.maximumf %28, %29 : vector<8x1024xf32>
    %31 = arith.truncf %30 : vector<8x1024xf32> to vector<8x1024xbf16>
    %c2_i32_14 = arith.constant 2 : i32
    %32 = tpu.memref_slice %arg18[%c2_i32_14] : memref<5x!tpu.dma_semaphore, #tpu.memory_space<semaphore_mem>> -> memref<1x!tpu.dma_semaphore, #tpu.memory_space<semaphore_mem>>
    %33 = tpu.memref_squeeze %32 : memref<1x!tpu.dma_semaphore, #tpu.memory_space<semaphore_mem>> -> memref<!tpu.dma_semaphore, #tpu.memory_space<semaphore_mem>>
    tpu.wait_dma2 semaphore(%33 : memref<!tpu.dma_semaphore, #tpu.memory_space<semaphore_mem>>) src(%arg9 : memref<1024x2048xbf16, #tpu.memory_space<any>>) dst(%arg15 : memref<1024x2048xbf16, #tpu.memory_space<vmem>>)
    %c0_15 = arith.constant 0 : index
    %c0_16 = arith.constant 0 : index
    %34 = vector.load %arg15[%c0_15, %c0_16] : memref<1024x2048xbf16, #tpu.memory_space<vmem>>, vector<1024x2048xbf16>
    %cst_17 = arith.constant dense<0.000000e+00> : vector<8x2048xf32>
    %35 = tpu.matmul %31, %34, %cst_17 {dimension_numbers = #tpu.dot_dimension_numbers<[1], [0], [0], [1], [0, 0, 1, 1], [], []>} : vector<8x1024xbf16>, vector<1024x2048xbf16>, vector<8x2048xf32> -> vector<8x2048xf32>
    %c0_18 = arith.constant 0 : index
    %c0_19 = arith.constant 0 : index
    %36 = vector.load %arg4[%c0_18, %c0_19] : memref<1x2048xf32, #tpu.memory_space<vmem>>, vector<1x2048xf32>
    %37 = vector.broadcast %36 : vector<1x2048xf32> to vector<8x2048xf32>
    %38 = arith.addf %35, %37 : vector<8x2048xf32>
    %cst_20 = arith.constant 0.000000e+00 : f32
    %39 = vector.broadcast %cst_20 : f32 to vector<8x2048xf32>
    %40 = arith.maximumf %38, %39 : vector<8x2048xf32>
    %41 = arith.truncf %40 : vector<8x2048xf32> to vector<8x2048xbf16>
    %c3_i32_21 = arith.constant 3 : i32
    %42 = tpu.memref_slice %arg18[%c3_i32_21] : memref<5x!tpu.dma_semaphore, #tpu.memory_space<semaphore_mem>> -> memref<1x!tpu.dma_semaphore, #tpu.memory_space<semaphore_mem>>
    %43 = tpu.memref_squeeze %42 : memref<1x!tpu.dma_semaphore, #tpu.memory_space<semaphore_mem>> -> memref<!tpu.dma_semaphore, #tpu.memory_space<semaphore_mem>>
    tpu.wait_dma2 semaphore(%43 : memref<!tpu.dma_semaphore, #tpu.memory_space<semaphore_mem>>) src(%arg10 : memref<2048x512xbf16, #tpu.memory_space<any>>) dst(%arg16 : memref<2048x512xbf16, #tpu.memory_space<vmem>>)
    %c0_22 = arith.constant 0 : index
    %c0_23 = arith.constant 0 : index
    %44 = vector.load %arg16[%c0_22, %c0_23] : memref<2048x512xbf16, #tpu.memory_space<vmem>>, vector<2048x512xbf16>
    %cst_24 = arith.constant dense<0.000000e+00> : vector<8x512xf32>
    %45 = tpu.matmul %41, %44, %cst_24 {dimension_numbers = #tpu.dot_dimension_numbers<[1], [0], [0], [1], [0, 0, 1, 1], [], []>} : vector<8x2048xbf16>, vector<2048x512xbf16>, vector<8x512xf32> -> vector<8x512xf32>
    %c0_25 = arith.constant 0 : index
    %c0_26 = arith.constant 0 : index
    %46 = vector.load %arg5[%c0_25, %c0_26] : memref<1x512xf32, #tpu.memory_space<vmem>>, vector<1x512xf32>
    %47 = vector.broadcast %46 : vector<1x512xf32> to vector<8x512xf32>
    %48 = arith.addf %45, %47 : vector<8x512xf32>
    %cst_27 = arith.constant 0.000000e+00 : f32
    %49 = vector.broadcast %cst_27 : f32 to vector<8x512xf32>
    %50 = arith.maximumf %48, %49 : vector<8x512xf32>
    %51 = arith.truncf %50 : vector<8x512xf32> to vector<8x512xbf16>
    %c4_i32_28 = arith.constant 4 : i32
    %52 = tpu.memref_slice %arg18[%c4_i32_28] : memref<5x!tpu.dma_semaphore, #tpu.memory_space<semaphore_mem>> -> memref<1x!tpu.dma_semaphore, #tpu.memory_space<semaphore_mem>>
    %53 = tpu.memref_squeeze %52 : memref<1x!tpu.dma_semaphore, #tpu.memory_space<semaphore_mem>> -> memref<!tpu.dma_semaphore, #tpu.memory_space<semaphore_mem>>
    tpu.wait_dma2 semaphore(%53 : memref<!tpu.dma_semaphore, #tpu.memory_space<semaphore_mem>>) src(%arg11 : memref<512x512xbf16, #tpu.memory_space<any>>) dst(%arg17 : memref<512x512xbf16, #tpu.memory_space<vmem>>)
    %c0_29 = arith.constant 0 : index
    %c0_30 = arith.constant 0 : index
    %54 = vector.load %arg17[%c0_29, %c0_30] : memref<512x512xbf16, #tpu.memory_space<vmem>>, vector<512x512xbf16>
    %cst_31 = arith.constant dense<0.000000e+00> : vector<8x512xf32>
    %55 = tpu.matmul %51, %54, %cst_31 {dimension_numbers = #tpu.dot_dimension_numbers<[1], [0], [0], [1], [0, 0, 1, 1], [], []>} : vector<8x512xbf16>, vector<512x512xbf16>, vector<8x512xf32> -> vector<8x512xf32>
    %c0_32 = arith.constant 0 : index
    %c0_33 = arith.constant 0 : index
    %56 = vector.load %arg6[%c0_32, %c0_33] : memref<1x512xf32, #tpu.memory_space<vmem>>, vector<1x512xf32>
    %57 = vector.broadcast %56 : vector<1x512xf32> to vector<8x512xf32>
    %58 = arith.addf %55, %57 : vector<8x512xf32>
    %59 = arith.mulf %58, %58 : vector<8x512xf32>
    %cst_34 = arith.constant dense<0.000000e+00> : vector<8xf32>
    %60 = vector.multi_reduction <add>, %59, %cst_34 [1] : vector<8x512xf32> to vector<8xf32>
    %61 = vector.shape_cast %60 : vector<8xf32> to vector<8x1xf32>
    %62 = math.sqrt %61 : vector<8x1xf32>
    %cst_35 = arith.constant 9.99999996E-13 : f32
    %63 = vector.broadcast %cst_35 : f32 to vector<8x1xf32>
    %64 = arith.maximumf %62, %63 : vector<8x1xf32>
    %65 = vector.broadcast %64 : vector<8x1xf32> to vector<8x512xf32>
    %66 = arith.divf %58, %65 : vector<8x512xf32>
    %c0_36 = arith.constant 0 : index
    %c0_37 = arith.constant 0 : index
    %67 = vector.load %arg12[%c0_36, %c0_37] : memref<8x512xf32, #tpu.memory_space<vmem>>, vector<8x512xf32>
    tpu.vector_store %arg12[%c0_36, %c0_37], %66 {strides = array<i32>} : memref<8x512xf32, #tpu.memory_space<vmem>>, vector<8x512xf32>,
    return
  }
  func.func @transform_0(%arg0: i32) -> (i32, i32) {
    %c0_i32 = arith.constant 0 : i32
    %c0_i32_0 = arith.constant 0 : i32
    %c0_i32_1 = arith.constant 0 : i32
    return %c0_i32, %c0_i32_0 : i32, i32
  }
  func.func @transform_1(%arg0: i32) -> (i32, i32) {
    %c0_i32 = arith.constant 0 : i32
    %c0_i32_0 = arith.constant 0 : i32
    %c0_i32_1 = arith.constant 0 : i32
    return %c0_i32, %c0_i32_0 : i32, i32
  }
  func.func @transform_2(%arg0: i32) -> (i32, i32) {
    %c0_i32 = arith.constant 0 : i32
    %c0_i32_0 = arith.constant 0 : i32
    %c0_i32_1 = arith.constant 0 : i32
    return %c0_i32, %c0_i32_0 : i32, i32
  }
  func.func @transform_3(%arg0: i32) -> (i32, i32) {
    %c0_i32 = arith.constant 0 : i32
    %c0_i32_0 = arith.constant 0 : i32
    %c0_i32_1 = arith.constant 0 : i32
    return %c0_i32, %c0_i32_0 : i32, i32
  }
  func.func @transform_4(%arg0: i32) -> (i32, i32) {
    %c0_i32 = arith.constant 0 : i32
    %c0_i32_0 = arith.constant 0 : i32
    %c0_i32_1 = arith.constant 0 : i32
    return %c0_i32, %c0_i32_0 : i32, i32
  }
  func.func @transform_5(%arg0: i32) -> (i32, i32) {
    %c0_i32 = arith.constant 0 : i32
    %c0_i32_0 = arith.constant 0 : i32
    %c0_i32_1 = arith.constant 0 : i32
    return %c0_i32, %c0_i32_0 : i32, i32
  }
  func.func @transform_11(%arg0: i32) -> (i32, i32) {
    %c0_i32 = arith.constant 0 : i32
    %c0_i32_0 = arith.constant 0 : i32
    %c0_i32_1 = arith.constant 0 : i32
    return %c0_i32, %c0_i32_0 : i32, i32
  }
}

</mosaic_0001>

<llo_original>
// kernel: sample_cnn_mlp_forward.1
$region0: #{sample_cnn_mlp_forward.1}
  #allocation0 [shape = 'u32[]', space=smem, size = 0x4, offset = 0x4, fixed_abs, tag = 'smem constant byte address 0x4 - core index']
  #allocation1 [shape = 'u32[144,128]{1,0:T(1,128)}', space=vmem, size = 0x12000, scoped, tag = 'internal scratch']
  #allocation2 [shape = 'bf16[128,2048]{1,0:T(16,128)(2,1)}', space=vmem, size = 0x80000, scoped, tag = 'scratch operand']
  #allocation3 [shape = 'bf16[2048,1024]{1,0:T(16,128)(2,1)}', space=vmem, size = 0x400000, scoped, tag = 'scratch operand']
  #allocation4 [shape = 'bf16[1024,2048]{1,0:T(16,128)(2,1)}', space=vmem, size = 0x400000, scoped, tag = 'scratch operand']
  #allocation5 [shape = 'bf16[2048,512]{1,0:T(16,128)(2,1)}', space=vmem, size = 0x200000, scoped, tag = 'scratch operand']
  #allocation6 [shape = 'bf16[512,512]{1,0:T(16,128)(2,1)}', space=vmem, size = 0x80000, scoped, tag = 'scratch operand']
  #allocation7 [shape = 's32[5]{0}', space=sflag, size = 0x14, scoped, tag = 'scratch operand']
  #allocation18 [shape = 's32[]', space=sflag, size = 0x4, offset = 0, fixed_abs, tag = 'sflag constant byte address 0x0 - dummy sync flag']
  #allocation20 [shape = 's32[]', space=sflag, size = 0x4, offset = 0, fixed_abs, tag = 'sflag constant byte address 0x0 - dummy sync flag']
  #allocation22 [shape = 's32[]', space=sflag, size = 0x4, offset = 0, fixed_abs, tag = 'sflag constant byte address 0x0 - dummy sync flag']
  #allocation24 [shape = 's32[]', space=sflag, size = 0x4, offset = 0, fixed_abs, tag = 'sflag constant byte address 0x0 - dummy sync flag']
  #allocation26 [shape = 's32[]', space=sflag, size = 0x4, offset = 0, fixed_abs, tag = 'sflag constant byte address 0x0 - dummy sync flag']
  %s0 = inlined_call_operand.vmem [shape: f32[8,128], index: 0, kind: input, shape index: {}]
  %s1 = inlined_call_operand.hbm [shape: f32[1,2048], index: 1, kind: input, shape index: {}]
  %s2 = inlined_call_operand.hbm [shape: f32[1,1024], index: 2, kind: input, shape index: {}]
  %s3 = inlined_call_operand.hbm [shape: f32[1,2048], index: 3, kind: input, shape index: {}]
  %s4 = inlined_call_operand.hbm [shape: f32[1,512], index: 4, kind: input, shape index: {}]
  %s5 = inlined_call_operand.hbm [shape: f32[1,512], index: 5, kind: input, shape index: {}]
  %s6 = inlined_call_operand.hbm [shape: bf16[128,2048], index: 6, kind: input, shape index: {}]
  %s7 = inlined_call_operand.hbm [shape: bf16[2048,1024], index: 7, kind: input, shape index: {}]
  %s8 = inlined_call_operand.hbm [shape: bf16[1024,2048], index: 8, kind: input, shape index: {}]
  %s9 = inlined_call_operand.hbm [shape: bf16[2048,512], index: 9, kind: input, shape index: {}]
  %s10 = inlined_call_operand.hbm [shape: bf16[512,512], index: 10, kind: input, shape index: {}]
  %s11 = inlined_call_operand.hbm [shape: f32[8,512], index: 11, kind: output, shape index: {}]
  %s12 = sld [smem:[#allocation0]]
  $region54: #{sample_cnn_mlp_forward.1} parent=0
    _
  %s14 = ssub.s32 1, %s12
  %s15 = scalar_select 0, %s14, %s12
  $region1: #{sample_cnn_mlp_forward.1} parent=0
    #allocation8 [shape = 'u8[8192]{0}', space=vmem, size = 0x2000, scoped, tag = 'input window, operand 1, single buffered']
    #allocation9 [shape = 's32[1]{0}', space=sflag, size = 0x4, scoped, tag = 'scoped memory for sample_cnn_mlp_forward.1']
    #allocation10 [shape = 's32[1]{0}', space=sflag, size = 0x4, scoped, tag = 'scoped memory for sample_cnn_mlp_forward.1']
    #allocation11 [shape = 'u8[4096]{0}', space=vmem, size = 0x1000, scoped, tag = 'input window, operand 2, single buffered']
    #allocation12 [shape = 's32[1]{0}', space=sflag, size = 0x4, scoped, tag = 'scoped memory for sample_cnn_mlp_forward.1']
    #allocation13 [shape = 'u8[8192]{0}', space=vmem, size = 0x2000, scoped, tag = 'input window, operand 3, single buffered']
    #allocation14 [shape = 'u8[2048]{0}', space=vmem, size = 0x800, scoped, tag = 'input window, operand 4, single buffered']
    #allocation15 [shape = 's32[1]{0}', space=sflag, size = 0x4, scoped, tag = 'scoped memory for sample_cnn_mlp_forward.1']
    #allocation16 [shape = 'u8[2048]{0}', space=vmem, size = 0x800, scoped, tag = 'input window, operand 5, single buffered']
    #allocation17 [shape = 'u8[16384]{0}', space=vmem, size = 0x4000, scoped, tag = 'output window, operand 0, single buffered']
    #allocation19 [shape = 'u32[9]{0}', space=smem, size = 0x24, scoped, tag = 'DMA stride descriptor']
    #allocation21 [shape = 'u32[9]{0}', space=smem, size = 0x24, scoped, tag = 'DMA stride descriptor']
    #allocation23 [shape = 'u32[9]{0}', space=smem, size = 0x24, scoped, tag = 'DMA stride descriptor']
    #allocation25 [shape = 'u32[9]{0}', space=smem, size = 0x24, scoped, tag = 'DMA stride descriptor']
    #allocation27 [shape = 'u32[9]{0}', space=smem, size = 0x24, scoped, tag = 'DMA stride descriptor']
    %16 = vsyncpa [#allocation9], 0
    %17 = vsyncpa [#allocation12], 0
    %18 = vsyncpa [#allocation15], 0
    %19 = vsyncpa [#allocation10], 0
    // Predicated region
    $region2: #{sample_cnn_mlp_forward.1} parent=1 // pred_check
      _
    $region3: #{sample_cnn_mlp_forward.1} parent=1 // pred_check_branch
      %21 = sbr.rel (0) target = $region5
    $region4: #{sample_cnn_mlp_forward.1} parent=1 // pred_region
      _
    $region5: #{sample_cnn_mlp_forward.1} parent=1 // pred_fallthru
      _
    // Predicated region
    $region6: #{sample_cnn_mlp_forward.1} parent=1 // pred_check
      _
    $region7: #{sample_cnn_mlp_forward.1} parent=1 // pred_check_branch
      %23 = sbr.rel (0) target = $region9
    $region8: #{sample_cnn_mlp_forward.1} parent=1 // pred_region
      %s25 = ssub.s32 256, 256
      %26 = vsyncadd [#allocation9], %s25
      %s28 = sshll.u32 [#allocation8], 4
      %s29 = int_to_ptr.vmem [resolvable:$true] %s28
      %31 = dma.hbm_to_vmem [thread:$0]  %s1, 256, %s29, [#allocation9]
    $region9: #{sample_cnn_mlp_forward.1} parent=1 // pred_fallthru
      _
    // Predicated region
    $region10: #{sample_cnn_mlp_forward.1} parent=1 // pred_check
      _
    $region11: #{sample_cnn_mlp_forward.1} parent=1 // pred_check_branch
      %33 = sbr.rel (0) target = $region13
    $region12: #{sample_cnn_mlp_forward.1} parent=1 // pred_region
      %s35 = ssub.s32 128, 128
      %36 = vsyncadd [#allocation12], %s35
      %s38 = sshll.u32 [#allocation11], 4
      %s39 = int_to_ptr.vmem [resolvable:$true] %s38
      %41 = dma.hbm_to_vmem [thread:$0]  %s2, 128, %s39, [#allocation12]
    $region13: #{sample_cnn_mlp_forward.1} parent=1 // pred_fallthru
      _
    // Predicated region
    $region14: #{sample_cnn_mlp_forward.1} parent=1 // pred_check
      _
    $region15: #{sample_cnn_mlp_forward.1} parent=1 // pred_check_branch
      %43 = sbr.rel (0) target = $region17
    $region16: #{sample_cnn_mlp_forward.1} parent=1 // pred_region
      %s45 = ssub.s32 256, 256
      %46 = vsyncadd [#allocation12], %s45
      %s48 = sshll.u32 [#allocation13], 4
      %s49 = int_to_ptr.vmem [resolvable:$true] %s48
      %51 = dma.hbm_to_vmem [thread:$0]  %s3, 256, %s49, [#allocation12]
    $region17: #{sample_cnn_mlp_forward.1} parent=1 // pred_fallthru
      _
    // Predicated region
    $region18: #{sample_cnn_mlp_forward.1} parent=1 // pred_check
      _
    $region19: #{sample_cnn_mlp_forward.1} parent=1 // pred_check_branch
      %53 = sbr.rel (0) target = $region21
    $region20: #{sample_cnn_mlp_forward.1} parent=1 // pred_region
      %s55 = ssub.s32 64, 64
      %56 = vsyncadd [#allocation15], %s55
      %s58 = sshll.u32 [#allocation14], 4
      %s59 = int_to_ptr.vmem [resolvable:$true] %s58
      %61 = dma.hbm_to_vmem [thread:$0]  %s4, 64, %s59, [#allocation15]
    $region21: #{sample_cnn_mlp_forward.1} parent=1 // pred_fallthru
      _
    // Predicated region
    $region22: #{sample_cnn_mlp_forward.1} parent=1 // pred_check
      _
    $region23: #{sample_cnn_mlp_forward.1} parent=1 // pred_check_branch
      %63 = sbr.rel (0) target = $region25
    $region24: #{sample_cnn_mlp_forward.1} parent=1 // pred_region
      %s65 = ssub.s32 64, 64
      %66 = vsyncadd [#allocation15], %s65
      %s68 = sshll.u32 [#allocation16], 4
      %s69 = int_to_ptr.vmem [resolvable:$true] %s68
      %71 = dma.hbm_to_vmem [thread:$0]  %s5, 64, %s69, [#allocation15]
    $region25: #{sample_cnn_mlp_forward.1} parent=1 // pred_fallthru
      _
    // Predicated region
    $region26: #{sample_cnn_mlp_forward.1} parent=1 // pred_check
      _
    $region27: #{sample_cnn_mlp_forward.1} parent=1 // pred_check_branch
      %73 = sbr.rel (0) target = $region29
    $region28: #{sample_cnn_mlp_forward.1} parent=1 // pred_region
      %74 = dma.done [#allocation9], 256
    $region29: #{sample_cnn_mlp_forward.1} parent=1 // pred_fallthru
      _
    // Predicated region
    $region30: #{sample_cnn_mlp_forward.1} parent=1 // pred_check
      _
    $region31: #{sample_cnn_mlp_forward.1} parent=1 // pred_check_branch
      %76 = sbr.rel (0) target = $region33
    $region32: #{sample_cnn_mlp_forward.1} parent=1 // pred_region
      %77 = dma.done [#allocation12], 128
    $region33: #{sample_cnn_mlp_forward.1} parent=1 // pred_fallthru
      _
    // Predicated region
    $region34: #{sample_cnn_mlp_forward.1} parent=1 // pred_check
      _
    $region35: #{sample_cnn_mlp_forward.1} parent=1 // pred_check_branch
      %79 = sbr.rel (0) target = $region37
    $region36: #{sample_cnn_mlp_forward.1} parent=1 // pred_region
      %80 = dma.done [#allocation12], 256
    $region37: #{sample_cnn_mlp_forward.1} parent=1 // pred_fallthru
      _
    // Predicated region
    $region38: #{sample_cnn_mlp_forward.1} parent=1 // pred_check
      _
    $region39: #{sample_cnn_mlp_forward.1} parent=1 // pred_check_branch
      %82 = sbr.rel (0) target = $region41
    $region40: #{sample_cnn_mlp_forward.1} parent=1 // pred_region
      %83 = dma.done [#allocation15], 64
    $region41: #{sample_cnn_mlp_forward.1} parent=1 // pred_fallthru
      _
    // Predicated region
    $region42: #{sample_cnn_mlp_forward.1} parent=1 // pred_check
      _
    $region43: #{sample_cnn_mlp_forward.1} parent=1 // pred_check_branch
      %85 = sbr.rel (0) target = $region45
    $region44: #{sample_cnn_mlp_forward.1} parent=1 // pred_region
      %86 = dma.done [#allocation15], 64
    $region45: #{sample_cnn_mlp_forward.1} parent=1 // pred_fallthru
      _
    %s89 = sshll.u32 1, 14
    %s90 = sxor.u32 4294967295, %s89
    %s92 = sld [smem:[#allocation0]]
    %s93 = sadd.s32 2, %s92
    %s95 = sshll.u32 7, 26
    %s96 = sxor.u32 4294967295, %s95
    %s97 = sand.u32 0, %s96
    %s98 = sshll.u32 %s93, 26
    %s99 = sor.u32 %s97, %s98
    %s100 = sshll.u32 [#allocation2], 4
    %s101 = int_to_ptr.vmem [resolvable:$true] %s100
    %104 = sst [smem:[#allocation19]] 2048
    %s105 = scalar_lea.smem [#allocation19], 1
    %106 = sst [smem:[%s105]] 2048
    %s107 = scalar_lea.smem [#allocation19], 2
    %108 = sst [smem:[%s107]] 16
    %s109 = scalar_lea.smem [#allocation19], 3
    %110 = sst [smem:[%s109]] 64
    %s111 = scalar_lea.smem [#allocation19], 4
    %112 = sst [smem:[%s111]] 128
    %s113 = scalar_lea.smem [#allocation19], 5
    %114 = sst [smem:[%s113]] 2
    %s115 = scalar_lea.smem [#allocation19], 6
    %116 = sst [smem:[%s115]] 1024
    %s117 = scalar_lea.smem [#allocation19], 7
    %118 = sst [smem:[%s117]] 64
    %s119 = scalar_lea.smem [#allocation19], 8
    %120 = sst [smem:[%s119]] 4
    %122 = dma.general %s6, 16384, %s101, [#allocation7], [#allocation18], [#allocation19], %s99, 0
    %s123 = scalar_lea.sflag [#allocation7], 1
    %s125 = sshll.u32 1, 14
    %s126 = sxor.u32 4294967295, %s125
    %s128 = sadd.s32 2, %s92
    %s130 = sshll.u32 7, 26
    %s131 = sxor.u32 4294967295, %s130
    %s132 = sand.u32 0, %s131
    %s133 = sshll.u32 %s128, 26
    %s134 = sor.u32 %s132, %s133
    %s135 = sshll.u32 [#allocation3], 4
    %s136 = int_to_ptr.vmem [resolvable:$true] %s135
    %139 = sst [smem:[#allocation21]] 1024
    %s140 = scalar_lea.smem [#allocation21], 1
    %141 = sst [smem:[%s140]] 1024
    %s142 = scalar_lea.smem [#allocation21], 2
    %143 = sst [smem:[%s142]] 8
    %s144 = scalar_lea.smem [#allocation21], 3
    %145 = sst [smem:[%s144]] 64
    %s146 = scalar_lea.smem [#allocation21], 4
    %147 = sst [smem:[%s146]] 128
    %s148 = scalar_lea.smem [#allocation21], 5
    %149 = sst [smem:[%s148]] 2
    %s150 = scalar_lea.smem [#allocation21], 6
    %151 = sst [smem:[%s150]] 512
    %s152 = scalar_lea.smem [#allocation21], 7
    %153 = sst [smem:[%s152]] 64
    %s154 = scalar_lea.smem [#allocation21], 8
    %155 = sst [smem:[%s154]] 4
    %157 = dma.general %s7, 131072, %s136, %s123, [#allocation20], [#allocation21], %s134, 0
    %s158 = scalar_lea.sflag [#allocation7], 2
    %s160 = sshll.u32 1, 14
    %s161 = sxor.u32 4294967295, %s160
    %s163 = sadd.s32 2, %s92
    %s165 = sshll.u32 7, 26
    %s166 = sxor.u32 4294967295, %s165
    %s167 = sand.u32 0, %s166
    %s168 = sshll.u32 %s163, 26
    %s169 = sor.u32 %s167, %s168
    %s170 = sshll.u32 [#allocation4], 4
    %s171 = int_to_ptr.vmem [resolvable:$true] %s170
    %174 = sst [smem:[#allocation23]] 2048
    %s175 = scalar_lea.smem [#allocation23], 1
    %176 = sst [smem:[%s175]] 2048
    %s177 = scalar_lea.smem [#allocation23], 2
    %178 = sst [smem:[%s177]] 16
    %s179 = scalar_lea.smem [#allocation23], 3
    %180 = sst [smem:[%s179]] 64
    %s181 = scalar_lea.smem [#allocation23], 4
    %182 = sst [smem:[%s181]] 128
    %s183 = scalar_lea.smem [#allocation23], 5
    %184 = sst [smem:[%s183]] 2
    %s185 = scalar_lea.smem [#allocation23], 6
    %186 = sst [smem:[%s185]] 1024
    %s187 = scalar_lea.smem [#allocation23], 7
    %188 = sst [smem:[%s187]] 64
    %s189 = scalar_lea.smem [#allocation23], 8
    %190 = sst [smem:[%s189]] 4
    %192 = dma.general %s8, 131072, %s171, %s158, [#allocation22], [#allocation23], %s169, 0
    %s193 = scalar_lea.sflag [#allocation7], 3
    %s195 = sshll.u32 1, 14
    %s196 = sxor.u32 4294967295, %s195
    %s198 = sadd.s32 2, %s92
    %s200 = sshll.u32 7, 26
    %s201 = sxor.u32 4294967295, %s200
    %s202 = sand.u32 0, %s201
    %s203 = sshll.u32 %s198, 26
    %s204 = sor.u32 %s202, %s203
    %s205 = sshll.u32 [#allocation5], 4
    %s206 = int_to_ptr.vmem [resolvable:$true] %s205
    %209 = sst [smem:[#allocation25]] 512
    %s210 = scalar_lea.smem [#allocation25], 1
    %211 = sst [smem:[%s210]] 512
    %s212 = scalar_lea.smem [#allocation25], 2
    %213 = sst [smem:[%s212]] 4
    %s214 = scalar_lea.smem [#allocation25], 3
    %215 = sst [smem:[%s214]] 64
    %s216 = scalar_lea.smem [#allocation25], 4
    %217 = sst [smem:[%s216]] 128
    %s218 = scalar_lea.smem [#allocation25], 5
    %219 = sst [smem:[%s218]] 2
    %s220 = scalar_lea.smem [#allocation25], 6
    %221 = sst [smem:[%s220]] 256
    %s222 = scalar_lea.smem [#allocation25], 7
    %223 = sst [smem:[%s222]] 64
    %s224 = scalar_lea.smem [#allocation25], 8
    %225 = sst [smem:[%s224]] 4
    %227 = dma.general %s9, 65536, %s206, %s193, [#allocation24], [#allocation25], %s204, 0
    %s228 = scalar_lea.sflag [#allocation7], 4
    %s230 = sshll.u32 1, 14
    %s231 = sxor.u32 4294967295, %s230
    %s233 = sadd.s32 2, %s92
    %s235 = sshll.u32 7, 26
    %s236 = sxor.u32 4294967295, %s235
    %s237 = sand.u32 0, %s236
    %s238 = sshll.u32 %s233, 26
    %s239 = sor.u32 %s237, %s238
    %s240 = sshll.u32 [#allocation6], 4
    %s241 = int_to_ptr.vmem [resolvable:$true] %s240
    %244 = sst [smem:[#allocation27]] 512
    %s245 = scalar_lea.smem [#allocation27], 1
    %246 = sst [smem:[%s245]] 512
    %s247 = scalar_lea.smem [#allocation27], 2
    %248 = sst [smem:[%s247]] 4
    %s249 = scalar_lea.smem [#allocation27], 3
    %250 = sst [smem:[%s249]] 64
    %s251 = scalar_lea.smem [#allocation27], 4
    %252 = sst [smem:[%s251]] 128
    %s253 = scalar_lea.smem [#allocation27], 5
    %254 = sst [smem:[%s253]] 2
    %s255 = scalar_lea.smem [#allocation27], 6
    %256 = sst [smem:[%s255]] 256
    %s257 = scalar_lea.smem [#allocation27], 7
    %258 = sst [smem:[%s257]] 64
    %s259 = scalar_lea.smem [#allocation27], 8
    %260 = sst [smem:[%s259]] 4
    %262 = dma.general %s10, 16384, %s241, %s228, [#allocation26], [#allocation27], %s239, 0
    %v263 = vld [vmem:[%s0] sm:$0xff]
    %v264 = vpack.c.bf16 %v263, %v263
    %s265 = smul.u32 4, 16
    %s266 = smul.u32 %s265, 16
    %s267 = sshll.u32 %s266, 4
    %268 = dma.done [#allocation7], %s267
    %v269 = vld [vmem:[#allocation2] sm:$0xff]
    %v270 = vld [vmem:[#allocation2 + $0x8] sm:$0xff]
    %v271 = vld [vmem:[#allocation2 + $0x10] sm:$0xff]
    %v272 = vld [vmem:[#allocation2 + $0x18] sm:$0xff]
    %v273 = vld [vmem:[#allocation2 + $0x20] sm:$0xff]
    %v274 = vld [vmem:[#allocation2 + $0x28] sm:$0xff]
    %v275 = vld [vmem:[#allocation2 + $0x30] sm:$0xff]
    %v276 = vld [vmem:[#allocation2 + $0x38] sm:$0xff]
    %v277 = vld [vmem:[#allocation2 + $0x40] sm:$0xff]
    %v278 = vld [vmem:[#allocation2 + $0x48] sm:$0xff]
    %v279 = vld [vmem:[#allocation2 + $0x50] sm:$0xff]
    %v280 = vld [vmem:[#allocation2 + $0x58] sm:$0xff]
    %v281 = vld [vmem:[#allocation2 + $0x60] sm:$0xff]
    %v282 = vld [vmem:[#allocation2 + $0x68] sm:$0xff]
    %v283 = vld [vmem:[#allocation2 + $0x70] sm:$0xff]
    %v284 = vld [vmem:[#allocation2 + $0x78] sm:$0xff]
    %v285 = vld [vmem:[#allocation2 + $0x80] sm:$0xff]
    %v286 = vld [vmem:[#allocation2 + $0x88] sm:$0xff]
    %v287 = vld [vmem:[#allocation2 + $0x90] sm:$0xff]
    %v288 = vld [vmem:[#allocation2 + $0x98] sm:$0xff]
    %v289 = vld [vmem:[#allocation2 + $0xa0] sm:$0xff]
    %v290 = vld [vmem:[#allocation2 + $0xa8] sm:$0xff]
    %v291 = vld [vmem:[#allocation2 + $0xb0] sm:$0xff]
    %v292 = vld [vmem:[#allocation2 + $0xb8] sm:$0xff]
    %v293 = vld [vmem:[#allocation2 + $0xc0] sm:$0xff]
    %v294 = vld [vmem:[#allocation2 + $0xc8] sm:$0xff]
    %v295 = vld [vmem:[#allocation2 + $0xd0] sm:$0xff]
    %v296 = vld [vmem:[#allocation2 + $0xd8] sm:$0xff]
    %v297 = vld [vmem:[#allocation2 + $0xe0] sm:$0xff]
    %v298 = vld [vmem:[#allocation2 + $0xe8] sm:$0xff]
    %v299 = vld [vmem:[#allocation2 + $0xf0] sm:$0xff]
    %v300 = vld [vmem:[#allocation2 + $0xf8] sm:$0xff]
    %v301 = vld [vmem:[#allocation2 + $0x100] sm:$0xff]
    %v302 = vld [vmem:[#allocation2 + $0x108] sm:$0xff]
    %v303 = vld [vmem:[#allocation2 + $0x110] sm:$0xff]
    %v304 = vld [vmem:[#allocation2 + $0x118] sm:$0xff]
    %v305 = vld [vmem:[#allocation2 + $0x120] sm:$0xff]
    %v306 = vld [vmem:[#allocation2 + $0x128] sm:$0xff]
    %v307 = vld [vmem:[#allocation2 + $0x130] sm:$0xff]
    %v308 = vld [vmem:[#allocation2 + $0x138] sm:$0xff]
    %v309 = vld [vmem:[#allocation2 + $0x140] sm:$0xff]
    %v310 = vld [vmem:[#allocation2 + $0x148] sm:$0xff]
    %v311 = vld [vmem:[#allocation2 + $0x150] sm:$0xff]
    %v312 = vld [vmem:[#allocation2 + $0x158] sm:$0xff]
    %v313 = vld [vmem:[#allocation2 + $0x160] sm:$0xff]
    %v314 = vld [vmem:[#allocation2 + $0x168] sm:$0xff]
    %v315 = vld [vmem:[#allocation2 + $0x170] sm:$0xff]
    %v316 = vld [vmem:[#allocation2 + $0x178] sm:$0xff]
    %v317 = vld [vmem:[#allocation2 + $0x180] sm:$0xff]
    %v318 = vld [vmem:[#allocation2 + $0x188] sm:$0xff]
    %v319 = vld [vmem:[#allocation2 + $0x190] sm:$0xff]
    %v320 = vld [vmem:[#allocation2 + $0x198] sm:$0xff]
    %v321 = vld [vmem:[#allocation2 + $0x1a0] sm:$0xff]
    %v322 = vld [vmem:[#allocation2 + $0x1a8] sm:$0xff]
    %v323 = vld [vmem:[#allocation2 + $0x1b0] sm:$0xff]
    %v324 = vld [vmem:[#allocation2 + $0x1b8] sm:$0xff]
    %v325 = vld [vmem:[#allocation2 + $0x1c0] sm:$0xff]
    %v326 = vld [vmem:[#allocation2 + $0x1c8] sm:$0xff]
    %v327 = vld [vmem:[#allocation2 + $0x1d0] sm:$0xff]
    %v328 = vld [vmem:[#allocation2 + $0x1d8] sm:$0xff]
    %v329 = vld [vmem:[#allocation2 + $0x1e0] sm:$0xff]
    %v330 = vld [vmem:[#allocation2 + $0x1e8] sm:$0xff]
    %v331 = vld [vmem:[#allocation2 + $0x1f0] sm:$0xff]
    %v332 = vld [vmem:[#allocation2 + $0x1f8] sm:$0xff]
    %v333 = vld [vmem:[#allocation2 + $0x200] sm:$0xff]
    %v334 = vld [vmem:[#allocation2 + $0x208] sm:$0xff]
    %v335 = vld [vmem:[#allocation2 + $0x210] sm:$0xff]
    %v336 = vld [vmem:[#allocation2 + $0x218] sm:$0xff]
    %v337 = vld [vmem:[#allocation2 + $0x220] sm:$0xff]
    %v338 = vld [vmem:[#allocation2 + $0x228] sm:$0xff]
    %v339 = vld [vmem:[#allocation2 + $0x230] sm:$0xff]
    %v340 = vld [vmem:[#allocation2 + $0x238] sm:$0xff]
    %v341 = vld [vmem:[#allocation2 + $0x240] sm:$0xff]
    %v342 = vld [vmem:[#allocation2 + $0x248] sm:$0xff]
    %v343 = vld [vmem:[#allocation2 + $0x250] sm:$0xff]
    %v344 = vld [vmem:[#allocation2 + $0x258] sm:$0xff]
    %v345 = vld [vmem:[#allocation2 + $0x260] sm:$0xff]
    %v346 = vld [vmem:[#allocation2 + $0x268] sm:$0xff]
    %v347 = vld [vmem:[#allocation2 + $0x270] sm:$0xff]
    %v348 = vld [vmem:[#allocation2 + $0x278] sm:$0xff]
    %v349 = vld [vmem:[#allocation2 + $0x280] sm:$0xff]
    %v350 = vld [vmem:[#allocation2 + $0x288] sm:$0xff]
    %v351 = vld [vmem:[#allocation2 + $0x290] sm:$0xff]
    %v352 = vld [vmem:[#allocation2 + $0x298] sm:$0xff]
    %v353 = vld [vmem:[#allocation2 + $0x2a0] sm:$0xff]
    %v354 = vld [vmem:[#allocation2 + $0x2a8] sm:$0xff]
    %v355 = vld [vmem:[#allocation2 + $0x2b0] sm:$0xff]
    %v356 = vld [vmem:[#allocation2 + $0x2b8] sm:$0xff]
    %v357 = vld [vmem:[#allocation2 + $0x2c0] sm:$0xff]
    %v358 = vld [vmem:[#allocation2 + $0x2c8] sm:$0xff]
    %v359 = vld [vmem:[#allocation2 + $0x2d0] sm:$0xff]
    %v360 = vld [vmem:[#allocation2 + $0x2d8] sm:$0xff]
    %v361 = vld [vmem:[#allocation2 + $0x2e0] sm:$0xff]
    %v362 = vld [vmem:[#allocation2 + $0x2e8] sm:$0xff]
    %v363 = vld [vmem:[#allocation2 + $0x2f0] sm:$0xff]
    %v364 = vld [vmem:[#allocation2 + $0x2f8] sm:$0xff]
    %v365 = vld [vmem:[#allocation2 + $0x300] sm:$0xff]
    %v366 = vld [vmem:[#allocation2 + $0x308] sm:$0xff]
    %v367 = vld [vmem:[#allocation2 + $0x310] sm:$0xff]
    %v368 = vld [vmem:[#allocation2 + $0x318] sm:$0xff]
    %v369 = vld [vmem:[#allocation2 + $0x320] sm:$0xff]
    %v370 = vld [vmem:[#allocation2 + $0x328] sm:$0xff]
    %v371 = vld [vmem:[#allocation2 + $0x330] sm:$0xff]
    %v372 = vld [vmem:[#allocation2 + $0x338] sm:$0xff]
    %v373 = vld [vmem:[#allocation2 + $0x340] sm:$0xff]
    %v374 = vld [vmem:[#allocation2 + $0x348] sm:$0xff]
    %v375 = vld [vmem:[#allocation2 + $0x350] sm:$0xff]
    %v376 = vld [vmem:[#allocation2 + $0x358] sm:$0xff]
    %v377 = vld [vmem:[#allocation2 + $0x360] sm:$0xff]
    %v378 = vld [vmem:[#allocation2 + $0x368] sm:$0xff]
    %v379 = vld [vmem:[#allocation2 + $0x370] sm:$0xff]
    %v380 = vld [vmem:[#allocation2 + $0x378] sm:$0xff]
    %v381 = vld [vmem:[#allocation2 + $0x380] sm:$0xff]
    %v382 = vld [vmem:[#allocation2 + $0x388] sm:$0xff]
    %v383 = vld [vmem:[#allocation2 + $0x390] sm:$0xff]
    %v384 = vld [vmem:[#allocation2 + $0x398] sm:$0xff]
    %v385 = vld [vmem:[#allocation2 + $0x3a0] sm:$0xff]
    %v386 = vld [vmem:[#allocation2 + $0x3a8] sm:$0xff]
    %v387 = vld [vmem:[#allocation2 + $0x3b0] sm:$0xff]
    %v388 = vld [vmem:[#allocation2 + $0x3b8] sm:$0xff]
    %v389 = vld [vmem:[#allocation2 + $0x3c0] sm:$0xff]
    %v390 = vld [vmem:[#allocation2 + $0x3c8] sm:$0xff]
    %v391 = vld [vmem:[#allocation2 + $0x3d0] sm:$0xff]
    %v392 = vld [vmem:[#allocation2 + $0x3d8] sm:$0xff]
    %v393 = vld [vmem:[#allocation2 + $0x3e0] sm:$0xff]
    %v394 = vld [vmem:[#allocation2 + $0x3e8] sm:$0xff]
    %v395 = vld [vmem:[#allocation2 + $0x3f0] sm:$0xff]
    %v396 = vld [vmem:[#allocation2 + $0x3f8] sm:$0xff]
    %v397 = vld [vmem:[#allocation8] sm:$0xff]
    %v398 = vld [vmem:[#allocation8 + $0x8] sm:$0xff]
    %v401 = vlaneseq
    %v402 = vshrl.u32 %v401, 7
    %v403 = vsub.s32 0, %v402
    %v404 = vrot.slane %v397, %v403
    %v405 = vlaneseq
    %v406 = vshrl.u32 %v405, 7
    %v407 = vsub.s32 1, %v406
    %v408 = vrot.slane %v397, %v407
    %v409 = vlaneseq
    %v410 = vshrl.u32 %v409, 7
    %v411 = vsub.s32 2, %v410
    %v412 = vrot.slane %v397, %v411
    %v413 = vlaneseq
    %v414 = vshrl.u32 %v413, 7
    %v415 = vsub.s32 3, %v414
    %v416 = vrot.slane %v397, %v415
    %v417 = vlaneseq
    %v418 = vshrl.u32 %v417, 7
    %v419 = vsub.s32 4, %v418
    %v420 = vrot.slane %v397, %v419
    %v421 = vlaneseq
    %v422 = vshrl.u32 %v421, 7
    %v423 = vsub.s32 5, %v422
    %v424 = vrot.slane %v397, %v423
    %v425 = vlaneseq
    %v426 = vshrl.u32 %v425, 7
    %v427 = vsub.s32 6, %v426
    %v428 = vrot.slane %v397, %v427
    %v429 = vlaneseq
    %v430 = vshrl.u32 %v429, 7
    %v431 = vsub.s32 7, %v430
    %v432 = vrot.slane %v397, %v431
    %v433 = vlaneseq
    %v434 = vshrl.u32 %v433, 7
    %v435 = vsub.s32 0, %v434
    %v436 = vrot.slane %v398, %v435
    %v437 = vlaneseq
    %v438 = vshrl.u32 %v437, 7
    %v439 = vsub.s32 1, %v438
    %v440 = vrot.slane %v398, %v439
    %v441 = vlaneseq
    %v442 = vshrl.u32 %v441, 7
    %v443 = vsub.s32 2, %v442
    %v444 = vrot.slane %v398, %v443
    %v445 = vlaneseq
    %v446 = vshrl.u32 %v445, 7
    %v447 = vsub.s32 3, %v446
    %v448 = vrot.slane %v398, %v447
    %v449 = vlaneseq
    %v450 = vshrl.u32 %v449, 7
    %v451 = vsub.s32 4, %v450
    %v452 = vrot.slane %v398, %v451
    %v453 = vlaneseq
    %v454 = vshrl.u32 %v453, 7
    %v455 = vsub.s32 5, %v454
    %v456 = vrot.slane %v398, %v455
    %v457 = vlaneseq
    %v458 = vshrl.u32 %v457, 7
    %v459 = vsub.s32 6, %v458
    %v460 = vrot.slane %v398, %v459
    %v461 = vlaneseq
    %v462 = vshrl.u32 %v461, 7
    %v463 = vsub.s32 7, %v462
    %v464 = vrot.slane %v398, %v463
    %481 = vmatprep.subr.bf16.mxu0 %v270
    %482 = vmatpush1.bf16.msra.mxu0 %v269
    %483 = vmatprep.subr.bf16.mxu0 %v286
    %484 = vmatpush1.bf16.msra.mxu0 %v285
    %485 = vmatprep.subr.bf16.mxu0 %v302
    %486 = vmatpush1.bf16.msra.mxu0 %v301
    %487 = vmatprep.subr.bf16.mxu0 %v318
    %488 = vmatpush1.bf16.msra.mxu0 %v317
    %489 = vmatprep.subr.bf16.mxu0 %v334
    %490 = vmatpush1.bf16.msra.mxu0 %v333
    %491 = vmatprep.subr.bf16.mxu0 %v350
    %492 = vmatpush1.bf16.msra.mxu0 %v349
    %493 = vmatprep.subr.bf16.mxu0 %v366
    %494 = vmatpush1.bf16.msra.mxu0 %v365
    %495 = vmatprep.subr.bf16.mxu0 %v382
    %496 = vmatpush1.bf16.msra.mxu0 %v381
    %497 = vmatprep.subr.bf16.mxu0 0
    %498 = vmatpush1.bf16.msra.mxu0 0
    %499 = vmatprep.subr.bf16.mxu0 0
    %500 = vmatpush1.bf16.msra.mxu0 0
    %501 = vmatprep.subr.bf16.mxu0 0
    %502 = vmatpush1.bf16.msra.mxu0 0
    %503 = vmatprep.subr.bf16.mxu0 0
    %504 = vmatpush1.bf16.msra.mxu0 0
    %505 = vmatprep.subr.bf16.mxu0 0
    %506 = vmatpush1.bf16.msra.mxu0 0
    %507 = vmatprep.subr.bf16.mxu0 0
    %508 = vmatpush1.bf16.msra.mxu0 0
    %509 = vmatprep.subr.bf16.mxu0 0
    %510 = vmatpush1.bf16.msra.mxu0 0
    %511 = vmatprep.subr.bf16.mxu0 0
    %512 = vmatpush1.bf16.msra.mxu0 0
    %513 = vmatprep.mubr.bf16.mxu0 0
    %514 = vmatmul.mubr.bf16.gmra.mrb[0].mxu0 %v264
    %v515 = vpop.f32.mrb[0].mxu0
    %v516 = vadd.f32 %v404, %v515
    %v517 = vpop.f32.mrb[0].mxu0
    %v518 = vadd.f32 %v408, %v517
    %v519 = vpop.f32.mrb[0].mxu0
    %v520 = vpop.f32.mrb[0].mxu0
    %521 = vdwg.mxu0
    %522 = vmatprep.subr.bf16.mxu0 %v272
    %523 = vmatpush1.bf16.msra.mxu0 %v271
    %524 = vmatprep.subr.bf16.mxu0 %v288
    %525 = vmatpush1.bf16.msra.mxu0 %v287
    %526 = vmatprep.subr.bf16.mxu0 %v304
    %527 = vmatpush1.bf16.msra.mxu0 %v303
    %528 = vmatprep.subr.bf16.mxu0 %v320
    %529 = vmatpush1.bf16.msra.mxu0 %v319
    %530 = vmatprep.subr.bf16.mxu0 %v336
    %531 = vmatpush1.bf16.msra.mxu0 %v335
    %532 = vmatprep.subr.bf16.mxu0 %v352
    %533 = vmatpush1.bf16.msra.mxu0 %v351
    %534 = vmatprep.subr.bf16.mxu0 %v368
    %535 = vmatpush1.bf16.msra.mxu0 %v367
    %536 = vmatprep.subr.bf16.mxu0 %v384
    %537 = vmatpush1.bf16.msra.mxu0 %v383
    %538 = vmatprep.subr.bf16.mxu0 0
    %539 = vmatpush1.bf16.msra.mxu0 0
    %540 = vmatprep.subr.bf16.mxu0 0
    %541 = vmatpush1.bf16.msra.mxu0 0
    %542 = vmatprep.subr.bf16.mxu0 0
    %543 = vmatpush1.bf16.msra.mxu0 0
    %544 = vmatprep.subr.bf16.mxu0 0
    %545 = vmatpush1.bf16.msra.mxu0 0
    %546 = vmatprep.subr.bf16.mxu0 0
    %547 = vmatpush1.bf16.msra.mxu0 0
    %548 = vmatprep.subr.bf16.mxu0 0
    %549 = vmatpush1.bf16.msra.mxu0 0
    %550 = vmatprep.subr.bf16.mxu0 0
    %551 = vmatpush1.bf16.msra.mxu0 0
    %552 = vmatprep.subr.bf16.mxu0 0
    %553 = vmatpush1.bf16.msra.mxu0 0
    %554 = vmatprep.mubr.bf16.mxu0 0
    %555 = vmatmul.mubr.bf16.gmra.mrb[0].mxu0 %v264
    %v556 = vpop.f32.mrb[0].mxu0
    %v557 = vadd.f32 %v412, %v556
    %v558 = vpop.f32.mrb[0].mxu0
    %v559 = vadd.f32 %v416, %v558
    %v560 = vpop.f32.mrb[0].mxu0
    %v561 = vpop.f32.mrb[0].mxu0
    %562 = vdwg.mxu0
    %563 = vmatprep.subr.bf16.mxu0 %v274
    %564 = vmatpush1.bf16.msra.mxu0 %v273
    %565 = vmatprep.subr.bf16.mxu0 %v290
    %566 = vmatpush1.bf16.msra.mxu0 %v289
    %567 = vmatprep.subr.bf16.mxu0 %v306
    %568 = vmatpush1.bf16.msra.mxu0 %v305
    %569 = vmatprep.subr.bf16.mxu0 %v322
    %570 = vmatpush1.bf16.msra.mxu0 %v321
    %571 = vmatprep.subr.bf16.mxu0 %v338
    %572 = vmatpush1.bf16.msra.mxu0 %v337
    %573 = vmatprep.subr.bf16.mxu0 %v354
    %574 = vmatpush1.bf16.msra.mxu0 %v353
    %575 = vmatprep.subr.bf16.mxu0 %v370
    %576 = vmatpush1.bf16.msra.mxu0 %v369
    %577 = vmatprep.subr.bf16.mxu0 %v386
    %578 = vmatpush1.bf16.msra.mxu0 %v385
    %579 = vmatprep.subr.bf16.mxu0 0
    %580 = vmatpush1.bf16.msra.mxu0 0
    %581 = vmatprep.subr.bf16.mxu0 0
    %582 = vmatpush1.bf16.msra.mxu0 0
    %583 = vmatprep.subr.bf16.mxu0 0
    %584 = vmatpush1.bf16.msra.mxu0 0
    %585 = vmatprep.subr.bf16.mxu0 0
    %586 = vmatpush1.bf16.msra.mxu0 0
    %587 = vmatprep.subr.bf16.mxu0 0
    %588 = vmatpush1.bf16.msra.mxu0 0
    %589 = vmatprep.subr.bf16.mxu0 0
    %590 = vmatpush1.bf16.msra.mxu0 0
    %591 = vmatprep.subr.bf16.mxu0 0
    %592 = vmatpush1.bf16.msra.mxu0 0
    %593 = vmatprep.subr.bf16.mxu0 0
    %594 = vmatpush1.bf16.msra.mxu0 0
    %595 = vmatprep.mubr.bf16.mxu0 0
    %596 = vmatmul.mubr.bf16.gmra.mrb[0].mxu0 %v264
    %v597 = vpop.f32.mrb[0].mxu0
    %v598 = vadd.f32 %v420, %v597
    %v599 = vpop.f32.mrb[0].mxu0
    %v600 = vadd.f32 %v424, %v599
    %v601 = vpop.f32.mrb[0].mxu0
    %v602 = vpop.f32.mrb[0].mxu0
    %603 = vdwg.mxu0
    %604 = vmatprep.subr.bf16.mxu0 %v276
    %605 = vmatpush1.bf16.msra.mxu0 %v275
    %606 = vmatprep.subr.bf16.mxu0 %v292
    %607 = vmatpush1.bf16.msra.mxu0 %v291
    %608 = vmatprep.subr.bf16.mxu0 %v308
    %609 = vmatpush1.bf16.msra.mxu0 %v307
    %610 = vmatprep.subr.bf16.mxu0 %v324
    %611 = vmatpush1.bf16.msra.mxu0 %v323
    %612 = vmatprep.subr.bf16.mxu0 %v340
    %613 = vmatpush1.bf16.msra.mxu0 %v339
    %614 = vmatprep.subr.bf16.mxu0 %v356
    %615 = vmatpush1.bf16.msra.mxu0 %v355
    %616 = vmatprep.subr.bf16.mxu0 %v372
    %617 = vmatpush1.bf16.msra.mxu0 %v371
    %618 = vmatprep.subr.bf16.mxu0 %v388
    %619 = vmatpush1.bf16.msra.mxu0 %v387
    %620 = vmatprep.subr.bf16.mxu0 0
    %621 = vmatpush1.bf16.msra.mxu0 0
    %622 = vmatprep.subr.bf16.mxu0 0
    %623 = vmatpush1.bf16.msra.mxu0 0
    %624 = vmatprep.subr.bf16.mxu0 0
    %625 = vmatpush1.bf16.msra.mxu0 0
    %626 = vmatprep.subr.bf16.mxu0 0
    %627 = vmatpush1.bf16.msra.mxu0 0
    %628 = vmatprep.subr.bf16.mxu0 0
    %629 = vmatpush1.bf16.msra.mxu0 0
    %630 = vmatprep.subr.bf16.mxu0 0
    %631 = vmatpush1.bf16.msra.mxu0 0
    %632 = vmatprep.subr.bf16.mxu0 0
    %633 = vmatpush1.bf16.msra.mxu0 0
    %634 = vmatprep.subr.bf16.mxu0 0
    %635 = vmatpush1.bf16.msra.mxu0 0
    %636 = vmatprep.mubr.bf16.mxu0 0
    %637 = vmatmul.mubr.bf16.gmra.mrb[0].mxu0 %v264
    %v638 = vpop.f32.mrb[0].mxu0
    %v639 = vadd.f32 %v428, %v638
    %v640 = vpop.f32.mrb[0].mxu0
    %v641 = vadd.f32 %v432, %v640
    %v642 = vpop.f32.mrb[0].mxu0
    %v643 = vpop.f32.mrb[0].mxu0
    %644 = vdwg.mxu0
    %645 = vmatprep.subr.bf16.mxu0 %v278
    %646 = vmatpush1.bf16.msra.mxu0 %v277
    %647 = vmatprep.subr.bf16.mxu0 %v294
    %648 = vmatpush1.bf16.msra.mxu0 %v293
    %649 = vmatprep.subr.bf16.mxu0 %v310
    %650 = vmatpush1.bf16.msra.mxu0 %v309
    %651 = vmatprep.subr.bf16.mxu0 %v326
    %652 = vmatpush1.bf16.msra.mxu0 %v325
    %653 = vmatprep.subr.bf16.mxu0 %v342
    %654 = vmatpush1.bf16.msra.mxu0 %v341
    %655 = vmatprep.subr.bf16.mxu0 %v358
    %656 = vmatpush1.bf16.msra.mxu0 %v357
    %657 = vmatprep.subr.bf16.mxu0 %v374
    %658 = vmatpush1.bf16.msra.mxu0 %v373
    %659 = vmatprep.subr.bf16.mxu0 %v390
    %660 = vmatpush1.bf16.msra.mxu0 %v389
    %661 = vmatprep.subr.bf16.mxu0 0
    %662 = vmatpush1.bf16.msra.mxu0 0
    %663 = vmatprep.subr.bf16.mxu0 0
    %664 = vmatpush1.bf16.msra.mxu0 0
    %665 = vmatprep.subr.bf16.mxu0 0
    %666 = vmatpush1.bf16.msra.mxu0 0
    %667 = vmatprep.subr.bf16.mxu0 0
    %668 = vmatpush1.bf16.msra.mxu0 0
    %669 = vmatprep.subr.bf16.mxu0 0
    %670 = vmatpush1.bf16.msra.mxu0 0
    %671 = vmatprep.subr.bf16.mxu0 0
    %672 = vmatpush1.bf16.msra.mxu0 0
    %673 = vmatprep.subr.bf16.mxu0 0
    %674 = vmatpush1.bf16.msra.mxu0 0
    %675 = vmatprep.subr.bf16.mxu0 0
    %676 = vmatpush1.bf16.msra.mxu0 0
    %677 = vmatprep.mubr.bf16.mxu0 0
    %678 = vmatmul.mubr.bf16.gmra.mrb[0].mxu0 %v264
    %v679 = vpop.f32.mrb[0].mxu0
    %v680 = vadd.f32 %v436, %v679
    %v681 = vpop.f32.mrb[0].mxu0
    %v682 = vadd.f32 %v440, %v681
    %v683 = vpop.f32.mrb[0].mxu0
    %v684 = vpop.f32.mrb[0].mxu0
    %685 = vdwg.mxu0
    %686 = vmatprep.subr.bf16.mxu0 %v280
    %687 = vmatpush1.bf16.msra.mxu0 %v279
    %688 = vmatprep.subr.bf16.mxu0 %v296
    %689 = vmatpush1.bf16.msra.mxu0 %v295
    %690 = vmatprep.subr.bf16.mxu0 %v312
    %691 = vmatpush1.bf16.msra.mxu0 %v311
    %692 = vmatprep.subr.bf16.mxu0 %v328
    %693 = vmatpush1.bf16.msra.mxu0 %v327
    %694 = vmatprep.subr.bf16.mxu0 %v344
    %695 = vmatpush1.bf16.msra.mxu0 %v343
    %696 = vmatprep.subr.bf16.mxu0 %v360
    %697 = vmatpush1.bf16.msra.mxu0 %v359
    %698 = vmatprep.subr.bf16.mxu0 %v376
    %699 = vmatpush1.bf16.msra.mxu0 %v375
    %700 = vmatprep.subr.bf16.mxu0 %v392
    %701 = vmatpush1.bf16.msra.mxu0 %v391
    %702 = vmatprep.subr.bf16.mxu0 0
    %703 = vmatpush1.bf16.msra.mxu0 0
    %704 = vmatprep.subr.bf16.mxu0 0
    %705 = vmatpush1.bf16.msra.mxu0 0
    %706 = vmatprep.subr.bf16.mxu0 0
    %707 = vmatpush1.bf16.msra.mxu0 0
    %708 = vmatprep.subr.bf16.mxu0 0
    %709 = vmatpush1.bf16.msra.mxu0 0
    %710 = vmatprep.subr.bf16.mxu0 0
    %711 = vmatpush1.bf16.msra.mxu0 0
    %712 = vmatprep.subr.bf16.mxu0 0
    %713 = vmatpush1.bf16.msra.mxu0 0
    %714 = vmatprep.subr.bf16.mxu0 0
    %715 = vmatpush1.bf16.msra.mxu0 0
    %716 = vmatprep.subr.bf16.mxu0 0
    %717 = vmatpush1.bf16.msra.mxu0 0
    %718 = vmatprep.mubr.bf16.mxu0 0
    %719 = vmatmul.mubr.bf16.gmra.mrb[0].mxu0 %v264
    %v720 = vpop.f32.mrb[0].mxu0
    %v721 = vadd.f32 %v444, %v720
    %v722 = vpop.f32.mrb[0].mxu0
    %v723 = vadd.f32 %v448, %v722
    %v724 = vpop.f32.mrb[0].mxu0
    %v725 = vpop.f32.mrb[0].mxu0
    %726 = vdwg.mxu0
    %727 = vmatprep.subr.bf16.mxu0 %v282
    %728 = vmatpush1.bf16.msra.mxu0 %v281
    %729 = vmatprep.subr.bf16.mxu0 %v298
    %730 = vmatpush1.bf16.msra.mxu0 %v297
    %731 = vmatprep.subr.bf16.mxu0 %v314
    %732 = vmatpush1.bf16.msra.mxu0 %v313
    %733 = vmatprep.subr.bf16.mxu0 %v330
    %734 = vmatpush1.bf16.msra.mxu0 %v329
    %735 = vmatprep.subr.bf16.mxu0 %v346
    %736 = vmatpush1.bf16.msra.mxu0 %v345
    %737 = vmatprep.subr.bf16.mxu0 %v362
    %738 = vmatpush1.bf16.msra.mxu0 %v361
    %739 = vmatprep.subr.bf16.mxu0 %v378
    %740 = vmatpush1.bf16.msra.mxu0 %v377
    %741 = vmatprep.subr.bf16.mxu0 %v394
    %742 = vmatpush1.bf16.msra.mxu0 %v393
    %743 = vmatprep.subr.bf16.mxu0 0
    %744 = vmatpush1.bf16.msra.mxu0 0
    %745 = vmatprep.subr.bf16.mxu0 0
    %746 = vmatpush1.bf16.msra.mxu0 0
    %747 = vmatprep.subr.bf16.mxu0 0
    %748 = vmatpush1.bf16.msra.mxu0 0
    %749 = vmatprep.subr.bf16.mxu0 0
    %750 = vmatpush1.bf16.msra.mxu0 0
    %751 = vmatprep.subr.bf16.mxu0 0
    %752 = vmatpush1.bf16.msra.mxu0 0
    %753 = vmatprep.subr.bf16.mxu0 0
    %754 = vmatpush1.bf16.msra.mxu0 0
    %755 = vmatprep.subr.bf16.mxu0 0
    %756 = vmatpush1.bf16.msra.mxu0 0
    %757 = vmatprep.subr.bf16.mxu0 0
    %758 = vmatpush1.bf16.msra.mxu0 0
    %759 = vmatprep.mubr.bf16.mxu0 0
    %760 = vmatmul.mubr.bf16.gmra.mrb[0].mxu0 %v264
    %v761 = vpop.f32.mrb[0].mxu0
    %v762 = vadd.f32 %v452, %v761
    %v763 = vpop.f32.mrb[0].mxu0
    %v764 = vadd.f32 %v456, %v763
    %v765 = vpop.f32.mrb[0].mxu0
    %v766 = vpop.f32.mrb[0].mxu0
    %767 = vdwg.mxu0
    %768 = vmatprep.subr.bf16.mxu0 %v284
    %769 = vmatpush1.bf16.msra.mxu0 %v283
    %770 = vmatprep.subr.bf16.mxu0 %v300
    %771 = vmatpush1.bf16.msra.mxu0 %v299
    %772 = vmatprep.subr.bf16.mxu0 %v316
    %773 = vmatpush1.bf16.msra.mxu0 %v315
    %774 = vmatprep.subr.bf16.mxu0 %v332
    %775 = vmatpush1.bf16.msra.mxu0 %v331
    %776 = vmatprep.subr.bf16.mxu0 %v348
    %777 = vmatpush1.bf16.msra.mxu0 %v347
    %778 = vmatprep.subr.bf16.mxu0 %v364
    %779 = vmatpush1.bf16.msra.mxu0 %v363
    %780 = vmatprep.subr.bf16.mxu0 %v380
    %781 = vmatpush1.bf16.msra.mxu0 %v379
    %782 = vmatprep.subr.bf16.mxu0 %v396
    %783 = vmatpush1.bf16.msra.mxu0 %v395
    %784 = vmatprep.subr.bf16.mxu0 0
    %785 = vmatpush1.bf16.msra.mxu0 0
    %786 = vmatprep.subr.bf16.mxu0 0
    %787 = vmatpush1.bf16.msra.mxu0 0
    %788 = vmatprep.subr.bf16.mxu0 0
    %789 = vmatpush1.bf16.msra.mxu0 0
    %790 = vmatprep.subr.bf16.mxu0 0
    %791 = vmatpush1.bf16.msra.mxu0 0
    %792 = vmatprep.subr.bf16.mxu0 0
    %793 = vmatpush1.bf16.msra.mxu0 0
    %794 = vmatprep.subr.bf16.mxu0 0
    %795 = vmatpush1.bf16.msra.mxu0 0
    %796 = vmatprep.subr.bf16.mxu0 0
    %797 = vmatpush1.bf16.msra.mxu0 0
    %798 = vmatprep.subr.bf16.mxu0 0
    %799 = vmatpush1.bf16.msra.mxu0 0
    %800 = vmatprep.mubr.bf16.mxu0 0
    %801 = vmatmul.mubr.bf16.gmra.mrb[0].mxu0 %v264
    %v802 = vpop.f32.mrb[0].mxu0
    %v803 = vadd.f32 %v460, %v802
    %v804 = vpop.f32.mrb[0].mxu0
    %v805 = vadd.f32 %v464, %v804
    %v806 = vpop.f32.mrb[0].mxu0
    %v807 = vpop.f32.mrb[0].mxu0
    %808 = vdwg.mxu0
    %v809 = vmax.f32 %v516, 0.0
    %v810 = vmax.f32 %v518, 0.0
    %v811 = vmax.f32 %v557, 0.0
    %v812 = vmax.f32 %v559, 0.0
    %v813 = vmax.f32 %v598, 0.0
    %v814 = vmax.f32 %v600, 0.0
    %v815 = vmax.f32 %v639, 0.0
    %v816 = vmax.f32 %v641, 0.0
    %v817 = vmax.f32 %v680, 0.0
    %v818 = vmax.f32 %v682, 0.0
    %v819 = vmax.f32 %v721, 0.0
    %v820 = vmax.f32 %v723, 0.0
    %v821 = vmax.f32 %v762, 0.0
    %v822 = vmax.f32 %v764, 0.0
    %v823 = vmax.f32 %v803, 0.0
    %v824 = vmax.f32 %v805, 0.0
    %v825 = vpack.c.bf16 %v809, %v809
    %v826 = vpack.c.bf16 %v810, %v810
    %v827 = vpack.c.bf16 %v811, %v811
    %v828 = vpack.c.bf16 %v812, %v812
    %v829 = vpack.c.bf16 %v813, %v813
    %v830 = vpack.c.bf16 %v814, %v814
    %v831 = vpack.c.bf16 %v815, %v815
    %v832 = vpack.c.bf16 %v816, %v816
    %v833 = vpack.c.bf16 %v817, %v817
    %v834 = vpack.c.bf16 %v818, %v818
    %v835 = vpack.c.bf16 %v819, %v819
    %v836 = vpack.c.bf16 %v820, %v820
    %v837 = vpack.c.bf16 %v821, %v821
    %v838 = vpack.c.bf16 %v822, %v822
    %v839 = vpack.c.bf16 %v823, %v823
    %v840 = vpack.c.bf16 %v824, %v824
    %s841 = smul.u32 4, 256
    %s842 = smul.u32 %s841, 8
    %s843 = sshll.u32 %s842, 4
    %844 = dma.done %s123, %s843
    %v845 = vld [vmem:[#allocation3] sm:$0xff]
    %v846 = vld [vmem:[#allocation3 + $0x8] sm:$0xff]
    %v847 = vld [vmem:[#allocation3 + $0x10] sm:$0xff]
    %v848 = vld [vmem:[#allocation3 + $0x18] sm:$0xff]
    %v849 = vld [vmem:[#allocation3 + $0x20] sm:$0xff]
    %v850 = vld [vmem:[#allocation3 + $0x28] sm:$0xff]
    %v851 = vld [vmem:[#allocation3 + $0x30] sm:$0xff]
    %v852 = vld [vmem:[#allocation3 + $0x38] sm:$0xff]
    %v853 = vld [vmem:[#allocation3 + $0x40] sm:$0xff]
    %v854 = vld [vmem:[#allocation3 + $0x48] sm:$0xff]
    %v855 = vld [vmem:[#allocation3 + $0x50] sm:$0xff]
    %v856 = vld [vmem:[#allocation3 + $0x58] sm:$0xff]
    %v857 = vld [vmem:[#allocation3 + $0x60] sm:$0xff]
    %v858 = vld [vmem:[#allocation3 + $0x68] sm:$0xff]
    %v859 = vld [vmem:[#allocation3 + $0x70] sm:$0xff]
    %v860 = vld [vmem:[#allocation3 + $0x78] sm:$0xff]
    %v861 = vld [vmem:[#allocation3 + $0x80] sm:$0xff]
    %v862 = vld [vmem:[#allocation3 + $0x88] sm:$0xff]
    %v863 = vld [vmem:[#allocation3 + $0x90] sm:$0xff]
    %v864 = vld [vmem:[#allocation3 + $0x98] sm:$0xff]
    %v865 = vld [vmem:[#allocation3 + $0xa0] sm:$0xff]
    %v866 = vld [vmem:[#allocation3 + $0xa8] sm:$0xff]
    %v867 = vld [vmem:[#allocation3 + $0xb0] sm:$0xff]
    %v868 = vld [vmem:[#allocation3 + $0xb8] sm:$0xff]
    %v869 = vld [vmem:[#allocation3 + $0xc0] sm:$0xff]
    %v870 = vld [vmem:[#allocation3 + $0xc8] sm:$0xff]
    %v871 = vld [vmem:[#allocation3 + $0xd0] sm:$0xff]
    %v872 = vld [vmem:[#allocation3 + $0xd8] sm:$0xff]
    %v873 = vld [vmem:[#allocation3 + $0xe0] sm:$0xff]
    %v874 = vld [vmem:[#allocation3 + $0xe8] sm:$0xff]
    %v875 = vld [vmem:[#allocation3 + $0xf0] sm:$0xff]
    %v876 = vld [vmem:[#allocation3 + $0xf8] sm:$0xff]
    %v877 = vld [vmem:[#allocation3 + $0x100] sm:$0xff]
    %v878 = vld [vmem:[#allocation3 + $0x108] sm:$0xff]
    %v879 = vld [vmem:[#allocation3 + $0x110] sm:$0xff]
    %v880 = vld [vmem:[#allocation3 + $0x118] sm:$0xff]
    %v881 = vld [vmem:[#allocation3 + $0x120] sm:$0xff]
    %v882 = vld [vmem:[#allocation3 + $0x128] sm:$0xff]
    %v883 = vld [vmem:[#allocation3 + $0x130] sm:$0xff]
    %v884 = vld [vmem:[#allocation3 + $0x138] sm:$0xff]
    %v885 = vld [vmem:[#allocation3 + $0x140] sm:$0xff]
    %v886 = vld [vmem:[#allocation3 + $0x148] sm:$0xff]
    %v887 = vld [vmem:[#allocation3 + $0x150] sm:$0xff]
    %v888 = vld [vmem:[#allocation3 + $0x158] sm:$0xff]
    %v889 = vld [vmem:[#allocation3 + $0x160] sm:$0xff]
    %v890 = vld [vmem:[#allocation3 + $0x168] sm:$0xff]
    %v891 = vld [vmem:[#allocation3 + $0x170] sm:$0xff]
    %v892 = vld [vmem:[#allocation3 + $0x178] sm:$0xff]
    %v893 = vld [vmem:[#allocation3 + $0x180] sm:$0xff]
    %v894 = vld [vmem:[#allocation3 + $0x188] sm:$0xff]
    %v895 = vld [vmem:[#allocation3 + $0x190] sm:$0xff]
    %v896 = vld [vmem:[#allocation3 + $0x198] sm:$0xff]
    %v897 = vld [vmem:[#allocation3 + $0x1a0] sm:$0xff]
    %v898 = vld [vmem:[#allocation3 + $0x1a8] sm:$0xff]
    %v899 = vld [vmem:[#allocation3 + $0x1b0] sm:$0xff]
    %v900 = vld [vmem:[#allocation3 + $0x1b8] sm:$0xff]
    %v901 = vld [vmem:[#allocation3 + $0x1c0] sm:$0xff]
    %v902 = vld [vmem:[#allocation3 + $0x1c8] sm:$0xff]
    %v903 = vld [vmem:[#allocation3 + $0x1d0] sm:$0xff]
    %v904 = vld [vmem:[#allocation3 + $0x1d8] sm:$0xff]
    %v905 = vld [vmem:[#allocation3 + $0x1e0] sm:$0xff]
    %v906 = vld [vmem:[#allocation3 + $0x1e8] sm:$0xff]
    %v907 = vld [vmem:[#allocation3 + $0x1f0] sm:$0xff]
    %v908 = vld [vmem:[#allocation3 + $0x1f8] sm:$0xff]
    %v909 = vld [vmem:[#allocation3 + $0x200] sm:$0xff]
    %v910 = vld [vmem:[#allocation3 + $0x208] sm:$0xff]
    %v911 = vld [vmem:[#allocation3 + $0x210] sm:$0xff]
    %v912 = vld [vmem:[#allocation3 + $0x218] sm:$0xff]
    %v913 = vld [vmem:[#allocation3 + $0x220] sm:$0xff]
    %v914 = vld [vmem:[#allocation3 + $0x228] sm:$0xff]
    %v915 = vld [vmem:[#allocation3 + $0x230] sm:$0xff]
    %v916 = vld [vmem:[#allocation3 + $0x238] sm:$0xff]
    %v917 = vld [vmem:[#allocation3 + $0x240] sm:$0xff]
    %v918 = vld [vmem:[#allocation3 + $0x248] sm:$0xff]
    %v919 = vld [vmem:[#allocation3 + $0x250] sm:$0xff]
    %v920 = vld [vmem:[#allocation3 + $0x258] sm:$0xff]
    %v921 = vld [vmem:[#allocation3 + $0x260] sm:$0xff]
    %v922 = vld [vmem:[#allocation3 + $0x268] sm:$0xff]
    %v923 = vld [vmem:[#allocation3 + $0x270] sm:$0xff]
    %v924 = vld [vmem:[#allocation3 + $0x278] sm:$0xff]
    %v925 = vld [vmem:[#allocation3 + $0x280] sm:$0xff]
    %v926 = vld [vmem:[#allocation3 + $0x288] sm:$0xff]
    %v927 = vld [vmem:[#allocation3 + $0x290] sm:$0xff]
    %v928 = vld [vmem:[#allocation3 + $0x298] sm:$0xff]
    %v929 = vld [vmem:[#allocation3 + $0x2a0] sm:$0xff]
    %v930 = vld [vmem:[#allocation3 + $0x2a8] sm:$0xff]
    %v931 = vld [vmem:[#allocation3 + $0x2b0] sm:$0xff]
    %v932 = vld [vmem:[#allocation3 + $0x2b8] sm:$0xff]
    %v933 = vld [vmem:[#allocation3 + $0x2c0] sm:$0xff]
    %v934 = vld [vmem:[#allocation3 + $0x2c8] sm:$0xff]
    %v935 = vld [vmem:[#allocation3 + $0x2d0] sm:$0xff]
    %v936 = vld [vmem:[#allocation3 + $0x2d8] sm:$0xff]
    %v937 = vld [vmem:[#allocation3 + $0x2e0] sm:$0xff]
    %v938 = vld [vmem:[#allocation3 + $0x2e8] sm:$0xff]
    %v939 = vld [vmem:[#allocation3 + $0x2f0] sm:$0xff]
    %v940 = vld [vmem:[#allocation3 + $0x2f8] sm:$0xff]
    %v941 = vld [vmem:[#allocation3 + $0x300] sm:$0xff]
    %v942 = vld [vmem:[#allocation3 + $0x308] sm:$0xff]
    %v943 = vld [vmem:[#allocation3 + $0x310] sm:$0xff]
    %v944 = vld [vmem:[#allocation3 + $0x318] sm:$0xff]
    %v945 = vld [vmem:[#allocation3 + $0x320] sm:$0xff]
    %v946 = vld [vmem:[#allocation3 + $0x328] sm:$0xff]
    %v947 = vld [vmem:[#allocation3 + $0x330] sm:$0xff]
    %v948 = vld [vmem:[#allocation3 + $0x338] sm:$0xff]
    %v949 = vld [vmem:[#allocation3 + $0x340] sm:$0xff]
    %v950 = vld [vmem:[#allocation3 + $0x348] sm:$0xff]
    %v951 = vld [vmem:[#allocation3 + $0x350] sm:$0xff]
    %v952 = vld [vmem:[#allocation3 + $0x358] sm:$0xff]
    %v953 = vld [vmem:[#allocation3 + $0x360] sm:$0xff]
    %v954 = vld [vmem:[#allocation3 + $0x368] sm:$0xff]
    %v955 = vld [vmem:[#allocation3 + $0x370] sm:$0xff]
    %v956 = vld [vmem:[#allocation3 + $0x378] sm:$0xff]
    %v957 = vld [vmem:[#allocation3 + $0x380] sm:$0xff]
    %v958 = vld [vmem:[#allocation3 + $0x388] sm:$0xff]
    %v959 = vld [vmem:[#allocation3 + $0x390] sm:$0xff]
    %v960 = vld [vmem:[#allocation3 + $0x398] sm:$0xff]
    %v961 = vld [vmem:[#allocation3 + $0x3a0] sm:$0xff]
    %v962 = vld [vmem:[#allocation3 + $0x3a8] sm:$0xff]
    %v963 = vld [vmem:[#allocation3 + $0x3b0] sm:$0xff]
    %v964 = vld [vmem:[#allocation3 + $0x3b8] sm:$0xff]
    %v965 = vld [vmem:[#allocation3 + $0x3c0] sm:$0xff]
    %v966 = vld [vmem:[#allocation3 + $0x3c8] sm:$0xff]
    %v967 = vld [vmem:[#allocation3 + $0x3d0] sm:$0xff]
    %v968 = vld [vmem:[#allocation3 + $0x3d8] sm:$0xff]
    %v969 = vld [vmem:[#allocation3 + $0x3e0] sm:$0xff]
    %v970 = vld [vmem:[#allocation3 + $0x3e8] sm:$0xff]
    %v971 = vld [vmem:[#allocation3 + $0x3f0] sm:$0xff]
    %v972 = vld [vmem:[#allocation3 + $0x3f8] sm:$0xff]
    %v973 = vld [vmem:[#allocation3 + $0x400] sm:$0xff]
    %v974 = vld [vmem:[#allocation3 + $0x408] sm:$0xff]
    %v975 = vld [vmem:[#allocation3 + $0x410] sm:$0xff]
    %v976 = vld [vmem:[#allocation3 + $0x418] sm:$0xff]
    %v977 = vld [vmem:[#allocation3 + $0x420] sm:$0xff]
    %v978 = vld [vmem:[#allocation3 + $0x428] sm:$0xff]
    %v979 = vld [vmem:[#allocation3 + $0x430] sm:$0xff]
    %v980 = vld [vmem:[#allocation3 + $0x438] sm:$0xff]
    %v981 = vld [vmem:[#allocation3 + $0x440] sm:$0xff]
    %v982 = vld [vmem:[#allocation3 + $0x448] sm:$0xff]
    %v983 = vld [vmem:[#allocation3 + $0x450] sm:$0xff]
    %v984 = vld [vmem:[#allocation3 + $0x458] sm:$0xff]
    %v985 = vld [vmem:[#allocation3 + $0x460] sm:$0xff]
    %v986 = vld [vmem:[#allocation3 + $0x468] sm:$0xff]
    %v987 = vld [vmem:[#allocation3 + $0x470] sm:$0xff]
    %v988 = vld [vmem:[#allocation3 + $0x478] sm:$0xff]
    %v989 = vld [vmem:[#allocation3 + $0x480] sm:$0xff]
    %v990 = vld [vmem:[#allocation3 + $0x488] sm:$0xff]
    %v991 = vld [vmem:[#allocation3 + $0x490] sm:$0xff]
    %v992 = vld [vmem:[#allocation3 + $0x498] sm:$0xff]
    %v993 = vld [vmem:[#allocation3 + $0x4a0] sm:$0xff]
    %v994 = vld [vmem:[#allocation3 + $0x4a8] sm:$0xff]
    %v995 = vld [vmem:[#allocation3 + $0x4b0] sm:$0xff]
    %v996 = vld [vmem:[#allocation3 + $0x4b8] sm:$0xff]
    %v997 = vld [vmem:[#allocation3 + $0x4c0] sm:$0xff]
    %v998 = vld [vmem:[#allocation3 + $0x4c8] sm:$0xff]
    %v999 = vld [vmem:[#allocation3 + $0x4d0] sm:$0xff]
    %v1000 = vld [vmem:[#allocation3 + $0x4d8] sm:$0xff]
    %v1001 = vld [vmem:[#allocation3 + $0x4e0] sm:$0xff]
    %v1002 = vld [vmem:[#allocation3 + $0x4e8] sm:$0xff]
    %v1003 = vld [vmem:[#allocation3 + $0x4f0] sm:$0xff]
    %v1004 = vld [vmem:[#allocation3 + $0x4f8] sm:$0xff]
    %v1005 = vld [vmem:[#allocation3 + $0x500] sm:$0xff]
    %v1006 = vld [vmem:[#allocation3 + $0x508] sm:$0xff]
    %v1007 = vld [vmem:[#allocation3 + $0x510] sm:$0xff]
    %v1008 = vld [vmem:[#allocation3 + $0x518] sm:$0xff]
    %v1009 = vld [vmem:[#allocation3 + $0x520] sm:$0xff]
    %v1010 = vld [vmem:[#allocation3 + $0x528] sm:$0xff]
    %v1011 = vld [vmem:[#allocation3 + $0x530] sm:$0xff]
    %v1012 = vld [vmem:[#allocation3 + $0x538] sm:$0xff]
    %v1013 = vld [vmem:[#allocation3 + $0x540] sm:$0xff]
    %v1014 = vld [vmem:[#allocation3 + $0x548] sm:$0xff]
    %v1015 = vld [vmem:[#allocation3 + $0x550] sm:$0xff]
    %v1016 = vld [vmem:[#allocation3 + $0x558] sm:$0xff]
    %v1017 = vld [vmem:[#allocation3 + $0x560] sm:$0xff]
    %v1018 = vld [vmem:[#allocation3 + $0x568] sm:$0xff]
    %v1019 = vld [vmem:[#allocation3 + $0x570] sm:$0xff]
    %v1020 = vld [vmem:[#allocation3 + $0x578] sm:$0xff]
    %v1021 = vld [vmem:[#allocation3 + $0x580] sm:$0xff]
    %v1022 = vld [vmem:[#allocation3 + $0x588] sm:$0xff]
    %v1023 = vld [vmem:[#allocation3 + $0x590] sm:$0xff]
    %v1024 = vld [vmem:[#allocation3 + $0x598] sm:$0xff]
    %v1025 = vld [vmem:[#allocation3 + $0x5a0] sm:$0xff]
    %v1026 = vld [vmem:[#allocation3 + $0x5a8] sm:$0xff]
    %v1027 = vld [vmem:[#allocation3 + $0x5b0] sm:$0xff]
    %v1028 = vld [vmem:[#allocation3 + $0x5b8] sm:$0xff]
    %v1029 = vld [vmem:[#allocation3 + $0x5c0] sm:$0xff]
    %v1030 = vld [vmem:[#allocation3 + $0x5c8] sm:$0xff]
    %v1031 = vld [vmem:[#allocation3 + $0x5d0] sm:$0xff]
    %v1032 = vld [vmem:[#allocation3 + $0x5d8] sm:$0xff]
    %v1033 = vld [vmem:[#allocation3 + $0x5e0] sm:$0xff]
    %v1034 = vld [vmem:[#allocation3 + $0x5e8] sm:$0xff]
    %v1035 = vld [vmem:[#allocation3 + $0x5f0] sm:$0xff]
    %v1036 = vld [vmem:[#allocation3 + $0x5f8] sm:$0xff]
    %v1037 = vld [vmem:[#allocation3 + $0x600] sm:$0xff]
    %v1038 = vld [vmem:[#allocation3 + $0x608] sm:$0xff]
    %v1039 = vld [vmem:[#allocation3 + $0x610] sm:$0xff]
    %v1040 = vld [vmem:[#allocation3 + $0x618] sm:$0xff]
    %v1041 = vld [vmem:[#allocation3 + $0x620] sm:$0xff]
    %v1042 = vld [vmem:[#allocation3 + $0x628] sm:$0xff]
    %v1043 = vld [vmem:[#allocation3 + $0x630] sm:$0xff]
    %v1044 = vld [vmem:[#allocation3 + $0x638] sm:$0xff]
    %v1045 = vld [vmem:[#allocation3 + $0x640] sm:$0xff]
    %v1046 = vld [vmem:[#allocation3 + $0x648] sm:$0xff]
    %v1047 = vld [vmem:[#allocation3 + $0x650] sm:$0xff]
    %v1048 = vld [vmem:[#allocation3 + $0x658] sm:$0xff]
    %v1049 = vld [vmem:[#allocation3 + $0x660] sm:$0xff]
    %v1050 = vld [vmem:[#allocation3 + $0x668] sm:$0xff]
    %v1051 = vld [vmem:[#allocation3 + $0x670] sm:$0xff]
    %v1052 = vld [vmem:[#allocation3 + $0x678] sm:$0xff]
    %v1053 = vld [vmem:[#allocation3 + $0x680] sm:$0xff]
    %v1054 = vld [vmem:[#allocation3 + $0x688] sm:$0xff]
    %v1055 = vld [vmem:[#allocation3 + $0x690] sm:$0xff]
    %v1056 = vld [vmem:[#allocation3 + $0x698] sm:$0xff]
    %v1057 = vld [vmem:[#allocation3 + $0x6a0] sm:$0xff]
    %v1058 = vld [vmem:[#allocation3 + $0x6a8] sm:$0xff]
    %v1059 = vld [vmem:[#allocation3 + $0x6b0] sm:$0xff]
    %v1060 = vld [vmem:[#allocation3 + $0x6b8] sm:$0xff]
    %v1061 = vld [vmem:[#allocation3 + $0x6c0] sm:$0xff]
    %v1062 = vld [vmem:[#allocation3 + $0x6c8] sm:$0xff]
    %v1063 = vld [vmem:[#allocation3 + $0x6d0] sm:$0xff]
    %v1064 = vld [vmem:[#allocation3 + $0x6d8] sm:$0xff]
    %v1065 = vld [vmem:[#allocation3 + $0x6e0] sm:$0xff]
    %v1066 = vld [vmem:[#allocation3 + $0x6e8] sm:$0xff]
    %v1067 = vld [vmem:[#allocation3 + $0x6f0] sm:$0xff]
    %v1068 = vld [vmem:[#allocation3 + $0x6f8] sm:$0xff]
    %v1069 = vld [vmem:[#allocation3 + $0x700] sm:$0xff]
    %v1070 = vld [vmem:[#allocation3 + $0x708] sm:$0xff]
    %v1071 = vld [vmem:[#allocation3 + $0x710] sm:$0xff]
    %v1072 = vld [vmem:[#allocation3 + $0x718] sm:$0xff]
    %v1073 = vld [vmem:[#allocation3 + $0x720] sm:$0xff]
    %v1074 = vld [vmem:[#allocation3 + $0x728] sm:$0xff]
    %v1075 = vld [vmem:[#allocation3 + $0x730] sm:$0xff]
    %v1076 = vld [vmem:[#allocation3 + $0x738] sm:$0xff]
    %v1077 = vld [vmem:[#allocation3 + $0x740] sm:$0xff]
    %v1078 = vld [vmem:[#allocation3 + $0x748] sm:$0xff]
    %v1079 = vld [vmem:[#allocation3 + $0x750] sm:$0xff]
    %v1080 = vld [vmem:[#allocation3 + $0x758] sm:$0xff]
    %v1081 = vld [vmem:[#allocation3 + $0x760] sm:$0xff]
    %v1082 = vld [vmem:[#allocation3 + $0x768] sm:$0xff]
    %v1083 = vld [vmem:[#allocation3 + $0x770] sm:$0xff]
    %v1084 = vld [vmem:[#allocation3 + $0x778] sm:$0xff]
    %v1085 = vld [vmem:[#allocation3 + $0x780] sm:$0xff]
    %v1086 = vld [vmem:[#allocation3 + $0x788] sm:$0xff]
    %v1087 = vld [vmem:[#allocation3 + $0x790] sm:$0xff]
    %v1088 = vld [vmem:[#allocation3 + $0x798] sm:$0xff]
    %v1089 = vld [vmem:[#allocation3 + $0x7a0] sm:$0xff]
    %v1090 = vld [vmem:[#allocation3 + $0x7a8] sm:$0xff]
    %v1091 = vld [vmem:[#allocation3 + $0x7b0] sm:$0xff]
    %v1092 = vld [vmem:[#allocation3 + $0x7b8] sm:$0xff]
    %v1093 = vld [vmem:[#allocation3 + $0x7c0] sm:$0xff]
    %v1094 = vld [vmem:[#allocation3 + $0x7c8] sm:$0xff]
    %v1095 = vld [vmem:[#allocation3 + $0x7d0] sm:$0xff]
    %v1096 = vld [vmem:[#allocation3 + $0x7d8] sm:$0xff]
    %v1097 = vld [vmem:[#allocation3 + $0x7e0] sm:$0xff]
    %v1098 = vld [vmem:[#allocation3 + $0x7e8] sm:$0xff]
    %v1099 = vld [vmem:[#allocation3 + $0x7f0] sm:$0xff]
    %v1100 = vld [vmem:[#allocation3 + $0x7f8] sm:$0xff]
    %v1101 = vld [vmem:[#allocation3 + $0x800] sm:$0xff]
    %v1102 = vld [vmem:[#allocation3 + $0x808] sm:$0xff]
    %v1103 = vld [vmem:[#allocation3 + $0x810] sm:$0xff]
    %v1104 = vld [vmem:[#allocation3 + $0x818] sm:$0xff]
    %v1105 = vld [vmem:[#allocation3 + $0x820] sm:$0xff]
    %v1106 = vld [vmem:[#allocation3 + $0x828] sm:$0xff]
    %v1107 = vld [vmem:[#allocation3 + $0x830] sm:$0xff]
    %v1108 = vld [vmem:[#allocation3 + $0x838] sm:$0xff]
    %v1109 = vld [vmem:[#allocation3 + $0x840] sm:$0xff]
    %v1110 = vld [vmem:[#allocation3 + $0x848] sm:$0xff]
    %v1111 = vld [vmem:[#allocation3 + $0x850] sm:$0xff]
    %v1112 = vld [vmem:[#allocation3 + $0x858] sm:$0xff]
    %v1113 = vld [vmem:[#allocation3 + $0x860] sm:$0xff]
    %v1114 = vld [vmem:[#allocation3 + $0x868] sm:$0xff]
    %v1115 = vld [vmem:[#allocation3 + $0x870] sm:$0xff]
    %v1116 = vld [vmem:[#allocation3 + $0x878] sm:$0xff]
    %v1117 = vld [vmem:[#allocation3 + $0x880] sm:$0xff]
    %v1118 = vld [vmem:[#allocation3 + $0x888] sm:$0xff]
    %v1119 = vld [vmem:[#allocation3 + $0x890] sm:$0xff]
    %v1120 = vld [vmem:[#allocation3 + $0x898] sm:$0xff]
    %v1121 = vld [vmem:[#allocation3 + $0x8a0] sm:$0xff]
    %v1122 = vld [vmem:[#allocation3 + $0x8a8] sm:$0xff]
    %v1123 = vld [vmem:[#allocation3 + $0x8b0] sm:$0xff]
    %v1124 = vld [vmem:[#allocation3 + $0x8b8] sm:$0xff]
    %v1125 = vld [vmem:[#allocation3 + $0x8c0] sm:$0xff]
    %v1126 = vld [vmem:[#allocation3 + $0x8c8] sm:$0xff]
    %v1127 = vld [vmem:[#allocation3 + $0x8d0] sm:$0xff]
    %v1128 = vld [vmem:[#allocation3 + $0x8d8] sm:$0xff]
    %v1129 = vld [vmem:[#allocation3 + $0x8e0] sm:$0xff]
    %v1130 = vld [vmem:[#allocation3 + $0x8e8] sm:$0xff]
    %v1131 = vld [vmem:[#allocation3 + $0x8f0] sm:$0xff]
    %v1132 = vld [vmem:[#allocation3 + $0x8f8] sm:$0xff]
    %v1133 = vld [vmem:[#allocation3 + $0x900] sm:$0xff]
    %v1134 = vld [vmem:[#allocation3 + $0x908] sm:$0xff]
    %v1135 = vld [vmem:[#allocation3 + $0x910] sm:$0xff]
    %v1136 = vld [vmem:[#allocation3 + $0x918] sm:$0xff]
    %v1137 = vld [vmem:[#allocation3 + $0x920] sm:$0xff]
    %v1138 = vld [vmem:[#allocation3 + $0x928] sm:$0xff]
    %v1139 = vld [vmem:[#allocation3 + $0x930] sm:$0xff]
    %v1140 = vld [vmem:[#allocation3 + $0x938] sm:$0xff]
    %v1141 = vld [vmem:[#allocation3 + $0x940] sm:$0xff]
    %v1142 = vld [vmem:[#allocation3 + $0x948] sm:$0xff]
    %v1143 = vld [vmem:[#allocation3 + $0x950] sm:$0xff]
    %v1144 = vld [vmem:[#allocation3 + $0x958] sm:$0xff]
    %v1145 = vld [vmem:[#allocation3 + $0x960] sm:$0xff]
    %v1146 = vld [vmem:[#allocation3 + $0x968] sm:$0xff]
    %v1147 = vld [vmem:[#allocation3 + $0x970] sm:$0xff]
    %v1148 = vld [vmem:[#allocation3 + $0x978] sm:$0xff]
    %v1149 = vld [vmem:[#allocation3 + $0x980] sm:$0xff]
    %v1150 = vld [vmem:[#allocation3 + $0x988] sm:$0xff]
    %v1151 = vld [vmem:[#allocation3 + $0x990] sm:$0xff]
    %v1152 = vld [vmem:[#allocation3 + $0x998] sm:$0xff]
    %v1153 = vld [vmem:[#allocation3 + $0x9a0] sm:$0xff]
    %v1154 = vld [vmem:[#allocation3 + $0x9a8] sm:$0xff]
    %v1155 = vld [vmem:[#allocation3 + $0x9b0] sm:$0xff]
    %v1156 = vld [vmem:[#allocation3 + $0x9b8] sm:$0xff]
    %v1157 = vld [vmem:[#allocation3 + $0x9c0] sm:$0xff]
    %v1158 = vld [vmem:[#allocation3 + $0x9c8] sm:$0xff]
    %v1159 = vld [vmem:[#allocation3 + $0x9d0] sm:$0xff]
    %v1160 = vld [vmem:[#allocation3 + $0x9d8] sm:$0xff]
    %v1161 = vld [vmem:[#allocation3 + $0x9e0] sm:$0xff]
    %v1162 = vld [vmem:[#allocation3 + $0x9e8] sm:$0xff]
    %v1163 = vld [vmem:[#allocation3 + $0x9f0] sm:$0xff]
    %v1164 = vld [vmem:[#allocation3 + $0x9f8] sm:$0xff]
    %v1165 = vld [vmem:[#allocation3 + $0xa00] sm:$0xff]
    %v1166 = vld [vmem:[#allocation3 + $0xa08] sm:$0xff]
    %v1167 = vld [vmem:[#allocation3 + $0xa10] sm:$0xff]
    %v1168 = vld [vmem:[#allocation3 + $0xa18] sm:$0xff]
    %v1169 = vld [vmem:[#allocation3 + $0xa20] sm:$0xff]
    %v1170 = vld [vmem:[#allocation3 + $0xa28] sm:$0xff]
    %v1171 = vld [vmem:[#allocation3 + $0xa30] sm:$0xff]
    %v1172 = vld [vmem:[#allocation3 + $0xa38] sm:$0xff]
    %v1173 = vld [vmem:[#allocation3 + $0xa40] sm:$0xff]
    %v1174 = vld [vmem:[#allocation3 + $0xa48] sm:$0xff]
    %v1175 = vld [vmem:[#allocation3 + $0xa50] sm:$0xff]
    %v1176 = vld [vmem:[#allocation3 + $0xa58] sm:$0xff]
    %v1177 = vld [vmem:[#allocation3 + $0xa60] sm:$0xff]
    %v1178 = vld [vmem:[#allocation3 + $0xa68] sm:$0xff]
    %v1179 = vld [vmem:[#allocation3 + $0xa70] sm:$0xff]
    %v1180 = vld [vmem:[#allocation3 + $0xa78] sm:$0xff]
    %v1181 = vld [vmem:[#allocation3 + $0xa80] sm:$0xff]
    %v1182 = vld [vmem:[#allocation3 + $0xa88] sm:$0xff]
    %v1183 = vld [vmem:[#allocation3 + $0xa90] sm:$0xff]
    %v1184 = vld [vmem:[#allocation3 + $0xa98] sm:$0xff]
    %v1185 = vld [vmem:[#allocation3 + $0xaa0] sm:$0xff]
    %v1186 = vld [vmem:[#allocation3 + $0xaa8] sm:$0xff]
    %v1187 = vld [vmem:[#allocation3 + $0xab0] sm:$0xff]
    %v1188 = vld [vmem:[#allocation3 + $0xab8] sm:$0xff]
    %v1189 = vld [vmem:[#allocation3 + $0xac0] sm:$0xff]
    %v1190 = vld [vmem:[#allocation3 + $0xac8] sm:$0xff]
    %v1191 = vld [vmem:[#allocation3 + $0xad0] sm:$0xff]
    %v1192 = vld [vmem:[#allocation3 + $0xad8] sm:$0xff]
    %v1193 = vld [vmem:[#allocation3 + $0xae0] sm:$0xff]
    %v1194 = vld [vmem:[#allocation3 + $0xae8] sm:$0xff]
    %v1195 = vld [vmem:[#allocation3 + $0xaf0] sm:$0xff]
    %v1196 = vld [vmem:[#allocation3 + $0xaf8] sm:$0xff]
    %v1197 = vld [vmem:[#allocation3 + $0xb00] sm:$0xff]
    %v1198 = vld [vmem:[#allocation3 + $0xb08] sm:$0xff]
    %v1199 = vld [vmem:[#allocation3 + $0xb10] sm:$0xff]
    %v1200 = vld [vmem:[#allocation3 + $0xb18] sm:$0xff]
    %v1201 = vld [vmem:[#allocation3 + $0xb20] sm:$0xff]
    %v1202 = vld [vmem:[#allocation3 + $0xb28] sm:$0xff]
    %v1203 = vld [vmem:[#allocation3 + $0xb30] sm:$0xff]
    %v1204 = vld [vmem:[#allocation3 + $0xb38] sm:$0xff]
    %v1205 = vld [vmem:[#allocation3 + $0xb40] sm:$0xff]
    %v1206 = vld [vmem:[#allocation3 + $0xb48] sm:$0xff]
    %v1207 = vld [vmem:[#allocation3 + $0xb50] sm:$0xff]
    %v1208 = vld [vmem:[#allocation3 + $0xb58] sm:$0xff]
    %v1209 = vld [vmem:[#allocation3 + $0xb60] sm:$0xff]
    %v1210 = vld [vmem:[#allocation3 + $0xb68] sm:$0xff]
    %v1211 = vld [vmem:[#allocation3 + $0xb70] sm:$0xff]
    %v1212 = vld [vmem:[#allocation3 + $0xb78] sm:$0xff]
    %v1213 = vld [vmem:[#allocation3 + $0xb80] sm:$0xff]
    %v1214 = vld [vmem:[#allocation3 + $0xb88] sm:$0xff]
    %v1215 = vld [vmem:[#allocation3 + $0xb90] sm:$0xff]
    %v1216 = vld [vmem:[#allocation3 + $0xb98] sm:$0xff]
    %v1217 = vld [vmem:[#allocation3 + $0xba0] sm:$0xff]
    %v1218 = vld [vmem:[#allocation3 + $0xba8] sm:$0xff]
    %v1219 = vld [vmem:[#allocation3 + $0xbb0] sm:$0xff]
    %v1220 = vld [vmem:[#allocation3 + $0xbb8] sm:$0xff]
    %v1221 = vld [vmem:[#allocation3 + $0xbc0] sm:$0xff]
    %v1222 = vld [vmem:[#allocation3 + $0xbc8] sm:$0xff]
    %v1223 = vld [vmem:[#allocation3 + $0xbd0] sm:$0xff]
    %v1224 = vld [vmem:[#allocation3 + $0xbd8] sm:$0xff]
    %v1225 = vld [vmem:[#allocation3 + $0xbe0] sm:$0xff]
    %v1226 = vld [vmem:[#allocation3 + $0xbe8] sm:$0xff]
    %v1227 = vld [vmem:[#allocation3 + $0xbf0] sm:$0xff]
    %v1228 = vld [vmem:[#allocation3 + $0xbf8] sm:$0xff]
    %v1229 = vld [vmem:[#allocation3 + $0xc00] sm:$0xff]
    %v1230 = vld [vmem:[#allocation3 + $0xc08] sm:$0xff]
    %v1231 = vld [vmem:[#allocation3 + $0xc10] sm:$0xff]
    %v1232 = vld [vmem:[#allocation3 + $0xc18] sm:$0xff]
    %v1233 = vld [vmem:[#allocation3 + $0xc20] sm:$0xff]
    %v1234 = vld [vmem:[#allocation3 + $0xc28] sm:$0xff]
    %v1235 = vld [vmem:[#allocation3 + $0xc30] sm:$0xff]
    %v1236 = vld [vmem:[#allocation3 + $0xc38] sm:$0xff]
    %v1237 = vld [vmem:[#allocation3 + $0xc40] sm:$0xff]
    %v1238 = vld [vmem:[#allocation3 + $0xc48] sm:$0xff]
    %v1239 = vld [vmem:[#allocation3 + $0xc50] sm:$0xff]
    %v1240 = vld [vmem:[#allocation3 + $0xc58] sm:$0xff]
    %v1241 = vld [vmem:[#allocation3 + $0xc60] sm:$0xff]
    %v1242 = vld [vmem:[#allocation3 + $0xc68] sm:$0xff]
    %v1243 = vld [vmem:[#allocation3 + $0xc70] sm:$0xff]
    %v1244 = vld [vmem:[#allocation3 + $0xc78] sm:$0xff]
    %v1245 = vld [vmem:[#allocation3 + $0xc80] sm:$0xff]
    %v1246 = vld [vmem:[#allocation3 + $0xc88] sm:$0xff]
    %v1247 = vld [vmem:[#allocation3 + $0xc90] sm:$0xff]
    %v1248 = vld [vmem:[#allocation3 + $0xc98] sm:$0xff]
    %v1249 = vld [vmem:[#allocation3 + $0xca0] sm:$0xff]
    %v1250 = vld [vmem:[#allocation3 + $0xca8] sm:$0xff]
    %v1251 = vld [vmem:[#allocation3 + $0xcb0] sm:$0xff]
    %v1252 = vld [vmem:[#allocation3 + $0xcb8] sm:$0xff]
    %v1253 = vld [vmem:[#allocation3 + $0xcc0] sm:$0xff]
    %v1254 = vld [vmem:[#allocation3 + $0xcc8] sm:$0xff]
    %v1255 = vld [vmem:[#allocation3 + $0xcd0] sm:$0xff]
    %v1256 = vld [vmem:[#allocation3 + $0xcd8] sm:$0xff]
    %v1257 = vld [vmem:[#allocation3 + $0xce0] sm:$0xff]
    %v1258 = vld [vmem:[#allocation3 + $0xce8] sm:$0xff]
    %v1259 = vld [vmem:[#allocation3 + $0xcf0] sm:$0xff]
    %v1260 = vld [vmem:[#allocation3 + $0xcf8] sm:$0xff]
    %v1261 = vld [vmem:[#allocation3 + $0xd00] sm:$0xff]
    %v1262 = vld [vmem:[#allocation3 + $0xd08] sm:$0xff]
    %v1263 = vld [vmem:[#allocation3 + $0xd10] sm:$0xff]
    %v1264 = vld [vmem:[#allocation3 + $0xd18] sm:$0xff]
    %v1265 = vld [vmem:[#allocation3 + $0xd20] sm:$0xff]
    %v1266 = vld [vmem:[#allocation3 + $0xd28] sm:$0xff]
    %v1267 = vld [vmem:[#allocation3 + $0xd30] sm:$0xff]
    %v1268 = vld [vmem:[#allocation3 + $0xd38] sm:$0xff]
    %v1269 = vld [vmem:[#allocation3 + $0xd40] sm:$0xff]
    %v1270 = vld [vmem:[#allocation3 + $0xd48] sm:$0xff]
    %v1271 = vld [vmem:[#allocation3 + $0xd50] sm:$0xff]
    %v1272 = vld [vmem:[#allocation3 + $0xd58] sm:$0xff]
    %v1273 = vld [vmem:[#allocation3 + $0xd60] sm:$0xff]
    %v1274 = vld [vmem:[#allocation3 + $0xd68] sm:$0xff]
    %v1275 = vld [vmem:[#allocation3 + $0xd70] sm:$0xff]
    %v1276 = vld [vmem:[#allocation3 + $0xd78] sm:$0xff]
    %v1277 = vld [vmem:[#allocation3 + $0xd80] sm:$0xff]
    %v1278 = vld [vmem:[#allocation3 + $0xd88] sm:$0xff]
    %v1279 = vld [vmem:[#allocation3 + $0xd90] sm:$0xff]
    %v1280 = vld [vmem:[#allocation3 + $0xd98] sm:$0xff]
    %v1281 = vld [vmem:[#allocation3 + $0xda0] sm:$0xff]
    %v1282 = vld [vmem:[#allocation3 + $0xda8] sm:$0xff]
    %v1283 = vld [vmem:[#allocation3 + $0xdb0] sm:$0xff]
    %v1284 = vld [vmem:[#allocation3 + $0xdb8] sm:$0xff]
    %v1285 = vld [vmem:[#allocation3 + $0xdc0] sm:$0xff]
    %v1286 = vld [vmem:[#allocation3 + $0xdc8] sm:$0xff]
    %v1287 = vld [vmem:[#allocation3 + $0xdd0] sm:$0xff]
    %v1288 = vld [vmem:[#allocation3 + $0xdd8] sm:$0xff]
    %v1289 = vld [vmem:[#allocation3 + $0xde0] sm:$0xff]
    %v1290 = vld [vmem:[#allocation3 + $0xde8] sm:$0xff]
    %v1291 = vld [vmem:[#allocation3 + $0xdf0] sm:$0xff]
    %v1292 = vld [vmem:[#allocation3 + $0xdf8] sm:$0xff]
    %v1293 = vld [vmem:[#allocation3 + $0xe00] sm:$0xff]
    %v1294 = vld [vmem:[#allocation3 + $0xe08] sm:$0xff]
    %v1295 = vld [vmem:[#allocation3 + $0xe10] sm:$0xff]
    %v1296 = vld [vmem:[#allocation3 + $0xe18] sm:$0xff]
    %v1297 = vld [vmem:[#allocation3 + $0xe20] sm:$0xff]
    %v1298 = vld [vmem:[#allocation3 + $0xe28] sm:$0xff]
    %v1299 = vld [vmem:[#allocation3 + $0xe30] sm:$0xff]
    %v1300 = vld [vmem:[#allocation3 + $0xe38] sm:$0xff]
    %v1301 = vld [vmem:[#allocation3 + $0xe40] sm:$0xff]
    %v1302 = vld [vmem:[#allocation3 + $0xe48] sm:$0xff]
    %v1303 = vld [vmem:[#allocation3 + $0xe50] sm:$0xff]
    %v1304 = vld [vmem:[#allocation3 + $0xe58] sm:$0xff]
    %v1305 = vld [vmem:[#allocation3 + $0xe60] sm:$0xff]
    %v1306 = vld [vmem:[#allocation3 + $0xe68] sm:$0xff]
    %v1307 = vld [vmem:[#allocation3 + $0xe70] sm:$0xff]
    %v1308 = vld [vmem:[#allocation3 + $0xe78] sm:$0xff]
    %v1309 = vld [vmem:[#allocation3 + $0xe80] sm:$0xff]
    %v1310 = vld [vmem:[#allocation3 + $0xe88] sm:$0xff]
    %v1311 = vld [vmem:[#allocation3 + $0xe90] sm:$0xff]
    %v1312 = vld [vmem:[#allocation3 + $0xe98] sm:$0xff]
    %v1313 = vld [vmem:[#allocation3 + $0xea0] sm:$0xff]
    %v1314 = vld [vmem:[#allocation3 + $0xea8] sm:$0xff]
    %v1315 = vld [vmem:[#allocation3 + $0xeb0] sm:$0xff]
    %v1316 = vld [vmem:[#allocation3 + $0xeb8] sm:$0xff]
    %v1317 = vld [vmem:[#allocation3 + $0xec0] sm:$0xff]
    %v1318 = vld [vmem:[#allocation3 + $0xec8] sm:$0xff]
    %v1319 = vld [vmem:[#allocation3 + $0xed0] sm:$0xff]
    %v1320 = vld [vmem:[#allocation3 + $0xed8] sm:$0xff]
    %v1321 = vld [vmem:[#allocation3 + $0xee0] sm:$0xff]
    %v1322 = vld [vmem:[#allocation3 + $0xee8] sm:$0xff]
    %v1323 = vld [vmem:[#allocation3 + $0xef0] sm:$0xff]
    %v1324 = vld [vmem:[#allocation3 + $0xef8] sm:$0xff]
    %v1325 = vld [vmem:[#allocation3 + $0xf00] sm:$0xff]
    %v1326 = vld [vmem:[#allocation3 + $0xf08] sm:$0xff]
    %v1327 = vld [vmem:[#allocation3 + $0xf10] sm:$0xff]
    %v1328 = vld [vmem:[#allocation3 + $0xf18] sm:$0xff]
    %v1329 = vld [vmem:[#allocation3 + $0xf20] sm:$0xff]
    %v1330 = vld [vmem:[#allocation3 + $0xf28] sm:$0xff]
    %v1331 = vld [vmem:[#allocation3 + $0xf30] sm:$0xff]
    %v1332 = vld [vmem:[#allocation3 + $0xf38] sm:$0xff]
    %v1333 = vld [vmem:[#allocation3 + $0xf40] sm:$0xff]
    %v1334 = vld [vmem:[#allocation3 + $0xf48] sm:$0xff]
    %v1335 = vld [vmem:[#allocation3 + $0xf50] sm:$0xff]
    %v1336 = vld [vmem:[#allocation3 + $0xf58] sm:$0xff]
    %v1337 = vld [vmem:[#allocation3 + $0xf60] sm:$0xff]
    %v1338 = vld [vmem:[#allocation3 + $0xf68] sm:$0xff]
    %v1339 = vld [vmem:[#allocation3 + $0xf70] sm:$0xff]
    %v1340 = vld [vmem:[#allocation3 + $0xf78] sm:$0xff]
    %v1341 = vld [vmem:[#allocation3 + $0xf80] sm:$0xff]
    %v1342 = vld [vmem:[#allocation3 + $0xf88] sm:$0xff]
    %v1343 = vld [vmem:[#allocation3 + $0xf90] sm:$0xff]
    %v1344 = vld [vmem:[#allocation3 + $0xf98] sm:$0xff]
    %v1345 = vld [vmem:[#allocation3 + $0xfa0] sm:$0xff]
    %v1346 = vld [vmem:[#allocation3 + $0xfa8] sm:$0xff]
    %v1347 = vld [vmem:[#allocation3 + $0xfb0] sm:$0xff]
    %v1348 = vld [vmem:[#allocation3 + $0xfb8] sm:$0xff]
    %v1349 = vld [vmem:[#allocation3 + $0xfc0] sm:$0xff]
    %v1350 = vld [vmem:[#allocation3 + $0xfc8] sm:$0xff]
    %v1351 = vld [vmem:[#allocation3 + $0xfd0] sm:$0xff]
    %v1352 = vld [vmem:[#allocation3 + $0xfd8] sm:$0xff]
    %v1353 = vld [vmem:[#allocation3 + $0xfe0] sm:$0xff]
    %v1354 = vld [vmem:[#allocation3 + $0xfe8] sm:$0xff]
    %v1355 = vld [vmem:[#allocation3 + $0xff0] sm:$0xff]
    %v1356 = vld [vmem:[#allocation3 + $0xff8] sm:$0xff]
    %v1357 = vld [vmem:[#allocation3 + $0x1000] sm:$0xff]
    %v1358 = vld [vmem:[#allocation3 + $0x1008] sm:$0xff]
    %v1359 = vld [vmem:[#allocation3 + $0x1010] sm:$0xff]
    %v1360 = vld [vmem:[#allocation3 + $0x1018] sm:$0xff]
    %v1361 = vld [vmem:[#allocation3 + $0x1020] sm:$0xff]
    %v1362 = vld [vmem:[#allocation3 + $0x1028] sm:$0xff]
    %v1363 = vld [vmem:[#allocation3 + $0x1030] sm:$0xff]
    %v1364 = vld [vmem:[#allocation3 + $0x1038] sm:$0xff]
    %v1365 = vld [vmem:[#allocation3 + $0x1040] sm:$0xff]
    %v1366 = vld [vmem:[#allocation3 + $0x1048] sm:$0xff]
    %v1367 = vld [vmem:[#allocation3 + $0x1050] sm:$0xff]
    %v1368 = vld [vmem:[#allocation3 + $0x1058] sm:$0xff]
    %v1369 = vld [vmem:[#allocation3 + $0x1060] sm:$0xff]
    %v1370 = vld [vmem:[#allocation3 + $0x1068] sm:$0xff]
    %v1371 = vld [vmem:[#allocation3 + $0x1070] sm:$0xff]
    %v1372 = vld [vmem:[#allocation3 + $0x1078] sm:$0xff]
    %v1373 = vld [vmem:[#allocation3 + $0x1080] sm:$0xff]
    %v1374 = vld [vmem:[#allocation3 + $0x1088] sm:$0xff]
    %v1375 = vld [vmem:[#allocation3 + $0x1090] sm:$0xff]
    %v1376 = vld [vmem:[#allocation3 + $0x1098] sm:$0xff]
    %v1377 = vld [vmem:[#allocation3 + $0x10a0] sm:$0xff]
    %v1378 = vld [vmem:[#allocation3 + $0x10a8] sm:$0xff]
    %v1379 = vld [vmem:[#allocation3 + $0x10b0] sm:$0xff]
    %v1380 = vld [vmem:[#allocation3 + $0x10b8] sm:$0xff]
    %v1381 = vld [vmem:[#allocation3 + $0x10c0] sm:$0xff]
    %v1382 = vld [vmem:[#allocation3 + $0x10c8] sm:$0xff]
    %v1383 = vld [vmem:[#allocation3 + $0x10d0] sm:$0xff]
    %v1384 = vld [vmem:[#allocation3 + $0x10d8] sm:$0xff]
    %v1385 = vld [vmem:[#allocation3 + $0x10e0] sm:$0xff]
    %v1386 = vld [vmem:[#allocation3 + $0x10e8] sm:$0xff]
    %v1387 = vld [vmem:[#allocation3 + $0x10f0] sm:$0xff]
    %v1388 = vld [vmem:[#allocation3 + $0x10f8] sm:$0xff]
    %v1389 = vld [vmem:[#allocation3 + $0x1100] sm:$0xff]
    %v1390 = vld [vmem:[#allocation3 + $0x1108] sm:$0xff]
    %v1391 = vld [vmem:[#allocation3 + $0x1110] sm:$0xff]
    %v1392 = vld [vmem:[#allocation3 + $0x1118] sm:$0xff]
    %v1393 = vld [vmem:[#allocation3 + $0x1120] sm:$0xff]
    %v1394 = vld [vmem:[#allocation3 + $0x1128] sm:$0xff]
    %v1395 = vld [vmem:[#allocation3 + $0x1130] sm:$0xff]
    %v1396 = vld [vmem:[#allocation3 + $0x1138] sm:$0xff]
    %v1397 = vld [vmem:[#allocation3 + $0x1140] sm:$0xff]
    %v1398 = vld [vmem:[#allocation3 + $0x1148] sm:$0xff]
    %v1399 = vld [vmem:[#allocation3 + $0x1150] sm:$0xff]
    %v1400 = vld [vmem:[#allocation3 + $0x1158] sm:$0xff]
    %v1401 = vld [vmem:[#allocation3 + $0x1160] sm:$0xff]
    %v1402 = vld [vmem:[#allocation3 + $0x1168] sm:$0xff]
    %v1403 = vld [vmem:[#allocation3 + $0x1170] sm:$0xff]
    %v1404 = vld [vmem:[#allocation3 + $0x1178] sm:$0xff]
    %v1405 = vld [vmem:[#allocation3 + $0x1180] sm:$0xff]
    %v1406 = vld [vmem:[#allocation3 + $0x1188] sm:$0xff]
    %v1407 = vld [vmem:[#allocation3 + $0x1190] sm:$0xff]
    %v1408 = vld [vmem:[#allocation3 + $0x1198] sm:$0xff]
    %v1409 = vld [vmem:[#allocation3 + $0x11a0] sm:$0xff]
    %v1410 = vld [vmem:[#allocation3 + $0x11a8] sm:$0xff]
    %v1411 = vld [vmem:[#allocation3 + $0x11b0] sm:$0xff]
    %v1412 = vld [vmem:[#allocation3 + $0x11b8] sm:$0xff]
    %v1413 = vld [vmem:[#allocation3 + $0x11c0] sm:$0xff]
    %v1414 = vld [vmem:[#allocation3 + $0x11c8] sm:$0xff]
    %v1415 = vld [vmem:[#allocation3 + $0x11d0] sm:$0xff]
    %v1416 = vld [vmem:[#allocation3 + $0x11d8] sm:$0xff]
    %v1417 = vld [vmem:[#allocation3 + $0x11e0] sm:$0xff]
    %v1418 = vld [vmem:[#allocation3 + $0x11e8] sm:$0xff]
    %v1419 = vld [vmem:[#allocation3 + $0x11f0] sm:$0xff]
    %v1420 = vld [vmem:[#allocation3 + $0x11f8] sm:$0xff]
    %v1421 = vld [vmem:[#allocation3 + $0x1200] sm:$0xff]
    %v1422 = vld [vmem:[#allocation3 + $0x1208] sm:$0xff]
    %v1423 = vld [vmem:[#allocation3 + $0x1210] sm:$0xff]
    %v1424 = vld [vmem:[#allocation3 + $0x1218] sm:$0xff]
    %v1425 = vld [vmem:[#allocation3 + $0x1220] sm:$0xff]
    %v1426 = vld [vmem:[#allocation3 + $0x1228] sm:$0xff]
    %v1427 = vld [vmem:[#allocation3 + $0x1230] sm:$0xff]
    %v1428 = vld [vmem:[#allocation3 + $0x1238] sm:$0xff]
    %v1429 = vld [vmem:[#allocation3 + $0x1240] sm:$0xff]
    %v1430 = vld [vmem:[#allocation3 + $0x1248] sm:$0xff]
    %v1431 = vld [vmem:[#allocation3 + $0x1250] sm:$0xff]
    %v1432 = vld [vmem:[#allocation3 + $0x1258] sm:$0xff]
    %v1433 = vld [vmem:[#allocation3 + $0x1260] sm:$0xff]
    %v1434 = vld [vmem:[#allocation3 + $0x1268] sm:$0xff]
    %v1435 = vld [vmem:[#allocation3 + $0x1270] sm:$0xff]
    %v1436 = vld [vmem:[#allocation3 + $0x1278] sm:$0xff]
    %v1437 = vld [vmem:[#allocation3 + $0x1280] sm:$0xff]
    %v1438 = vld [vmem:[#allocation3 + $0x1288] sm:$0xff]
    %v1439 = vld [vmem:[#allocation3 + $0x1290] sm:$0xff]
    %v1440 = vld [vmem:[#allocation3 + $0x1298] sm:$0xff]
    %v1441 = vld [vmem:[#allocation3 + $0x12a0] sm:$0xff]
    %v1442 = vld [vmem:[#allocation3 + $0x12a8] sm:$0xff]
    %v1443 = vld [vmem:[#allocation3 + $0x12b0] sm:$0xff]
    %v1444 = vld [vmem:[#allocation3 + $0x12b8] sm:$0xff]
    %v1445 = vld [vmem:[#allocation3 + $0x12c0] sm:$0xff]
    %v1446 = vld [vmem:[#allocation3 + $0x12c8] sm:$0xff]
    %v1447 = vld [vmem:[#allocation3 + $0x12d0] sm:$0xff]
    %v1448 = vld [vmem:[#allocation3 + $0x12d8] sm:$0xff]
    %v1449 = vld [vmem:[#allocation3 + $0x12e0] sm:$0xff]
    %v1450 = vld [vmem:[#allocation3 + $0x12e8] sm:$0xff]
    %v1451 = vld [vmem:[#allocation3 + $0x12f0] sm:$0xff]
    %v1452 = vld [vmem:[#allocation3 + $0x12f8] sm:$0xff]
    %v1453 = vld [vmem:[#allocation3 + $0x1300] sm:$0xff]
    %v1454 = vld [vmem:[#allocation3 + $0x1308] sm:$0xff]
    %v1455 = vld [vmem:[#allocation3 + $0x1310] sm:$0xff]
    %v1456 = vld [vmem:[#allocation3 + $0x1318] sm:$0xff]
    %v1457 = vld [vmem:[#allocation3 + $0x1320] sm:$0xff]
    %v1458 = vld [vmem:[#allocation3 + $0x1328] sm:$0xff]
    %v1459 = vld [vmem:[#allocation3 + $0x1330] sm:$0xff]
    %v1460 = vld [vmem:[#allocation3 + $0x1338] sm:$0xff]
    %v1461 = vld [vmem:[#allocation3 + $0x1340] sm:$0xff]
    %v1462 = vld [vmem:[#allocation3 + $0x1348] sm:$0xff]
    %v1463 = vld [vmem:[#allocation3 + $0x1350] sm:$0xff]
    %v1464 = vld [vmem:[#allocation3 + $0x1358] sm:$0xff]
    %v1465 = vld [vmem:[#allocation3 + $0x1360] sm:$0xff]
    %v1466 = vld [vmem:[#allocation3 + $0x1368] sm:$0xff]
    %v1467 = vld [vmem:[#allocation3 + $0x1370] sm:$0xff]
    %v1468 = vld [vmem:[#allocation3 + $0x1378] sm:$0xff]
    %v1469 = vld [vmem:[#allocation3 + $0x1380] sm:$0xff]
    %v1470 = vld [vmem:[#allocation3 + $0x1388] sm:$0xff]
    %v1471 = vld [vmem:[#allocation3 + $0x1390] sm:$0xff]
    %v1472 = vld [vmem:[#allocation3 + $0x1398] sm:$0xff]
    %v1473 = vld [vmem:[#allocation3 + $0x13a0] sm:$0xff]
    %v1474 = vld [vmem:[#allocation3 + $0x13a8] sm:$0xff]
    %v1475 = vld [vmem:[#allocation3 + $0x13b0] sm:$0xff]
    %v1476 = vld [vmem:[#allocation3 + $0x13b8] sm:$0xff]
    %v1477 = vld [vmem:[#allocation3 + $0x13c0] sm:$0xff]
    %v1478 = vld [vmem:[#allocation3 + $0x13c8] sm:$0xff]
    %v1479 = vld [vmem:[#allocation3 + $0x13d0] sm:$0xff]
    %v1480 = vld [vmem:[#allocation3 + $0x13d8] sm:$0xff]
    %v1481 = vld [vmem:[#allocation3 + $0x13e0] sm:$0xff]
    %v1482 = vld [vmem:[#allocation3 + $0x13e8] sm:$0xff]
    %v1483 = vld [vmem:[#allocation3 + $0x13f0] sm:$0xff]
    %v1484 = vld [vmem:[#allocation3 + $0x13f8] sm:$0xff]
    %v1485 = vld [vmem:[#allocation3 + $0x1400] sm:$0xff]
    %v1486 = vld [vmem:[#allocation3 + $0x1408] sm:$0xff]
    %v1487 = vld [vmem:[#allocation3 + $0x1410] sm:$0xff]
    %v1488 = vld [vmem:[#allocation3 + $0x1418] sm:$0xff]
    %v1489 = vld [vmem:[#allocation3 + $0x1420] sm:$0xff]
    %v1490 = vld [vmem:[#allocation3 + $0x1428] sm:$0xff]
    %v1491 = vld [vmem:[#allocation3 + $0x1430] sm:$0xff]
    %v1492 = vld [vmem:[#allocation3 + $0x1438] sm:$0xff]
    %v1493 = vld [vmem:[#allocation3 + $0x1440] sm:$0xff]
    %v1494 = vld [vmem:[#allocation3 + $0x1448] sm:$0xff]
    %v1495 = vld [vmem:[#allocation3 + $0x1450] sm:$0xff]
    %v1496 = vld [vmem:[#allocation3 + $0x1458] sm:$0xff]
    %v1497 = vld [vmem:[#allocation3 + $0x1460] sm:$0xff]
    %v1498 = vld [vmem:[#allocation3 + $0x1468] sm:$0xff]
    %v1499 = vld [vmem:[#allocation3 + $0x1470] sm:$0xff]
    %v1500 = vld [vmem:[#allocation3 + $0x1478] sm:$0xff]
    %v1501 = vld [vmem:[#allocation3 + $0x1480] sm:$0xff]
    %v1502 = vld [vmem:[#allocation3 + $0x1488] sm:$0xff]
    %v1503 = vld [vmem:[#allocation3 + $0x1490] sm:$0xff]
    %v1504 = vld [vmem:[#allocation3 + $0x1498] sm:$0xff]
    %v1505 = vld [vmem:[#allocation3 + $0x14a0] sm:$0xff]
    %v1506 = vld [vmem:[#allocation3 + $0x14a8] sm:$0xff]
    %v1507 = vld [vmem:[#allocation3 + $0x14b0] sm:$0xff]
    %v1508 = vld [vmem:[#allocation3 + $0x14b8] sm:$0xff]
    %v1509 = vld [vmem:[#allocation3 + $0x14c0] sm:$0xff]
    %v1510 = vld [vmem:[#allocation3 + $0x14c8] sm:$0xff]
    %v1511 = vld [vmem:[#allocation3 + $0x14d0] sm:$0xff]
    %v1512 = vld [vmem:[#allocation3 + $0x14d8] sm:$0xff]
    %v1513 = vld [vmem:[#allocation3 + $0x14e0] sm:$0xff]
    %v1514 = vld [vmem:[#allocation3 + $0x14e8] sm:$0xff]
    %v1515 = vld [vmem:[#allocation3 + $0x14f0] sm:$0xff]
    %v1516 = vld [vmem:[#allocation3 + $0x14f8] sm:$0xff]
    %v1517 = vld [vmem:[#allocation3 + $0x1500] sm:$0xff]
    %v1518 = vld [vmem:[#allocation3 + $0x1508] sm:$0xff]
    %v1519 = vld [vmem:[#allocation3 + $0x1510] sm:$0xff]
    %v1520 = vld [vmem:[#allocation3 + $0x1518] sm:$0xff]
    %v1521 = vld [vmem:[#allocation3 + $0x1520] sm:$0xff]
    %v1522 = vld [vmem:[#allocation3 + $0x1528] sm:$0xff]
    %v1523 = vld [vmem:[#allocation3 + $0x1530] sm:$0xff]
    %v1524 = vld [vmem:[#allocation3 + $0x1538] sm:$0xff]
    %v1525 = vld [vmem:[#allocation3 + $0x1540] sm:$0xff]
    %v1526 = vld [vmem:[#allocation3 + $0x1548] sm:$0xff]
    %v1527 = vld [vmem:[#allocation3 + $0x1550] sm:$0xff]
    %v1528 = vld [vmem:[#allocation3 + $0x1558] sm:$0xff]
    %v1529 = vld [vmem:[#allocation3 + $0x1560] sm:$0xff]
    %v1530 = vld [vmem:[#allocation3 + $0x1568] sm:$0xff]
    %v1531 = vld [vmem:[#allocation3 + $0x1570] sm:$0xff]
    %v1532 = vld [vmem:[#allocation3 + $0x1578] sm:$0xff]
    %v1533 = vld [vmem:[#allocation3 + $0x1580] sm:$0xff]
    %v1534 = vld [vmem:[#allocation3 + $0x1588] sm:$0xff]
    %v1535 = vld [vmem:[#allocation3 + $0x1590] sm:$0xff]
    %v1536 = vld [vmem:[#allocation3 + $0x1598] sm:$0xff]
    %v1537 = vld [vmem:[#allocation3 + $0x15a0] sm:$0xff]
    %v1538 = vld [vmem:[#allocation3 + $0x15a8] sm:$0xff]
    %v1539 = vld [vmem:[#allocation3 + $0x15b0] sm:$0xff]
    %v1540 = vld [vmem:[#allocation3 + $0x15b8] sm:$0xff]
    %v1541 = vld [vmem:[#allocation3 + $0x15c0] sm:$0xff]
    %v1542 = vld [vmem:[#allocation3 + $0x15c8] sm:$0xff]
    %v1543 = vld [vmem:[#allocation3 + $0x15d0] sm:$0xff]
    %v1544 = vld [vmem:[#allocation3 + $0x15d8] sm:$0xff]
    %v1545 = vld [vmem:[#allocation3 + $0x15e0] sm:$0xff]
    %v1546 = vld [vmem:[#allocation3 + $0x15e8] sm:$0xff]
    %v1547 = vld [vmem:[#allocation3 + $0x15f0] sm:$0xff]
    %v1548 = vld [vmem:[#allocation3 + $0x15f8] sm:$0xff]
    %v1549 = vld [vmem:[#allocation3 + $0x1600] sm:$0xff]
    %v1550 = vld [vmem:[#allocation3 + $0x1608] sm:$0xff]
    %v1551 = vld [vmem:[#allocation3 + $0x1610] sm:$0xff]
    %v1552 = vld [vmem:[#allocation3 + $0x1618] sm:$0xff]
    %v1553 = vld [vmem:[#allocation3 + $0x1620] sm:$0xff]
    %v1554 = vld [vmem:[#allocation3 + $0x1628] sm:$0xff]
    %v1555 = vld [vmem:[#allocation3 + $0x1630] sm:$0xff]
    %v1556 = vld [vmem:[#allocation3 + $0x1638] sm:$0xff]
    %v1557 = vld [vmem:[#allocation3 + $0x1640] sm:$0xff]
    %v1558 = vld [vmem:[#allocation3 + $0x1648] sm:$0xff]
    %v1559 = vld [vmem:[#allocation3 + $0x1650] sm:$0xff]
    %v1560 = vld [vmem:[#allocation3 + $0x1658] sm:$0xff]
    %v1561 = vld [vmem:[#allocation3 + $0x1660] sm:$0xff]
    %v1562 = vld [vmem:[#allocation3 + $0x1668] sm:$0xff]
    %v1563 = vld [vmem:[#allocation3 + $0x1670] sm:$0xff]
    %v1564 = vld [vmem:[#allocation3 + $0x1678] sm:$0xff]
    %v1565 = vld [vmem:[#allocation3 + $0x1680] sm:$0xff]
    %v1566 = vld [vmem:[#allocation3 + $0x1688] sm:$0xff]
    %v1567 = vld [vmem:[#allocation3 + $0x1690] sm:$0xff]
    %v1568 = vld [vmem:[#allocation3 + $0x1698] sm:$0xff]
    %v1569 = vld [vmem:[#allocation3 + $0x16a0] sm:$0xff]
    %v1570 = vld [vmem:[#allocation3 + $0x16a8] sm:$0xff]
    %v1571 = vld [vmem:[#allocation3 + $0x16b0] sm:$0xff]
    %v1572 = vld [vmem:[#allocation3 + $0x16b8] sm:$0xff]
    %v1573 = vld [vmem:[#allocation3 + $0x16c0] sm:$0xff]
    %v1574 = vld [vmem:[#allocation3 + $0x16c8] sm:$0xff]
    %v1575 = vld [vmem:[#allocation3 + $0x16d0] sm:$0xff]
    %v1576 = vld [vmem:[#allocation3 + $0x16d8] sm:$0xff]
    %v1577 = vld [vmem:[#allocation3 + $0x16e0] sm:$0xff]
    %v1578 = vld [vmem:[#allocation3 + $0x16e8] sm:$0xff]
    %v1579 = vld [vmem:[#allocation3 + $0x16f0] sm:$0xff]
    %v1580 = vld [vmem:[#allocation3 + $0x16f8] sm:$0xff]
    %v1581 = vld [vmem:[#allocation3 + $0x1700] sm:$0xff]
    %v1582 = vld [vmem:[#allocation3 + $0x1708] sm:$0xff]
    %v1583 = vld [vmem:[#allocation3 + $0x1710] sm:$0xff]
    %v1584 = vld [vmem:[#allocation3 + $0x1718] sm:$0xff]
    %v1585 = vld [vmem:[#allocation3 + $0x1720] sm:$0xff]
    %v1586 = vld [vmem:[#allocation3 + $0x1728] sm:$0xff]
    %v1587 = vld [vmem:[#allocation3 + $0x1730] sm:$0xff]
    %v1588 = vld [vmem:[#allocation3 + $0x1738] sm:$0xff]
    %v1589 = vld [vmem:[#allocation3 + $0x1740] sm:$0xff]
    %v1590 = vld [vmem:[#allocation3 + $0x1748] sm:$0xff]
    %v1591 = vld [vmem:[#allocation3 + $0x1750] sm:$0xff]
    %v1592 = vld [vmem:[#allocation3 + $0x1758] sm:$0xff]
    %v1593 = vld [vmem:[#allocation3 + $0x1760] sm:$0xff]
    %v1594 = vld [vmem:[#allocation3 + $0x1768] sm:$0xff]
    %v1595 = vld [vmem:[#allocation3 + $0x1770] sm:$0xff]
    %v1596 = vld [vmem:[#allocation3 + $0x1778] sm:$0xff]
    %v1597 = vld [vmem:[#allocation3 + $0x1780] sm:$0xff]
    %v1598 = vld [vmem:[#allocation3 + $0x1788] sm:$0xff]
    %v1599 = vld [vmem:[#allocation3 + $0x1790] sm:$0xff]
    %v1600 = vld [vmem:[#allocation3 + $0x1798] sm:$0xff]
    %v1601 = vld [vmem:[#allocation3 + $0x17a0] sm:$0xff]
    %v1602 = vld [vmem:[#allocation3 + $0x17a8] sm:$0xff]
    %v1603 = vld [vmem:[#allocation3 + $0x17b0] sm:$0xff]
    %v1604 = vld [vmem:[#allocation3 + $0x17b8] sm:$0xff]
    %v1605 = vld [vmem:[#allocation3 + $0x17c0] sm:$0xff]
    %v1606 = vld [vmem:[#allocation3 + $0x17c8] sm:$0xff]
    %v1607 = vld [vmem:[#allocation3 + $0x17d0] sm:$0xff]
    %v1608 = vld [vmem:[#allocation3 + $0x17d8] sm:$0xff]
    %v1609 = vld [vmem:[#allocation3 + $0x17e0] sm:$0xff]
    %v1610 = vld [vmem:[#allocation3 + $0x17e8] sm:$0xff]
    %v1611 = vld [vmem:[#allocation3 + $0x17f0] sm:$0xff]
    %v1612 = vld [vmem:[#allocation3 + $0x17f8] sm:$0xff]
    %v1613 = vld [vmem:[#allocation3 + $0x1800] sm:$0xff]
    %v1614 = vld [vmem:[#allocation3 + $0x1808] sm:$0xff]
    %v1615 = vld [vmem:[#allocation3 + $0x1810] sm:$0xff]
    %v1616 = vld [vmem:[#allocation3 + $0x1818] sm:$0xff]
    %v1617 = vld [vmem:[#allocation3 + $0x1820] sm:$0xff]
    %v1618 = vld [vmem:[#allocation3 + $0x1828] sm:$0xff]
    %v1619 = vld [vmem:[#allocation3 + $0x1830] sm:$0xff]
    %v1620 = vld [vmem:[#allocation3 + $0x1838] sm:$0xff]
    %v1621 = vld [vmem:[#allocation3 + $0x1840] sm:$0xff]
    %v1622 = vld [vmem:[#allocation3 + $0x1848] sm:$0xff]
    %v1623 = vld [vmem:[#allocation3 + $0x1850] sm:$0xff]
    %v1624 = vld [vmem:[#allocation3 + $0x1858] sm:$0xff]
    %v1625 = vld [vmem:[#allocation3 + $0x1860] sm:$0xff]
    %v1626 = vld [vmem:[#allocation3 + $0x1868] sm:$0xff]
    %v1627 = vld [vmem:[#allocation3 + $0x1870] sm:$0xff]
    %v1628 = vld [vmem:[#allocation3 + $0x1878] sm:$0xff]
    %v1629 = vld [vmem:[#allocation3 + $0x1880] sm:$0xff]
    %v1630 = vld [vmem:[#allocation3 + $0x1888] sm:$0xff]
    %v1631 = vld [vmem:[#allocation3 + $0x1890] sm:$0xff]
    %v1632 = vld [vmem:[#allocation3 + $0x1898] sm:$0xff]
    %v1633 = vld [vmem:[#allocation3 + $0x18a0] sm:$0xff]
    %v1634 = vld [vmem:[#allocation3 + $0x18a8] sm:$0xff]
    %v1635 = vld [vmem:[#allocation3 + $0x18b0] sm:$0xff]
    %v1636 = vld [vmem:[#allocation3 + $0x18b8] sm:$0xff]
    %v1637 = vld [vmem:[#allocation3 + $0x18c0] sm:$0xff]
    %v1638 = vld [vmem:[#allocation3 + $0x18c8] sm:$0xff]
    %v1639 = vld [vmem:[#allocation3 + $0x18d0] sm:$0xff]
    %v1640 = vld [vmem:[#allocation3 + $0x18d8] sm:$0xff]
    %v1641 = vld [vmem:[#allocation3 + $0x18e0] sm:$0xff]
    %v1642 = vld [vmem:[#allocation3 + $0x18e8] sm:$0xff]
    %v1643 = vld [vmem:[#allocation3 + $0x18f0] sm:$0xff]
    %v1644 = vld [vmem:[#allocation3 + $0x18f8] sm:$0xff]
    %v1645 = vld [vmem:[#allocation3 + $0x1900] sm:$0xff]
    %v1646 = vld [vmem:[#allocation3 + $0x1908] sm:$0xff]
    %v1647 = vld [vmem:[#allocation3 + $0x1910] sm:$0xff]
    %v1648 = vld [vmem:[#allocation3 + $0x1918] sm:$0xff]
    %v1649 = vld [vmem:[#allocation3 + $0x1920] sm:$0xff]
    %v1650 = vld [vmem:[#allocation3 + $0x1928] sm:$0xff]
    %v1651 = vld [vmem:[#allocation3 + $0x1930] sm:$0xff]
    %v1652 = vld [vmem:[#allocation3 + $0x1938] sm:$0xff]
    %v1653 = vld [vmem:[#allocation3 + $0x1940] sm:$0xff]
    %v1654 = vld [vmem:[#allocation3 + $0x1948] sm:$0xff]
    %v1655 = vld [vmem:[#allocation3 + $0x1950] sm:$0xff]
    %v1656 = vld [vmem:[#allocation3 + $0x1958] sm:$0xff]
    %v1657 = vld [vmem:[#allocation3 + $0x1960] sm:$0xff]
    %v1658 = vld [vmem:[#allocation3 + $0x1968] sm:$0xff]
    %v1659 = vld [vmem:[#allocation3 + $0x1970] sm:$0xff]
    %v1660 = vld [vmem:[#allocation3 + $0x1978] sm:$0xff]
    %v1661 = vld [vmem:[#allocation3 + $0x1980] sm:$0xff]
    %v1662 = vld [vmem:[#allocation3 + $0x1988] sm:$0xff]
    %v1663 = vld [vmem:[#allocation3 + $0x1990] sm:$0xff]
    %v1664 = vld [vmem:[#allocation3 + $0x1998] sm:$0xff]
    %v1665 = vld [vmem:[#allocation3 + $0x19a0] sm:$0xff]
    %v1666 = vld [vmem:[#allocation3 + $0x19a8] sm:$0xff]
    %v1667 = vld [vmem:[#allocation3 + $0x19b0] sm:$0xff]
    %v1668 = vld [vmem:[#allocation3 + $0x19b8] sm:$0xff]
    %v1669 = vld [vmem:[#allocation3 + $0x19c0] sm:$0xff]
    %v1670 = vld [vmem:[#allocation3 + $0x19c8] sm:$0xff]
    %v1671 = vld [vmem:[#allocation3 + $0x19d0] sm:$0xff]
    %v1672 = vld [vmem:[#allocation3 + $0x19d8] sm:$0xff]
    %v1673 = vld [vmem:[#allocation3 + $0x19e0] sm:$0xff]
    %v1674 = vld [vmem:[#allocation3 + $0x19e8] sm:$0xff]
    %v1675 = vld [vmem:[#allocation3 + $0x19f0] sm:$0xff]
    %v1676 = vld [vmem:[#allocation3 + $0x19f8] sm:$0xff]
    %v1677 = vld [vmem:[#allocation3 + $0x1a00] sm:$0xff]
    %v1678 = vld [vmem:[#allocation3 + $0x1a08] sm:$0xff]
    %v1679 = vld [vmem:[#allocation3 + $0x1a10] sm:$0xff]
    %v1680 = vld [vmem:[#allocation3 + $0x1a18] sm:$0xff]
    %v1681 = vld [vmem:[#allocation3 + $0x1a20] sm:$0xff]
    %v1682 = vld [vmem:[#allocation3 + $0x1a28] sm:$0xff]
    %v1683 = vld [vmem:[#allocation3 + $0x1a30] sm:$0xff]
    %v1684 = vld [vmem:[#allocation3 + $0x1a38] sm:$0xff]
    %v1685 = vld [vmem:[#allocation3 + $0x1a40] sm:$0xff]
    %v1686 = vld [vmem:[#allocation3 + $0x1a48] sm:$0xff]
    %v1687 = vld [vmem:[#allocation3 + $0x1a50] sm:$0xff]
    %v1688 = vld [vmem:[#allocation3 + $0x1a58] sm:$0xff]
    %v1689 = vld [vmem:[#allocation3 + $0x1a60] sm:$0xff]
    %v1690 = vld [vmem:[#allocation3 + $0x1a68] sm:$0xff]
    %v1691 = vld [vmem:[#allocation3 + $0x1a70] sm:$0xff]
    %v1692 = vld [vmem:[#allocation3 + $0x1a78] sm:$0xff]
    %v1693 = vld [vmem:[#allocation3 + $0x1a80] sm:$0xff]
    %v1694 = vld [vmem:[#allocation3 + $0x1a88] sm:$0xff]
    %v1695 = vld [vmem:[#allocation3 + $0x1a90] sm:$0xff]
    %v1696 = vld [vmem:[#allocation3 + $0x1a98] sm:$0xff]
    %v1697 = vld [vmem:[#allocation3 + $0x1aa0] sm:$0xff]
    %v1698 = vld [vmem:[#allocation3 + $0x1aa8] sm:$0xff]
    %v1699 = vld [vmem:[#allocation3 + $0x1ab0] sm:$0xff]
    %v1700 = vld [vmem:[#allocation3 + $0x1ab8] sm:$0xff]
    %v1701 = vld [vmem:[#allocation3 + $0x1ac0] sm:$0xff]
    %v1702 = vld [vmem:[#allocation3 + $0x1ac8] sm:$0xff]
    %v1703 = vld [vmem:[#allocation3 + $0x1ad0] sm:$0xff]
    %v1704 = vld [vmem:[#allocation3 + $0x1ad8] sm:$0xff]
    %v1705 = vld [vmem:[#allocation3 + $0x1ae0] sm:$0xff]
    %v1706 = vld [vmem:[#allocation3 + $0x1ae8] sm:$0xff]
    %v1707 = vld [vmem:[#allocation3 + $0x1af0] sm:$0xff]
    %v1708 = vld [vmem:[#allocation3 + $0x1af8] sm:$0xff]
    %v1709 = vld [vmem:[#allocation3 + $0x1b00] sm:$0xff]
    %v1710 = vld [vmem:[#allocation3 + $0x1b08] sm:$0xff]
    %v1711 = vld [vmem:[#allocation3 + $0x1b10] sm:$0xff]
    %v1712 = vld [vmem:[#allocation3 + $0x1b18] sm:$0xff]
    %v1713 = vld [vmem:[#allocation3 + $0x1b20] sm:$0xff]
    %v1714 = vld [vmem:[#allocation3 + $0x1b28] sm:$0xff]
    %v1715 = vld [vmem:[#allocation3 + $0x1b30] sm:$0xff]
    %v1716 = vld [vmem:[#allocation3 + $0x1b38] sm:$0xff]
    %v1717 = vld [vmem:[#allocation3 + $0x1b40] sm:$0xff]
    %v1718 = vld [vmem:[#allocation3 + $0x1b48] sm:$0xff]
    %v1719 = vld [vmem:[#allocation3 + $0x1b50] sm:$0xff]
    %v1720 = vld [vmem:[#allocation3 + $0x1b58] sm:$0xff]
    %v1721 = vld [vmem:[#allocation3 + $0x1b60] sm:$0xff]
    %v1722 = vld [vmem:[#allocation3 + $0x1b68] sm:$0xff]
    %v1723 = vld [vmem:[#allocation3 + $0x1b70] sm:$0xff]
    %v1724 = vld [vmem:[#allocation3 + $0x1b78] sm:$0xff]
    %v1725 = vld [vmem:[#allocation3 + $0x1b80] sm:$0xff]
    %v1726 = vld [vmem:[#allocation3 + $0x1b88] sm:$0xff]
    %v1727 = vld [vmem:[#allocation3 + $0x1b90] sm:$0xff]
    %v1728 = vld [vmem:[#allocation3 + $0x1b98] sm:$0xff]
    %v1729 = vld [vmem:[#allocation3 + $0x1ba0] sm:$0xff]
    %v1730 = vld [vmem:[#allocation3 + $0x1ba8] sm:$0xff]
    %v1731 = vld [vmem:[#allocation3 + $0x1bb0] sm:$0xff]
    %v1732 = vld [vmem:[#allocation3 + $0x1bb8] sm:$0xff]
    %v1733 = vld [vmem:[#allocation3 + $0x1bc0] sm:$0xff]
    %v1734 = vld [vmem:[#allocation3 + $0x1bc8] sm:$0xff]
    %v1735 = vld [vmem:[#allocation3 + $0x1bd0] sm:$0xff]
    %v1736 = vld [vmem:[#allocation3 + $0x1bd8] sm:$0xff]
    %v1737 = vld [vmem:[#allocation3 + $0x1be0] sm:$0xff]
    %v1738 = vld [vmem:[#allocation3 + $0x1be8] sm:$0xff]
    %v1739 = vld [vmem:[#allocation3 + $0x1bf0] sm:$0xff]
    %v1740 = vld [vmem:[#allocation3 + $0x1bf8] sm:$0xff]
    %v1741 = vld [vmem:[#allocation3 + $0x1c00] sm:$0xff]
    %v1742 = vld [vmem:[#allocation3 + $0x1c08] sm:$0xff]
    %v1743 = vld [vmem:[#allocation3 + $0x1c10] sm:$0xff]
    %v1744 = vld [vmem:[#allocation3 + $0x1c18] sm:$0xff]
    %v1745 = vld [vmem:[#allocation3 + $0x1c20] sm:$0xff]
    %v1746 = vld [vmem:[#allocation3 + $0x1c28] sm:$0xff]
    %v1747 = vld [vmem:[#allocation3 + $0x1c30] sm:$0xff]
    %v1748 = vld [vmem:[#allocation3 + $0x1c38] sm:$0xff]
    %v1749 = vld [vmem:[#allocation3 + $0x1c40] sm:$0xff]
    %v1750 = vld [vmem:[#allocation3 + $0x1c48] sm:$0xff]
    %v1751 = vld [vmem:[#allocation3 + $0x1c50] sm:$0xff]
    %v1752 = vld [vmem:[#allocation3 + $0x1c58] sm:$0xff]
    %v1753 = vld [vmem:[#allocation3 + $0x1c60] sm:$0xff]
    %v1754 = vld [vmem:[#allocation3 + $0x1c68] sm:$0xff]
    %v1755 = vld [vmem:[#allocation3 + $0x1c70] sm:$0xff]
    %v1756 = vld [vmem:[#allocation3 + $0x1c78] sm:$0xff]
    %v1757 = vld [vmem:[#allocation3 + $0x1c80] sm:$0xff]
    %v1758 = vld [vmem:[#allocation3 + $0x1c88] sm:$0xff]
    %v1759 = vld [vmem:[#allocation3 + $0x1c90] sm:$0xff]
    %v1760 = vld [vmem:[#allocation3 + $0x1c98] sm:$0xff]
    %v1761 = vld [vmem:[#allocation3 + $0x1ca0] sm:$0xff]
    %v1762 = vld [vmem:[#allocation3 + $0x1ca8] sm:$0xff]
    %v1763 = vld [vmem:[#allocation3 + $0x1cb0] sm:$0xff]
    %v1764 = vld [vmem:[#allocation3 + $0x1cb8] sm:$0xff]
    %v1765 = vld [vmem:[#allocation3 + $0x1cc0] sm:$0xff]
    %v1766 = vld [vmem:[#allocation3 + $0x1cc8] sm:$0xff]
    %v1767 = vld [vmem:[#allocation3 + $0x1cd0] sm:$0xff]
    %v1768 = vld [vmem:[#allocation3 + $0x1cd8] sm:$0xff]
    %v1769 = vld [vmem:[#allocation3 + $0x1ce0] sm:$0xff]
    %v1770 = vld [vmem:[#allocation3 + $0x1ce8] sm:$0xff]
    %v1771 = vld [vmem:[#allocation3 + $0x1cf0] sm:$0xff]
    %v1772 = vld [vmem:[#allocation3 + $0x1cf8] sm:$0xff]
    %v1773 = vld [vmem:[#allocation3 + $0x1d00] sm:$0xff]
    %v1774 = vld [vmem:[#allocation3 + $0x1d08] sm:$0xff]
    %v1775 = vld [vmem:[#allocation3 + $0x1d10] sm:$0xff]
    %v1776 = vld [vmem:[#allocation3 + $0x1d18] sm:$0xff]
    %v1777 = vld [vmem:[#allocation3 + $0x1d20] sm:$0xff]
    %v1778 = vld [vmem:[#allocation3 + $0x1d28] sm:$0xff]
    %v1779 = vld [vmem:[#allocation3 + $0x1d30] sm:$0xff]
    %v1780 = vld [vmem:[#allocation3 + $0x1d38] sm:$0xff]
    %v1781 = vld [vmem:[#allocation3 + $0x1d40] sm:$0xff]
    %v1782 = vld [vmem:[#allocation3 + $0x1d48] sm:$0xff]
    %v1783 = vld [vmem:[#allocation3 + $0x1d50] sm:$0xff]
    %v1784 = vld [vmem:[#allocation3 + $0x1d58] sm:$0xff]
    %v1785 = vld [vmem:[#allocation3 + $0x1d60] sm:$0xff]
    %v1786 = vld [vmem:[#allocation3 + $0x1d68] sm:$0xff]
    %v1787 = vld [vmem:[#allocation3 + $0x1d70] sm:$0xff]
    %v1788 = vld [vmem:[#allocation3 + $0x1d78] sm:$0xff]
    %v1789 = vld [vmem:[#allocation3 + $0x1d80] sm:$0xff]
    %v1790 = vld [vmem:[#allocation3 + $0x1d88] sm:$0xff]
    %v1791 = vld [vmem:[#allocation3 + $0x1d90] sm:$0xff]
    %v1792 = vld [vmem:[#allocation3 + $0x1d98] sm:$0xff]
    %v1793 = vld [vmem:[#allocation3 + $0x1da0] sm:$0xff]
    %v1794 = vld [vmem:[#allocation3 + $0x1da8] sm:$0xff]
    %v1795 = vld [vmem:[#allocation3 + $0x1db0] sm:$0xff]
    %v1796 = vld [vmem:[#allocation3 + $0x1db8] sm:$0xff]
    %v1797 = vld [vmem:[#allocation3 + $0x1dc0] sm:$0xff]
    %v1798 = vld [vmem:[#allocation3 + $0x1dc8] sm:$0xff]
    %v1799 = vld [vmem:[#allocation3 + $0x1dd0] sm:$0xff]
    %v1800 = vld [vmem:[#allocation3 + $0x1dd8] sm:$0xff]
    %v1801 = vld [vmem:[#allocation3 + $0x1de0] sm:$0xff]
    %v1802 = vld [vmem:[#allocation3 + $0x1de8] sm:$0xff]
    %v1803 = vld [vmem:[#allocation3 + $0x1df0] sm:$0xff]
    %v1804 = vld [vmem:[#allocation3 + $0x1df8] sm:$0xff]
    %v1805 = vld [vmem:[#allocation3 + $0x1e00] sm:$0xff]
    %v1806 = vld [vmem:[#allocation3 + $0x1e08] sm:$0xff]
    %v1807 = vld [vmem:[#allocation3 + $0x1e10] sm:$0xff]
    %v1808 = vld [vmem:[#allocation3 + $0x1e18] sm:$0xff]
    %v1809 = vld [vmem:[#allocation3 + $0x1e20] sm:$0xff]
    %v1810 = vld [vmem:[#allocation3 + $0x1e28] sm:$0xff]
    %v1811 = vld [vmem:[#allocation3 + $0x1e30] sm:$0xff]
    %v1812 = vld [vmem:[#allocation3 + $0x1e38] sm:$0xff]
    %v1813 = vld [vmem:[#allocation3 + $0x1e40] sm:$0xff]
    %v1814 = vld [vmem:[#allocation3 + $0x1e48] sm:$0xff]
    %v1815 = vld [vmem:[#allocation3 + $0x1e50] sm:$0xff]
    %v1816 = vld [vmem:[#allocation3 + $0x1e58] sm:$0xff]
    %v1817 = vld [vmem:[#allocation3 + $0x1e60] sm:$0xff]
    %v1818 = vld [vmem:[#allocation3 + $0x1e68] sm:$0xff]
    %v1819 = vld [vmem:[#allocation3 + $0x1e70] sm:$0xff]
    %v1820 = vld [vmem:[#allocation3 + $0x1e78] sm:$0xff]
    %v1821 = vld [vmem:[#allocation3 + $0x1e80] sm:$0xff]
    %v1822 = vld [vmem:[#allocation3 + $0x1e88] sm:$0xff]
    %v1823 = vld [vmem:[#allocation3 + $0x1e90] sm:$0xff]
    %v1824 = vld [vmem:[#allocation3 + $0x1e98] sm:$0xff]
    %v1825 = vld [vmem:[#allocation3 + $0x1ea0] sm:$0xff]
    %v1826 = vld [vmem:[#allocation3 + $0x1ea8] sm:$0xff]
    %v1827 = vld [vmem:[#allocation3 + $0x1eb0] sm:$0xff]
    %v1828 = vld [vmem:[#allocation3 + $0x1eb8] sm:$0xff]
    %v1829 = vld [vmem:[#allocation3 + $0x1ec0] sm:$0xff]
    %v1830 = vld [vmem:[#allocation3 + $0x1ec8] sm:$0xff]
    %v1831 = vld [vmem:[#allocation3 + $0x1ed0] sm:$0xff]
    %v1832 = vld [vmem:[#allocation3 + $0x1ed8] sm:$0xff]
    %v1833 = vld [vmem:[#allocation3 + $0x1ee0] sm:$0xff]
    %v1834 = vld [vmem:[#allocation3 + $0x1ee8] sm:$0xff]
    %v1835 = vld [vmem:[#allocation3 + $0x1ef0] sm:$0xff]
    %v1836 = vld [vmem:[#allocation3 + $0x1ef8] sm:$0xff]
    %v1837 = vld [vmem:[#allocation3 + $0x1f00] sm:$0xff]
    %v1838 = vld [vmem:[#allocation3 + $0x1f08] sm:$0xff]
    %v1839 = vld [vmem:[#allocation3 + $0x1f10] sm:$0xff]
    %v1840 = vld [vmem:[#allocation3 + $0x1f18] sm:$0xff]
    %v1841 = vld [vmem:[#allocation3 + $0x1f20] sm:$0xff]
    %v1842 = vld [vmem:[#allocation3 + $0x1f28] sm:$0xff]
    %v1843 = vld [vmem:[#allocation3 + $0x1f30] sm:$0xff]
    %v1844 = vld [vmem:[#allocation3 + $0x1f38] sm:$0xff]
    %v1845 = vld [vmem:[#allocation3 + $0x1f40] sm:$0xff]
    %v1846 = vld [vmem:[#allocation3 + $0x1f48] sm:$0xff]
    %v1847 = vld [vmem:[#allocation3 + $0x1f50] sm:$0xff]
    %v1848 = vld [vmem:[#allocation3 + $0x1f58] sm:$0xff]
    %v1849 = vld [vmem:[#allocation3 + $0x1f60] sm:$0xff]
    %v1850 = vld [vmem:[#allocation3 + $0x1f68] sm:$0xff]
    %v1851 = vld [vmem:[#allocation3 + $0x1f70] sm:$0xff]
    %v1852 = vld [vmem:[#allocation3 + $0x1f78] sm:$0xff]
    %v1853 = vld [vmem:[#allocation3 + $0x1f80] sm:$0xff]
    %v1854 = vld [vmem:[#allocation3 + $0x1f88] sm:$0xff]
    %v1855 = vld [vmem:[#allocation3 + $0x1f90] sm:$0xff]
    %v1856 = vld [vmem:[#allocation3 + $0x1f98] sm:$0xff]
    %v1857 = vld [vmem:[#allocation3 + $0x1fa0] sm:$0xff]
    %v1858 = vld [vmem:[#allocation3 + $0x1fa8] sm:$0xff]
    %v1859 = vld [vmem:[#allocation3 + $0x1fb0] sm:$0xff]
    %v1860 = vld [vmem:[#allocation3 + $0x1fb8] sm:$0xff]
    %v1861 = vld [vmem:[#allocation3 + $0x1fc0] sm:$0xff]
    %v1862 = vld [vmem:[#allocation3 + $0x1fc8] sm:$0xff]
    %v1863 = vld [vmem:[#allocation3 + $0x1fd0] sm:$0xff]
    %v1864 = vld [vmem:[#allocation3 + $0x1fd8] sm:$0xff]
    %v1865 = vld [vmem:[#allocation3 + $0x1fe0] sm:$0xff]
    %v1866 = vld [vmem:[#allocation3 + $0x1fe8] sm:$0xff]
    %v1867 = vld [vmem:[#allocation3 + $0x1ff0] sm:$0xff]
    %v1868 = vld [vmem:[#allocation3 + $0x1ff8] sm:$0xff]
    %v1869 = vld [vmem:[#allocation11] sm:$0xff]
    %v1871 = vlaneseq
    %v1872 = vshrl.u32 %v1871, 7
    %v1873 = vsub.s32 0, %v1872
    %v1874 = vrot.slane %v1869, %v1873
    %v1875 = vlaneseq
    %v1876 = vshrl.u32 %v1875, 7
    %v1877 = vsub.s32 1, %v1876
    %v1878 = vrot.slane %v1869, %v1877
    %v1879 = vlaneseq
    %v1880 = vshrl.u32 %v1879, 7
    %v1881 = vsub.s32 2, %v1880
    %v1882 = vrot.slane %v1869, %v1881
    %v1883 = vlaneseq
    %v1884 = vshrl.u32 %v1883, 7
    %v1885 = vsub.s32 3, %v1884
    %v1886 = vrot.slane %v1869, %v1885
    %v1887 = vlaneseq
    %v1888 = vshrl.u32 %v1887, 7
    %v1889 = vsub.s32 4, %v1888
    %v1890 = vrot.slane %v1869, %v1889
    %v1891 = vlaneseq
    %v1892 = vshrl.u32 %v1891, 7
    %v1893 = vsub.s32 5, %v1892
    %v1894 = vrot.slane %v1869, %v1893
    %v1895 = vlaneseq
    %v1896 = vshrl.u32 %v1895, 7
    %v1897 = vsub.s32 6, %v1896
    %v1898 = vrot.slane %v1869, %v1897
    %v1899 = vlaneseq
    %v1900 = vshrl.u32 %v1899, 7
    %v1901 = vsub.s32 7, %v1900
    %v1902 = vrot.slane %v1869, %v1901
    %1911 = vmatprep.subr.bf16.mxu0 %v846
    %1912 = vmatpush1.bf16.msra.mxu0 %v845
    %1913 = vmatprep.subr.bf16.mxu0 %v854
    %1914 = vmatpush1.bf16.msra.mxu0 %v853
    %1915 = vmatprep.subr.bf16.mxu0 %v862
    %1916 = vmatpush1.bf16.msra.mxu0 %v861
    %1917 = vmatprep.subr.bf16.mxu0 %v870
    %1918 = vmatpush1.bf16.msra.mxu0 %v869
    %1919 = vmatprep.subr.bf16.mxu0 %v878
    %1920 = vmatpush1.bf16.msra.mxu0 %v877
    %1921 = vmatprep.subr.bf16.mxu0 %v886
    %1922 = vmatpush1.bf16.msra.mxu0 %v885
    %1923 = vmatprep.subr.bf16.mxu0 %v894
    %1924 = vmatpush1.bf16.msra.mxu0 %v893
    %1925 = vmatprep.subr.bf16.mxu0 %v902
    %1926 = vmatpush1.bf16.msra.mxu0 %v901
    %1927 = vmatprep.subr.bf16.mxu0 %v910
    %1928 = vmatpush1.bf16.msra.mxu0 %v909
    %1929 = vmatprep.subr.bf16.mxu0 %v918
    %1930 = vmatpush1.bf16.msra.mxu0 %v917
    %1931 = vmatprep.subr.bf16.mxu0 %v926
    %1932 = vmatpush1.bf16.msra.mxu0 %v925
    %1933 = vmatprep.subr.bf16.mxu0 %v934
    %1934 = vmatpush1.bf16.msra.mxu0 %v933
    %1935 = vmatprep.subr.bf16.mxu0 %v942
    %1936 = vmatpush1.bf16.msra.mxu0 %v941
    %1937 = vmatprep.subr.bf16.mxu0 %v950
    %1938 = vmatpush1.bf16.msra.mxu0 %v949
    %1939 = vmatprep.subr.bf16.mxu0 %v958
    %1940 = vmatpush1.bf16.msra.mxu0 %v957
    %1941 = vmatprep.subr.bf16.mxu0 %v966
    %1942 = vmatpush1.bf16.msra.mxu0 %v965
    %1943 = vmatprep.mubr.bf16.mxu0 %v826
    %1944 = vmatmul.mubr.bf16.gmra.mrb[0].mxu0 %v825
    %v1945 = vpop.f32.mrb[0].mxu0
    %v1946 = vadd.f32 %v1874, %v1945
    %v1947 = vpop.f32.mrb[0].mxu0
    %v1948 = vadd.f32 %v1878, %v1947
    %v1949 = vpop.f32.mrb[0].mxu0
    %v1950 = vpop.f32.mrb[0].mxu0
    %1951 = vdwg.mxu0
    %1952 = vmatprep.subr.bf16.mxu0 %v974
    %1953 = vmatpush1.bf16.msra.mxu0 %v973
    %1954 = vmatprep.subr.bf16.mxu0 %v982
    %1955 = vmatpush1.bf16.msra.mxu0 %v981
    %1956 = vmatprep.subr.bf16.mxu0 %v990
    %1957 = vmatpush1.bf16.msra.mxu0 %v989
    %1958 = vmatprep.subr.bf16.mxu0 %v998
    %1959 = vmatpush1.bf16.msra.mxu0 %v997
    %1960 = vmatprep.subr.bf16.mxu0 %v1006
    %1961 = vmatpush1.bf16.msra.mxu0 %v1005
    %1962 = vmatprep.subr.bf16.mxu0 %v1014
    %1963 = vmatpush1.bf16.msra.mxu0 %v1013
    %1964 = vmatprep.subr.bf16.mxu0 %v1022
    %1965 = vmatpush1.bf16.msra.mxu0 %v1021
    %1966 = vmatprep.subr.bf16.mxu0 %v1030
    %1967 = vmatpush1.bf16.msra.mxu0 %v1029
    %1968 = vmatprep.subr.bf16.mxu0 %v1038
    %1969 = vmatpush1.bf16.msra.mxu0 %v1037
    %1970 = vmatprep.subr.bf16.mxu0 %v1046
    %1971 = vmatpush1.bf16.msra.mxu0 %v1045
    %1972 = vmatprep.subr.bf16.mxu0 %v1054
    %1973 = vmatpush1.bf16.msra.mxu0 %v1053
    %1974 = vmatprep.subr.bf16.mxu0 %v1062
    %1975 = vmatpush1.bf16.msra.mxu0 %v1061
    %1976 = vmatprep.subr.bf16.mxu0 %v1070
    %1977 = vmatpush1.bf16.msra.mxu0 %v1069
    %1978 = vmatprep.subr.bf16.mxu0 %v1078
    %1979 = vmatpush1.bf16.msra.mxu0 %v1077
    %1980 = vmatprep.subr.bf16.mxu0 %v1086
    %1981 = vmatpush1.bf16.msra.mxu0 %v1085
    %1982 = vmatprep.subr.bf16.mxu0 %v1094
    %1983 = vmatpush1.bf16.msra.mxu0 %v1093
    %1984 = vmatprep.mubr.bf16.mxu0 %v828
    %1985 = vmatmul.mubr.bf16.gmra.mrb[0].mxu0 %v827
    %v1986 = vpop.f32.mrb[0].mxu0
    %v1987 = vadd.f32 %v1946, %v1986
    %v1988 = vpop.f32.mrb[0].mxu0
    %v1989 = vadd.f32 %v1948, %v1988
    %v1990 = vpop.f32.mrb[0].mxu0
    %v1991 = vpop.f32.mrb[0].mxu0
    %1992 = vdwg.mxu0
    %1993 = vmatprep.subr.bf16.mxu0 %v1102
    %1994 = vmatpush1.bf16.msra.mxu0 %v1101
    %1995 = vmatprep.subr.bf16.mxu0 %v1110
    %1996 = vmatpush1.bf16.msra.mxu0 %v1109
    %1997 = vmatprep.subr.bf16.mxu0 %v1118
    %1998 = vmatpush1.bf16.msra.mxu0 %v1117
    %1999 = vmatprep.subr.bf16.mxu0 %v1126
    %2000 = vmatpush1.bf16.msra.mxu0 %v1125
    %2001 = vmatprep.subr.bf16.mxu0 %v1134
    %2002 = vmatpush1.bf16.msra.mxu0 %v1133
    %2003 = vmatprep.subr.bf16.mxu0 %v1142
    %2004 = vmatpush1.bf16.msra.mxu0 %v1141
    %2005 = vmatprep.subr.bf16.mxu0 %v1150
    %2006 = vmatpush1.bf16.msra.mxu0 %v1149
    %2007 = vmatprep.subr.bf16.mxu0 %v1158
    %2008 = vmatpush1.bf16.msra.mxu0 %v1157
    %2009 = vmatprep.subr.bf16.mxu0 %v1166
    %2010 = vmatpush1.bf16.msra.mxu0 %v1165
    %2011 = vmatprep.subr.bf16.mxu0 %v1174
    %2012 = vmatpush1.bf16.msra.mxu0 %v1173
    %2013 = vmatprep.subr.bf16.mxu0 %v1182
    %2014 = vmatpush1.bf16.msra.mxu0 %v1181
    %2015 = vmatprep.subr.bf16.mxu0 %v1190
    %2016 = vmatpush1.bf16.msra.mxu0 %v1189
    %2017 = vmatprep.subr.bf16.mxu0 %v1198
    %2018 = vmatpush1.bf16.msra.mxu0 %v1197
    %2019 = vmatprep.subr.bf16.mxu0 %v1206
    %2020 = vmatpush1.bf16.msra.mxu0 %v1205
    %2021 = vmatprep.subr.bf16.mxu0 %v1214
    %2022 = vmatpush1.bf16.msra.mxu0 %v1213
    %2023 = vmatprep.subr.bf16.mxu0 %v1222
    %2024 = vmatpush1.bf16.msra.mxu0 %v1221
    %2025 = vmatprep.mubr.bf16.mxu0 %v830
    %2026 = vmatmul.mubr.bf16.gmra.mrb[0].mxu0 %v829
    %v2027 = vpop.f32.mrb[0].mxu0
    %v2028 = vadd.f32 %v1987, %v2027
    %v2029 = vpop.f32.mrb[0].mxu0
    %v2030 = vadd.f32 %v1989, %v2029
    %v2031 = vpop.f32.mrb[0].mxu0
    %v2032 = vpop.f32.mrb[0].mxu0
    %2033 = vdwg.mxu0
    %2034 = vmatprep.subr.bf16.mxu0 %v1230
    %2035 = vmatpush1.bf16.msra.mxu0 %v1229
    %2036 = vmatprep.subr.bf16.mxu0 %v1238
    %2037 = vmatpush1.bf16.msra.mxu0 %v1237
    %2038 = vmatprep.subr.bf16.mxu0 %v1246
    %2039 = vmatpush1.bf16.msra.mxu0 %v1245
    %2040 = vmatprep.subr.bf16.mxu0 %v1254
    %2041 = vmatpush1.bf16.msra.mxu0 %v1253
    %2042 = vmatprep.subr.bf16.mxu0 %v1262
    %2043 = vmatpush1.bf16.msra.mxu0 %v1261
    %2044 = vmatprep.subr.bf16.mxu0 %v1270
    %2045 = vmatpush1.bf16.msra.mxu0 %v1269
    %2046 = vmatprep.subr.bf16.mxu0 %v1278
    %2047 = vmatpush1.bf16.msra.mxu0 %v1277
    %2048 = vmatprep.subr.bf16.mxu0 %v1286
    %2049 = vmatpush1.bf16.msra.mxu0 %v1285
    %2050 = vmatprep.subr.bf16.mxu0 %v1294
    %2051 = vmatpush1.bf16.msra.mxu0 %v1293
    %2052 = vmatprep.subr.bf16.mxu0 %v1302
    %2053 = vmatpush1.bf16.msra.mxu0 %v1301
    %2054 = vmatprep.subr.bf16.mxu0 %v1310
    %2055 = vmatpush1.bf16.msra.mxu0 %v1309
    %2056 = vmatprep.subr.bf16.mxu0 %v1318
    %2057 = vmatpush1.bf16.msra.mxu0 %v1317
    %2058 = vmatprep.subr.bf16.mxu0 %v1326
    %2059 = vmatpush1.bf16.msra.mxu0 %v1325
    %2060 = vmatprep.subr.bf16.mxu0 %v1334
    %2061 = vmatpush1.bf16.msra.mxu0 %v1333
    %2062 = vmatprep.subr.bf16.mxu0 %v1342
    %2063 = vmatpush1.bf16.msra.mxu0 %v1341
    %2064 = vmatprep.subr.bf16.mxu0 %v1350
    %2065 = vmatpush1.bf16.msra.mxu0 %v1349
    %2066 = vmatprep.mubr.bf16.mxu0 %v832
    %2067 = vmatmul.mubr.bf16.gmra.mrb[0].mxu0 %v831
    %v2068 = vpop.f32.mrb[0].mxu0
    %v2069 = vadd.f32 %v2028, %v2068
    %v2070 = vpop.f32.mrb[0].mxu0
    %v2071 = vadd.f32 %v2030, %v2070
    %v2072 = vpop.f32.mrb[0].mxu0
    %v2073 = vpop.f32.mrb[0].mxu0
    %2074 = vdwg.mxu0
    %2075 = vmatprep.subr.bf16.mxu0 %v1358
    %2076 = vmatpush1.bf16.msra.mxu0 %v1357
    %2077 = vmatprep.subr.bf16.mxu0 %v1366
    %2078 = vmatpush1.bf16.msra.mxu0 %v1365
    %2079 = vmatprep.subr.bf16.mxu0 %v1374
    %2080 = vmatpush1.bf16.msra.mxu0 %v1373
    %2081 = vmatprep.subr.bf16.mxu0 %v1382
    %2082 = vmatpush1.bf16.msra.mxu0 %v1381
    %2083 = vmatprep.subr.bf16.mxu0 %v1390
    %2084 = vmatpush1.bf16.msra.mxu0 %v1389
    %2085 = vmatprep.subr.bf16.mxu0 %v1398
    %2086 = vmatpush1.bf16.msra.mxu0 %v1397
    %2087 = vmatprep.subr.bf16.mxu0 %v1406
    %2088 = vmatpush1.bf16.msra.mxu0 %v1405
    %2089 = vmatprep.subr.bf16.mxu0 %v1414
    %2090 = vmatpush1.bf16.msra.mxu0 %v1413
    %2091 = vmatprep.subr.bf16.mxu0 %v1422
    %2092 = vmatpush1.bf16.msra.mxu0 %v1421
    %2093 = vmatprep.subr.bf16.mxu0 %v1430
    %2094 = vmatpush1.bf16.msra.mxu0 %v1429
    %2095 = vmatprep.subr.bf16.mxu0 %v1438
    %2096 = vmatpush1.bf16.msra.mxu0 %v1437
    %2097 = vmatprep.subr.bf16.mxu0 %v1446
    %2098 = vmatpush1.bf16.msra.mxu0 %v1445
    %2099 = vmatprep.subr.bf16.mxu0 %v1454
    %2100 = vmatpush1.bf16.msra.mxu0 %v1453
    %2101 = vmatprep.subr.bf16.mxu0 %v1462
    %2102 = vmatpush1.bf16.msra.mxu0 %v1461
    %2103 = vmatprep.subr.bf16.mxu0 %v1470
    %2104 = vmatpush1.bf16.msra.mxu0 %v1469
    %2105 = vmatprep.subr.bf16.mxu0 %v1478
    %2106 = vmatpush1.bf16.msra.mxu0 %v1477
    %2107 = vmatprep.mubr.bf16.mxu0 %v834
    %2108 = vmatmul.mubr.bf16.gmra.mrb[0].mxu0 %v833
    %v2109 = vpop.f32.mrb[0].mxu0
    %v2110 = vadd.f32 %v2069, %v2109
    %v2111 = vpop.f32.mrb[0].mxu0
    %v2112 = vadd.f32 %v2071, %v2111
    %v2113 = vpop.f32.mrb[0].mxu0
    %v2114 = vpop.f32.mrb[0].mxu0
    %2115 = vdwg.mxu0
    %2116 = vmatprep.subr.bf16.mxu0 %v1486
    %2117 = vmatpush1.bf16.msra.mxu0 %v1485
    %2118 = vmatprep.subr.bf16.mxu0 %v1494
    %2119 = vmatpush1.bf16.msra.mxu0 %v1493
    %2120 = vmatprep.subr.bf16.mxu0 %v1502
    %2121 = vmatpush1.bf16.msra.mxu0 %v1501
    %2122 = vmatprep.subr.bf16.mxu0 %v1510
    %2123 = vmatpush1.bf16.msra.mxu0 %v1509
    %2124 = vmatprep.subr.bf16.mxu0 %v1518
    %2125 = vmatpush1.bf16.msra.mxu0 %v1517
    %2126 = vmatprep.subr.bf16.mxu0 %v1526
    %2127 = vmatpush1.bf16.msra.mxu0 %v1525
    %2128 = vmatprep.subr.bf16.mxu0 %v1534
    %2129 = vmatpush1.bf16.msra.mxu0 %v1533
    %2130 = vmatprep.subr.bf16.mxu0 %v1542
    %2131 = vmatpush1.bf16.msra.mxu0 %v1541
    %2132 = vmatprep.subr.bf16.mxu0 %v1550
    %2133 = vmatpush1.bf16.msra.mxu0 %v1549
    %2134 = vmatprep.subr.bf16.mxu0 %v1558
    %2135 = vmatpush1.bf16.msra.mxu0 %v1557
    %2136 = vmatprep.subr.bf16.mxu0 %v1566
    %2137 = vmatpush1.bf16.msra.mxu0 %v1565
    %2138 = vmatprep.subr.bf16.mxu0 %v1574
    %2139 = vmatpush1.bf16.msra.mxu0 %v1573
    %2140 = vmatprep.subr.bf16.mxu0 %v1582
    %2141 = vmatpush1.bf16.msra.mxu0 %v1581
    %2142 = vmatprep.subr.bf16.mxu0 %v1590
    %2143 = vmatpush1.bf16.msra.mxu0 %v1589
    %2144 = vmatprep.subr.bf16.mxu0 %v1598
    %2145 = vmatpush1.bf16.msra.mxu0 %v1597
    %2146 = vmatprep.subr.bf16.mxu0 %v1606
    %2147 = vmatpush1.bf16.msra.mxu0 %v1605
    %2148 = vmatprep.mubr.bf16.mxu0 %v836
    %2149 = vmatmul.mubr.bf16.gmra.mrb[0].mxu0 %v835
    %v2150 = vpop.f32.mrb[0].mxu0
    %v2151 = vadd.f32 %v2110, %v2150
    %v2152 = vpop.f32.mrb[0].mxu0
    %v2153 = vadd.f32 %v2112, %v2152
    %v2154 = vpop.f32.mrb[0].mxu0
    %v2155 = vpop.f32.mrb[0].mxu0
    %2156 = vdwg.mxu0
    %2157 = vmatprep.subr.bf16.mxu0 %v1614
    %2158 = vmatpush1.bf16.msra.mxu0 %v1613
    %2159 = vmatprep.subr.bf16.mxu0 %v1622
    %2160 = vmatpush1.bf16.msra.mxu0 %v1621
    %2161 = vmatprep.subr.bf16.mxu0 %v1630
    %2162 = vmatpush1.bf16.msra.mxu0 %v1629
    %2163 = vmatprep.subr.bf16.mxu0 %v1638
    %2164 = vmatpush1.bf16.msra.mxu0 %v1637
    %2165 = vmatprep.subr.bf16.mxu0 %v1646
    %2166 = vmatpush1.bf16.msra.mxu0 %v1645
    %2167 = vmatprep.subr.bf16.mxu0 %v1654
    %2168 = vmatpush1.bf16.msra.mxu0 %v1653
    %2169 = vmatprep.subr.bf16.mxu0 %v1662
    %2170 = vmatpush1.bf16.msra.mxu0 %v1661
    %2171 = vmatprep.subr.bf16.mxu0 %v1670
    %2172 = vmatpush1.bf16.msra.mxu0 %v1669
    %2173 = vmatprep.subr.bf16.mxu0 %v1678
    %2174 = vmatpush1.bf16.msra.mxu0 %v1677
    %2175 = vmatprep.subr.bf16.mxu0 %v1686
    %2176 = vmatpush1.bf16.msra.mxu0 %v1685
    %2177 = vmatprep.subr.bf16.mxu0 %v1694
    %2178 = vmatpush1.bf16.msra.mxu0 %v1693
    %2179 = vmatprep.subr.bf16.mxu0 %v1702
    %2180 = vmatpush1.bf16.msra.mxu0 %v1701
    %2181 = vmatprep.subr.bf16.mxu0 %v1710
    %2182 = vmatpush1.bf16.msra.mxu0 %v1709
    %2183 = vmatprep.subr.bf16.mxu0 %v1718
    %2184 = vmatpush1.bf16.msra.mxu0 %v1717
    %2185 = vmatprep.subr.bf16.mxu0 %v1726
    %2186 = vmatpush1.bf16.msra.mxu0 %v1725
    %2187 = vmatprep.subr.bf16.mxu0 %v1734
    %2188 = vmatpush1.bf16.msra.mxu0 %v1733
    %2189 = vmatprep.mubr.bf16.mxu0 %v838
    %2190 = vmatmul.mubr.bf16.gmra.mrb[0].mxu0 %v837
    %v2191 = vpop.f32.mrb[0].mxu0
    %v2192 = vadd.f32 %v2151, %v2191
    %v2193 = vpop.f32.mrb[0].mxu0
    %v2194 = vadd.f32 %v2153, %v2193
    %v2195 = vpop.f32.mrb[0].mxu0
    %v2196 = vpop.f32.mrb[0].mxu0
    %2197 = vdwg.mxu0
    %2198 = vmatprep.subr.bf16.mxu0 %v1742
    %2199 = vmatpush1.bf16.msra.mxu0 %v1741
    %2200 = vmatprep.subr.bf16.mxu0 %v1750
    %2201 = vmatpush1.bf16.msra.mxu0 %v1749
    %2202 = vmatprep.subr.bf16.mxu0 %v1758
    %2203 = vmatpush1.bf16.msra.mxu0 %v1757
    %2204 = vmatprep.subr.bf16.mxu0 %v1766
    %2205 = vmatpush1.bf16.msra.mxu0 %v1765
    %2206 = vmatprep.subr.bf16.mxu0 %v1774
    %2207 = vmatpush1.bf16.msra.mxu0 %v1773
    %2208 = vmatprep.subr.bf16.mxu0 %v1782
    %2209 = vmatpush1.bf16.msra.mxu0 %v1781
    %2210 = vmatprep.subr.bf16.mxu0 %v1790
    %2211 = vmatpush1.bf16.msra.mxu0 %v1789
    %2212 = vmatprep.subr.bf16.mxu0 %v1798
    %2213 = vmatpush1.bf16.msra.mxu0 %v1797
    %2214 = vmatprep.subr.bf16.mxu0 %v1806
    %2215 = vmatpush1.bf16.msra.mxu0 %v1805
    %2216 = vmatprep.subr.bf16.mxu0 %v1814
    %2217 = vmatpush1.bf16.msra.mxu0 %v1813
    %2218 = vmatprep.subr.bf16.mxu0 %v1822
    %2219 = vmatpush1.bf16.msra.mxu0 %v1821
    %2220 = vmatprep.subr.bf16.mxu0 %v1830
    %2221 = vmatpush1.bf16.msra.mxu0 %v1829
    %2222 = vmatprep.subr.bf16.mxu0 %v1838
    %2223 = vmatpush1.bf16.msra.mxu0 %v1837
    %2224 = vmatprep.subr.bf16.mxu0 %v1846
    %2225 = vmatpush1.bf16.msra.mxu0 %v1845
    %2226 = vmatprep.subr.bf16.mxu0 %v1854
    %2227 = vmatpush1.bf16.msra.mxu0 %v1853
    %2228 = vmatprep.subr.bf16.mxu0 %v1862
    %2229 = vmatpush1.bf16.msra.mxu0 %v1861
    %2230 = vmatprep.mubr.bf16.mxu0 %v840
    %2231 = vmatmul.mubr.bf16.gmra.mrb[0].mxu0 %v839
    %v2232 = vpop.f32.mrb[0].mxu0
    %v2233 = vadd.f32 %v2192, %v2232
    %v2234 = vpop.f32.mrb[0].mxu0
    %v2235 = vadd.f32 %v2194, %v2234
    %v2236 = vpop.f32.mrb[0].mxu0
    %v2237 = vpop.f32.mrb[0].mxu0
    %2238 = vdwg.mxu0
    %2239 = vmatprep.subr.bf16.mxu0 %v848
    %2240 = vmatpush1.bf16.msra.mxu0 %v847
    %2241 = vmatprep.subr.bf16.mxu0 %v856
    %2242 = vmatpush1.bf16.msra.mxu0 %v855
    %2243 = vmatprep.subr.bf16.mxu0 %v864
    %2244 = vmatpush1.bf16.msra.mxu0 %v863
    %2245 = vmatprep.subr.bf16.mxu0 %v872
    %2246 = vmatpush1.bf16.msra.mxu0 %v871
    %2247 = vmatprep.subr.bf16.mxu0 %v880
    %2248 = vmatpush1.bf16.msra.mxu0 %v879
    %2249 = vmatprep.subr.bf16.mxu0 %v888
    %2250 = vmatpush1.bf16.msra.mxu0 %v887
    %2251 = vmatprep.subr.bf16.mxu0 %v896
    %2252 = vmatpush1.bf16.msra.mxu0 %v895
    %2253 = vmatprep.subr.bf16.mxu0 %v904
    %2254 = vmatpush1.bf16.msra.mxu0 %v903
    %2255 = vmatprep.subr.bf16.mxu0 %v912
    %2256 = vmatpush1.bf16.msra.mxu0 %v911
    %2257 = vmatprep.subr.bf16.mxu0 %v920
    %2258 = vmatpush1.bf16.msra.mxu0 %v919
    %2259 = vmatprep.subr.bf16.mxu0 %v928
    %2260 = vmatpush1.bf16.msra.mxu0 %v927
    %2261 = vmatprep.subr.bf16.mxu0 %v936
    %2262 = vmatpush1.bf16.msra.mxu0 %v935
    %2263 = vmatprep.subr.bf16.mxu0 %v944
    %2264 = vmatpush1.bf16.msra.mxu0 %v943
    %2265 = vmatprep.subr.bf16.mxu0 %v952
    %2266 = vmatpush1.bf16.msra.mxu0 %v951
    %2267 = vmatprep.subr.bf16.mxu0 %v960
    %2268 = vmatpush1.bf16.msra.mxu0 %v959
    %2269 = vmatprep.subr.bf16.mxu0 %v968
    %2270 = vmatpush1.bf16.msra.mxu0 %v967
    %2271 = vmatprep.mubr.bf16.mxu0 %v826
    %2272 = vmatmul.mubr.bf16.gmra.mrb[0].mxu0 %v825
    %v2273 = vpop.f32.mrb[0].mxu0
    %v2274 = vadd.f32 %v1882, %v2273
    %v2275 = vpop.f32.mrb[0].mxu0
    %v2276 = vadd.f32 %v1886, %v2275
    %v2277 = vpop.f32.mrb[0].mxu0
    %v2278 = vpop.f32.mrb[0].mxu0
    %2279 = vdwg.mxu0
    %2280 = vmatprep.subr.bf16.mxu0 %v976
    %2281 = vmatpush1.bf16.msra.mxu0 %v975
    %2282 = vmatprep.subr.bf16.mxu0 %v984
    %2283 = vmatpush1.bf16.msra.mxu0 %v983
    %2284 = vmatprep.subr.bf16.mxu0 %v992
    %2285 = vmatpush1.bf16.msra.mxu0 %v991
    %2286 = vmatprep.subr.bf16.mxu0 %v1000
    %2287 = vmatpush1.bf16.msra.mxu0 %v999
    %2288 = vmatprep.subr.bf16.mxu0 %v1008
    %2289 = vmatpush1.bf16.msra.mxu0 %v1007
    %2290 = vmatprep.subr.bf16.mxu0 %v1016
    %2291 = vmatpush1.bf16.msra.mxu0 %v1015
    %2292 = vmatprep.subr.bf16.mxu0 %v1024
    %2293 = vmatpush1.bf16.msra.mxu0 %v1023
    %2294 = vmatprep.subr.bf16.mxu0 %v1032
    %2295 = vmatpush1.bf16.msra.mxu0 %v1031
    %2296 = vmatprep.subr.bf16.mxu0 %v1040
    %2297 = vmatpush1.bf16.msra.mxu0 %v1039
    %2298 = vmatprep.subr.bf16.mxu0 %v1048
    %2299 = vmatpush1.bf16.msra.mxu0 %v1047
    %2300 = vmatprep.subr.bf16.mxu0 %v1056
    %2301 = vmatpush1.bf16.msra.mxu0 %v1055
    %2302 = vmatprep.subr.bf16.mxu0 %v1064
    %2303 = vmatpush1.bf16.msra.mxu0 %v1063
    %2304 = vmatprep.subr.bf16.mxu0 %v1072
    %2305 = vmatpush1.bf16.msra.mxu0 %v1071
    %2306 = vmatprep.subr.bf16.mxu0 %v1080
    %2307 = vmatpush1.bf16.msra.mxu0 %v1079
    %2308 = vmatprep.subr.bf16.mxu0 %v1088
    %2309 = vmatpush1.bf16.msra.mxu0 %v1087
    %2310 = vmatprep.subr.bf16.mxu0 %v1096
    %2311 = vmatpush1.bf16.msra.mxu0 %v1095
    %2312 = vmatprep.mubr.bf16.mxu0 %v828
    %2313 = vmatmul.mubr.bf16.gmra.mrb[0].mxu0 %v827
    %v2314 = vpop.f32.mrb[0].mxu0
    %v2315 = vadd.f32 %v2274, %v2314
    %v2316 = vpop.f32.mrb[0].mxu0
    %v2317 = vadd.f32 %v2276, %v2316
    %v2318 = vpop.f32.mrb[0].mxu0
    %v2319 = vpop.f32.mrb[0].mxu0
    %2320 = vdwg.mxu0
    %2321 = vmatprep.subr.bf16.mxu0 %v1104
    %2322 = vmatpush1.bf16.msra.mxu0 %v1103
    %2323 = vmatprep.subr.bf16.mxu0 %v1112
    %2324 = vmatpush1.bf16.msra.mxu0 %v1111
    %2325 = vmatprep.subr.bf16.mxu0 %v1120
    %2326 = vmatpush1.bf16.msra.mxu0 %v1119
    %2327 = vmatprep.subr.bf16.mxu0 %v1128
    %2328 = vmatpush1.bf16.msra.mxu0 %v1127
    %2329 = vmatprep.subr.bf16.mxu0 %v1136
    %2330 = vmatpush1.bf16.msra.mxu0 %v1135
    %2331 = vmatprep.subr.bf16.mxu0 %v1144
    %2332 = vmatpush1.bf16.msra.mxu0 %v1143
    %2333 = vmatprep.subr.bf16.mxu0 %v1152
    %2334 = vmatpush1.bf16.msra.mxu0 %v1151
    %2335 = vmatprep.subr.bf16.mxu0 %v1160
    %2336 = vmatpush1.bf16.msra.mxu0 %v1159
    %2337 = vmatprep.subr.bf16.mxu0 %v1168
    %2338 = vmatpush1.bf16.msra.mxu0 %v1167
    %2339 = vmatprep.subr.bf16.mxu0 %v1176
    %2340 = vmatpush1.bf16.msra.mxu0 %v1175
    %2341 = vmatprep.subr.bf16.mxu0 %v1184
    %2342 = vmatpush1.bf16.msra.mxu0 %v1183
    %2343 = vmatprep.subr.bf16.mxu0 %v1192
    %2344 = vmatpush1.bf16.msra.mxu0 %v1191
    %2345 = vmatprep.subr.bf16.mxu0 %v1200
    %2346 = vmatpush1.bf16.msra.mxu0 %v1199
    %2347 = vmatprep.subr.bf16.mxu0 %v1208
    %2348 = vmatpush1.bf16.msra.mxu0 %v1207
    %2349 = vmatprep.subr.bf16.mxu0 %v1216
    %2350 = vmatpush1.bf16.msra.mxu0 %v1215
    %2351 = vmatprep.subr.bf16.mxu0 %v1224
    %2352 = vmatpush1.bf16.msra.mxu0 %v1223
    %2353 = vmatprep.mubr.bf16.mxu0 %v830
    %2354 = vmatmul.mubr.bf16.gmra.mrb[0].mxu0 %v829
    %v2355 = vpop.f32.mrb[0].mxu0
    %v2356 = vadd.f32 %v2315, %v2355
    %v2357 = vpop.f32.mrb[0].mxu0
    %v2358 = vadd.f32 %v2317, %v2357
    %v2359 = vpop.f32.mrb[0].mxu0
    %v2360 = vpop.f32.mrb[0].mxu0
    %2361 = vdwg.mxu0
    %2362 = vmatprep.subr.bf16.mxu0 %v1232
    %2363 = vmatpush1.bf16.msra.mxu0 %v1231
    %2364 = vmatprep.subr.bf16.mxu0 %v1240
    %2365 = vmatpush1.bf16.msra.mxu0 %v1239
    %2366 = vmatprep.subr.bf16.mxu0 %v1248
    %2367 = vmatpush1.bf16.msra.mxu0 %v1247
    %2368 = vmatprep.subr.bf16.mxu0 %v1256
    %2369 = vmatpush1.bf16.msra.mxu0 %v1255
    %2370 = vmatprep.subr.bf16.mxu0 %v1264
    %2371 = vmatpush1.bf16.msra.mxu0 %v1263
    %2372 = vmatprep.subr.bf16.mxu0 %v1272
    %2373 = vmatpush1.bf16.msra.mxu0 %v1271
    %2374 = vmatprep.subr.bf16.mxu0 %v1280
    %2375 = vmatpush1.bf16.msra.mxu0 %v1279
    %2376 = vmatprep.subr.bf16.mxu0 %v1288
    %2377 = vmatpush1.bf16.msra.mxu0 %v1287
    %2378 = vmatprep.subr.bf16.mxu0 %v1296
    %2379 = vmatpush1.bf16.msra.mxu0 %v1295
    %2380 = vmatprep.subr.bf16.mxu0 %v1304
    %2381 = vmatpush1.bf16.msra.mxu0 %v1303
    %2382 = vmatprep.subr.bf16.mxu0 %v1312
    %2383 = vmatpush1.bf16.msra.mxu0 %v1311
    %2384 = vmatprep.subr.bf16.mxu0 %v1320
    %2385 = vmatpush1.bf16.msra.mxu0 %v1319
    %2386 = vmatprep.subr.bf16.mxu0 %v1328
    %2387 = vmatpush1.bf16.msra.mxu0 %v1327
    %2388 = vmatprep.subr.bf16.mxu0 %v1336
    %2389 = vmatpush1.bf16.msra.mxu0 %v1335
    %2390 = vmatprep.subr.bf16.mxu0 %v1344
    %2391 = vmatpush1.bf16.msra.mxu0 %v1343
    %2392 = vmatprep.subr.bf16.mxu0 %v1352
    %2393 = vmatpush1.bf16.msra.mxu0 %v1351
    %2394 = vmatprep.mubr.bf16.mxu0 %v832
    %2395 = vmatmul.mubr.bf16.gmra.mrb[0].mxu0 %v831
    %v2396 = vpop.f32.mrb[0].mxu0
    %v2397 = vadd.f32 %v2356, %v2396
    %v2398 = vpop.f32.mrb[0].mxu0
    %v2399 = vadd.f32 %v2358, %v2398
    %v2400 = vpop.f32.mrb[0].mxu0
    %v2401 = vpop.f32.mrb[0].mxu0
    %2402 = vdwg.mxu0
    %2403 = vmatprep.subr.bf16.mxu0 %v1360
    %2404 = vmatpush1.bf16.msra.mxu0 %v1359
    %2405 = vmatprep.subr.bf16.mxu0 %v1368
    %2406 = vmatpush1.bf16.msra.mxu0 %v1367
    %2407 = vmatprep.subr.bf16.mxu0 %v1376
    %2408 = vmatpush1.bf16.msra.mxu0 %v1375
    %2409 = vmatprep.subr.bf16.mxu0 %v1384
    %2410 = vmatpush1.bf16.msra.mxu0 %v1383
    %2411 = vmatprep.subr.bf16.mxu0 %v1392
    %2412 = vmatpush1.bf16.msra.mxu0 %v1391
    %2413 = vmatprep.subr.bf16.mxu0 %v1400
    %2414 = vmatpush1.bf16.msra.mxu0 %v1399
    %2415 = vmatprep.subr.bf16.mxu0 %v1408
    %2416 = vmatpush1.bf16.msra.mxu0 %v1407
    %2417 = vmatprep.subr.bf16.mxu0 %v1416
    %2418 = vmatpush1.bf16.msra.mxu0 %v1415
    %2419 = vmatprep.subr.bf16.mxu0 %v1424
    %2420 = vmatpush1.bf16.msra.mxu0 %v1423
    %2421 = vmatprep.subr.bf16.mxu0 %v1432
    %2422 = vmatpush1.bf16.msra.mxu0 %v1431
    %2423 = vmatprep.subr.bf16.mxu0 %v1440
    %2424 = vmatpush1.bf16.msra.mxu0 %v1439
    %2425 = vmatprep.subr.bf16.mxu0 %v1448
    %2426 = vmatpush1.bf16.msra.mxu0 %v1447
    %2427 = vmatprep.subr.bf16.mxu0 %v1456
    %2428 = vmatpush1.bf16.msra.mxu0 %v1455
    %2429 = vmatprep.subr.bf16.mxu0 %v1464
    %2430 = vmatpush1.bf16.msra.mxu0 %v1463
    %2431 = vmatprep.subr.bf16.mxu0 %v1472
    %2432 = vmatpush1.bf16.msra.mxu0 %v1471
    %2433 = vmatprep.subr.bf16.mxu0 %v1480
    %2434 = vmatpush1.bf16.msra.mxu0 %v1479
    %2435 = vmatprep.mubr.bf16.mxu0 %v834
    %2436 = vmatmul.mubr.bf16.gmra.mrb[0].mxu0 %v833
    %v2437 = vpop.f32.mrb[0].mxu0
    %v2438 = vadd.f32 %v2397, %v2437
    %v2439 = vpop.f32.mrb[0].mxu0
    %v2440 = vadd.f32 %v2399, %v2439
    %v2441 = vpop.f32.mrb[0].mxu0
    %v2442 = vpop.f32.mrb[0].mxu0
    %2443 = vdwg.mxu0
    %2444 = vmatprep.subr.bf16.mxu0 %v1488
    %2445 = vmatpush1.bf16.msra.mxu0 %v1487
    %2446 = vmatprep.subr.bf16.mxu0 %v1496
    %2447 = vmatpush1.bf16.msra.mxu0 %v1495
    %2448 = vmatprep.subr.bf16.mxu0 %v1504
    %2449 = vmatpush1.bf16.msra.mxu0 %v1503
    %2450 = vmatprep.subr.bf16.mxu0 %v1512
    %2451 = vmatpush1.bf16.msra.mxu0 %v1511
    %2452 = vmatprep.subr.bf16.mxu0 %v1520
    %2453 = vmatpush1.bf16.msra.mxu0 %v1519
    %2454 = vmatprep.subr.bf16.mxu0 %v1528
    %2455 = vmatpush1.bf16.msra.mxu0 %v1527
    %2456 = vmatprep.subr.bf16.mxu0 %v1536
    %2457 = vmatpush1.bf16.msra.mxu0 %v1535
    %2458 = vmatprep.subr.bf16.mxu0 %v1544
    %2459 = vmatpush1.bf16.msra.mxu0 %v1543
    %2460 = vmatprep.subr.bf16.mxu0 %v1552
    %2461 = vmatpush1.bf16.msra.mxu0 %v1551
    %2462 = vmatprep.subr.bf16.mxu0 %v1560
    %2463 = vmatpush1.bf16.msra.mxu0 %v1559
    %2464 = vmatprep.subr.bf16.mxu0 %v1568
    %2465 = vmatpush1.bf16.msra.mxu0 %v1567
    %2466 = vmatprep.subr.bf16.mxu0 %v1576
    %2467 = vmatpush1.bf16.msra.mxu0 %v1575
    %2468 = vmatprep.subr.bf16.mxu0 %v1584
    %2469 = vmatpush1.bf16.msra.mxu0 %v1583
    %2470 = vmatprep.subr.bf16.mxu0 %v1592
    %2471 = vmatpush1.bf16.msra.mxu0 %v1591
    %2472 = vmatprep.subr.bf16.mxu0 %v1600
    %2473 = vmatpush1.bf16.msra.mxu0 %v1599
    %2474 = vmatprep.subr.bf16.mxu0 %v1608
    %2475 = vmatpush1.bf16.msra.mxu0 %v1607
    %2476 = vmatprep.mubr.bf16.mxu0 %v836
    %2477 = vmatmul.mubr.bf16.gmra.mrb[0].mxu0 %v835
    %v2478 = vpop.f32.mrb[0].mxu0
    %v2479 = vadd.f32 %v2438, %v2478
    %v2480 = vpop.f32.mrb[0].mxu0
    %v2481 = vadd.f32 %v2440, %v2480
    %v2482 = vpop.f32.mrb[0].mxu0
    %v2483 = vpop.f32.mrb[0].mxu0
    %2484 = vdwg.mxu0
    %2485 = vmatprep.subr.bf16.mxu0 %v1616
    %2486 = vmatpush1.bf16.msra.mxu0 %v1615
    %2487 = vmatprep.subr.bf16.mxu0 %v1624
    %2488 = vmatpush1.bf16.msra.mxu0 %v1623
    %2489 = vmatprep.subr.bf16.mxu0 %v1632
    %2490 = vmatpush1.bf16.msra.mxu0 %v1631
    %2491 = vmatprep.subr.bf16.mxu0 %v1640
    %2492 = vmatpush1.bf16.msra.mxu0 %v1639
    %2493 = vmatprep.subr.bf16.mxu0 %v1648
    %2494 = vmatpush1.bf16.msra.mxu0 %v1647
    %2495 = vmatprep.subr.bf16.mxu0 %v1656
    %2496 = vmatpush1.bf16.msra.mxu0 %v1655
    %2497 = vmatprep.subr.bf16.mxu0 %v1664
    %2498 = vmatpush1.bf16.msra.mxu0 %v1663
    %2499 = vmatprep.subr.bf16.mxu0 %v1672
    %2500 = vmatpush1.bf16.msra.mxu0 %v1671
    %2501 = vmatprep.subr.bf16.mxu0 %v1680
    %2502 = vmatpush1.bf16.msra.mxu0 %v1679
    %2503 = vmatprep.subr.bf16.mxu0 %v1688
    %2504 = vmatpush1.bf16.msra.mxu0 %v1687
    %2505 = vmatprep.subr.bf16.mxu0 %v1696
    %2506 = vmatpush1.bf16.msra.mxu0 %v1695
    %2507 = vmatprep.subr.bf16.mxu0 %v1704
    %2508 = vmatpush1.bf16.msra.mxu0 %v1703
    %2509 = vmatprep.subr.bf16.mxu0 %v1712
    %2510 = vmatpush1.bf16.msra.mxu0 %v1711
    %2511 = vmatprep.subr.bf16.mxu0 %v1720
    %2512 = vmatpush1.bf16.msra.mxu0 %v1719
    %2513 = vmatprep.subr.bf16.mxu0 %v1728
    %2514 = vmatpush1.bf16.msra.mxu0 %v1727
    %2515 = vmatprep.subr.bf16.mxu0 %v1736
    %2516 = vmatpush1.bf16.msra.mxu0 %v1735
    %2517 = vmatprep.mubr.bf16.mxu0 %v838
    %2518 = vmatmul.mubr.bf16.gmra.mrb[0].mxu0 %v837
    %v2519 = vpop.f32.mrb[0].mxu0
    %v2520 = vadd.f32 %v2479, %v2519
    %v2521 = vpop.f32.mrb[0].mxu0
    %v2522 = vadd.f32 %v2481, %v2521
    %v2523 = vpop.f32.mrb[0].mxu0
    %v2524 = vpop.f32.mrb[0].mxu0
    %2525 = vdwg.mxu0
    %2526 = vmatprep.subr.bf16.mxu0 %v1744
    %2527 = vmatpush1.bf16.msra.mxu0 %v1743
    %2528 = vmatprep.subr.bf16.mxu0 %v1752
    %2529 = vmatpush1.bf16.msra.mxu0 %v1751
    %2530 = vmatprep.subr.bf16.mxu0 %v1760
    %2531 = vmatpush1.bf16.msra.mxu0 %v1759
    %2532 = vmatprep.subr.bf16.mxu0 %v1768
    %2533 = vmatpush1.bf16.msra.mxu0 %v1767
    %2534 = vmatprep.subr.bf16.mxu0 %v1776
    %2535 = vmatpush1.bf16.msra.mxu0 %v1775
    %2536 = vmatprep.subr.bf16.mxu0 %v1784
    %2537 = vmatpush1.bf16.msra.mxu0 %v1783
    %2538 = vmatprep.subr.bf16.mxu0 %v1792
    %2539 = vmatpush1.bf16.msra.mxu0 %v1791
    %2540 = vmatprep.subr.bf16.mxu0 %v1800
    %2541 = vmatpush1.bf16.msra.mxu0 %v1799
    %2542 = vmatprep.subr.bf16.mxu0 %v1808
    %2543 = vmatpush1.bf16.msra.mxu0 %v1807
    %2544 = vmatprep.subr.bf16.mxu0 %v1816
    %2545 = vmatpush1.bf16.msra.mxu0 %v1815
    %2546 = vmatprep.subr.bf16.mxu0 %v1824
    %2547 = vmatpush1.bf16.msra.mxu0 %v1823
    %2548 = vmatprep.subr.bf16.mxu0 %v1832
    %2549 = vmatpush1.bf16.msra.mxu0 %v1831
    %2550 = vmatprep.subr.bf16.mxu0 %v1840
    %2551 = vmatpush1.bf16.msra.mxu0 %v1839
    %2552 = vmatprep.subr.bf16.mxu0 %v1848
    %2553 = vmatpush1.bf16.msra.mxu0 %v1847
    %2554 = vmatprep.subr.bf16.mxu0 %v1856
    %2555 = vmatpush1.bf16.msra.mxu0 %v1855
    %2556 = vmatprep.subr.bf16.mxu0 %v1864
    %2557 = vmatpush1.bf16.msra.mxu0 %v1863
    %2558 = vmatprep.mubr.bf16.mxu0 %v840
    %2559 = vmatmul.mubr.bf16.gmra.mrb[0].mxu0 %v839
    %v2560 = vpop.f32.mrb[0].mxu0
    %v2561 = vadd.f32 %v2520, %v2560
    %v2562 = vpop.f32.mrb[0].mxu0
    %v2563 = vadd.f32 %v2522, %v2562
    %v2564 = vpop.f32.mrb[0].mxu0
    %v2565 = vpop.f32.mrb[0].mxu0
    %2566 = vdwg.mxu0
    %2567 = vmatprep.subr.bf16.mxu0 %v850
    %2568 = vmatpush1.bf16.msra.mxu0 %v849
    %2569 = vmatprep.subr.bf16.mxu0 %v858
    %2570 = vmatpush1.bf16.msra.mxu0 %v857
    %2571 = vmatprep.subr.bf16.mxu0 %v866
    %2572 = vmatpush1.bf16.msra.mxu0 %v865
    %2573 = vmatprep.subr.bf16.mxu0 %v874
    %2574 = vmatpush1.bf16.msra.mxu0 %v873
    %2575 = vmatprep.subr.bf16.mxu0 %v882
    %2576 = vmatpush1.bf16.msra.mxu0 %v881
    %2577 = vmatprep.subr.bf16.mxu0 %v890
    %2578 = vmatpush1.bf16.msra.mxu0 %v889
    %2579 = vmatprep.subr.bf16.mxu0 %v898
    %2580 = vmatpush1.bf16.msra.mxu0 %v897
    %2581 = vmatprep.subr.bf16.mxu0 %v906
    %2582 = vmatpush1.bf16.msra.mxu0 %v905
    %2583 = vmatprep.subr.bf16.mxu0 %v914
    %2584 = vmatpush1.bf16.msra.mxu0 %v913
    %2585 = vmatprep.subr.bf16.mxu0 %v922
    %2586 = vmatpush1.bf16.msra.mxu0 %v921
    %2587 = vmatprep.subr.bf16.mxu0 %v930
    %2588 = vmatpush1.bf16.msra.mxu0 %v929
    %2589 = vmatprep.subr.bf16.mxu0 %v938
    %2590 = vmatpush1.bf16.msra.mxu0 %v937
    %2591 = vmatprep.subr.bf16.mxu0 %v946
    %2592 = vmatpush1.bf16.msra.mxu0 %v945
    %2593 = vmatprep.subr.bf16.mxu0 %v954
    %2594 = vmatpush1.bf16.msra.mxu0 %v953
    %2595 = vmatprep.subr.bf16.mxu0 %v962
    %2596 = vmatpush1.bf16.msra.mxu0 %v961
    %2597 = vmatprep.subr.bf16.mxu0 %v970
    %2598 = vmatpush1.bf16.msra.mxu0 %v969
    %2599 = vmatprep.mubr.bf16.mxu0 %v826
    %2600 = vmatmul.mubr.bf16.gmra.mrb[0].mxu0 %v825
    %v2601 = vpop.f32.mrb[0].mxu0
    %v2602 = vadd.f32 %v1890, %v2601
    %v2603 = vpop.f32.mrb[0].mxu0
    %v2604 = vadd.f32 %v1894, %v2603
    %v2605 = vpop.f32.mrb[0].mxu0
    %v2606 = vpop.f32.mrb[0].mxu0
    %2607 = vdwg.mxu0
    %2608 = vmatprep.subr.bf16.mxu0 %v978
    %2609 = vmatpush1.bf16.msra.mxu0 %v977
    %2610 = vmatprep.subr.bf16.mxu0 %v986
    %2611 = vmatpush1.bf16.msra.mxu0 %v985
    %2612 = vmatprep.subr.bf16.mxu0 %v994
    %2613 = vmatpush1.bf16.msra.mxu0 %v993
    %2614 = vmatprep.subr.bf16.mxu0 %v1002
    %2615 = vmatpush1.bf16.msra.mxu0 %v1001
    %2616 = vmatprep.subr.bf16.mxu0 %v1010
    %2617 = vmatpush1.bf16.msra.mxu0 %v1009
    %2618 = vmatprep.subr.bf16.mxu0 %v1018
    %2619 = vmatpush1.bf16.msra.mxu0 %v1017
    %2620 = vmatprep.subr.bf16.mxu0 %v1026
    %2621 = vmatpush1.bf16.msra.mxu0 %v1025
    %2622 = vmatprep.subr.bf16.mxu0 %v1034
    %2623 = vmatpush1.bf16.msra.mxu0 %v1033
    %2624 = vmatprep.subr.bf16.mxu0 %v1042
    %2625 = vmatpush1.bf16.msra.mxu0 %v1041
    %2626 = vmatprep.subr.bf16.mxu0 %v1050
    %2627 = vmatpush1.bf16.msra.mxu0 %v1049
    %2628 = vmatprep.subr.bf16.mxu0 %v1058
    %2629 = vmatpush1.bf16.msra.mxu0 %v1057
    %2630 = vmatprep.subr.bf16.mxu0 %v1066
    %2631 = vmatpush1.bf16.msra.mxu0 %v1065
    %2632 = vmatprep.subr.bf16.mxu0 %v1074
    %2633 = vmatpush1.bf16.msra.mxu0 %v1073
    %2634 = vmatprep.subr.bf16.mxu0 %v1082
    %2635 = vmatpush1.bf16.msra.mxu0 %v1081
    %2636 = vmatprep.subr.bf16.mxu0 %v1090
    %2637 = vmatpush1.bf16.msra.mxu0 %v1089
    %2638 = vmatprep.subr.bf16.mxu0 %v1098
    %2639 = vmatpush1.bf16.msra.mxu0 %v1097
    %2640 = vmatprep.mubr.bf16.mxu0 %v828
    %2641 = vmatmul.mubr.bf16.gmra.mrb[0].mxu0 %v827
    %v2642 = vpop.f32.mrb[0].mxu0
    %v2643 = vadd.f32 %v2602, %v2642
    %v2644 = vpop.f32.mrb[0].mxu0
    %v2645 = vadd.f32 %v2604, %v2644
    %v2646 = vpop.f32.mrb[0].mxu0
    %v2647 = vpop.f32.mrb[0].mxu0
    %2648 = vdwg.mxu0
    %2649 = vmatprep.subr.bf16.mxu0 %v1106
    %2650 = vmatpush1.bf16.msra.mxu0 %v1105
    %2651 = vmatprep.subr.bf16.mxu0 %v1114
    %2652 = vmatpush1.bf16.msra.mxu0 %v1113
    %2653 = vmatprep.subr.bf16.mxu0 %v1122
    %2654 = vmatpush1.bf16.msra.mxu0 %v1121
    %2655 = vmatprep.subr.bf16.mxu0 %v1130
    %2656 = vmatpush1.bf16.msra.mxu0 %v1129
    %2657 = vmatprep.subr.bf16.mxu0 %v1138
    %2658 = vmatpush1.bf16.msra.mxu0 %v1137
    %2659 = vmatprep.subr.bf16.mxu0 %v1146
    %2660 = vmatpush1.bf16.msra.mxu0 %v1145
    %2661 = vmatprep.subr.bf16.mxu0 %v1154
    %2662 = vmatpush1.bf16.msra.mxu0 %v1153
    %2663 = vmatprep.subr.bf16.mxu0 %v1162
    %2664 = vmatpush1.bf16.msra.mxu0 %v1161
    %2665 = vmatprep.subr.bf16.mxu0 %v1170
    %2666 = vmatpush1.bf16.msra.mxu0 %v1169
    %2667 = vmatprep.subr.bf16.mxu0 %v1178
    %2668 = vmatpush1.bf16.msra.mxu0 %v1177
    %2669 = vmatprep.subr.bf16.mxu0 %v1186
    %2670 = vmatpush1.bf16.msra.mxu0 %v1185
    %2671 = vmatprep.subr.bf16.mxu0 %v1194
    %2672 = vmatpush1.bf16.msra.mxu0 %v1193
    %2673 = vmatprep.subr.bf16.mxu0 %v1202
    %2674 = vmatpush1.bf16.msra.mxu0 %v1201
    %2675 = vmatprep.subr.bf16.mxu0 %v1210
    %2676 = vmatpush1.bf16.msra.mxu0 %v1209
    %2677 = vmatprep.subr.bf16.mxu0 %v1218
    %2678 = vmatpush1.bf16.msra.mxu0 %v1217
    %2679 = vmatprep.subr.bf16.mxu0 %v1226
    %2680 = vmatpush1.bf16.msra.mxu0 %v1225
    %2681 = vmatprep.mubr.bf16.mxu0 %v830
    %2682 = vmatmul.mubr.bf16.gmra.mrb[0].mxu0 %v829
    %v2683 = vpop.f32.mrb[0].mxu0
    %v2684 = vadd.f32 %v2643, %v2683
    %v2685 = vpop.f32.mrb[0].mxu0
    %v2686 = vadd.f32 %v2645, %v2685
    %v2687 = vpop.f32.mrb[0].mxu0
    %v2688 = vpop.f32.mrb[0].mxu0
    %2689 = vdwg.mxu0
    %2690 = vmatprep.subr.bf16.mxu0 %v1234
    %2691 = vmatpush1.bf16.msra.mxu0 %v1233
    %2692 = vmatprep.subr.bf16.mxu0 %v1242
    %2693 = vmatpush1.bf16.msra.mxu0 %v1241
    %2694 = vmatprep.subr.bf16.mxu0 %v1250
    %2695 = vmatpush1.bf16.msra.mxu0 %v1249
    %2696 = vmatprep.subr.bf16.mxu0 %v1258
    %2697 = vmatpush1.bf16.msra.mxu0 %v1257
    %2698 = vmatprep.subr.bf16.mxu0 %v1266
    %2699 = vmatpush1.bf16.msra.mxu0 %v1265
    %2700 = vmatprep.subr.bf16.mxu0 %v1274
    %2701 = vmatpush1.bf16.msra.mxu0 %v1273
    %2702 = vmatprep.subr.bf16.mxu0 %v1282
    %2703 = vmatpush1.bf16.msra.mxu0 %v1281
    %2704 = vmatprep.subr.bf16.mxu0 %v1290
    %2705 = vmatpush1.bf16.msra.mxu0 %v1289
    %2706 = vmatprep.subr.bf16.mxu0 %v1298
    %2707 = vmatpush1.bf16.msra.mxu0 %v1297
    %2708 = vmatprep.subr.bf16.mxu0 %v1306
    %2709 = vmatpush1.bf16.msra.mxu0 %v1305
    %2710 = vmatprep.subr.bf16.mxu0 %v1314
    %2711 = vmatpush1.bf16.msra.mxu0 %v1313
    %2712 = vmatprep.subr.bf16.mxu0 %v1322
    %2713 = vmatpush1.bf16.msra.mxu0 %v1321
    %2714 = vmatprep.subr.bf16.mxu0 %v1330
    %2715 = vmatpush1.bf16.msra.mxu0 %v1329
    %2716 = vmatprep.subr.bf16.mxu0 %v1338
    %2717 = vmatpush1.bf16.msra.mxu0 %v1337
    %2718 = vmatprep.subr.bf16.mxu0 %v1346
    %2719 = vmatpush1.bf16.msra.mxu0 %v1345
    %2720 = vmatprep.subr.bf16.mxu0 %v1354
    %2721 = vmatpush1.bf16.msra.mxu0 %v1353
    %2722 = vmatprep.mubr.bf16.mxu0 %v832
    %2723 = vmatmul.mubr.bf16.gmra.mrb[0].mxu0 %v831
    %v2724 = vpop.f32.mrb[0].mxu0
    %v2725 = vadd.f32 %v2684, %v2724
    %v2726 = vpop.f32.mrb[0].mxu0
    %v2727 = vadd.f32 %v2686, %v2726
    %v2728 = vpop.f32.mrb[0].mxu0
    %v2729 = vpop.f32.mrb[0].mxu0
    %2730 = vdwg.mxu0
    %2731 = vmatprep.subr.bf16.mxu0 %v1362
    %2732 = vmatpush1.bf16.msra.mxu0 %v1361
    %2733 = vmatprep.subr.bf16.mxu0 %v1370
    %2734 = vmatpush1.bf16.msra.mxu0 %v1369
    %2735 = vmatprep.subr.bf16.mxu0 %v1378
    %2736 = vmatpush1.bf16.msra.mxu0 %v1377
    %2737 = vmatprep.subr.bf16.mxu0 %v1386
    %2738 = vmatpush1.bf16.msra.mxu0 %v1385
    %2739 = vmatprep.subr.bf16.mxu0 %v1394
    %2740 = vmatpush1.bf16.msra.mxu0 %v1393
    %2741 = vmatprep.subr.bf16.mxu0 %v1402
    %2742 = vmatpush1.bf16.msra.mxu0 %v1401
    %2743 = vmatprep.subr.bf16.mxu0 %v1410
    %2744 = vmatpush1.bf16.msra.mxu0 %v1409
    %2745 = vmatprep.subr.bf16.mxu0 %v1418
    %2746 = vmatpush1.bf16.msra.mxu0 %v1417
    %2747 = vmatprep.subr.bf16.mxu0 %v1426
    %2748 = vmatpush1.bf16.msra.mxu0 %v1425
    %2749 = vmatprep.subr.bf16.mxu0 %v1434
    %2750 = vmatpush1.bf16.msra.mxu0 %v1433
    %2751 = vmatprep.subr.bf16.mxu0 %v1442
    %2752 = vmatpush1.bf16.msra.mxu0 %v1441
    %2753 = vmatprep.subr.bf16.mxu0 %v1450
    %2754 = vmatpush1.bf16.msra.mxu0 %v1449
    %2755 = vmatprep.subr.bf16.mxu0 %v1458
    %2756 = vmatpush1.bf16.msra.mxu0 %v1457
    %2757 = vmatprep.subr.bf16.mxu0 %v1466
    %2758 = vmatpush1.bf16.msra.mxu0 %v1465
    %2759 = vmatprep.subr.bf16.mxu0 %v1474
    %2760 = vmatpush1.bf16.msra.mxu0 %v1473
    %2761 = vmatprep.subr.bf16.mxu0 %v1482
    %2762 = vmatpush1.bf16.msra.mxu0 %v1481
    %2763 = vmatprep.mubr.bf16.mxu0 %v834
    %2764 = vmatmul.mubr.bf16.gmra.mrb[0].mxu0 %v833
    %v2765 = vpop.f32.mrb[0].mxu0
    %v2766 = vadd.f32 %v2725, %v2765
    %v2767 = vpop.f32.mrb[0].mxu0
    %v2768 = vadd.f32 %v2727, %v2767
    %v2769 = vpop.f32.mrb[0].mxu0
    %v2770 = vpop.f32.mrb[0].mxu0
    %2771 = vdwg.mxu0
    %2772 = vmatprep.subr.bf16.mxu0 %v1490
    %2773 = vmatpush1.bf16.msra.mxu0 %v1489
    %2774 = vmatprep.subr.bf16.mxu0 %v1498
    %2775 = vmatpush1.bf16.msra.mxu0 %v1497
    %2776 = vmatprep.subr.bf16.mxu0 %v1506
    %2777 = vmatpush1.bf16.msra.mxu0 %v1505
    %2778 = vmatprep.subr.bf16.mxu0 %v1514
    %2779 = vmatpush1.bf16.msra.mxu0 %v1513
    %2780 = vmatprep.subr.bf16.mxu0 %v1522
    %2781 = vmatpush1.bf16.msra.mxu0 %v1521
    %2782 = vmatprep.subr.bf16.mxu0 %v1530
    %2783 = vmatpush1.bf16.msra.mxu0 %v1529
    %2784 = vmatprep.subr.bf16.mxu0 %v1538
    %2785 = vmatpush1.bf16.msra.mxu0 %v1537
    %2786 = vmatprep.subr.bf16.mxu0 %v1546
    %2787 = vmatpush1.bf16.msra.mxu0 %v1545
    %2788 = vmatprep.subr.bf16.mxu0 %v1554
    %2789 = vmatpush1.bf16.msra.mxu0 %v1553
    %2790 = vmatprep.subr.bf16.mxu0 %v1562
    %2791 = vmatpush1.bf16.msra.mxu0 %v1561
    %2792 = vmatprep.subr.bf16.mxu0 %v1570
    %2793 = vmatpush1.bf16.msra.mxu0 %v1569
    %2794 = vmatprep.subr.bf16.mxu0 %v1578
    %2795 = vmatpush1.bf16.msra.mxu0 %v1577
    %2796 = vmatprep.subr.bf16.mxu0 %v1586
    %2797 = vmatpush1.bf16.msra.mxu0 %v1585
    %2798 = vmatprep.subr.bf16.mxu0 %v1594
    %2799 = vmatpush1.bf16.msra.mxu0 %v1593
    %2800 = vmatprep.subr.bf16.mxu0 %v1602
    %2801 = vmatpush1.bf16.msra.mxu0 %v1601
    %2802 = vmatprep.subr.bf16.mxu0 %v1610
    %2803 = vmatpush1.bf16.msra.mxu0 %v1609
    %2804 = vmatprep.mubr.bf16.mxu0 %v836
    %2805 = vmatmul.mubr.bf16.gmra.mrb[0].mxu0 %v835
    %v2806 = vpop.f32.mrb[0].mxu0
    %v2807 = vadd.f32 %v2766, %v2806
    %v2808 = vpop.f32.mrb[0].mxu0
    %v2809 = vadd.f32 %v2768, %v2808
    %v2810 = vpop.f32.mrb[0].mxu0
    %v2811 = vpop.f32.mrb[0].mxu0
    %2812 = vdwg.mxu0
    %2813 = vmatprep.subr.bf16.mxu0 %v1618
    %2814 = vmatpush1.bf16.msra.mxu0 %v1617
    %2815 = vmatprep.subr.bf16.mxu0 %v1626
    %2816 = vmatpush1.bf16.msra.mxu0 %v1625
    %2817 = vmatprep.subr.bf16.mxu0 %v1634
    %2818 = vmatpush1.bf16.msra.mxu0 %v1633
    %2819 = vmatprep.subr.bf16.mxu0 %v1642
    %2820 = vmatpush1.bf16.msra.mxu0 %v1641
    %2821 = vmatprep.subr.bf16.mxu0 %v1650
    %2822 = vmatpush1.bf16.msra.mxu0 %v1649
    %2823 = vmatprep.subr.bf16.mxu0 %v1658
    %2824 = vmatpush1.bf16.msra.mxu0 %v1657
    %2825 = vmatprep.subr.bf16.mxu0 %v1666
    %2826 = vmatpush1.bf16.msra.mxu0 %v1665
    %2827 = vmatprep.subr.bf16.mxu0 %v1674
    %2828 = vmatpush1.bf16.msra.mxu0 %v1673
    %2829 = vmatprep.subr.bf16.mxu0 %v1682
    %2830 = vmatpush1.bf16.msra.mxu0 %v1681
    %2831 = vmatprep.subr.bf16.mxu0 %v1690
    %2832 = vmatpush1.bf16.msra.mxu0 %v1689
    %2833 = vmatprep.subr.bf16.mxu0 %v1698
    %2834 = vmatpush1.bf16.msra.mxu0 %v1697
    %2835 = vmatprep.subr.bf16.mxu0 %v1706
    %2836 = vmatpush1.bf16.msra.mxu0 %v1705
    %2837 = vmatprep.subr.bf16.mxu0 %v1714
    %2838 = vmatpush1.bf16.msra.mxu0 %v1713
    %2839 = vmatprep.subr.bf16.mxu0 %v1722
    %2840 = vmatpush1.bf16.msra.mxu0 %v1721
    %2841 = vmatprep.subr.bf16.mxu0 %v1730
    %2842 = vmatpush1.bf16.msra.mxu0 %v1729
    %2843 = vmatprep.subr.bf16.mxu0 %v1738
    %2844 = vmatpush1.bf16.msra.mxu0 %v1737
    %2845 = vmatprep.mubr.bf16.mxu0 %v838
    %2846 = vmatmul.mubr.bf16.gmra.mrb[0].mxu0 %v837
    %v2847 = vpop.f32.mrb[0].mxu0
    %v2848 = vadd.f32 %v2807, %v2847
    %v2849 = vpop.f32.mrb[0].mxu0
    %v2850 = vadd.f32 %v2809, %v2849
    %v2851 = vpop.f32.mrb[0].mxu0
    %v2852 = vpop.f32.mrb[0].mxu0
    %2853 = vdwg.mxu0
    %2854 = vmatprep.subr.bf16.mxu0 %v1746
    %2855 = vmatpush1.bf16.msra.mxu0 %v1745
    %2856 = vmatprep.subr.bf16.mxu0 %v1754
    %2857 = vmatpush1.bf16.msra.mxu0 %v1753
    %2858 = vmatprep.subr.bf16.mxu0 %v1762
    %2859 = vmatpush1.bf16.msra.mxu0 %v1761
    %2860 = vmatprep.subr.bf16.mxu0 %v1770
    %2861 = vmatpush1.bf16.msra.mxu0 %v1769
    %2862 = vmatprep.subr.bf16.mxu0 %v1778
    %2863 = vmatpush1.bf16.msra.mxu0 %v1777
    %2864 = vmatprep.subr.bf16.mxu0 %v1786
    %2865 = vmatpush1.bf16.msra.mxu0 %v1785
    %2866 = vmatprep.subr.bf16.mxu0 %v1794
    %2867 = vmatpush1.bf16.msra.mxu0 %v1793
    %2868 = vmatprep.subr.bf16.mxu0 %v1802
    %2869 = vmatpush1.bf16.msra.mxu0 %v1801
    %2870 = vmatprep.subr.bf16.mxu0 %v1810
    %2871 = vmatpush1.bf16.msra.mxu0 %v1809
    %2872 = vmatprep.subr.bf16.mxu0 %v1818
    %2873 = vmatpush1.bf16.msra.mxu0 %v1817
    %2874 = vmatprep.subr.bf16.mxu0 %v1826
    %2875 = vmatpush1.bf16.msra.mxu0 %v1825
    %2876 = vmatprep.subr.bf16.mxu0 %v1834
    %2877 = vmatpush1.bf16.msra.mxu0 %v1833
    %2878 = vmatprep.subr.bf16.mxu0 %v1842
    %2879 = vmatpush1.bf16.msra.mxu0 %v1841
    %2880 = vmatprep.subr.bf16.mxu0 %v1850
    %2881 = vmatpush1.bf16.msra.mxu0 %v1849
    %2882 = vmatprep.subr.bf16.mxu0 %v1858
    %2883 = vmatpush1.bf16.msra.mxu0 %v1857
    %2884 = vmatprep.subr.bf16.mxu0 %v1866
    %2885 = vmatpush1.bf16.msra.mxu0 %v1865
    %2886 = vmatprep.mubr.bf16.mxu0 %v840
    %2887 = vmatmul.mubr.bf16.gmra.mrb[0].mxu0 %v839
    %v2888 = vpop.f32.mrb[0].mxu0
    %v2889 = vadd.f32 %v2848, %v2888
    %v2890 = vpop.f32.mrb[0].mxu0
    %v2891 = vadd.f32 %v2850, %v2890
    %v2892 = vpop.f32.mrb[0].mxu0
    %v2893 = vpop.f32.mrb[0].mxu0
    %2894 = vdwg.mxu0
    %2895 = vmatprep.subr.bf16.mxu0 %v852
    %2896 = vmatpush1.bf16.msra.mxu0 %v851
    %2897 = vmatprep.subr.bf16.mxu0 %v860
    %2898 = vmatpush1.bf16.msra.mxu0 %v859
    %2899 = vmatprep.subr.bf16.mxu0 %v868
    %2900 = vmatpush1.bf16.msra.mxu0 %v867
    %2901 = vmatprep.subr.bf16.mxu0 %v876
    %2902 = vmatpush1.bf16.msra.mxu0 %v875
    %2903 = vmatprep.subr.bf16.mxu0 %v884
    %2904 = vmatpush1.bf16.msra.mxu0 %v883
    %2905 = vmatprep.subr.bf16.mxu0 %v892
    %2906 = vmatpush1.bf16.msra.mxu0 %v891
    %2907 = vmatprep.subr.bf16.mxu0 %v900
    %2908 = vmatpush1.bf16.msra.mxu0 %v899
    %2909 = vmatprep.subr.bf16.mxu0 %v908
    %2910 = vmatpush1.bf16.msra.mxu0 %v907
    %2911 = vmatprep.subr.bf16.mxu0 %v916
    %2912 = vmatpush1.bf16.msra.mxu0 %v915
    %2913 = vmatprep.subr.bf16.mxu0 %v924
    %2914 = vmatpush1.bf16.msra.mxu0 %v923
    %2915 = vmatprep.subr.bf16.mxu0 %v932
    %2916 = vmatpush1.bf16.msra.mxu0 %v931
    %2917 = vmatprep.subr.bf16.mxu0 %v940
    %2918 = vmatpush1.bf16.msra.mxu0 %v939
    %2919 = vmatprep.subr.bf16.mxu0 %v948
    %2920 = vmatpush1.bf16.msra.mxu0 %v947
    %2921 = vmatprep.subr.bf16.mxu0 %v956
    %2922 = vmatpush1.bf16.msra.mxu0 %v955
    %2923 = vmatprep.subr.bf16.mxu0 %v964
    %2924 = vmatpush1.bf16.msra.mxu0 %v963
    %2925 = vmatprep.subr.bf16.mxu0 %v972
    %2926 = vmatpush1.bf16.msra.mxu0 %v971
    %2927 = vmatprep.mubr.bf16.mxu0 %v826
    %2928 = vmatmul.mubr.bf16.gmra.mrb[0].mxu0 %v825
    %v2929 = vpop.f32.mrb[0].mxu0
    %v2930 = vadd.f32 %v1898, %v2929
    %v2931 = vpop.f32.mrb[0].mxu0
    %v2932 = vadd.f32 %v1902, %v2931
    %v2933 = vpop.f32.mrb[0].mxu0
    %v2934 = vpop.f32.mrb[0].mxu0
    %2935 = vdwg.mxu0
    %2936 = vmatprep.subr.bf16.mxu0 %v980
    %2937 = vmatpush1.bf16.msra.mxu0 %v979
    %2938 = vmatprep.subr.bf16.mxu0 %v988
    %2939 = vmatpush1.bf16.msra.mxu0 %v987
    %2940 = vmatprep.subr.bf16.mxu0 %v996
    %2941 = vmatpush1.bf16.msra.mxu0 %v995
    %2942 = vmatprep.subr.bf16.mxu0 %v1004
    %2943 = vmatpush1.bf16.msra.mxu0 %v1003
    %2944 = vmatprep.subr.bf16.mxu0 %v1012
    %2945 = vmatpush1.bf16.msra.mxu0 %v1011
    %2946 = vmatprep.subr.bf16.mxu0 %v1020
    %2947 = vmatpush1.bf16.msra.mxu0 %v1019
    %2948 = vmatprep.subr.bf16.mxu0 %v1028
    %2949 = vmatpush1.bf16.msra.mxu0 %v1027
    %2950 = vmatprep.subr.bf16.mxu0 %v1036
    %2951 = vmatpush1.bf16.msra.mxu0 %v1035
    %2952 = vmatprep.subr.bf16.mxu0 %v1044
    %2953 = vmatpush1.bf16.msra.mxu0 %v1043
    %2954 = vmatprep.subr.bf16.mxu0 %v1052
    %2955 = vmatpush1.bf16.msra.mxu0 %v1051
    %2956 = vmatprep.subr.bf16.mxu0 %v1060
    %2957 = vmatpush1.bf16.msra.mxu0 %v1059
    %2958 = vmatprep.subr.bf16.mxu0 %v1068
    %2959 = vmatpush1.bf16.msra.mxu0 %v1067
    %2960 = vmatprep.subr.bf16.mxu0 %v1076
    %2961 = vmatpush1.bf16.msra.mxu0 %v1075
    %2962 = vmatprep.subr.bf16.mxu0 %v1084
    %2963 = vmatpush1.bf16.msra.mxu0 %v1083
    %2964 = vmatprep.subr.bf16.mxu0 %v1092
    %2965 = vmatpush1.bf16.msra.mxu0 %v1091
    %2966 = vmatprep.subr.bf16.mxu0 %v1100
    %2967 = vmatpush1.bf16.msra.mxu0 %v1099
    %2968 = vmatprep.mubr.bf16.mxu0 %v828
    %2969 = vmatmul.mubr.bf16.gmra.mrb[0].mxu0 %v827
    %v2970 = vpop.f32.mrb[0].mxu0
    %v2971 = vadd.f32 %v2930, %v2970
    %v2972 = vpop.f32.mrb[0].mxu0
    %v2973 = vadd.f32 %v2932, %v2972
    %v2974 = vpop.f32.mrb[0].mxu0
    %v2975 = vpop.f32.mrb[0].mxu0
    %2976 = vdwg.mxu0
    %2977 = vmatprep.subr.bf16.mxu0 %v1108
    %2978 = vmatpush1.bf16.msra.mxu0 %v1107
    %2979 = vmatprep.subr.bf16.mxu0 %v1116
    %2980 = vmatpush1.bf16.msra.mxu0 %v1115
    %2981 = vmatprep.subr.bf16.mxu0 %v1124
    %2982 = vmatpush1.bf16.msra.mxu0 %v1123
    %2983 = vmatprep.subr.bf16.mxu0 %v1132
    %2984 = vmatpush1.bf16.msra.mxu0 %v1131
    %2985 = vmatprep.subr.bf16.mxu0 %v1140
    %2986 = vmatpush1.bf16.msra.mxu0 %v1139
    %2987 = vmatprep.subr.bf16.mxu0 %v1148
    %2988 = vmatpush1.bf16.msra.mxu0 %v1147
    %2989 = vmatprep.subr.bf16.mxu0 %v1156
    %2990 = vmatpush1.bf16.msra.mxu0 %v1155
    %2991 = vmatprep.subr.bf16.mxu0 %v1164
    %2992 = vmatpush1.bf16.msra.mxu0 %v1163
    %2993 = vmatprep.subr.bf16.mxu0 %v1172
    %2994 = vmatpush1.bf16.msra.mxu0 %v1171
    %2995 = vmatprep.subr.bf16.mxu0 %v1180
    %2996 = vmatpush1.bf16.msra.mxu0 %v1179
    %2997 = vmatprep.subr.bf16.mxu0 %v1188
    %2998 = vmatpush1.bf16.msra.mxu0 %v1187
    %2999 = vmatprep.subr.bf16.mxu0 %v1196
    %3000 = vmatpush1.bf16.msra.mxu0 %v1195
    %3001 = vmatprep.subr.bf16.mxu0 %v1204
    %3002 = vmatpush1.bf16.msra.mxu0 %v1203
    %3003 = vmatprep.subr.bf16.mxu0 %v1212
    %3004 = vmatpush1.bf16.msra.mxu0 %v1211
    %3005 = vmatprep.subr.bf16.mxu0 %v1220
    %3006 = vmatpush1.bf16.msra.mxu0 %v1219
    %3007 = vmatprep.subr.bf16.mxu0 %v1228
    %3008 = vmatpush1.bf16.msra.mxu0 %v1227
    %3009 = vmatprep.mubr.bf16.mxu0 %v830
    %3010 = vmatmul.mubr.bf16.gmra.mrb[0].mxu0 %v829
    %v3011 = vpop.f32.mrb[0].mxu0
    %v3012 = vadd.f32 %v2971, %v3011
    %v3013 = vpop.f32.mrb[0].mxu0
    %v3014 = vadd.f32 %v2973, %v3013
    %v3015 = vpop.f32.mrb[0].mxu0
    %v3016 = vpop.f32.mrb[0].mxu0
    %3017 = vdwg.mxu0
    %3018 = vmatprep.subr.bf16.mxu0 %v1236
    %3019 = vmatpush1.bf16.msra.mxu0 %v1235
    %3020 = vmatprep.subr.bf16.mxu0 %v1244
    %3021 = vmatpush1.bf16.msra.mxu0 %v1243
    %3022 = vmatprep.subr.bf16.mxu0 %v1252
    %3023 = vmatpush1.bf16.msra.mxu0 %v1251
    %3024 = vmatprep.subr.bf16.mxu0 %v1260
    %3025 = vmatpush1.bf16.msra.mxu0 %v1259
    %3026 = vmatprep.subr.bf16.mxu0 %v1268
    %3027 = vmatpush1.bf16.msra.mxu0 %v1267
    %3028 = vmatprep.subr.bf16.mxu0 %v1276
    %3029 = vmatpush1.bf16.msra.mxu0 %v1275
    %3030 = vmatprep.subr.bf16.mxu0 %v1284
    %3031 = vmatpush1.bf16.msra.mxu0 %v1283
    %3032 = vmatprep.subr.bf16.mxu0 %v1292
    %3033 = vmatpush1.bf16.msra.mxu0 %v1291
    %3034 = vmatprep.subr.bf16.mxu0 %v1300
    %3035 = vmatpush1.bf16.msra.mxu0 %v1299
    %3036 = vmatprep.subr.bf16.mxu0 %v1308
    %3037 = vmatpush1.bf16.msra.mxu0 %v1307
    %3038 = vmatprep.subr.bf16.mxu0 %v1316
    %3039 = vmatpush1.bf16.msra.mxu0 %v1315
    %3040 = vmatprep.subr.bf16.mxu0 %v1324
    %3041 = vmatpush1.bf16.msra.mxu0 %v1323
    %3042 = vmatprep.subr.bf16.mxu0 %v1332
    %3043 = vmatpush1.bf16.msra.mxu0 %v1331
    %3044 = vmatprep.subr.bf16.mxu0 %v1340
    %3045 = vmatpush1.bf16.msra.mxu0 %v1339
    %3046 = vmatprep.subr.bf16.mxu0 %v1348
    %3047 = vmatpush1.bf16.msra.mxu0 %v1347
    %3048 = vmatprep.subr.bf16.mxu0 %v1356
    %3049 = vmatpush1.bf16.msra.mxu0 %v1355
    %3050 = vmatprep.mubr.bf16.mxu0 %v832
    %3051 = vmatmul.mubr.bf16.gmra.mrb[0].mxu0 %v831
    %v3052 = vpop.f32.mrb[0].mxu0
    %v3053 = vadd.f32 %v3012, %v3052
    %v3054 = vpop.f32.mrb[0].mxu0
    %v3055 = vadd.f32 %v3014, %v3054
    %v3056 = vpop.f32.mrb[0].mxu0
    %v3057 = vpop.f32.mrb[0].mxu0
    %3058 = vdwg.mxu0
    %3059 = vmatprep.subr.bf16.mxu0 %v1364
    %3060 = vmatpush1.bf16.msra.mxu0 %v1363
    %3061 = vmatprep.subr.bf16.mxu0 %v1372
    %3062 = vmatpush1.bf16.msra.mxu0 %v1371
    %3063 = vmatprep.subr.bf16.mxu0 %v1380
    %3064 = vmatpush1.bf16.msra.mxu0 %v1379
    %3065 = vmatprep.subr.bf16.mxu0 %v1388
    %3066 = vmatpush1.bf16.msra.mxu0 %v1387
    %3067 = vmatprep.subr.bf16.mxu0 %v1396
    %3068 = vmatpush1.bf16.msra.mxu0 %v1395
    %3069 = vmatprep.subr.bf16.mxu0 %v1404
    %3070 = vmatpush1.bf16.msra.mxu0 %v1403
    %3071 = vmatprep.subr.bf16.mxu0 %v1412
    %3072 = vmatpush1.bf16.msra.mxu0 %v1411
    %3073 = vmatprep.subr.bf16.mxu0 %v1420
    %3074 = vmatpush1.bf16.msra.mxu0 %v1419
    %3075 = vmatprep.subr.bf16.mxu0 %v1428
    %3076 = vmatpush1.bf16.msra.mxu0 %v1427
    %3077 = vmatprep.subr.bf16.mxu0 %v1436
    %3078 = vmatpush1.bf16.msra.mxu0 %v1435
    %3079 = vmatprep.subr.bf16.mxu0 %v1444
    %3080 = vmatpush1.bf16.msra.mxu0 %v1443
    %3081 = vmatprep.subr.bf16.mxu0 %v1452
    %3082 = vmatpush1.bf16.msra.mxu0 %v1451
    %3083 = vmatprep.subr.bf16.mxu0 %v1460
    %3084 = vmatpush1.bf16.msra.mxu0 %v1459
    %3085 = vmatprep.subr.bf16.mxu0 %v1468
    %3086 = vmatpush1.bf16.msra.mxu0 %v1467
    %3087 = vmatprep.subr.bf16.mxu0 %v1476
    %3088 = vmatpush1.bf16.msra.mxu0 %v1475
    %3089 = vmatprep.subr.bf16.mxu0 %v1484
    %3090 = vmatpush1.bf16.msra.mxu0 %v1483
    %3091 = vmatprep.mubr.bf16.mxu0 %v834
    %3092 = vmatmul.mubr.bf16.gmra.mrb[0].mxu0 %v833
    %v3093 = vpop.f32.mrb[0].mxu0
    %v3094 = vadd.f32 %v3053, %v3093
    %v3095 = vpop.f32.mrb[0].mxu0
    %v3096 = vadd.f32 %v3055, %v3095
    %v3097 = vpop.f32.mrb[0].mxu0
    %v3098 = vpop.f32.mrb[0].mxu0
    %3099 = vdwg.mxu0
    %3100 = vmatprep.subr.bf16.mxu0 %v1492
    %3101 = vmatpush1.bf16.msra.mxu0 %v1491
    %3102 = vmatprep.subr.bf16.mxu0 %v1500
    %3103 = vmatpush1.bf16.msra.mxu0 %v1499
    %3104 = vmatprep.subr.bf16.mxu0 %v1508
    %3105 = vmatpush1.bf16.msra.mxu0 %v1507
    %3106 = vmatprep.subr.bf16.mxu0 %v1516
    %3107 = vmatpush1.bf16.msra.mxu0 %v1515
    %3108 = vmatprep.subr.bf16.mxu0 %v1524
    %3109 = vmatpush1.bf16.msra.mxu0 %v1523
    %3110 = vmatprep.subr.bf16.mxu0 %v1532
    %3111 = vmatpush1.bf16.msra.mxu0 %v1531
    %3112 = vmatprep.subr.bf16.mxu0 %v1540
    %3113 = vmatpush1.bf16.msra.mxu0 %v1539
    %3114 = vmatprep.subr.bf16.mxu0 %v1548
    %3115 = vmatpush1.bf16.msra.mxu0 %v1547
    %3116 = vmatprep.subr.bf16.mxu0 %v1556
    %3117 = vmatpush1.bf16.msra.mxu0 %v1555
    %3118 = vmatprep.subr.bf16.mxu0 %v1564
    %3119 = vmatpush1.bf16.msra.mxu0 %v1563
    %3120 = vmatprep.subr.bf16.mxu0 %v1572
    %3121 = vmatpush1.bf16.msra.mxu0 %v1571
    %3122 = vmatprep.subr.bf16.mxu0 %v1580
    %3123 = vmatpush1.bf16.msra.mxu0 %v1579
    %3124 = vmatprep.subr.bf16.mxu0 %v1588
    %3125 = vmatpush1.bf16.msra.mxu0 %v1587
    %3126 = vmatprep.subr.bf16.mxu0 %v1596
    %3127 = vmatpush1.bf16.msra.mxu0 %v1595
    %3128 = vmatprep.subr.bf16.mxu0 %v1604
    %3129 = vmatpush1.bf16.msra.mxu0 %v1603
    %3130 = vmatprep.subr.bf16.mxu0 %v1612
    %3131 = vmatpush1.bf16.msra.mxu0 %v1611
    %3132 = vmatprep.mubr.bf16.mxu0 %v836
    %3133 = vmatmul.mubr.bf16.gmra.mrb[0].mxu0 %v835
    %v3134 = vpop.f32.mrb[0].mxu0
    %v3135 = vadd.f32 %v3094, %v3134
    %v3136 = vpop.f32.mrb[0].mxu0
    %v3137 = vadd.f32 %v3096, %v3136
    %v3138 = vpop.f32.mrb[0].mxu0
    %v3139 = vpop.f32.mrb[0].mxu0
    %3140 = vdwg.mxu0
    %3141 = vmatprep.subr.bf16.mxu0 %v1620
    %3142 = vmatpush1.bf16.msra.mxu0 %v1619
    %3143 = vmatprep.subr.bf16.mxu0 %v1628
    %3144 = vmatpush1.bf16.msra.mxu0 %v1627
    %3145 = vmatprep.subr.bf16.mxu0 %v1636
    %3146 = vmatpush1.bf16.msra.mxu0 %v1635
    %3147 = vmatprep.subr.bf16.mxu0 %v1644
    %3148 = vmatpush1.bf16.msra.mxu0 %v1643
    %3149 = vmatprep.subr.bf16.mxu0 %v1652
    %3150 = vmatpush1.bf16.msra.mxu0 %v1651
    %3151 = vmatprep.subr.bf16.mxu0 %v1660
    %3152 = vmatpush1.bf16.msra.mxu0 %v1659
    %3153 = vmatprep.subr.bf16.mxu0 %v1668
    %3154 = vmatpush1.bf16.msra.mxu0 %v1667
    %3155 = vmatprep.subr.bf16.mxu0 %v1676
    %3156 = vmatpush1.bf16.msra.mxu0 %v1675
    %3157 = vmatprep.subr.bf16.mxu0 %v1684
    %3158 = vmatpush1.bf16.msra.mxu0 %v1683
    %3159 = vmatprep.subr.bf16.mxu0 %v1692
    %3160 = vmatpush1.bf16.msra.mxu0 %v1691
    %3161 = vmatprep.subr.bf16.mxu0 %v1700
    %3162 = vmatpush1.bf16.msra.mxu0 %v1699
    %3163 = vmatprep.subr.bf16.mxu0 %v1708
    %3164 = vmatpush1.bf16.msra.mxu0 %v1707
    %3165 = vmatprep.subr.bf16.mxu0 %v1716
    %3166 = vmatpush1.bf16.msra.mxu0 %v1715
    %3167 = vmatprep.subr.bf16.mxu0 %v1724
    %3168 = vmatpush1.bf16.msra.mxu0 %v1723
    %3169 = vmatprep.subr.bf16.mxu0 %v1732
    %3170 = vmatpush1.bf16.msra.mxu0 %v1731
    %3171 = vmatprep.subr.bf16.mxu0 %v1740
    %3172 = vmatpush1.bf16.msra.mxu0 %v1739
    %3173 = vmatprep.mubr.bf16.mxu0 %v838
    %3174 = vmatmul.mubr.bf16.gmra.mrb[0].mxu0 %v837
    %v3175 = vpop.f32.mrb[0].mxu0
    %v3176 = vadd.f32 %v3135, %v3175
    %v3177 = vpop.f32.mrb[0].mxu0
    %v3178 = vadd.f32 %v3137, %v3177
    %v3179 = vpop.f32.mrb[0].mxu0
    %v3180 = vpop.f32.mrb[0].mxu0
    %3181 = vdwg.mxu0
    %3182 = vmatprep.subr.bf16.mxu0 %v1748
    %3183 = vmatpush1.bf16.msra.mxu0 %v1747
    %3184 = vmatprep.subr.bf16.mxu0 %v1756
    %3185 = vmatpush1.bf16.msra.mxu0 %v1755
    %3186 = vmatprep.subr.bf16.mxu0 %v1764
    %3187 = vmatpush1.bf16.msra.mxu0 %v1763
    %3188 = vmatprep.subr.bf16.mxu0 %v1772
    %3189 = vmatpush1.bf16.msra.mxu0 %v1771
    %3190 = vmatprep.subr.bf16.mxu0 %v1780
    %3191 = vmatpush1.bf16.msra.mxu0 %v1779
    %3192 = vmatprep.subr.bf16.mxu0 %v1788
    %3193 = vmatpush1.bf16.msra.mxu0 %v1787
    %3194 = vmatprep.subr.bf16.mxu0 %v1796
    %3195 = vmatpush1.bf16.msra.mxu0 %v1795
    %3196 = vmatprep.subr.bf16.mxu0 %v1804
    %3197 = vmatpush1.bf16.msra.mxu0 %v1803
    %3198 = vmatprep.subr.bf16.mxu0 %v1812
    %3199 = vmatpush1.bf16.msra.mxu0 %v1811
    %3200 = vmatprep.subr.bf16.mxu0 %v1820
    %3201 = vmatpush1.bf16.msra.mxu0 %v1819
    %3202 = vmatprep.subr.bf16.mxu0 %v1828
    %3203 = vmatpush1.bf16.msra.mxu0 %v1827
    %3204 = vmatprep.subr.bf16.mxu0 %v1836
    %3205 = vmatpush1.bf16.msra.mxu0 %v1835
    %3206 = vmatprep.subr.bf16.mxu0 %v1844
    %3207 = vmatpush1.bf16.msra.mxu0 %v1843
    %3208 = vmatprep.subr.bf16.mxu0 %v1852
    %3209 = vmatpush1.bf16.msra.mxu0 %v1851
    %3210 = vmatprep.subr.bf16.mxu0 %v1860
    %3211 = vmatpush1.bf16.msra.mxu0 %v1859
    %3212 = vmatprep.subr.bf16.mxu0 %v1868
    %3213 = vmatpush1.bf16.msra.mxu0 %v1867
    %3214 = vmatprep.mubr.bf16.mxu0 %v840
    %3215 = vmatmul.mubr.bf16.gmra.mrb[0].mxu0 %v839
    %v3216 = vpop.f32.mrb[0].mxu0
    %v3217 = vadd.f32 %v3176, %v3216
    %v3218 = vpop.f32.mrb[0].mxu0
    %v3219 = vadd.f32 %v3178, %v3218
    %v3220 = vpop.f32.mrb[0].mxu0
    %v3221 = vpop.f32.mrb[0].mxu0
    %3222 = vdwg.mxu0
    %v3223 = vmax.f32 %v2233, 0.0
    %v3224 = vmax.f32 %v2235, 0.0
    %v3225 = vmax.f32 %v2561, 0.0
    %v3226 = vmax.f32 %v2563, 0.0
    %v3227 = vmax.f32 %v2889, 0.0
    %v3228 = vmax.f32 %v2891, 0.0
    %v3229 = vmax.f32 %v3217, 0.0
    %v3230 = vmax.f32 %v3219, 0.0
    %v3231 = vpack.c.bf16 %v3223, %v3223
    %v3232 = vpack.c.bf16 %v3224, %v3224
    %v3233 = vpack.c.bf16 %v3225, %v3225
    %v3234 = vpack.c.bf16 %v3226, %v3226
    %v3235 = vpack.c.bf16 %v3227, %v3227
    %v3236 = vpack.c.bf16 %v3228, %v3228
    %v3237 = vpack.c.bf16 %v3229, %v3229
    %v3238 = vpack.c.bf16 %v3230, %v3230
    %s3239 = smul.u32 4, 128
    %s3240 = smul.u32 %s3239, 16
    %s3241 = sshll.u32 %s3240, 4
    %3242 = dma.done %s158, %s3241
    %v3243 = vld [vmem:[#allocation4] sm:$0xff]
    %v3244 = vld [vmem:[#allocation4 + $0x8] sm:$0xff]
    %v3245 = vld [vmem:[#allocation4 + $0x10] sm:$0xff]
    %v3246 = vld [vmem:[#allocation4 + $0x18] sm:$0xff]
    %v3247 = vld [vmem:[#allocation4 + $0x20] sm:$0xff]
    %v3248 = vld [vmem:[#allocation4 + $0x28] sm:$0xff]
    %v3249 = vld [vmem:[#allocation4 + $0x30] sm:$0xff]
    %v3250 = vld [vmem:[#allocation4 + $0x38] sm:$0xff]
    %v3251 = vld [vmem:[#allocation4 + $0x40] sm:$0xff]
    %v3252 = vld [vmem:[#allocation4 + $0x48] sm:$0xff]
    %v3253 = vld [vmem:[#allocation4 + $0x50] sm:$0xff]
    %v3254 = vld [vmem:[#allocation4 + $0x58] sm:$0xff]
    %v3255 = vld [vmem:[#allocation4 + $0x60] sm:$0xff]
    %v3256 = vld [vmem:[#allocation4 + $0x68] sm:$0xff]
    %v3257 = vld [vmem:[#allocation4 + $0x70] sm:$0xff]
    %v3258 = vld [vmem:[#allocation4 + $0x78] sm:$0xff]
    %v3259 = vld [vmem:[#allocation4 + $0x80] sm:$0xff]
    %v3260 = vld [vmem:[#allocation4 + $0x88] sm:$0xff]
    %v3261 = vld [vmem:[#allocation4 + $0x90] sm:$0xff]
    %v3262 = vld [vmem:[#allocation4 + $0x98] sm:$0xff]
    %v3263 = vld [vmem:[#allocation4 + $0xa0] sm:$0xff]
    %v3264 = vld [vmem:[#allocation4 + $0xa8] sm:$0xff]
    %v3265 = vld [vmem:[#allocation4 + $0xb0] sm:$0xff]
    %v3266 = vld [vmem:[#allocation4 + $0xb8] sm:$0xff]
    %v3267 = vld [vmem:[#allocation4 + $0xc0] sm:$0xff]
    %v3268 = vld [vmem:[#allocation4 + $0xc8] sm:$0xff]
    %v3269 = vld [vmem:[#allocation4 + $0xd0] sm:$0xff]
    %v3270 = vld [vmem:[#allocation4 + $0xd8] sm:$0xff]
    %v3271 = vld [vmem:[#allocation4 + $0xe0] sm:$0xff]
    %v3272 = vld [vmem:[#allocation4 + $0xe8] sm:$0xff]
    %v3273 = vld [vmem:[#allocation4 + $0xf0] sm:$0xff]
    %v3274 = vld [vmem:[#allocation4 + $0xf8] sm:$0xff]
    %v3275 = vld [vmem:[#allocation4 + $0x100] sm:$0xff]
    %v3276 = vld [vmem:[#allocation4 + $0x108] sm:$0xff]
    %v3277 = vld [vmem:[#allocation4 + $0x110] sm:$0xff]
    %v3278 = vld [vmem:[#allocation4 + $0x118] sm:$0xff]
    %v3279 = vld [vmem:[#allocation4 + $0x120] sm:$0xff]
    %v3280 = vld [vmem:[#allocation4 + $0x128] sm:$0xff]
    %v3281 = vld [vmem:[#allocation4 + $0x130] sm:$0xff]
    %v3282 = vld [vmem:[#allocation4 + $0x138] sm:$0xff]
    %v3283 = vld [vmem:[#allocation4 + $0x140] sm:$0xff]
    %v3284 = vld [vmem:[#allocation4 + $0x148] sm:$0xff]
    %v3285 = vld [vmem:[#allocation4 + $0x150] sm:$0xff]
    %v3286 = vld [vmem:[#allocation4 + $0x158] sm:$0xff]
    %v3287 = vld [vmem:[#allocation4 + $0x160] sm:$0xff]
    %v3288 = vld [vmem:[#allocation4 + $0x168] sm:$0xff]
    %v3289 = vld [vmem:[#allocation4 + $0x170] sm:$0xff]
    %v3290 = vld [vmem:[#allocation4 + $0x178] sm:$0xff]
    %v3291 = vld [vmem:[#allocation4 + $0x180] sm:$0xff]
    %v3292 = vld [vmem:[#allocation4 + $0x188] sm:$0xff]
    %v3293 = vld [vmem:[#allocation4 + $0x190] sm:$0xff]
    %v3294 = vld [vmem:[#allocation4 + $0x198] sm:$0xff]
    %v3295 = vld [vmem:[#allocation4 + $0x1a0] sm:$0xff]
    %v3296 = vld [vmem:[#allocation4 + $0x1a8] sm:$0xff]
    %v3297 = vld [vmem:[#allocation4 + $0x1b0] sm:$0xff]
    %v3298 = vld [vmem:[#allocation4 + $0x1b8] sm:$0xff]
    %v3299 = vld [vmem:[#allocation4 + $0x1c0] sm:$0xff]
    %v3300 = vld [vmem:[#allocation4 + $0x1c8] sm:$0xff]
    %v3301 = vld [vmem:[#allocation4 + $0x1d0] sm:$0xff]
    %v3302 = vld [vmem:[#allocation4 + $0x1d8] sm:$0xff]
    %v3303 = vld [vmem:[#allocation4 + $0x1e0] sm:$0xff]
    %v3304 = vld [vmem:[#allocation4 + $0x1e8] sm:$0xff]
    %v3305 = vld [vmem:[#allocation4 + $0x1f0] sm:$0xff]
    %v3306 = vld [vmem:[#allocation4 + $0x1f8] sm:$0xff]
    %v3307 = vld [vmem:[#allocation4 + $0x200] sm:$0xff]
    %v3308 = vld [vmem:[#allocation4 + $0x208] sm:$0xff]
    %v3309 = vld [vmem:[#allocation4 + $0x210] sm:$0xff]
    %v3310 = vld [vmem:[#allocation4 + $0x218] sm:$0xff]
    %v3311 = vld [vmem:[#allocation4 + $0x220] sm:$0xff]
    %v3312 = vld [vmem:[#allocation4 + $0x228] sm:$0xff]
    %v3313 = vld [vmem:[#allocation4 + $0x230] sm:$0xff]
    %v3314 = vld [vmem:[#allocation4 + $0x238] sm:$0xff]
    %v3315 = vld [vmem:[#allocation4 + $0x240] sm:$0xff]
    %v3316 = vld [vmem:[#allocation4 + $0x248] sm:$0xff]
    %v3317 = vld [vmem:[#allocation4 + $0x250] sm:$0xff]
    %v3318 = vld [vmem:[#allocation4 + $0x258] sm:$0xff]
    %v3319 = vld [vmem:[#allocation4 + $0x260] sm:$0xff]
    %v3320 = vld [vmem:[#allocation4 + $0x268] sm:$0xff]
    %v3321 = vld [vmem:[#allocation4 + $0x270] sm:$0xff]
    %v3322 = vld [vmem:[#allocation4 + $0x278] sm:$0xff]
    %v3323 = vld [vmem:[#allocation4 + $0x280] sm:$0xff]
    %v3324 = vld [vmem:[#allocation4 + $0x288] sm:$0xff]
    %v3325 = vld [vmem:[#allocation4 + $0x290] sm:$0xff]
    %v3326 = vld [vmem:[#allocation4 + $0x298] sm:$0xff]
    %v3327 = vld [vmem:[#allocation4 + $0x2a0] sm:$0xff]
    %v3328 = vld [vmem:[#allocation4 + $0x2a8] sm:$0xff]
    %v3329 = vld [vmem:[#allocation4 + $0x2b0] sm:$0xff]
    %v3330 = vld [vmem:[#allocation4 + $0x2b8] sm:$0xff]
    %v3331 = vld [vmem:[#allocation4 + $0x2c0] sm:$0xff]
    %v3332 = vld [vmem:[#allocation4 + $0x2c8] sm:$0xff]
    %v3333 = vld [vmem:[#allocation4 + $0x2d0] sm:$0xff]
    %v3334 = vld [vmem:[#allocation4 + $0x2d8] sm:$0xff]
    %v3335 = vld [vmem:[#allocation4 + $0x2e0] sm:$0xff]
    %v3336 = vld [vmem:[#allocation4 + $0x2e8] sm:$0xff]
    %v3337 = vld [vmem:[#allocation4 + $0x2f0] sm:$0xff]
    %v3338 = vld [vmem:[#allocation4 + $0x2f8] sm:$0xff]
    %v3339 = vld [vmem:[#allocation4 + $0x300] sm:$0xff]
    %v3340 = vld [vmem:[#allocation4 + $0x308] sm:$0xff]
    %v3341 = vld [vmem:[#allocation4 + $0x310] sm:$0xff]
    %v3342 = vld [vmem:[#allocation4 + $0x318] sm:$0xff]
    %v3343 = vld [vmem:[#allocation4 + $0x320] sm:$0xff]
    %v3344 = vld [vmem:[#allocation4 + $0x328] sm:$0xff]
    %v3345 = vld [vmem:[#allocation4 + $0x330] sm:$0xff]
    %v3346 = vld [vmem:[#allocation4 + $0x338] sm:$0xff]
    %v3347 = vld [vmem:[#allocation4 + $0x340] sm:$0xff]
    %v3348 = vld [vmem:[#allocation4 + $0x348] sm:$0xff]
    %v3349 = vld [vmem:[#allocation4 + $0x350] sm:$0xff]
    %v3350 = vld [vmem:[#allocation4 + $0x358] sm:$0xff]
    %v3351 = vld [vmem:[#allocation4 + $0x360] sm:$0xff]
    %v3352 = vld [vmem:[#allocation4 + $0x368] sm:$0xff]
    %v3353 = vld [vmem:[#allocation4 + $0x370] sm:$0xff]
    %v3354 = vld [vmem:[#allocation4 + $0x378] sm:$0xff]
    %v3355 = vld [vmem:[#allocation4 + $0x380] sm:$0xff]
    %v3356 = vld [vmem:[#allocation4 + $0x388] sm:$0xff]
    %v3357 = vld [vmem:[#allocation4 + $0x390] sm:$0xff]
    %v3358 = vld [vmem:[#allocation4 + $0x398] sm:$0xff]
    %v3359 = vld [vmem:[#allocation4 + $0x3a0] sm:$0xff]
    %v3360 = vld [vmem:[#allocation4 + $0x3a8] sm:$0xff]
    %v3361 = vld [vmem:[#allocation4 + $0x3b0] sm:$0xff]
    %v3362 = vld [vmem:[#allocation4 + $0x3b8] sm:$0xff]
    %v3363 = vld [vmem:[#allocation4 + $0x3c0] sm:$0xff]
    %v3364 = vld [vmem:[#allocation4 + $0x3c8] sm:$0xff]
    %v3365 = vld [vmem:[#allocation4 + $0x3d0] sm:$0xff]
    %v3366 = vld [vmem:[#allocation4 + $0x3d8] sm:$0xff]
    %v3367 = vld [vmem:[#allocation4 + $0x3e0] sm:$0xff]
    %v3368 = vld [vmem:[#allocation4 + $0x3e8] sm:$0xff]
    %v3369 = vld [vmem:[#allocation4 + $0x3f0] sm:$0xff]
    %v3370 = vld [vmem:[#allocation4 + $0x3f8] sm:$0xff]
    %v3371 = vld [vmem:[#allocation4 + $0x400] sm:$0xff]
    %v3372 = vld [vmem:[#allocation4 + $0x408] sm:$0xff]
    %v3373 = vld [vmem:[#allocation4 + $0x410] sm:$0xff]
    %v3374 = vld [vmem:[#allocation4 + $0x418] sm:$0xff]
    %v3375 = vld [vmem:[#allocation4 + $0x420] sm:$0xff]
    %v3376 = vld [vmem:[#allocation4 + $0x428] sm:$0xff]
    %v3377 = vld [vmem:[#allocation4 + $0x430] sm:$0xff]
    %v3378 = vld [vmem:[#allocation4 + $0x438] sm:$0xff]
    %v3379 = vld [vmem:[#allocation4 + $0x440] sm:$0xff]
    %v3380 = vld [vmem:[#allocation4 + $0x448] sm:$0xff]
    %v3381 = vld [vmem:[#allocation4 + $0x450] sm:$0xff]
    %v3382 = vld [vmem:[#allocation4 + $0x458] sm:$0xff]
    %v3383 = vld [vmem:[#allocation4 + $0x460] sm:$0xff]
    %v3384 = vld [vmem:[#allocation4 + $0x468] sm:$0xff]
    %v3385 = vld [vmem:[#allocation4 + $0x470] sm:$0xff]
    %v3386 = vld [vmem:[#allocation4 + $0x478] sm:$0xff]
    %v3387 = vld [vmem:[#allocation4 + $0x480] sm:$0xff]
    %v3388 = vld [vmem:[#allocation4 + $0x488] sm:$0xff]
    %v3389 = vld [vmem:[#allocation4 + $0x490] sm:$0xff]
    %v3390 = vld [vmem:[#allocation4 + $0x498] sm:$0xff]
    %v3391 = vld [vmem:[#allocation4 + $0x4a0] sm:$0xff]
    %v3392 = vld [vmem:[#allocation4 + $0x4a8] sm:$0xff]
    %v3393 = vld [vmem:[#allocation4 + $0x4b0] sm:$0xff]
    %v3394 = vld [vmem:[#allocation4 + $0x4b8] sm:$0xff]
    %v3395 = vld [vmem:[#allocation4 + $0x4c0] sm:$0xff]
    %v3396 = vld [vmem:[#allocation4 + $0x4c8] sm:$0xff]
    %v3397 = vld [vmem:[#allocation4 + $0x4d0] sm:$0xff]
    %v3398 = vld [vmem:[#allocation4 + $0x4d8] sm:$0xff]
    %v3399 = vld [vmem:[#allocation4 + $0x4e0] sm:$0xff]
    %v3400 = vld [vmem:[#allocation4 + $0x4e8] sm:$0xff]
    %v3401 = vld [vmem:[#allocation4 + $0x4f0] sm:$0xff]
    %v3402 = vld [vmem:[#allocation4 + $0x4f8] sm:$0xff]
    %v3403 = vld [vmem:[#allocation4 + $0x500] sm:$0xff]
    %v3404 = vld [vmem:[#allocation4 + $0x508] sm:$0xff]
    %v3405 = vld [vmem:[#allocation4 + $0x510] sm:$0xff]
    %v3406 = vld [vmem:[#allocation4 + $0x518] sm:$0xff]
    %v3407 = vld [vmem:[#allocation4 + $0x520] sm:$0xff]
    %v3408 = vld [vmem:[#allocation4 + $0x528] sm:$0xff]
    %v3409 = vld [vmem:[#allocation4 + $0x530] sm:$0xff]
    %v3410 = vld [vmem:[#allocation4 + $0x538] sm:$0xff]
    %v3411 = vld [vmem:[#allocation4 + $0x540] sm:$0xff]
    %v3412 = vld [vmem:[#allocation4 + $0x548] sm:$0xff]
    %v3413 = vld [vmem:[#allocation4 + $0x550] sm:$0xff]
    %v3414 = vld [vmem:[#allocation4 + $0x558] sm:$0xff]
    %v3415 = vld [vmem:[#allocation4 + $0x560] sm:$0xff]
    %v3416 = vld [vmem:[#allocation4 + $0x568] sm:$0xff]
    %v3417 = vld [vmem:[#allocation4 + $0x570] sm:$0xff]
    %v3418 = vld [vmem:[#allocation4 + $0x578] sm:$0xff]
    %v3419 = vld [vmem:[#allocation4 + $0x580] sm:$0xff]
    %v3420 = vld [vmem:[#allocation4 + $0x588] sm:$0xff]
    %v3421 = vld [vmem:[#allocation4 + $0x590] sm:$0xff]
    %v3422 = vld [vmem:[#allocation4 + $0x598] sm:$0xff]
    %v3423 = vld [vmem:[#allocation4 + $0x5a0] sm:$0xff]
    %v3424 = vld [vmem:[#allocation4 + $0x5a8] sm:$0xff]
    %v3425 = vld [vmem:[#allocation4 + $0x5b0] sm:$0xff]
    %v3426 = vld [vmem:[#allocation4 + $0x5b8] sm:$0xff]
    %v3427 = vld [vmem:[#allocation4 + $0x5c0] sm:$0xff]
    %v3428 = vld [vmem:[#allocation4 + $0x5c8] sm:$0xff]
    %v3429 = vld [vmem:[#allocation4 + $0x5d0] sm:$0xff]
    %v3430 = vld [vmem:[#allocation4 + $0x5d8] sm:$0xff]
    %v3431 = vld [vmem:[#allocation4 + $0x5e0] sm:$0xff]
    %v3432 = vld [vmem:[#allocation4 + $0x5e8] sm:$0xff]
    %v3433 = vld [vmem:[#allocation4 + $0x5f0] sm:$0xff]
    %v3434 = vld [vmem:[#allocation4 + $0x5f8] sm:$0xff]
    %v3435 = vld [vmem:[#allocation4 + $0x600] sm:$0xff]
    %v3436 = vld [vmem:[#allocation4 + $0x608] sm:$0xff]
    %v3437 = vld [vmem:[#allocation4 + $0x610] sm:$0xff]
    %v3438 = vld [vmem:[#allocation4 + $0x618] sm:$0xff]
    %v3439 = vld [vmem:[#allocation4 + $0x620] sm:$0xff]
    %v3440 = vld [vmem:[#allocation4 + $0x628] sm:$0xff]
    %v3441 = vld [vmem:[#allocation4 + $0x630] sm:$0xff]
    %v3442 = vld [vmem:[#allocation4 + $0x638] sm:$0xff]
    %v3443 = vld [vmem:[#allocation4 + $0x640] sm:$0xff]
    %v3444 = vld [vmem:[#allocation4 + $0x648] sm:$0xff]
    %v3445 = vld [vmem:[#allocation4 + $0x650] sm:$0xff]
    %v3446 = vld [vmem:[#allocation4 + $0x658] sm:$0xff]
    %v3447 = vld [vmem:[#allocation4 + $0x660] sm:$0xff]
    %v3448 = vld [vmem:[#allocation4 + $0x668] sm:$0xff]
    %v3449 = vld [vmem:[#allocation4 + $0x670] sm:$0xff]
    %v3450 = vld [vmem:[#allocation4 + $0x678] sm:$0xff]
    %v3451 = vld [vmem:[#allocation4 + $0x680] sm:$0xff]
    %v3452 = vld [vmem:[#allocation4 + $0x688] sm:$0xff]
    %v3453 = vld [vmem:[#allocation4 + $0x690] sm:$0xff]
    %v3454 = vld [vmem:[#allocation4 + $0x698] sm:$0xff]
    %v3455 = vld [vmem:[#allocation4 + $0x6a0] sm:$0xff]
    %v3456 = vld [vmem:[#allocation4 + $0x6a8] sm:$0xff]
    %v3457 = vld [vmem:[#allocation4 + $0x6b0] sm:$0xff]
    %v3458 = vld [vmem:[#allocation4 + $0x6b8] sm:$0xff]
    %v3459 = vld [vmem:[#allocation4 + $0x6c0] sm:$0xff]
    %v3460 = vld [vmem:[#allocation4 + $0x6c8] sm:$0xff]
    %v3461 = vld [vmem:[#allocation4 + $0x6d0] sm:$0xff]
    %v3462 = vld [vmem:[#allocation4 + $0x6d8] sm:$0xff]
    %v3463 = vld [vmem:[#allocation4 + $0x6e0] sm:$0xff]
    %v3464 = vld [vmem:[#allocation4 + $0x6e8] sm:$0xff]
    %v3465 = vld [vmem:[#allocation4 + $0x6f0] sm:$0xff]
    %v3466 = vld [vmem:[#allocation4 + $0x6f8] sm:$0xff]
    %v3467 = vld [vmem:[#allocation4 + $0x700] sm:$0xff]
    %v3468 = vld [vmem:[#allocation4 + $0x708] sm:$0xff]
    %v3469 = vld [vmem:[#allocation4 + $0x710] sm:$0xff]
    %v3470 = vld [vmem:[#allocation4 + $0x718] sm:$0xff]
    %v3471 = vld [vmem:[#allocation4 + $0x720] sm:$0xff]
    %v3472 = vld [vmem:[#allocation4 + $0x728] sm:$0xff]
    %v3473 = vld [vmem:[#allocation4 + $0x730] sm:$0xff]
    %v3474 = vld [vmem:[#allocation4 + $0x738] sm:$0xff]
    %v3475 = vld [vmem:[#allocation4 + $0x740] sm:$0xff]
    %v3476 = vld [vmem:[#allocation4 + $0x748] sm:$0xff]
    %v3477 = vld [vmem:[#allocation4 + $0x750] sm:$0xff]
    %v3478 = vld [vmem:[#allocation4 + $0x758] sm:$0xff]
    %v3479 = vld [vmem:[#allocation4 + $0x760] sm:$0xff]
    %v3480 = vld [vmem:[#allocation4 + $0x768] sm:$0xff]
    %v3481 = vld [vmem:[#allocation4 + $0x770] sm:$0xff]
    %v3482 = vld [vmem:[#allocation4 + $0x778] sm:$0xff]
    %v3483 = vld [vmem:[#allocation4 + $0x780] sm:$0xff]
    %v3484 = vld [vmem:[#allocation4 + $0x788] sm:$0xff]
    %v3485 = vld [vmem:[#allocation4 + $0x790] sm:$0xff]
    %v3486 = vld [vmem:[#allocation4 + $0x798] sm:$0xff]
    %v3487 = vld [vmem:[#allocation4 + $0x7a0] sm:$0xff]
    %v3488 = vld [vmem:[#allocation4 + $0x7a8] sm:$0xff]
    %v3489 = vld [vmem:[#allocation4 + $0x7b0] sm:$0xff]
    %v3490 = vld [vmem:[#allocation4 + $0x7b8] sm:$0xff]
    %v3491 = vld [vmem:[#allocation4 + $0x7c0] sm:$0xff]
    %v3492 = vld [vmem:[#allocation4 + $0x7c8] sm:$0xff]
    %v3493 = vld [vmem:[#allocation4 + $0x7d0] sm:$0xff]
    %v3494 = vld [vmem:[#allocation4 + $0x7d8] sm:$0xff]
    %v3495 = vld [vmem:[#allocation4 + $0x7e0] sm:$0xff]
    %v3496 = vld [vmem:[#allocation4 + $0x7e8] sm:$0xff]
    %v3497 = vld [vmem:[#allocation4 + $0x7f0] sm:$0xff]
    %v3498 = vld [vmem:[#allocation4 + $0x7f8] sm:$0xff]
    %v3499 = vld [vmem:[#allocation4 + $0x800] sm:$0xff]
    %v3500 = vld [vmem:[#allocation4 + $0x808] sm:$0xff]
    %v3501 = vld [vmem:[#allocation4 + $0x810] sm:$0xff]
    %v3502 = vld [vmem:[#allocation4 + $0x818] sm:$0xff]
    %v3503 = vld [vmem:[#allocation4 + $0x820] sm:$0xff]
    %v3504 = vld [vmem:[#allocation4 + $0x828] sm:$0xff]
    %v3505 = vld [vmem:[#allocation4 + $0x830] sm:$0xff]
    %v3506 = vld [vmem:[#allocation4 + $0x838] sm:$0xff]
    %v3507 = vld [vmem:[#allocation4 + $0x840] sm:$0xff]
    %v3508 = vld [vmem:[#allocation4 + $0x848] sm:$0xff]
    %v3509 = vld [vmem:[#allocation4 + $0x850] sm:$0xff]
    %v3510 = vld [vmem:[#allocation4 + $0x858] sm:$0xff]
    %v3511 = vld [vmem:[#allocation4 + $0x860] sm:$0xff]
    %v3512 = vld [vmem:[#allocation4 + $0x868] sm:$0xff]
    %v3513 = vld [vmem:[#allocation4 + $0x870] sm:$0xff]
    %v3514 = vld [vmem:[#allocation4 + $0x878] sm:$0xff]
    %v3515 = vld [vmem:[#allocation4 + $0x880] sm:$0xff]
    %v3516 = vld [vmem:[#allocation4 + $0x888] sm:$0xff]
    %v3517 = vld [vmem:[#allocation4 + $0x890] sm:$0xff]
    %v3518 = vld [vmem:[#allocation4 + $0x898] sm:$0xff]
    %v3519 = vld [vmem:[#allocation4 + $0x8a0] sm:$0xff]
    %v3520 = vld [vmem:[#allocation4 + $0x8a8] sm:$0xff]
    %v3521 = vld [vmem:[#allocation4 + $0x8b0] sm:$0xff]
    %v3522 = vld [vmem:[#allocation4 + $0x8b8] sm:$0xff]
    %v3523 = vld [vmem:[#allocation4 + $0x8c0] sm:$0xff]
    %v3524 = vld [vmem:[#allocation4 + $0x8c8] sm:$0xff]
    %v3525 = vld [vmem:[#allocation4 + $0x8d0] sm:$0xff]
    %v3526 = vld [vmem:[#allocation4 + $0x8d8] sm:$0xff]
    %v3527 = vld [vmem:[#allocation4 + $0x8e0] sm:$0xff]
    %v3528 = vld [vmem:[#allocation4 + $0x8e8] sm:$0xff]
    %v3529 = vld [vmem:[#allocation4 + $0x8f0] sm:$0xff]
    %v3530 = vld [vmem:[#allocation4 + $0x8f8] sm:$0xff]
    %v3531 = vld [vmem:[#allocation4 + $0x900] sm:$0xff]
    %v3532 = vld [vmem:[#allocation4 + $0x908] sm:$0xff]
    %v3533 = vld [vmem:[#allocation4 + $0x910] sm:$0xff]
    %v3534 = vld [vmem:[#allocation4 + $0x918] sm:$0xff]
    %v3535 = vld [vmem:[#allocation4 + $0x920] sm:$0xff]
    %v3536 = vld [vmem:[#allocation4 + $0x928] sm:$0xff]
    %v3537 = vld [vmem:[#allocation4 + $0x930] sm:$0xff]
    %v3538 = vld [vmem:[#allocation4 + $0x938] sm:$0xff]
    %v3539 = vld [vmem:[#allocation4 + $0x940] sm:$0xff]
    %v3540 = vld [vmem:[#allocation4 + $0x948] sm:$0xff]
    %v3541 = vld [vmem:[#allocation4 + $0x950] sm:$0xff]
    %v3542 = vld [vmem:[#allocation4 + $0x958] sm:$0xff]
    %v3543 = vld [vmem:[#allocation4 + $0x960] sm:$0xff]
    %v3544 = vld [vmem:[#allocation4 + $0x968] sm:$0xff]
    %v3545 = vld [vmem:[#allocation4 + $0x970] sm:$0xff]
    %v3546 = vld [vmem:[#allocation4 + $0x978] sm:$0xff]
    %v3547 = vld [vmem:[#allocation4 + $0x980] sm:$0xff]
    %v3548 = vld [vmem:[#allocation4 + $0x988] sm:$0xff]
    %v3549 = vld [vmem:[#allocation4 + $0x990] sm:$0xff]
    %v3550 = vld [vmem:[#allocation4 + $0x998] sm:$0xff]
    %v3551 = vld [vmem:[#allocation4 + $0x9a0] sm:$0xff]
    %v3552 = vld [vmem:[#allocation4 + $0x9a8] sm:$0xff]
    %v3553 = vld [vmem:[#allocation4 + $0x9b0] sm:$0xff]
    %v3554 = vld [vmem:[#allocation4 + $0x9b8] sm:$0xff]
    %v3555 = vld [vmem:[#allocation4 + $0x9c0] sm:$0xff]
    %v3556 = vld [vmem:[#allocation4 + $0x9c8] sm:$0xff]
    %v3557 = vld [vmem:[#allocation4 + $0x9d0] sm:$0xff]
    %v3558 = vld [vmem:[#allocation4 + $0x9d8] sm:$0xff]
    %v3559 = vld [vmem:[#allocation4 + $0x9e0] sm:$0xff]
    %v3560 = vld [vmem:[#allocation4 + $0x9e8] sm:$0xff]
    %v3561 = vld [vmem:[#allocation4 + $0x9f0] sm:$0xff]
    %v3562 = vld [vmem:[#allocation4 + $0x9f8] sm:$0xff]
    %v3563 = vld [vmem:[#allocation4 + $0xa00] sm:$0xff]
    %v3564 = vld [vmem:[#allocation4 + $0xa08] sm:$0xff]
    %v3565 = vld [vmem:[#allocation4 + $0xa10] sm:$0xff]
    %v3566 = vld [vmem:[#allocation4 + $0xa18] sm:$0xff]
    %v3567 = vld [vmem:[#allocation4 + $0xa20] sm:$0xff]
    %v3568 = vld [vmem:[#allocation4 + $0xa28] sm:$0xff]
    %v3569 = vld [vmem:[#allocation4 + $0xa30] sm:$0xff]
    %v3570 = vld [vmem:[#allocation4 + $0xa38] sm:$0xff]
    %v3571 = vld [vmem:[#allocation4 + $0xa40] sm:$0xff]
    %v3572 = vld [vmem:[#allocation4 + $0xa48] sm:$0xff]
    %v3573 = vld [vmem:[#allocation4 + $0xa50] sm:$0xff]
    %v3574 = vld [vmem:[#allocation4 + $0xa58] sm:$0xff]
    %v3575 = vld [vmem:[#allocation4 + $0xa60] sm:$0xff]
    %v3576 = vld [vmem:[#allocation4 + $0xa68] sm:$0xff]
    %v3577 = vld [vmem:[#allocation4 + $0xa70] sm:$0xff]
    %v3578 = vld [vmem:[#allocation4 + $0xa78] sm:$0xff]
    %v3579 = vld [vmem:[#allocation4 + $0xa80] sm:$0xff]
    %v3580 = vld [vmem:[#allocation4 + $0xa88] sm:$0xff]
    %v3581 = vld [vmem:[#allocation4 + $0xa90] sm:$0xff]
    %v3582 = vld [vmem:[#allocation4 + $0xa98] sm:$0xff]
    %v3583 = vld [vmem:[#allocation4 + $0xaa0] sm:$0xff]
    %v3584 = vld [vmem:[#allocation4 + $0xaa8] sm:$0xff]
    %v3585 = vld [vmem:[#allocation4 + $0xab0] sm:$0xff]
    %v3586 = vld [vmem:[#allocation4 + $0xab8] sm:$0xff]
    %v3587 = vld [vmem:[#allocation4 + $0xac0] sm:$0xff]
    %v3588 = vld [vmem:[#allocation4 + $0xac8] sm:$0xff]
    %v3589 = vld [vmem:[#allocation4 + $0xad0] sm:$0xff]
    %v3590 = vld [vmem:[#allocation4 + $0xad8] sm:$0xff]
    %v3591 = vld [vmem:[#allocation4 + $0xae0] sm:$0xff]
    %v3592 = vld [vmem:[#allocation4 + $0xae8] sm:$0xff]
    %v3593 = vld [vmem:[#allocation4 + $0xaf0] sm:$0xff]
    %v3594 = vld [vmem:[#allocation4 + $0xaf8] sm:$0xff]
    %v3595 = vld [vmem:[#allocation4 + $0xb00] sm:$0xff]
    %v3596 = vld [vmem:[#allocation4 + $0xb08] sm:$0xff]
    %v3597 = vld [vmem:[#allocation4 + $0xb10] sm:$0xff]
    %v3598 = vld [vmem:[#allocation4 + $0xb18] sm:$0xff]
    %v3599 = vld [vmem:[#allocation4 + $0xb20] sm:$0xff]
    %v3600 = vld [vmem:[#allocation4 + $0xb28] sm:$0xff]
    %v3601 = vld [vmem:[#allocation4 + $0xb30] sm:$0xff]
    %v3602 = vld [vmem:[#allocation4 + $0xb38] sm:$0xff]
    %v3603 = vld [vmem:[#allocation4 + $0xb40] sm:$0xff]
    %v3604 = vld [vmem:[#allocation4 + $0xb48] sm:$0xff]
    %v3605 = vld [vmem:[#allocation4 + $0xb50] sm:$0xff]
    %v3606 = vld [vmem:[#allocation4 + $0xb58] sm:$0xff]
    %v3607 = vld [vmem:[#allocation4 + $0xb60] sm:$0xff]
    %v3608 = vld [vmem:[#allocation4 + $0xb68] sm:$0xff]
    %v3609 = vld [vmem:[#allocation4 + $0xb70] sm:$0xff]
    %v3610 = vld [vmem:[#allocation4 + $0xb78] sm:$0xff]
    %v3611 = vld [vmem:[#allocation4 + $0xb80] sm:$0xff]
    %v3612 = vld [vmem:[#allocation4 + $0xb88] sm:$0xff]
    %v3613 = vld [vmem:[#allocation4 + $0xb90] sm:$0xff]
    %v3614 = vld [vmem:[#allocation4 + $0xb98] sm:$0xff]
    %v3615 = vld [vmem:[#allocation4 + $0xba0] sm:$0xff]
    %v3616 = vld [vmem:[#allocation4 + $0xba8] sm:$0xff]
    %v3617 = vld [vmem:[#allocation4 + $0xbb0] sm:$0xff]
    %v3618 = vld [vmem:[#allocation4 + $0xbb8] sm:$0xff]
    %v3619 = vld [vmem:[#allocation4 + $0xbc0] sm:$0xff]
    %v3620 = vld [vmem:[#allocation4 + $0xbc8] sm:$0xff]
    %v3621 = vld [vmem:[#allocation4 + $0xbd0] sm:$0xff]
    %v3622 = vld [vmem:[#allocation4 + $0xbd8] sm:$0xff]
    %v3623 = vld [vmem:[#allocation4 + $0xbe0] sm:$0xff]
    %v3624 = vld [vmem:[#allocation4 + $0xbe8] sm:$0xff]
    %v3625 = vld [vmem:[#allocation4 + $0xbf0] sm:$0xff]
    %v3626 = vld [vmem:[#allocation4 + $0xbf8] sm:$0xff]
    %v3627 = vld [vmem:[#allocation4 + $0xc00] sm:$0xff]
    %v3628 = vld [vmem:[#allocation4 + $0xc08] sm:$0xff]
    %v3629 = vld [vmem:[#allocation4 + $0xc10] sm:$0xff]
    %v3630 = vld [vmem:[#allocation4 + $0xc18] sm:$0xff]
    %v3631 = vld [vmem:[#allocation4 + $0xc20] sm:$0xff]
    %v3632 = vld [vmem:[#allocation4 + $0xc28] sm:$0xff]
    %v3633 = vld [vmem:[#allocation4 + $0xc30] sm:$0xff]
    %v3634 = vld [vmem:[#allocation4 + $0xc38] sm:$0xff]
    %v3635 = vld [vmem:[#allocation4 + $0xc40] sm:$0xff]
    %v3636 = vld [vmem:[#allocation4 + $0xc48] sm:$0xff]
    %v3637 = vld [vmem:[#allocation4 + $0xc50] sm:$0xff]
    %v3638 = vld [vmem:[#allocation4 + $0xc58] sm:$0xff]
    %v3639 = vld [vmem:[#allocation4 + $0xc60] sm:$0xff]
    %v3640 = vld [vmem:[#allocation4 + $0xc68] sm:$0xff]
    %v3641 = vld [vmem:[#allocation4 + $0xc70] sm:$0xff]
    %v3642 = vld [vmem:[#allocation4 + $0xc78] sm:$0xff]
    %v3643 = vld [vmem:[#allocation4 + $0xc80] sm:$0xff]
    %v3644 = vld [vmem:[#allocation4 + $0xc88] sm:$0xff]
    %v3645 = vld [vmem:[#allocation4 + $0xc90] sm:$0xff]
    %v3646 = vld [vmem:[#allocation4 + $0xc98] sm:$0xff]
    %v3647 = vld [vmem:[#allocation4 + $0xca0] sm:$0xff]
    %v3648 = vld [vmem:[#allocation4 + $0xca8] sm:$0xff]
    %v3649 = vld [vmem:[#allocation4 + $0xcb0] sm:$0xff]
    %v3650 = vld [vmem:[#allocation4 + $0xcb8] sm:$0xff]
    %v3651 = vld [vmem:[#allocation4 + $0xcc0] sm:$0xff]
    %v3652 = vld [vmem:[#allocation4 + $0xcc8] sm:$0xff]
    %v3653 = vld [vmem:[#allocation4 + $0xcd0] sm:$0xff]
    %v3654 = vld [vmem:[#allocation4 + $0xcd8] sm:$0xff]
    %v3655 = vld [vmem:[#allocation4 + $0xce0] sm:$0xff]
    %v3656 = vld [vmem:[#allocation4 + $0xce8] sm:$0xff]
    %v3657 = vld [vmem:[#allocation4 + $0xcf0] sm:$0xff]
    %v3658 = vld [vmem:[#allocation4 + $0xcf8] sm:$0xff]
    %v3659 = vld [vmem:[#allocation4 + $0xd00] sm:$0xff]
    %v3660 = vld [vmem:[#allocation4 + $0xd08] sm:$0xff]
    %v3661 = vld [vmem:[#allocation4 + $0xd10] sm:$0xff]
    %v3662 = vld [vmem:[#allocation4 + $0xd18] sm:$0xff]
    %v3663 = vld [vmem:[#allocation4 + $0xd20] sm:$0xff]
    %v3664 = vld [vmem:[#allocation4 + $0xd28] sm:$0xff]
    %v3665 = vld [vmem:[#allocation4 + $0xd30] sm:$0xff]
    %v3666 = vld [vmem:[#allocation4 + $0xd38] sm:$0xff]
    %v3667 = vld [vmem:[#allocation4 + $0xd40] sm:$0xff]
    %v3668 = vld [vmem:[#allocation4 + $0xd48] sm:$0xff]
    %v3669 = vld [vmem:[#allocation4 + $0xd50] sm:$0xff]
    %v3670 = vld [vmem:[#allocation4 + $0xd58] sm:$0xff]
    %v3671 = vld [vmem:[#allocation4 + $0xd60] sm:$0xff]
    %v3672 = vld [vmem:[#allocation4 + $0xd68] sm:$0xff]
    %v3673 = vld [vmem:[#allocation4 + $0xd70] sm:$0xff]
    %v3674 = vld [vmem:[#allocation4 + $0xd78] sm:$0xff]
    %v3675 = vld [vmem:[#allocation4 + $0xd80] sm:$0xff]
    %v3676 = vld [vmem:[#allocation4 + $0xd88] sm:$0xff]
    %v3677 = vld [vmem:[#allocation4 + $0xd90] sm:$0xff]
    %v3678 = vld [vmem:[#allocation4 + $0xd98] sm:$0xff]
    %v3679 = vld [vmem:[#allocation4 + $0xda0] sm:$0xff]
    %v3680 = vld [vmem:[#allocation4 + $0xda8] sm:$0xff]
    %v3681 = vld [vmem:[#allocation4 + $0xdb0] sm:$0xff]
    %v3682 = vld [vmem:[#allocation4 + $0xdb8] sm:$0xff]
    %v3683 = vld [vmem:[#allocation4 + $0xdc0] sm:$0xff]
    %v3684 = vld [vmem:[#allocation4 + $0xdc8] sm:$0xff]
    %v3685 = vld [vmem:[#allocation4 + $0xdd0] sm:$0xff]
    %v3686 = vld [vmem:[#allocation4 + $0xdd8] sm:$0xff]
    %v3687 = vld [vmem:[#allocation4 + $0xde0] sm:$0xff]
    %v3688 = vld [vmem:[#allocation4 + $0xde8] sm:$0xff]
    %v3689 = vld [vmem:[#allocation4 + $0xdf0] sm:$0xff]
    %v3690 = vld [vmem:[#allocation4 + $0xdf8] sm:$0xff]
    %v3691 = vld [vmem:[#allocation4 + $0xe00] sm:$0xff]
    %v3692 = vld [vmem:[#allocation4 + $0xe08] sm:$0xff]
    %v3693 = vld [vmem:[#allocation4 + $0xe10] sm:$0xff]
    %v3694 = vld [vmem:[#allocation4 + $0xe18] sm:$0xff]
    %v3695 = vld [vmem:[#allocation4 + $0xe20] sm:$0xff]
    %v3696 = vld [vmem:[#allocation4 + $0xe28] sm:$0xff]
    %v3697 = vld [vmem:[#allocation4 + $0xe30] sm:$0xff]
    %v3698 = vld [vmem:[#allocation4 + $0xe38] sm:$0xff]
    %v3699 = vld [vmem:[#allocation4 + $0xe40] sm:$0xff]
    %v3700 = vld [vmem:[#allocation4 + $0xe48] sm:$0xff]
    %v3701 = vld [vmem:[#allocation4 + $0xe50] sm:$0xff]
    %v3702 = vld [vmem:[#allocation4 + $0xe58] sm:$0xff]
    %v3703 = vld [vmem:[#allocation4 + $0xe60] sm:$0xff]
    %v3704 = vld [vmem:[#allocation4 + $0xe68] sm:$0xff]
    %v3705 = vld [vmem:[#allocation4 + $0xe70] sm:$0xff]
    %v3706 = vld [vmem:[#allocation4 + $0xe78] sm:$0xff]
    %v3707 = vld [vmem:[#allocation4 + $0xe80] sm:$0xff]
    %v3708 = vld [vmem:[#allocation4 + $0xe88] sm:$0xff]
    %v3709 = vld [vmem:[#allocation4 + $0xe90] sm:$0xff]
    %v3710 = vld [vmem:[#allocation4 + $0xe98] sm:$0xff]
    %v3711 = vld [vmem:[#allocation4 + $0xea0] sm:$0xff]
    %v3712 = vld [vmem:[#allocation4 + $0xea8] sm:$0xff]
    %v3713 = vld [vmem:[#allocation4 + $0xeb0] sm:$0xff]
    %v3714 = vld [vmem:[#allocation4 + $0xeb8] sm:$0xff]
    %v3715 = vld [vmem:[#allocation4 + $0xec0] sm:$0xff]
    %v3716 = vld [vmem:[#allocation4 + $0xec8] sm:$0xff]
    %v3717 = vld [vmem:[#allocation4 + $0xed0] sm:$0xff]
    %v3718 = vld [vmem:[#allocation4 + $0xed8] sm:$0xff]
    %v3719 = vld [vmem:[#allocation4 + $0xee0] sm:$0xff]
    %v3720 = vld [vmem:[#allocation4 + $0xee8] sm:$0xff]
    %v3721 = vld [vmem:[#allocation4 + $0xef0] sm:$0xff]
    %v3722 = vld [vmem:[#allocation4 + $0xef8] sm:$0xff]
    %v3723 = vld [vmem:[#allocation4 + $0xf00] sm:$0xff]
    %v3724 = vld [vmem:[#allocation4 + $0xf08] sm:$0xff]
    %v3725 = vld [vmem:[#allocation4 + $0xf10] sm:$0xff]
    %v3726 = vld [vmem:[#allocation4 + $0xf18] sm:$0xff]
    %v3727 = vld [vmem:[#allocation4 + $0xf20] sm:$0xff]
    %v3728 = vld [vmem:[#allocation4 + $0xf28] sm:$0xff]
    %v3729 = vld [vmem:[#allocation4 + $0xf30] sm:$0xff]
    %v3730 = vld [vmem:[#allocation4 + $0xf38] sm:$0xff]
    %v3731 = vld [vmem:[#allocation4 + $0xf40] sm:$0xff]
    %v3732 = vld [vmem:[#allocation4 + $0xf48] sm:$0xff]
    %v3733 = vld [vmem:[#allocation4 + $0xf50] sm:$0xff]
    %v3734 = vld [vmem:[#allocation4 + $0xf58] sm:$0xff]
    %v3735 = vld [vmem:[#allocation4 + $0xf60] sm:$0xff]
    %v3736 = vld [vmem:[#allocation4 + $0xf68] sm:$0xff]
    %v3737 = vld [vmem:[#allocation4 + $0xf70] sm:$0xff]
    %v3738 = vld [vmem:[#allocation4 + $0xf78] sm:$0xff]
    %v3739 = vld [vmem:[#allocation4 + $0xf80] sm:$0xff]
    %v3740 = vld [vmem:[#allocation4 + $0xf88] sm:$0xff]
    %v3741 = vld [vmem:[#allocation4 + $0xf90] sm:$0xff]
    %v3742 = vld [vmem:[#allocation4 + $0xf98] sm:$0xff]
    %v3743 = vld [vmem:[#allocation4 + $0xfa0] sm:$0xff]
    %v3744 = vld [vmem:[#allocation4 + $0xfa8] sm:$0xff]
    %v3745 = vld [vmem:[#allocation4 + $0xfb0] sm:$0xff]
    %v3746 = vld [vmem:[#allocation4 + $0xfb8] sm:$0xff]
    %v3747 = vld [vmem:[#allocation4 + $0xfc0] sm:$0xff]
    %v3748 = vld [vmem:[#allocation4 + $0xfc8] sm:$0xff]
    %v3749 = vld [vmem:[#allocation4 + $0xfd0] sm:$0xff]
    %v3750 = vld [vmem:[#allocation4 + $0xfd8] sm:$0xff]
    %v3751 = vld [vmem:[#allocation4 + $0xfe0] sm:$0xff]
    %v3752 = vld [vmem:[#allocation4 + $0xfe8] sm:$0xff]
    %v3753 = vld [vmem:[#allocation4 + $0xff0] sm:$0xff]
    %v3754 = vld [vmem:[#allocation4 + $0xff8] sm:$0xff]
    %v3755 = vld [vmem:[#allocation4 + $0x1000] sm:$0xff]
    %v3756 = vld [vmem:[#allocation4 + $0x1008] sm:$0xff]
    %v3757 = vld [vmem:[#allocation4 + $0x1010] sm:$0xff]
    %v3758 = vld [vmem:[#allocation4 + $0x1018] sm:$0xff]
    %v3759 = vld [vmem:[#allocation4 + $0x1020] sm:$0xff]
    %v3760 = vld [vmem:[#allocation4 + $0x1028] sm:$0xff]
    %v3761 = vld [vmem:[#allocation4 + $0x1030] sm:$0xff]
    %v3762 = vld [vmem:[#allocation4 + $0x1038] sm:$0xff]
    %v3763 = vld [vmem:[#allocation4 + $0x1040] sm:$0xff]
    %v3764 = vld [vmem:[#allocation4 + $0x1048] sm:$0xff]
    %v3765 = vld [vmem:[#allocation4 + $0x1050] sm:$0xff]
    %v3766 = vld [vmem:[#allocation4 + $0x1058] sm:$0xff]
    %v3767 = vld [vmem:[#allocation4 + $0x1060] sm:$0xff]
    %v3768 = vld [vmem:[#allocation4 + $0x1068] sm:$0xff]
    %v3769 = vld [vmem:[#allocation4 + $0x1070] sm:$0xff]
    %v3770 = vld [vmem:[#allocation4 + $0x1078] sm:$0xff]
    %v3771 = vld [vmem:[#allocation4 + $0x1080] sm:$0xff]
    %v3772 = vld [vmem:[#allocation4 + $0x1088] sm:$0xff]
    %v3773 = vld [vmem:[#allocation4 + $0x1090] sm:$0xff]
    %v3774 = vld [vmem:[#allocation4 + $0x1098] sm:$0xff]
    %v3775 = vld [vmem:[#allocation4 + $0x10a0] sm:$0xff]
    %v3776 = vld [vmem:[#allocation4 + $0x10a8] sm:$0xff]
    %v3777 = vld [vmem:[#allocation4 + $0x10b0] sm:$0xff]
    %v3778 = vld [vmem:[#allocation4 + $0x10b8] sm:$0xff]
    %v3779 = vld [vmem:[#allocation4 + $0x10c0] sm:$0xff]
    %v3780 = vld [vmem:[#allocation4 + $0x10c8] sm:$0xff]
    %v3781 = vld [vmem:[#allocation4 + $0x10d0] sm:$0xff]
    %v3782 = vld [vmem:[#allocation4 + $0x10d8] sm:$0xff]
    %v3783 = vld [vmem:[#allocation4 + $0x10e0] sm:$0xff]
    %v3784 = vld [vmem:[#allocation4 + $0x10e8] sm:$0xff]
    %v3785 = vld [vmem:[#allocation4 + $0x10f0] sm:$0xff]
    %v3786 = vld [vmem:[#allocation4 + $0x10f8] sm:$0xff]
    %v3787 = vld [vmem:[#allocation4 + $0x1100] sm:$0xff]
    %v3788 = vld [vmem:[#allocation4 + $0x1108] sm:$0xff]
    %v3789 = vld [vmem:[#allocation4 + $0x1110] sm:$0xff]
    %v3790 = vld [vmem:[#allocation4 + $0x1118] sm:$0xff]
    %v3791 = vld [vmem:[#allocation4 + $0x1120] sm:$0xff]
    %v3792 = vld [vmem:[#allocation4 + $0x1128] sm:$0xff]
    %v3793 = vld [vmem:[#allocation4 + $0x1130] sm:$0xff]
    %v3794 = vld [vmem:[#allocation4 + $0x1138] sm:$0xff]
    %v3795 = vld [vmem:[#allocation4 + $0x1140] sm:$0xff]
    %v3796 = vld [vmem:[#allocation4 + $0x1148] sm:$0xff]
    %v3797 = vld [vmem:[#allocation4 + $0x1150] sm:$0xff]
    %v3798 = vld [vmem:[#allocation4 + $0x1158] sm:$0xff]
    %v3799 = vld [vmem:[#allocation4 + $0x1160] sm:$0xff]
    %v3800 = vld [vmem:[#allocation4 + $0x1168] sm:$0xff]
    %v3801 = vld [vmem:[#allocation4 + $0x1170] sm:$0xff]
    %v3802 = vld [vmem:[#allocation4 + $0x1178] sm:$0xff]
    %v3803 = vld [vmem:[#allocation4 + $0x1180] sm:$0xff]
    %v3804 = vld [vmem:[#allocation4 + $0x1188] sm:$0xff]
    %v3805 = vld [vmem:[#allocation4 + $0x1190] sm:$0xff]
    %v3806 = vld [vmem:[#allocation4 + $0x1198] sm:$0xff]
    %v3807 = vld [vmem:[#allocation4 + $0x11a0] sm:$0xff]
    %v3808 = vld [vmem:[#allocation4 + $0x11a8] sm:$0xff]
    %v3809 = vld [vmem:[#allocation4 + $0x11b0] sm:$0xff]
    %v3810 = vld [vmem:[#allocation4 + $0x11b8] sm:$0xff]
    %v3811 = vld [vmem:[#allocation4 + $0x11c0] sm:$0xff]
    %v3812 = vld [vmem:[#allocation4 + $0x11c8] sm:$0xff]
    %v3813 = vld [vmem:[#allocation4 + $0x11d0] sm:$0xff]
    %v3814 = vld [vmem:[#allocation4 + $0x11d8] sm:$0xff]
    %v3815 = vld [vmem:[#allocation4 + $0x11e0] sm:$0xff]
    %v3816 = vld [vmem:[#allocation4 + $0x11e8] sm:$0xff]
    %v3817 = vld [vmem:[#allocation4 + $0x11f0] sm:$0xff]
    %v3818 = vld [vmem:[#allocation4 + $0x11f8] sm:$0xff]
    %v3819 = vld [vmem:[#allocation4 + $0x1200] sm:$0xff]
    %v3820 = vld [vmem:[#allocation4 + $0x1208] sm:$0xff]
    %v3821 = vld [vmem:[#allocation4 + $0x1210] sm:$0xff]
    %v3822 = vld [vmem:[#allocation4 + $0x1218] sm:$0xff]
    %v3823 = vld [vmem:[#allocation4 + $0x1220] sm:$0xff]
    %v3824 = vld [vmem:[#allocation4 + $0x1228] sm:$0xff]
    %v3825 = vld [vmem:[#allocation4 + $0x1230] sm:$0xff]
    %v3826 = vld [vmem:[#allocation4 + $0x1238] sm:$0xff]
    %v3827 = vld [vmem:[#allocation4 + $0x1240] sm:$0xff]
    %v3828 = vld [vmem:[#allocation4 + $0x1248] sm:$0xff]
    %v3829 = vld [vmem:[#allocation4 + $0x1250] sm:$0xff]
    %v3830 = vld [vmem:[#allocation4 + $0x1258] sm:$0xff]
    %v3831 = vld [vmem:[#allocation4 + $0x1260] sm:$0xff]
    %v3832 = vld [vmem:[#allocation4 + $0x1268] sm:$0xff]
    %v3833 = vld [vmem:[#allocation4 + $0x1270] sm:$0xff]
    %v3834 = vld [vmem:[#allocation4 + $0x1278] sm:$0xff]
    %v3835 = vld [vmem:[#allocation4 + $0x1280] sm:$0xff]
    %v3836 = vld [vmem:[#allocation4 + $0x1288] sm:$0xff]
    %v3837 = vld [vmem:[#allocation4 + $0x1290] sm:$0xff]
    %v3838 = vld [vmem:[#allocation4 + $0x1298] sm:$0xff]
    %v3839 = vld [vmem:[#allocation4 + $0x12a0] sm:$0xff]
    %v3840 = vld [vmem:[#allocation4 + $0x12a8] sm:$0xff]
    %v3841 = vld [vmem:[#allocation4 + $0x12b0] sm:$0xff]
    %v3842 = vld [vmem:[#allocation4 + $0x12b8] sm:$0xff]
    %v3843 = vld [vmem:[#allocation4 + $0x12c0] sm:$0xff]
    %v3844 = vld [vmem:[#allocation4 + $0x12c8] sm:$0xff]
    %v3845 = vld [vmem:[#allocation4 + $0x12d0] sm:$0xff]
    %v3846 = vld [vmem:[#allocation4 + $0x12d8] sm:$0xff]
    %v3847 = vld [vmem:[#allocation4 + $0x12e0] sm:$0xff]
    %v3848 = vld [vmem:[#allocation4 + $0x12e8] sm:$0xff]
    %v3849 = vld [vmem:[#allocation4 + $0x12f0] sm:$0xff]
    %v3850 = vld [vmem:[#allocation4 + $0x12f8] sm:$0xff]
    %v3851 = vld [vmem:[#allocation4 + $0x1300] sm:$0xff]
    %v3852 = vld [vmem:[#allocation4 + $0x1308] sm:$0xff]
    %v3853 = vld [vmem:[#allocation4 + $0x1310] sm:$0xff]
    %v3854 = vld [vmem:[#allocation4 + $0x1318] sm:$0xff]
    %v3855 = vld [vmem:[#allocation4 + $0x1320] sm:$0xff]
    %v3856 = vld [vmem:[#allocation4 + $0x1328] sm:$0xff]
    %v3857 = vld [vmem:[#allocation4 + $0x1330] sm:$0xff]
    %v3858 = vld [vmem:[#allocation4 + $0x1338] sm:$0xff]
    %v3859 = vld [vmem:[#allocation4 + $0x1340] sm:$0xff]
    %v3860 = vld [vmem:[#allocation4 + $0x1348] sm:$0xff]
    %v3861 = vld [vmem:[#allocation4 + $0x1350] sm:$0xff]
    %v3862 = vld [vmem:[#allocation4 + $0x1358] sm:$0xff]
    %v3863 = vld [vmem:[#allocation4 + $0x1360] sm:$0xff]
    %v3864 = vld [vmem:[#allocation4 + $0x1368] sm:$0xff]
    %v3865 = vld [vmem:[#allocation4 + $0x1370] sm:$0xff]
    %v3866 = vld [vmem:[#allocation4 + $0x1378] sm:$0xff]
    %v3867 = vld [vmem:[#allocation4 + $0x1380] sm:$0xff]
    %v3868 = vld [vmem:[#allocation4 + $0x1388] sm:$0xff]
    %v3869 = vld [vmem:[#allocation4 + $0x1390] sm:$0xff]
    %v3870 = vld [vmem:[#allocation4 + $0x1398] sm:$0xff]
    %v3871 = vld [vmem:[#allocation4 + $0x13a0] sm:$0xff]
    %v3872 = vld [vmem:[#allocation4 + $0x13a8] sm:$0xff]
    %v3873 = vld [vmem:[#allocation4 + $0x13b0] sm:$0xff]
    %v3874 = vld [vmem:[#allocation4 + $0x13b8] sm:$0xff]
    %v3875 = vld [vmem:[#allocation4 + $0x13c0] sm:$0xff]
    %v3876 = vld [vmem:[#allocation4 + $0x13c8] sm:$0xff]
    %v3877 = vld [vmem:[#allocation4 + $0x13d0] sm:$0xff]
    %v3878 = vld [vmem:[#allocation4 + $0x13d8] sm:$0xff]
    %v3879 = vld [vmem:[#allocation4 + $0x13e0] sm:$0xff]
    %v3880 = vld [vmem:[#allocation4 + $0x13e8] sm:$0xff]
    %v3881 = vld [vmem:[#allocation4 + $0x13f0] sm:$0xff]
    %v3882 = vld [vmem:[#allocation4 + $0x13f8] sm:$0xff]
    %v3883 = vld [vmem:[#allocation4 + $0x1400] sm:$0xff]
    %v3884 = vld [vmem:[#allocation4 + $0x1408] sm:$0xff]
    %v3885 = vld [vmem:[#allocation4 + $0x1410] sm:$0xff]
    %v3886 = vld [vmem:[#allocation4 + $0x1418] sm:$0xff]
    %v3887 = vld [vmem:[#allocation4 + $0x1420] sm:$0xff]
    %v3888 = vld [vmem:[#allocation4 + $0x1428] sm:$0xff]
    %v3889 = vld [vmem:[#allocation4 + $0x1430] sm:$0xff]
    %v3890 = vld [vmem:[#allocation4 + $0x1438] sm:$0xff]
    %v3891 = vld [vmem:[#allocation4 + $0x1440] sm:$0xff]
    %v3892 = vld [vmem:[#allocation4 + $0x1448] sm:$0xff]
    %v3893 = vld [vmem:[#allocation4 + $0x1450] sm:$0xff]
    %v3894 = vld [vmem:[#allocation4 + $0x1458] sm:$0xff]
    %v3895 = vld [vmem:[#allocation4 + $0x1460] sm:$0xff]
    %v3896 = vld [vmem:[#allocation4 + $0x1468] sm:$0xff]
    %v3897 = vld [vmem:[#allocation4 + $0x1470] sm:$0xff]
    %v3898 = vld [vmem:[#allocation4 + $0x1478] sm:$0xff]
    %v3899 = vld [vmem:[#allocation4 + $0x1480] sm:$0xff]
    %v3900 = vld [vmem:[#allocation4 + $0x1488] sm:$0xff]
    %v3901 = vld [vmem:[#allocation4 + $0x1490] sm:$0xff]
    %v3902 = vld [vmem:[#allocation4 + $0x1498] sm:$0xff]
    %v3903 = vld [vmem:[#allocation4 + $0x14a0] sm:$0xff]
    %v3904 = vld [vmem:[#allocation4 + $0x14a8] sm:$0xff]
    %v3905 = vld [vmem:[#allocation4 + $0x14b0] sm:$0xff]
    %v3906 = vld [vmem:[#allocation4 + $0x14b8] sm:$0xff]
    %v3907 = vld [vmem:[#allocation4 + $0x14c0] sm:$0xff]
    %v3908 = vld [vmem:[#allocation4 + $0x14c8] sm:$0xff]
    %v3909 = vld [vmem:[#allocation4 + $0x14d0] sm:$0xff]
    %v3910 = vld [vmem:[#allocation4 + $0x14d8] sm:$0xff]
    %v3911 = vld [vmem:[#allocation4 + $0x14e0] sm:$0xff]
    %v3912 = vld [vmem:[#allocation4 + $0x14e8] sm:$0xff]
    %v3913 = vld [vmem:[#allocation4 + $0x14f0] sm:$0xff]
    %v3914 = vld [vmem:[#allocation4 + $0x14f8] sm:$0xff]
    %v3915 = vld [vmem:[#allocation4 + $0x1500] sm:$0xff]
    %v3916 = vld [vmem:[#allocation4 + $0x1508] sm:$0xff]
    %v3917 = vld [vmem:[#allocation4 + $0x1510] sm:$0xff]
    %v3918 = vld [vmem:[#allocation4 + $0x1518] sm:$0xff]
    %v3919 = vld [vmem:[#allocation4 + $0x1520] sm:$0xff]
    %v3920 = vld [vmem:[#allocation4 + $0x1528] sm:$0xff]
    %v3921 = vld [vmem:[#allocation4 + $0x1530] sm:$0xff]
    %v3922 = vld [vmem:[#allocation4 + $0x1538] sm:$0xff]
    %v3923 = vld [vmem:[#allocation4 + $0x1540] sm:$0xff]
    %v3924 = vld [vmem:[#allocation4 + $0x1548] sm:$0xff]
    %v3925 = vld [vmem:[#allocation4 + $0x1550] sm:$0xff]
    %v3926 = vld [vmem:[#allocation4 + $0x1558] sm:$0xff]
    %v3927 = vld [vmem:[#allocation4 + $0x1560] sm:$0xff]
    %v3928 = vld [vmem:[#allocation4 + $0x1568] sm:$0xff]
    %v3929 = vld [vmem:[#allocation4 + $0x1570] sm:$0xff]
    %v3930 = vld [vmem:[#allocation4 + $0x1578] sm:$0xff]
    %v3931 = vld [vmem:[#allocation4 + $0x1580] sm:$0xff]
    %v3932 = vld [vmem:[#allocation4 + $0x1588] sm:$0xff]
    %v3933 = vld [vmem:[#allocation4 + $0x1590] sm:$0xff]
    %v3934 = vld [vmem:[#allocation4 + $0x1598] sm:$0xff]
    %v3935 = vld [vmem:[#allocation4 + $0x15a0] sm:$0xff]
    %v3936 = vld [vmem:[#allocation4 + $0x15a8] sm:$0xff]
    %v3937 = vld [vmem:[#allocation4 + $0x15b0] sm:$0xff]
    %v3938 = vld [vmem:[#allocation4 + $0x15b8] sm:$0xff]
    %v3939 = vld [vmem:[#allocation4 + $0x15c0] sm:$0xff]
    %v3940 = vld [vmem:[#allocation4 + $0x15c8] sm:$0xff]
    %v3941 = vld [vmem:[#allocation4 + $0x15d0] sm:$0xff]
    %v3942 = vld [vmem:[#allocation4 + $0x15d8] sm:$0xff]
    %v3943 = vld [vmem:[#allocation4 + $0x15e0] sm:$0xff]
    %v3944 = vld [vmem:[#allocation4 + $0x15e8] sm:$0xff]
    %v3945 = vld [vmem:[#allocation4 + $0x15f0] sm:$0xff]
    %v3946 = vld [vmem:[#allocation4 + $0x15f8] sm:$0xff]
    %v3947 = vld [vmem:[#allocation4 + $0x1600] sm:$0xff]
    %v3948 = vld [vmem:[#allocation4 + $0x1608] sm:$0xff]
    %v3949 = vld [vmem:[#allocation4 + $0x1610] sm:$0xff]
    %v3950 = vld [vmem:[#allocation4 + $0x1618] sm:$0xff]
    %v3951 = vld [vmem:[#allocation4 + $0x1620] sm:$0xff]
    %v3952 = vld [vmem:[#allocation4 + $0x1628] sm:$0xff]
    %v3953 = vld [vmem:[#allocation4 + $0x1630] sm:$0xff]
    %v3954 = vld [vmem:[#allocation4 + $0x1638] sm:$0xff]
    %v3955 = vld [vmem:[#allocation4 + $0x1640] sm:$0xff]
    %v3956 = vld [vmem:[#allocation4 + $0x1648] sm:$0xff]
    %v3957 = vld [vmem:[#allocation4 + $0x1650] sm:$0xff]
    %v3958 = vld [vmem:[#allocation4 + $0x1658] sm:$0xff]
    %v3959 = vld [vmem:[#allocation4 + $0x1660] sm:$0xff]
    %v3960 = vld [vmem:[#allocation4 + $0x1668] sm:$0xff]
    %v3961 = vld [vmem:[#allocation4 + $0x1670] sm:$0xff]
    %v3962 = vld [vmem:[#allocation4 + $0x1678] sm:$0xff]
    %v3963 = vld [vmem:[#allocation4 + $0x1680] sm:$0xff]
    %v3964 = vld [vmem:[#allocation4 + $0x1688] sm:$0xff]
    %v3965 = vld [vmem:[#allocation4 + $0x1690] sm:$0xff]
    %v3966 = vld [vmem:[#allocation4 + $0x1698] sm:$0xff]
    %v3967 = vld [vmem:[#allocation4 + $0x16a0] sm:$0xff]
    %v3968 = vld [vmem:[#allocation4 + $0x16a8] sm:$0xff]
    %v3969 = vld [vmem:[#allocation4 + $0x16b0] sm:$0xff]
    %v3970 = vld [vmem:[#allocation4 + $0x16b8] sm:$0xff]
    %v3971 = vld [vmem:[#allocation4 + $0x16c0] sm:$0xff]
    %v3972 = vld [vmem:[#allocation4 + $0x16c8] sm:$0xff]
    %v3973 = vld [vmem:[#allocation4 + $0x16d0] sm:$0xff]
    %v3974 = vld [vmem:[#allocation4 + $0x16d8] sm:$0xff]
    %v3975 = vld [vmem:[#allocation4 + $0x16e0] sm:$0xff]
    %v3976 = vld [vmem:[#allocation4 + $0x16e8] sm:$0xff]
    %v3977 = vld [vmem:[#allocation4 + $0x16f0] sm:$0xff]
    %v3978 = vld [vmem:[#allocation4 + $0x16f8] sm:$0xff]
    %v3979 = vld [vmem:[#allocation4 + $0x1700] sm:$0xff]
    %v3980 = vld [vmem:[#allocation4 + $0x1708] sm:$0xff]
    %v3981 = vld [vmem:[#allocation4 + $0x1710] sm:$0xff]
    %v3982 = vld [vmem:[#allocation4 + $0x1718] sm:$0xff]
    %v3983 = vld [vmem:[#allocation4 + $0x1720] sm:$0xff]
    %v3984 = vld [vmem:[#allocation4 + $0x1728] sm:$0xff]
    %v3985 = vld [vmem:[#allocation4 + $0x1730] sm:$0xff]
    %v3986 = vld [vmem:[#allocation4 + $0x1738] sm:$0xff]
    %v3987 = vld [vmem:[#allocation4 + $0x1740] sm:$0xff]
    %v3988 = vld [vmem:[#allocation4 + $0x1748] sm:$0xff]
    %v3989 = vld [vmem:[#allocation4 + $0x1750] sm:$0xff]
    %v3990 = vld [vmem:[#allocation4 + $0x1758] sm:$0xff]
    %v3991 = vld [vmem:[#allocation4 + $0x1760] sm:$0xff]
    %v3992 = vld [vmem:[#allocation4 + $0x1768] sm:$0xff]
    %v3993 = vld [vmem:[#allocation4 + $0x1770] sm:$0xff]
    %v3994 = vld [vmem:[#allocation4 + $0x1778] sm:$0xff]
    %v3995 = vld [vmem:[#allocation4 + $0x1780] sm:$0xff]
    %v3996 = vld [vmem:[#allocation4 + $0x1788] sm:$0xff]
    %v3997 = vld [vmem:[#allocation4 + $0x1790] sm:$0xff]
    %v3998 = vld [vmem:[#allocation4 + $0x1798] sm:$0xff]
    %v3999 = vld [vmem:[#allocation4 + $0x17a0] sm:$0xff]
    %v4000 = vld [vmem:[#allocation4 + $0x17a8] sm:$0xff]
    %v4001 = vld [vmem:[#allocation4 + $0x17b0] sm:$0xff]
    %v4002 = vld [vmem:[#allocation4 + $0x17b8] sm:$0xff]
    %v4003 = vld [vmem:[#allocation4 + $0x17c0] sm:$0xff]
    %v4004 = vld [vmem:[#allocation4 + $0x17c8] sm:$0xff]
    %v4005 = vld [vmem:[#allocation4 + $0x17d0] sm:$0xff]
    %v4006 = vld [vmem:[#allocation4 + $0x17d8] sm:$0xff]
    %v4007 = vld [vmem:[#allocation4 + $0x17e0] sm:$0xff]
    %v4008 = vld [vmem:[#allocation4 + $0x17e8] sm:$0xff]
    %v4009 = vld [vmem:[#allocation4 + $0x17f0] sm:$0xff]
    %v4010 = vld [vmem:[#allocation4 + $0x17f8] sm:$0xff]
    %v4011 = vld [vmem:[#allocation4 + $0x1800] sm:$0xff]
    %v4012 = vld [vmem:[#allocation4 + $0x1808] sm:$0xff]
    %v4013 = vld [vmem:[#allocation4 + $0x1810] sm:$0xff]
    %v4014 = vld [vmem:[#allocation4 + $0x1818] sm:$0xff]
    %v4015 = vld [vmem:[#allocation4 + $0x1820] sm:$0xff]
    %v4016 = vld [vmem:[#allocation4 + $0x1828] sm:$0xff]
    %v4017 = vld [vmem:[#allocation4 + $0x1830] sm:$0xff]
    %v4018 = vld [vmem:[#allocation4 + $0x1838] sm:$0xff]
    %v4019 = vld [vmem:[#allocation4 + $0x1840] sm:$0xff]
    %v4020 = vld [vmem:[#allocation4 + $0x1848] sm:$0xff]
    %v4021 = vld [vmem:[#allocation4 + $0x1850] sm:$0xff]
    %v4022 = vld [vmem:[#allocation4 + $0x1858] sm:$0xff]
    %v4023 = vld [vmem:[#allocation4 + $0x1860] sm:$0xff]
    %v4024 = vld [vmem:[#allocation4 + $0x1868] sm:$0xff]
    %v4025 = vld [vmem:[#allocation4 + $0x1870] sm:$0xff]
    %v4026 = vld [vmem:[#allocation4 + $0x1878] sm:$0xff]
    %v4027 = vld [vmem:[#allocation4 + $0x1880] sm:$0xff]
    %v4028 = vld [vmem:[#allocation4 + $0x1888] sm:$0xff]
    %v4029 = vld [vmem:[#allocation4 + $0x1890] sm:$0xff]
    %v4030 = vld [vmem:[#allocation4 + $0x1898] sm:$0xff]
    %v4031 = vld [vmem:[#allocation4 + $0x18a0] sm:$0xff]
    %v4032 = vld [vmem:[#allocation4 + $0x18a8] sm:$0xff]
    %v4033 = vld [vmem:[#allocation4 + $0x18b0] sm:$0xff]
    %v4034 = vld [vmem:[#allocation4 + $0x18b8] sm:$0xff]
    %v4035 = vld [vmem:[#allocation4 + $0x18c0] sm:$0xff]
    %v4036 = vld [vmem:[#allocation4 + $0x18c8] sm:$0xff]
    %v4037 = vld [vmem:[#allocation4 + $0x18d0] sm:$0xff]
    %v4038 = vld [vmem:[#allocation4 + $0x18d8] sm:$0xff]
    %v4039 = vld [vmem:[#allocation4 + $0x18e0] sm:$0xff]
    %v4040 = vld [vmem:[#allocation4 + $0x18e8] sm:$0xff]
    %v4041 = vld [vmem:[#allocation4 + $0x18f0] sm:$0xff]
    %v4042 = vld [vmem:[#allocation4 + $0x18f8] sm:$0xff]
    %v4043 = vld [vmem:[#allocation4 + $0x1900] sm:$0xff]
    %v4044 = vld [vmem:[#allocation4 + $0x1908] sm:$0xff]
    %v4045 = vld [vmem:[#allocation4 + $0x1910] sm:$0xff]
    %v4046 = vld [vmem:[#allocation4 + $0x1918] sm:$0xff]
    %v4047 = vld [vmem:[#allocation4 + $0x1920] sm:$0xff]
    %v4048 = vld [vmem:[#allocation4 + $0x1928] sm:$0xff]
    %v4049 = vld [vmem:[#allocation4 + $0x1930] sm:$0xff]
    %v4050 = vld [vmem:[#allocation4 + $0x1938] sm:$0xff]
    %v4051 = vld [vmem:[#allocation4 + $0x1940] sm:$0xff]
    %v4052 = vld [vmem:[#allocation4 + $0x1948] sm:$0xff]
    %v4053 = vld [vmem:[#allocation4 + $0x1950] sm:$0xff]
    %v4054 = vld [vmem:[#allocation4 + $0x1958] sm:$0xff]
    %v4055 = vld [vmem:[#allocation4 + $0x1960] sm:$0xff]
    %v4056 = vld [vmem:[#allocation4 + $0x1968] sm:$0xff]
    %v4057 = vld [vmem:[#allocation4 + $0x1970] sm:$0xff]
    %v4058 = vld [vmem:[#allocation4 + $0x1978] sm:$0xff]
    %v4059 = vld [vmem:[#allocation4 + $0x1980] sm:$0xff]
    %v4060 = vld [vmem:[#allocation4 + $0x1988] sm:$0xff]
    %v4061 = vld [vmem:[#allocation4 + $0x1990] sm:$0xff]
    %v4062 = vld [vmem:[#allocation4 + $0x1998] sm:$0xff]
    %v4063 = vld [vmem:[#allocation4 + $0x19a0] sm:$0xff]
    %v4064 = vld [vmem:[#allocation4 + $0x19a8] sm:$0xff]
    %v4065 = vld [vmem:[#allocation4 + $0x19b0] sm:$0xff]
    %v4066 = vld [vmem:[#allocation4 + $0x19b8] sm:$0xff]
    %v4067 = vld [vmem:[#allocation4 + $0x19c0] sm:$0xff]
    %v4068 = vld [vmem:[#allocation4 + $0x19c8] sm:$0xff]
    %v4069 = vld [vmem:[#allocation4 + $0x19d0] sm:$0xff]
    %v4070 = vld [vmem:[#allocation4 + $0x19d8] sm:$0xff]
    %v4071 = vld [vmem:[#allocation4 + $0x19e0] sm:$0xff]
    %v4072 = vld [vmem:[#allocation4 + $0x19e8] sm:$0xff]
    %v4073 = vld [vmem:[#allocation4 + $0x19f0] sm:$0xff]
    %v4074 = vld [vmem:[#allocation4 + $0x19f8] sm:$0xff]
    %v4075 = vld [vmem:[#allocation4 + $0x1a00] sm:$0xff]
    %v4076 = vld [vmem:[#allocation4 + $0x1a08] sm:$0xff]
    %v4077 = vld [vmem:[#allocation4 + $0x1a10] sm:$0xff]
    %v4078 = vld [vmem:[#allocation4 + $0x1a18] sm:$0xff]
    %v4079 = vld [vmem:[#allocation4 + $0x1a20] sm:$0xff]
    %v4080 = vld [vmem:[#allocation4 + $0x1a28] sm:$0xff]
    %v4081 = vld [vmem:[#allocation4 + $0x1a30] sm:$0xff]
    %v4082 = vld [vmem:[#allocation4 + $0x1a38] sm:$0xff]
    %v4083 = vld [vmem:[#allocation4 + $0x1a40] sm:$0xff]
    %v4084 = vld [vmem:[#allocation4 + $0x1a48] sm:$0xff]
    %v4085 = vld [vmem:[#allocation4 + $0x1a50] sm:$0xff]
    %v4086 = vld [vmem:[#allocation4 + $0x1a58] sm:$0xff]
    %v4087 = vld [vmem:[#allocation4 + $0x1a60] sm:$0xff]
    %v4088 = vld [vmem:[#allocation4 + $0x1a68] sm:$0xff]
    %v4089 = vld [vmem:[#allocation4 + $0x1a70] sm:$0xff]
    %v4090 = vld [vmem:[#allocation4 + $0x1a78] sm:$0xff]
    %v4091 = vld [vmem:[#allocation4 + $0x1a80] sm:$0xff]
    %v4092 = vld [vmem:[#allocation4 + $0x1a88] sm:$0xff]
    %v4093 = vld [vmem:[#allocation4 + $0x1a90] sm:$0xff]
    %v4094 = vld [vmem:[#allocation4 + $0x1a98] sm:$0xff]
    %v4095 = vld [vmem:[#allocation4 + $0x1aa0] sm:$0xff]
    %v4096 = vld [vmem:[#allocation4 + $0x1aa8] sm:$0xff]
    %v4097 = vld [vmem:[#allocation4 + $0x1ab0] sm:$0xff]
    %v4098 = vld [vmem:[#allocation4 + $0x1ab8] sm:$0xff]
    %v4099 = vld [vmem:[#allocation4 + $0x1ac0] sm:$0xff]
    %v4100 = vld [vmem:[#allocation4 + $0x1ac8] sm:$0xff]
    %v4101 = vld [vmem:[#allocation4 + $0x1ad0] sm:$0xff]
    %v4102 = vld [vmem:[#allocation4 + $0x1ad8] sm:$0xff]
    %v4103 = vld [vmem:[#allocation4 + $0x1ae0] sm:$0xff]
    %v4104 = vld [vmem:[#allocation4 + $0x1ae8] sm:$0xff]
    %v4105 = vld [vmem:[#allocation4 + $0x1af0] sm:$0xff]
    %v4106 = vld [vmem:[#allocation4 + $0x1af8] sm:$0xff]
    %v4107 = vld [vmem:[#allocation4 + $0x1b00] sm:$0xff]
    %v4108 = vld [vmem:[#allocation4 + $0x1b08] sm:$0xff]
    %v4109 = vld [vmem:[#allocation4 + $0x1b10] sm:$0xff]
    %v4110 = vld [vmem:[#allocation4 + $0x1b18] sm:$0xff]
    %v4111 = vld [vmem:[#allocation4 + $0x1b20] sm:$0xff]
    %v4112 = vld [vmem:[#allocation4 + $0x1b28] sm:$0xff]
    %v4113 = vld [vmem:[#allocation4 + $0x1b30] sm:$0xff]
    %v4114 = vld [vmem:[#allocation4 + $0x1b38] sm:$0xff]
    %v4115 = vld [vmem:[#allocation4 + $0x1b40] sm:$0xff]
    %v4116 = vld [vmem:[#allocation4 + $0x1b48] sm:$0xff]
    %v4117 = vld [vmem:[#allocation4 + $0x1b50] sm:$0xff]
    %v4118 = vld [vmem:[#allocation4 + $0x1b58] sm:$0xff]
    %v4119 = vld [vmem:[#allocation4 + $0x1b60] sm:$0xff]
    %v4120 = vld [vmem:[#allocation4 + $0x1b68] sm:$0xff]
    %v4121 = vld [vmem:[#allocation4 + $0x1b70] sm:$0xff]
    %v4122 = vld [vmem:[#allocation4 + $0x1b78] sm:$0xff]
    %v4123 = vld [vmem:[#allocation4 + $0x1b80] sm:$0xff]
    %v4124 = vld [vmem:[#allocation4 + $0x1b88] sm:$0xff]
    %v4125 = vld [vmem:[#allocation4 + $0x1b90] sm:$0xff]
    %v4126 = vld [vmem:[#allocation4 + $0x1b98] sm:$0xff]
    %v4127 = vld [vmem:[#allocation4 + $0x1ba0] sm:$0xff]
    %v4128 = vld [vmem:[#allocation4 + $0x1ba8] sm:$0xff]
    %v4129 = vld [vmem:[#allocation4 + $0x1bb0] sm:$0xff]
    %v4130 = vld [vmem:[#allocation4 + $0x1bb8] sm:$0xff]
    %v4131 = vld [vmem:[#allocation4 + $0x1bc0] sm:$0xff]
    %v4132 = vld [vmem:[#allocation4 + $0x1bc8] sm:$0xff]
    %v4133 = vld [vmem:[#allocation4 + $0x1bd0] sm:$0xff]
    %v4134 = vld [vmem:[#allocation4 + $0x1bd8] sm:$0xff]
    %v4135 = vld [vmem:[#allocation4 + $0x1be0] sm:$0xff]
    %v4136 = vld [vmem:[#allocation4 + $0x1be8] sm:$0xff]
    %v4137 = vld [vmem:[#allocation4 + $0x1bf0] sm:$0xff]
    %v4138 = vld [vmem:[#allocation4 + $0x1bf8] sm:$0xff]
    %v4139 = vld [vmem:[#allocation4 + $0x1c00] sm:$0xff]
    %v4140 = vld [vmem:[#allocation4 + $0x1c08] sm:$0xff]
    %v4141 = vld [vmem:[#allocation4 + $0x1c10] sm:$0xff]
    %v4142 = vld [vmem:[#allocation4 + $0x1c18] sm:$0xff]
    %v4143 = vld [vmem:[#allocation4 + $0x1c20] sm:$0xff]
    %v4144 = vld [vmem:[#allocation4 + $0x1c28] sm:$0xff]
    %v4145 = vld [vmem:[#allocation4 + $0x1c30] sm:$0xff]
    %v4146 = vld [vmem:[#allocation4 + $0x1c38] sm:$0xff]
    %v4147 = vld [vmem:[#allocation4 + $0x1c40] sm:$0xff]
    %v4148 = vld [vmem:[#allocation4 + $0x1c48] sm:$0xff]
    %v4149 = vld [vmem:[#allocation4 + $0x1c50] sm:$0xff]
    %v4150 = vld [vmem:[#allocation4 + $0x1c58] sm:$0xff]
    %v4151 = vld [vmem:[#allocation4 + $0x1c60] sm:$0xff]
    %v4152 = vld [vmem:[#allocation4 + $0x1c68] sm:$0xff]
    %v4153 = vld [vmem:[#allocation4 + $0x1c70] sm:$0xff]
    %v4154 = vld [vmem:[#allocation4 + $0x1c78] sm:$0xff]
    %v4155 = vld [vmem:[#allocation4 + $0x1c80] sm:$0xff]
    %v4156 = vld [vmem:[#allocation4 + $0x1c88] sm:$0xff]
    %v4157 = vld [vmem:[#allocation4 + $0x1c90] sm:$0xff]
    %v4158 = vld [vmem:[#allocation4 + $0x1c98] sm:$0xff]
    %v4159 = vld [vmem:[#allocation4 + $0x1ca0] sm:$0xff]
    %v4160 = vld [vmem:[#allocation4 + $0x1ca8] sm:$0xff]
    %v4161 = vld [vmem:[#allocation4 + $0x1cb0] sm:$0xff]
    %v4162 = vld [vmem:[#allocation4 + $0x1cb8] sm:$0xff]
    %v4163 = vld [vmem:[#allocation4 + $0x1cc0] sm:$0xff]
    %v4164 = vld [vmem:[#allocation4 + $0x1cc8] sm:$0xff]
    %v4165 = vld [vmem:[#allocation4 + $0x1cd0] sm:$0xff]
    %v4166 = vld [vmem:[#allocation4 + $0x1cd8] sm:$0xff]
    %v4167 = vld [vmem:[#allocation4 + $0x1ce0] sm:$0xff]
    %v4168 = vld [vmem:[#allocation4 + $0x1ce8] sm:$0xff]
    %v4169 = vld [vmem:[#allocation4 + $0x1cf0] sm:$0xff]
    %v4170 = vld [vmem:[#allocation4 + $0x1cf8] sm:$0xff]
    %v4171 = vld [vmem:[#allocation4 + $0x1d00] sm:$0xff]
    %v4172 = vld [vmem:[#allocation4 + $0x1d08] sm:$0xff]
    %v4173 = vld [vmem:[#allocation4 + $0x1d10] sm:$0xff]
    %v4174 = vld [vmem:[#allocation4 + $0x1d18] sm:$0xff]
    %v4175 = vld [vmem:[#allocation4 + $0x1d20] sm:$0xff]
    %v4176 = vld [vmem:[#allocation4 + $0x1d28] sm:$0xff]
    %v4177 = vld [vmem:[#allocation4 + $0x1d30] sm:$0xff]
    %v4178 = vld [vmem:[#allocation4 + $0x1d38] sm:$0xff]
    %v4179 = vld [vmem:[#allocation4 + $0x1d40] sm:$0xff]
    %v4180 = vld [vmem:[#allocation4 + $0x1d48] sm:$0xff]
    %v4181 = vld [vmem:[#allocation4 + $0x1d50] sm:$0xff]
    %v4182 = vld [vmem:[#allocation4 + $0x1d58] sm:$0xff]
    %v4183 = vld [vmem:[#allocation4 + $0x1d60] sm:$0xff]
    %v4184 = vld [vmem:[#allocation4 + $0x1d68] sm:$0xff]
    %v4185 = vld [vmem:[#allocation4 + $0x1d70] sm:$0xff]
    %v4186 = vld [vmem:[#allocation4 + $0x1d78] sm:$0xff]
    %v4187 = vld [vmem:[#allocation4 + $0x1d80] sm:$0xff]
    %v4188 = vld [vmem:[#allocation4 + $0x1d88] sm:$0xff]
    %v4189 = vld [vmem:[#allocation4 + $0x1d90] sm:$0xff]
    %v4190 = vld [vmem:[#allocation4 + $0x1d98] sm:$0xff]
    %v4191 = vld [vmem:[#allocation4 + $0x1da0] sm:$0xff]
    %v4192 = vld [vmem:[#allocation4 + $0x1da8] sm:$0xff]
    %v4193 = vld [vmem:[#allocation4 + $0x1db0] sm:$0xff]
    %v4194 = vld [vmem:[#allocation4 + $0x1db8] sm:$0xff]
    %v4195 = vld [vmem:[#allocation4 + $0x1dc0] sm:$0xff]
    %v4196 = vld [vmem:[#allocation4 + $0x1dc8] sm:$0xff]
    %v4197 = vld [vmem:[#allocation4 + $0x1dd0] sm:$0xff]
    %v4198 = vld [vmem:[#allocation4 + $0x1dd8] sm:$0xff]
    %v4199 = vld [vmem:[#allocation4 + $0x1de0] sm:$0xff]
    %v4200 = vld [vmem:[#allocation4 + $0x1de8] sm:$0xff]
    %v4201 = vld [vmem:[#allocation4 + $0x1df0] sm:$0xff]
    %v4202 = vld [vmem:[#allocation4 + $0x1df8] sm:$0xff]
    %v4203 = vld [vmem:[#allocation4 + $0x1e00] sm:$0xff]
    %v4204 = vld [vmem:[#allocation4 + $0x1e08] sm:$0xff]
    %v4205 = vld [vmem:[#allocation4 + $0x1e10] sm:$0xff]
    %v4206 = vld [vmem:[#allocation4 + $0x1e18] sm:$0xff]
    %v4207 = vld [vmem:[#allocation4 + $0x1e20] sm:$0xff]
    %v4208 = vld [vmem:[#allocation4 + $0x1e28] sm:$0xff]
    %v4209 = vld [vmem:[#allocation4 + $0x1e30] sm:$0xff]
    %v4210 = vld [vmem:[#allocation4 + $0x1e38] sm:$0xff]
    %v4211 = vld [vmem:[#allocation4 + $0x1e40] sm:$0xff]
    %v4212 = vld [vmem:[#allocation4 + $0x1e48] sm:$0xff]
    %v4213 = vld [vmem:[#allocation4 + $0x1e50] sm:$0xff]
    %v4214 = vld [vmem:[#allocation4 + $0x1e58] sm:$0xff]
    %v4215 = vld [vmem:[#allocation4 + $0x1e60] sm:$0xff]
    %v4216 = vld [vmem:[#allocation4 + $0x1e68] sm:$0xff]
    %v4217 = vld [vmem:[#allocation4 + $0x1e70] sm:$0xff]
    %v4218 = vld [vmem:[#allocation4 + $0x1e78] sm:$0xff]
    %v4219 = vld [vmem:[#allocation4 + $0x1e80] sm:$0xff]
    %v4220 = vld [vmem:[#allocation4 + $0x1e88] sm:$0xff]
    %v4221 = vld [vmem:[#allocation4 + $0x1e90] sm:$0xff]
    %v4222 = vld [vmem:[#allocation4 + $0x1e98] sm:$0xff]
    %v4223 = vld [vmem:[#allocation4 + $0x1ea0] sm:$0xff]
    %v4224 = vld [vmem:[#allocation4 + $0x1ea8] sm:$0xff]
    %v4225 = vld [vmem:[#allocation4 + $0x1eb0] sm:$0xff]
    %v4226 = vld [vmem:[#allocation4 + $0x1eb8] sm:$0xff]
    %v4227 = vld [vmem:[#allocation4 + $0x1ec0] sm:$0xff]
    %v4228 = vld [vmem:[#allocation4 + $0x1ec8] sm:$0xff]
    %v4229 = vld [vmem:[#allocation4 + $0x1ed0] sm:$0xff]
    %v4230 = vld [vmem:[#allocation4 + $0x1ed8] sm:$0xff]
    %v4231 = vld [vmem:[#allocation4 + $0x1ee0] sm:$0xff]
    %v4232 = vld [vmem:[#allocation4 + $0x1ee8] sm:$0xff]
    %v4233 = vld [vmem:[#allocation4 + $0x1ef0] sm:$0xff]
    %v4234 = vld [vmem:[#allocation4 + $0x1ef8] sm:$0xff]
    %v4235 = vld [vmem:[#allocation4 + $0x1f00] sm:$0xff]
    %v4236 = vld [vmem:[#allocation4 + $0x1f08] sm:$0xff]
    %v4237 = vld [vmem:[#allocation4 + $0x1f10] sm:$0xff]
    %v4238 = vld [vmem:[#allocation4 + $0x1f18] sm:$0xff]
    %v4239 = vld [vmem:[#allocation4 + $0x1f20] sm:$0xff]
    %v4240 = vld [vmem:[#allocation4 + $0x1f28] sm:$0xff]
    %v4241 = vld [vmem:[#allocation4 + $0x1f30] sm:$0xff]
    %v4242 = vld [vmem:[#allocation4 + $0x1f38] sm:$0xff]
    %v4243 = vld [vmem:[#allocation4 + $0x1f40] sm:$0xff]
    %v4244 = vld [vmem:[#allocation4 + $0x1f48] sm:$0xff]
    %v4245 = vld [vmem:[#allocation4 + $0x1f50] sm:$0xff]
    %v4246 = vld [vmem:[#allocation4 + $0x1f58] sm:$0xff]
    %v4247 = vld [vmem:[#allocation4 + $0x1f60] sm:$0xff]
    %v4248 = vld [vmem:[#allocation4 + $0x1f68] sm:$0xff]
    %v4249 = vld [vmem:[#allocation4 + $0x1f70] sm:$0xff]
    %v4250 = vld [vmem:[#allocation4 + $0x1f78] sm:$0xff]
    %v4251 = vld [vmem:[#allocation4 + $0x1f80] sm:$0xff]
    %v4252 = vld [vmem:[#allocation4 + $0x1f88] sm:$0xff]
    %v4253 = vld [vmem:[#allocation4 + $0x1f90] sm:$0xff]
    %v4254 = vld [vmem:[#allocation4 + $0x1f98] sm:$0xff]
    %v4255 = vld [vmem:[#allocation4 + $0x1fa0] sm:$0xff]
    %v4256 = vld [vmem:[#allocation4 + $0x1fa8] sm:$0xff]
    %v4257 = vld [vmem:[#allocation4 + $0x1fb0] sm:$0xff]
    %v4258 = vld [vmem:[#allocation4 + $0x1fb8] sm:$0xff]
    %v4259 = vld [vmem:[#allocation4 + $0x1fc0] sm:$0xff]
    %v4260 = vld [vmem:[#allocation4 + $0x1fc8] sm:$0xff]
    %v4261 = vld [vmem:[#allocation4 + $0x1fd0] sm:$0xff]
    %v4262 = vld [vmem:[#allocation4 + $0x1fd8] sm:$0xff]
    %v4263 = vld [vmem:[#allocation4 + $0x1fe0] sm:$0xff]
    %v4264 = vld [vmem:[#allocation4 + $0x1fe8] sm:$0xff]
    %v4265 = vld [vmem:[#allocation4 + $0x1ff0] sm:$0xff]
    %v4266 = vld [vmem:[#allocation4 + $0x1ff8] sm:$0xff]
    %v4267 = vld [vmem:[#allocation13] sm:$0xff]
    %v4268 = vld [vmem:[#allocation13 + $0x8] sm:$0xff]
    %v4271 = vlaneseq
    %v4272 = vshrl.u32 %v4271, 7
    %v4273 = vsub.s32 0, %v4272
    %v4274 = vrot.slane %v4267, %v4273
    %v4275 = vlaneseq
    %v4276 = vshrl.u32 %v4275, 7
    %v4277 = vsub.s32 1, %v4276
    %v4278 = vrot.slane %v4267, %v4277
    %v4279 = vlaneseq
    %v4280 = vshrl.u32 %v4279, 7
    %v4281 = vsub.s32 2, %v4280
    %v4282 = vrot.slane %v4267, %v4281
    %v4283 = vlaneseq
    %v4284 = vshrl.u32 %v4283, 7
    %v4285 = vsub.s32 3, %v4284
    %v4286 = vrot.slane %v4267, %v4285
    %v4287 = vlaneseq
    %v4288 = vshrl.u32 %v4287, 7
    %v4289 = vsub.s32 4, %v4288
    %v4290 = vrot.slane %v4267, %v4289
    %v4291 = vlaneseq
    %v4292 = vshrl.u32 %v4291, 7
    %v4293 = vsub.s32 5, %v4292
    %v4294 = vrot.slane %v4267, %v4293
    %v4295 = vlaneseq
    %v4296 = vshrl.u32 %v4295, 7
    %v4297 = vsub.s32 6, %v4296
    %v4298 = vrot.slane %v4267, %v4297
    %v4299 = vlaneseq
    %v4300 = vshrl.u32 %v4299, 7
    %v4301 = vsub.s32 7, %v4300
    %v4302 = vrot.slane %v4267, %v4301
    %v4303 = vlaneseq
    %v4304 = vshrl.u32 %v4303, 7
    %v4305 = vsub.s32 0, %v4304
    %v4306 = vrot.slane %v4268, %v4305
    %v4307 = vlaneseq
    %v4308 = vshrl.u32 %v4307, 7
    %v4309 = vsub.s32 1, %v4308
    %v4310 = vrot.slane %v4268, %v4309
    %v4311 = vlaneseq
    %v4312 = vshrl.u32 %v4311, 7
    %v4313 = vsub.s32 2, %v4312
    %v4314 = vrot.slane %v4268, %v4313
    %v4315 = vlaneseq
    %v4316 = vshrl.u32 %v4315, 7
    %v4317 = vsub.s32 3, %v4316
    %v4318 = vrot.slane %v4268, %v4317
    %v4319 = vlaneseq
    %v4320 = vshrl.u32 %v4319, 7
    %v4321 = vsub.s32 4, %v4320
    %v4322 = vrot.slane %v4268, %v4321
    %v4323 = vlaneseq
    %v4324 = vshrl.u32 %v4323, 7
    %v4325 = vsub.s32 5, %v4324
    %v4326 = vrot.slane %v4268, %v4325
    %v4327 = vlaneseq
    %v4328 = vshrl.u32 %v4327, 7
    %v4329 = vsub.s32 6, %v4328
    %v4330 = vrot.slane %v4268, %v4329
    %v4331 = vlaneseq
    %v4332 = vshrl.u32 %v4331, 7
    %v4333 = vsub.s32 7, %v4332
    %v4334 = vrot.slane %v4268, %v4333
    %4351 = vmatprep.subr.bf16.mxu0 %v3244
    %4352 = vmatpush1.bf16.msra.mxu0 %v3243
    %4353 = vmatprep.subr.bf16.mxu0 %v3260
    %4354 = vmatpush1.bf16.msra.mxu0 %v3259
    %4355 = vmatprep.subr.bf16.mxu0 %v3276
    %4356 = vmatpush1.bf16.msra.mxu0 %v3275
    %4357 = vmatprep.subr.bf16.mxu0 %v3292
    %4358 = vmatpush1.bf16.msra.mxu0 %v3291
    %4359 = vmatprep.subr.bf16.mxu0 %v3308
    %4360 = vmatpush1.bf16.msra.mxu0 %v3307
    %4361 = vmatprep.subr.bf16.mxu0 %v3324
    %4362 = vmatpush1.bf16.msra.mxu0 %v3323
    %4363 = vmatprep.subr.bf16.mxu0 %v3340
    %4364 = vmatpush1.bf16.msra.mxu0 %v3339
    %4365 = vmatprep.subr.bf16.mxu0 %v3356
    %4366 = vmatpush1.bf16.msra.mxu0 %v3355
    %4367 = vmatprep.subr.bf16.mxu0 %v3372
    %4368 = vmatpush1.bf16.msra.mxu0 %v3371
    %4369 = vmatprep.subr.bf16.mxu0 %v3388
    %4370 = vmatpush1.bf16.msra.mxu0 %v3387
    %4371 = vmatprep.subr.bf16.mxu0 %v3404
    %4372 = vmatpush1.bf16.msra.mxu0 %v3403
    %4373 = vmatprep.subr.bf16.mxu0 %v3420
    %4374 = vmatpush1.bf16.msra.mxu0 %v3419
    %4375 = vmatprep.subr.bf16.mxu0 %v3436
    %4376 = vmatpush1.bf16.msra.mxu0 %v3435
    %4377 = vmatprep.subr.bf16.mxu0 %v3452
    %4378 = vmatpush1.bf16.msra.mxu0 %v3451
    %4379 = vmatprep.subr.bf16.mxu0 %v3468
    %4380 = vmatpush1.bf16.msra.mxu0 %v3467
    %4381 = vmatprep.subr.bf16.mxu0 %v3484
    %4382 = vmatpush1.bf16.msra.mxu0 %v3483
    %4383 = vmatprep.mubr.bf16.mxu0 %v3232
    %4384 = vmatmul.mubr.bf16.gmra.mrb[0].mxu0 %v3231
    %v4385 = vpop.f32.mrb[0].mxu0
    %v4386 = vadd.f32 %v4274, %v4385
    %v4387 = vpop.f32.mrb[0].mxu0
    %v4388 = vadd.f32 %v4278, %v4387
    %v4389 = vpop.f32.mrb[0].mxu0
    %v4390 = vpop.f32.mrb[0].mxu0
    %4391 = vdwg.mxu0
    %4392 = vmatprep.subr.bf16.mxu0 %v3500
    %4393 = vmatpush1.bf16.msra.mxu0 %v3499
    %4394 = vmatprep.subr.bf16.mxu0 %v3516
    %4395 = vmatpush1.bf16.msra.mxu0 %v3515
    %4396 = vmatprep.subr.bf16.mxu0 %v3532
    %4397 = vmatpush1.bf16.msra.mxu0 %v3531
    %4398 = vmatprep.subr.bf16.mxu0 %v3548
    %4399 = vmatpush1.bf16.msra.mxu0 %v3547
    %4400 = vmatprep.subr.bf16.mxu0 %v3564
    %4401 = vmatpush1.bf16.msra.mxu0 %v3563
    %4402 = vmatprep.subr.bf16.mxu0 %v3580
    %4403 = vmatpush1.bf16.msra.mxu0 %v3579
    %4404 = vmatprep.subr.bf16.mxu0 %v3596
    %4405 = vmatpush1.bf16.msra.mxu0 %v3595
    %4406 = vmatprep.subr.bf16.mxu0 %v3612
    %4407 = vmatpush1.bf16.msra.mxu0 %v3611
    %4408 = vmatprep.subr.bf16.mxu0 %v3628
    %4409 = vmatpush1.bf16.msra.mxu0 %v3627
    %4410 = vmatprep.subr.bf16.mxu0 %v3644
    %4411 = vmatpush1.bf16.msra.mxu0 %v3643
    %4412 = vmatprep.subr.bf16.mxu0 %v3660
    %4413 = vmatpush1.bf16.msra.mxu0 %v3659
    %4414 = vmatprep.subr.bf16.mxu0 %v3676
    %4415 = vmatpush1.bf16.msra.mxu0 %v3675
    %4416 = vmatprep.subr.bf16.mxu0 %v3692
    %4417 = vmatpush1.bf16.msra.mxu0 %v3691
    %4418 = vmatprep.subr.bf16.mxu0 %v3708
    %4419 = vmatpush1.bf16.msra.mxu0 %v3707
    %4420 = vmatprep.subr.bf16.mxu0 %v3724
    %4421 = vmatpush1.bf16.msra.mxu0 %v3723
    %4422 = vmatprep.subr.bf16.mxu0 %v3740
    %4423 = vmatpush1.bf16.msra.mxu0 %v3739
    %4424 = vmatprep.mubr.bf16.mxu0 %v3234
    %4425 = vmatmul.mubr.bf16.gmra.mrb[0].mxu0 %v3233
    %v4426 = vpop.f32.mrb[0].mxu0
    %v4427 = vadd.f32 %v4386, %v4426
    %v4428 = vpop.f32.mrb[0].mxu0
    %v4429 = vadd.f32 %v4388, %v4428
    %v4430 = vpop.f32.mrb[0].mxu0
    %v4431 = vpop.f32.mrb[0].mxu0
    %4432 = vdwg.mxu0
    %4433 = vmatprep.subr.bf16.mxu0 %v3756
    %4434 = vmatpush1.bf16.msra.mxu0 %v3755
    %4435 = vmatprep.subr.bf16.mxu0 %v3772
    %4436 = vmatpush1.bf16.msra.mxu0 %v3771
    %4437 = vmatprep.subr.bf16.mxu0 %v3788
    %4438 = vmatpush1.bf16.msra.mxu0 %v3787
    %4439 = vmatprep.subr.bf16.mxu0 %v3804
    %4440 = vmatpush1.bf16.msra.mxu0 %v3803
    %4441 = vmatprep.subr.bf16.mxu0 %v3820
    %4442 = vmatpush1.bf16.msra.mxu0 %v3819
    %4443 = vmatprep.subr.bf16.mxu0 %v3836
    %4444 = vmatpush1.bf16.msra.mxu0 %v3835
    %4445 = vmatprep.subr.bf16.mxu0 %v3852
    %4446 = vmatpush1.bf16.msra.mxu0 %v3851
    %4447 = vmatprep.subr.bf16.mxu0 %v3868
    %4448 = vmatpush1.bf16.msra.mxu0 %v3867
    %4449 = vmatprep.subr.bf16.mxu0 %v3884
    %4450 = vmatpush1.bf16.msra.mxu0 %v3883
    %4451 = vmatprep.subr.bf16.mxu0 %v3900
    %4452 = vmatpush1.bf16.msra.mxu0 %v3899
    %4453 = vmatprep.subr.bf16.mxu0 %v3916
    %4454 = vmatpush1.bf16.msra.mxu0 %v3915
    %4455 = vmatprep.subr.bf16.mxu0 %v3932
    %4456 = vmatpush1.bf16.msra.mxu0 %v3931
    %4457 = vmatprep.subr.bf16.mxu0 %v3948
    %4458 = vmatpush1.bf16.msra.mxu0 %v3947
    %4459 = vmatprep.subr.bf16.mxu0 %v3964
    %4460 = vmatpush1.bf16.msra.mxu0 %v3963
    %4461 = vmatprep.subr.bf16.mxu0 %v3980
    %4462 = vmatpush1.bf16.msra.mxu0 %v3979
    %4463 = vmatprep.subr.bf16.mxu0 %v3996
    %4464 = vmatpush1.bf16.msra.mxu0 %v3995
    %4465 = vmatprep.mubr.bf16.mxu0 %v3236
    %4466 = vmatmul.mubr.bf16.gmra.mrb[0].mxu0 %v3235
    %v4467 = vpop.f32.mrb[0].mxu0
    %v4468 = vadd.f32 %v4427, %v4467
    %v4469 = vpop.f32.mrb[0].mxu0
    %v4470 = vadd.f32 %v4429, %v4469
    %v4471 = vpop.f32.mrb[0].mxu0
    %v4472 = vpop.f32.mrb[0].mxu0
    %4473 = vdwg.mxu0
    %4474 = vmatprep.subr.bf16.mxu0 %v4012
    %4475 = vmatpush1.bf16.msra.mxu0 %v4011
    %4476 = vmatprep.subr.bf16.mxu0 %v4028
    %4477 = vmatpush1.bf16.msra.mxu0 %v4027
    %4478 = vmatprep.subr.bf16.mxu0 %v4044
    %4479 = vmatpush1.bf16.msra.mxu0 %v4043
    %4480 = vmatprep.subr.bf16.mxu0 %v4060
    %4481 = vmatpush1.bf16.msra.mxu0 %v4059
    %4482 = vmatprep.subr.bf16.mxu0 %v4076
    %4483 = vmatpush1.bf16.msra.mxu0 %v4075
    %4484 = vmatprep.subr.bf16.mxu0 %v4092
    %4485 = vmatpush1.bf16.msra.mxu0 %v4091
    %4486 = vmatprep.subr.bf16.mxu0 %v4108
    %4487 = vmatpush1.bf16.msra.mxu0 %v4107
    %4488 = vmatprep.subr.bf16.mxu0 %v4124
    %4489 = vmatpush1.bf16.msra.mxu0 %v4123
    %4490 = vmatprep.subr.bf16.mxu0 %v4140
    %4491 = vmatpush1.bf16.msra.mxu0 %v4139
    %4492 = vmatprep.subr.bf16.mxu0 %v4156
    %4493 = vmatpush1.bf16.msra.mxu0 %v4155
    %4494 = vmatprep.subr.bf16.mxu0 %v4172
    %4495 = vmatpush1.bf16.msra.mxu0 %v4171
    %4496 = vmatprep.subr.bf16.mxu0 %v4188
    %4497 = vmatpush1.bf16.msra.mxu0 %v4187
    %4498 = vmatprep.subr.bf16.mxu0 %v4204
    %4499 = vmatpush1.bf16.msra.mxu0 %v4203
    %4500 = vmatprep.subr.bf16.mxu0 %v4220
    %4501 = vmatpush1.bf16.msra.mxu0 %v4219
    %4502 = vmatprep.subr.bf16.mxu0 %v4236
    %4503 = vmatpush1.bf16.msra.mxu0 %v4235
    %4504 = vmatprep.subr.bf16.mxu0 %v4252
    %4505 = vmatpush1.bf16.msra.mxu0 %v4251
    %4506 = vmatprep.mubr.bf16.mxu0 %v3238
    %4507 = vmatmul.mubr.bf16.gmra.mrb[0].mxu0 %v3237
    %v4508 = vpop.f32.mrb[0].mxu0
    %v4509 = vadd.f32 %v4468, %v4508
    %v4510 = vpop.f32.mrb[0].mxu0
    %v4511 = vadd.f32 %v4470, %v4510
    %v4512 = vpop.f32.mrb[0].mxu0
    %v4513 = vpop.f32.mrb[0].mxu0
    %4514 = vdwg.mxu0
    %4515 = vmatprep.subr.bf16.mxu0 %v3246
    %4516 = vmatpush1.bf16.msra.mxu0 %v3245
    %4517 = vmatprep.subr.bf16.mxu0 %v3262
    %4518 = vmatpush1.bf16.msra.mxu0 %v3261
    %4519 = vmatprep.subr.bf16.mxu0 %v3278
    %4520 = vmatpush1.bf16.msra.mxu0 %v3277
    %4521 = vmatprep.subr.bf16.mxu0 %v3294
    %4522 = vmatpush1.bf16.msra.mxu0 %v3293
    %4523 = vmatprep.subr.bf16.mxu0 %v3310
    %4524 = vmatpush1.bf16.msra.mxu0 %v3309
    %4525 = vmatprep.subr.bf16.mxu0 %v3326
    %4526 = vmatpush1.bf16.msra.mxu0 %v3325
    %4527 = vmatprep.subr.bf16.mxu0 %v3342
    %4528 = vmatpush1.bf16.msra.mxu0 %v3341
    %4529 = vmatprep.subr.bf16.mxu0 %v3358
    %4530 = vmatpush1.bf16.msra.mxu0 %v3357
    %4531 = vmatprep.subr.bf16.mxu0 %v3374
    %4532 = vmatpush1.bf16.msra.mxu0 %v3373
    %4533 = vmatprep.subr.bf16.mxu0 %v3390
    %4534 = vmatpush1.bf16.msra.mxu0 %v3389
    %4535 = vmatprep.subr.bf16.mxu0 %v3406
    %4536 = vmatpush1.bf16.msra.mxu0 %v3405
    %4537 = vmatprep.subr.bf16.mxu0 %v3422
    %4538 = vmatpush1.bf16.msra.mxu0 %v3421
    %4539 = vmatprep.subr.bf16.mxu0 %v3438
    %4540 = vmatpush1.bf16.msra.mxu0 %v3437
    %4541 = vmatprep.subr.bf16.mxu0 %v3454
    %4542 = vmatpush1.bf16.msra.mxu0 %v3453
    %4543 = vmatprep.subr.bf16.mxu0 %v3470
    %4544 = vmatpush1.bf16.msra.mxu0 %v3469
    %4545 = vmatprep.subr.bf16.mxu0 %v3486
    %4546 = vmatpush1.bf16.msra.mxu0 %v3485
    %4547 = vmatprep.mubr.bf16.mxu0 %v3232
    %4548 = vmatmul.mubr.bf16.gmra.mrb[0].mxu0 %v3231
    %v4549 = vpop.f32.mrb[0].mxu0
    %v4550 = vadd.f32 %v4282, %v4549
    %v4551 = vpop.f32.mrb[0].mxu0
    %v4552 = vadd.f32 %v4286, %v4551
    %v4553 = vpop.f32.mrb[0].mxu0
    %v4554 = vpop.f32.mrb[0].mxu0
    %4555 = vdwg.mxu0
    %4556 = vmatprep.subr.bf16.mxu0 %v3502
    %4557 = vmatpush1.bf16.msra.mxu0 %v3501
    %4558 = vmatprep.subr.bf16.mxu0 %v3518
    %4559 = vmatpush1.bf16.msra.mxu0 %v3517
    %4560 = vmatprep.subr.bf16.mxu0 %v3534
    %4561 = vmatpush1.bf16.msra.mxu0 %v3533
    %4562 = vmatprep.subr.bf16.mxu0 %v3550
    %4563 = vmatpush1.bf16.msra.mxu0 %v3549
    %4564 = vmatprep.subr.bf16.mxu0 %v3566
    %4565 = vmatpush1.bf16.msra.mxu0 %v3565
    %4566 = vmatprep.subr.bf16.mxu0 %v3582
    %4567 = vmatpush1.bf16.msra.mxu0 %v3581
    %4568 = vmatprep.subr.bf16.mxu0 %v3598
    %4569 = vmatpush1.bf16.msra.mxu0 %v3597
    %4570 = vmatprep.subr.bf16.mxu0 %v3614
    %4571 = vmatpush1.bf16.msra.mxu0 %v3613
    %4572 = vmatprep.subr.bf16.mxu0 %v3630
    %4573 = vmatpush1.bf16.msra.mxu0 %v3629
    %4574 = vmatprep.subr.bf16.mxu0 %v3646
    %4575 = vmatpush1.bf16.msra.mxu0 %v3645
    %4576 = vmatprep.subr.bf16.mxu0 %v3662
    %4577 = vmatpush1.bf16.msra.mxu0 %v3661
    %4578 = vmatprep.subr.bf16.mxu0 %v3678
    %4579 = vmatpush1.bf16.msra.mxu0 %v3677
    %4580 = vmatprep.subr.bf16.mxu0 %v3694
    %4581 = vmatpush1.bf16.msra.mxu0 %v3693
    %4582 = vmatprep.subr.bf16.mxu0 %v3710
    %4583 = vmatpush1.bf16.msra.mxu0 %v3709
    %4584 = vmatprep.subr.bf16.mxu0 %v3726
    %4585 = vmatpush1.bf16.msra.mxu0 %v3725
    %4586 = vmatprep.subr.bf16.mxu0 %v3742
    %4587 = vmatpush1.bf16.msra.mxu0 %v3741
    %4588 = vmatprep.mubr.bf16.mxu0 %v3234
    %4589 = vmatmul.mubr.bf16.gmra.mrb[0].mxu0 %v3233
    %v4590 = vpop.f32.mrb[0].mxu0
    %v4591 = vadd.f32 %v4550, %v4590
    %v4592 = vpop.f32.mrb[0].mxu0
    %v4593 = vadd.f32 %v4552, %v4592
    %v4594 = vpop.f32.mrb[0].mxu0
    %v4595 = vpop.f32.mrb[0].mxu0
    %4596 = vdwg.mxu0
    %4597 = vmatprep.subr.bf16.mxu0 %v3758
    %4598 = vmatpush1.bf16.msra.mxu0 %v3757
    %4599 = vmatprep.subr.bf16.mxu0 %v3774
    %4600 = vmatpush1.bf16.msra.mxu0 %v3773
    %4601 = vmatprep.subr.bf16.mxu0 %v3790
    %4602 = vmatpush1.bf16.msra.mxu0 %v3789
    %4603 = vmatprep.subr.bf16.mxu0 %v3806
    %4604 = vmatpush1.bf16.msra.mxu0 %v3805
    %4605 = vmatprep.subr.bf16.mxu0 %v3822
    %4606 = vmatpush1.bf16.msra.mxu0 %v3821
    %4607 = vmatprep.subr.bf16.mxu0 %v3838
    %4608 = vmatpush1.bf16.msra.mxu0 %v3837
    %4609 = vmatprep.subr.bf16.mxu0 %v3854
    %4610 = vmatpush1.bf16.msra.mxu0 %v3853
    %4611 = vmatprep.subr.bf16.mxu0 %v3870
    %4612 = vmatpush1.bf16.msra.mxu0 %v3869
    %4613 = vmatprep.subr.bf16.mxu0 %v3886
    %4614 = vmatpush1.bf16.msra.mxu0 %v3885
    %4615 = vmatprep.subr.bf16.mxu0 %v3902
    %4616 = vmatpush1.bf16.msra.mxu0 %v3901
    %4617 = vmatprep.subr.bf16.mxu0 %v3918
    %4618 = vmatpush1.bf16.msra.mxu0 %v3917
    %4619 = vmatprep.subr.bf16.mxu0 %v3934
    %4620 = vmatpush1.bf16.msra.mxu0 %v3933
    %4621 = vmatprep.subr.bf16.mxu0 %v3950
    %4622 = vmatpush1.bf16.msra.mxu0 %v3949
    %4623 = vmatprep.subr.bf16.mxu0 %v3966
    %4624 = vmatpush1.bf16.msra.mxu0 %v3965
    %4625 = vmatprep.subr.bf16.mxu0 %v3982
    %4626 = vmatpush1.bf16.msra.mxu0 %v3981
    %4627 = vmatprep.subr.bf16.mxu0 %v3998
    %4628 = vmatpush1.bf16.msra.mxu0 %v3997
    %4629 = vmatprep.mubr.bf16.mxu0 %v3236
    %4630 = vmatmul.mubr.bf16.gmra.mrb[0].mxu0 %v3235
    %v4631 = vpop.f32.mrb[0].mxu0
    %v4632 = vadd.f32 %v4591, %v4631
    %v4633 = vpop.f32.mrb[0].mxu0
    %v4634 = vadd.f32 %v4593, %v4633
    %v4635 = vpop.f32.mrb[0].mxu0
    %v4636 = vpop.f32.mrb[0].mxu0
    %4637 = vdwg.mxu0
    %4638 = vmatprep.subr.bf16.mxu0 %v4014
    %4639 = vmatpush1.bf16.msra.mxu0 %v4013
    %4640 = vmatprep.subr.bf16.mxu0 %v4030
    %4641 = vmatpush1.bf16.msra.mxu0 %v4029
    %4642 = vmatprep.subr.bf16.mxu0 %v4046
    %4643 = vmatpush1.bf16.msra.mxu0 %v4045
    %4644 = vmatprep.subr.bf16.mxu0 %v4062
    %4645 = vmatpush1.bf16.msra.mxu0 %v4061
    %4646 = vmatprep.subr.bf16.mxu0 %v4078
    %4647 = vmatpush1.bf16.msra.mxu0 %v4077
    %4648 = vmatprep.subr.bf16.mxu0 %v4094
    %4649 = vmatpush1.bf16.msra.mxu0 %v4093
    %4650 = vmatprep.subr.bf16.mxu0 %v4110
    %4651 = vmatpush1.bf16.msra.mxu0 %v4109
    %4652 = vmatprep.subr.bf16.mxu0 %v4126
    %4653 = vmatpush1.bf16.msra.mxu0 %v4125
    %4654 = vmatprep.subr.bf16.mxu0 %v4142
    %4655 = vmatpush1.bf16.msra.mxu0 %v4141
    %4656 = vmatprep.subr.bf16.mxu0 %v4158
    %4657 = vmatpush1.bf16.msra.mxu0 %v4157
    %4658 = vmatprep.subr.bf16.mxu0 %v4174
    %4659 = vmatpush1.bf16.msra.mxu0 %v4173
    %4660 = vmatprep.subr.bf16.mxu0 %v4190
    %4661 = vmatpush1.bf16.msra.mxu0 %v4189
    %4662 = vmatprep.subr.bf16.mxu0 %v4206
    %4663 = vmatpush1.bf16.msra.mxu0 %v4205
    %4664 = vmatprep.subr.bf16.mxu0 %v4222
    %4665 = vmatpush1.bf16.msra.mxu0 %v4221
    %4666 = vmatprep.subr.bf16.mxu0 %v4238
    %4667 = vmatpush1.bf16.msra.mxu0 %v4237
    %4668 = vmatprep.subr.bf16.mxu0 %v4254
    %4669 = vmatpush1.bf16.msra.mxu0 %v4253
    %4670 = vmatprep.mubr.bf16.mxu0 %v3238
    %4671 = vmatmul.mubr.bf16.gmra.mrb[0].mxu0 %v3237
    %v4672 = vpop.f32.mrb[0].mxu0
    %v4673 = vadd.f32 %v4632, %v4672
    %v4674 = vpop.f32.mrb[0].mxu0
    %v4675 = vadd.f32 %v4634, %v4674
    %v4676 = vpop.f32.mrb[0].mxu0
    %v4677 = vpop.f32.mrb[0].mxu0
    %4678 = vdwg.mxu0
    %4679 = vmatprep.subr.bf16.mxu0 %v3248
    %4680 = vmatpush1.bf16.msra.mxu0 %v3247
    %4681 = vmatprep.subr.bf16.mxu0 %v3264
    %4682 = vmatpush1.bf16.msra.mxu0 %v3263
    %4683 = vmatprep.subr.bf16.mxu0 %v3280
    %4684 = vmatpush1.bf16.msra.mxu0 %v3279
    %4685 = vmatprep.subr.bf16.mxu0 %v3296
    %4686 = vmatpush1.bf16.msra.mxu0 %v3295
    %4687 = vmatprep.subr.bf16.mxu0 %v3312
    %4688 = vmatpush1.bf16.msra.mxu0 %v3311
    %4689 = vmatprep.subr.bf16.mxu0 %v3328
    %4690 = vmatpush1.bf16.msra.mxu0 %v3327
    %4691 = vmatprep.subr.bf16.mxu0 %v3344
    %4692 = vmatpush1.bf16.msra.mxu0 %v3343
    %4693 = vmatprep.subr.bf16.mxu0 %v3360
    %4694 = vmatpush1.bf16.msra.mxu0 %v3359
    %4695 = vmatprep.subr.bf16.mxu0 %v3376
    %4696 = vmatpush1.bf16.msra.mxu0 %v3375
    %4697 = vmatprep.subr.bf16.mxu0 %v3392
    %4698 = vmatpush1.bf16.msra.mxu0 %v3391
    %4699 = vmatprep.subr.bf16.mxu0 %v3408
    %4700 = vmatpush1.bf16.msra.mxu0 %v3407
    %4701 = vmatprep.subr.bf16.mxu0 %v3424
    %4702 = vmatpush1.bf16.msra.mxu0 %v3423
    %4703 = vmatprep.subr.bf16.mxu0 %v3440
    %4704 = vmatpush1.bf16.msra.mxu0 %v3439
    %4705 = vmatprep.subr.bf16.mxu0 %v3456
    %4706 = vmatpush1.bf16.msra.mxu0 %v3455
    %4707 = vmatprep.subr.bf16.mxu0 %v3472
    %4708 = vmatpush1.bf16.msra.mxu0 %v3471
    %4709 = vmatprep.subr.bf16.mxu0 %v3488
    %4710 = vmatpush1.bf16.msra.mxu0 %v3487
    %4711 = vmatprep.mubr.bf16.mxu0 %v3232
    %4712 = vmatmul.mubr.bf16.gmra.mrb[0].mxu0 %v3231
    %v4713 = vpop.f32.mrb[0].mxu0
    %v4714 = vadd.f32 %v4290, %v4713
    %v4715 = vpop.f32.mrb[0].mxu0
    %v4716 = vadd.f32 %v4294, %v4715
    %v4717 = vpop.f32.mrb[0].mxu0
    %v4718 = vpop.f32.mrb[0].mxu0
    %4719 = vdwg.mxu0
    %4720 = vmatprep.subr.bf16.mxu0 %v3504
    %4721 = vmatpush1.bf16.msra.mxu0 %v3503
    %4722 = vmatprep.subr.bf16.mxu0 %v3520
    %4723 = vmatpush1.bf16.msra.mxu0 %v3519
    %4724 = vmatprep.subr.bf16.mxu0 %v3536
    %4725 = vmatpush1.bf16.msra.mxu0 %v3535
    %4726 = vmatprep.subr.bf16.mxu0 %v3552
    %4727 = vmatpush1.bf16.msra.mxu0 %v3551
    %4728 = vmatprep.subr.bf16.mxu0 %v3568
    %4729 = vmatpush1.bf16.msra.mxu0 %v3567
    %4730 = vmatprep.subr.bf16.mxu0 %v3584
    %4731 = vmatpush1.bf16.msra.mxu0 %v3583
    %4732 = vmatprep.subr.bf16.mxu0 %v3600
    %4733 = vmatpush1.bf16.msra.mxu0 %v3599
    %4734 = vmatprep.subr.bf16.mxu0 %v3616
    %4735 = vmatpush1.bf16.msra.mxu0 %v3615
    %4736 = vmatprep.subr.bf16.mxu0 %v3632
    %4737 = vmatpush1.bf16.msra.mxu0 %v3631
    %4738 = vmatprep.subr.bf16.mxu0 %v3648
    %4739 = vmatpush1.bf16.msra.mxu0 %v3647
    %4740 = vmatprep.subr.bf16.mxu0 %v3664
    %4741 = vmatpush1.bf16.msra.mxu0 %v3663
    %4742 = vmatprep.subr.bf16.mxu0 %v3680
    %4743 = vmatpush1.bf16.msra.mxu0 %v3679
    %4744 = vmatprep.subr.bf16.mxu0 %v3696
    %4745 = vmatpush1.bf16.msra.mxu0 %v3695
    %4746 = vmatprep.subr.bf16.mxu0 %v3712
    %4747 = vmatpush1.bf16.msra.mxu0 %v3711
    %4748 = vmatprep.subr.bf16.mxu0 %v3728
    %4749 = vmatpush1.bf16.msra.mxu0 %v3727
    %4750 = vmatprep.subr.bf16.mxu0 %v3744
    %4751 = vmatpush1.bf16.msra.mxu0 %v3743
    %4752 = vmatprep.mubr.bf16.mxu0 %v3234
    %4753 = vmatmul.mubr.bf16.gmra.mrb[0].mxu0 %v3233
    %v4754 = vpop.f32.mrb[0].mxu0
    %v4755 = vadd.f32 %v4714, %v4754
    %v4756 = vpop.f32.mrb[0].mxu0
    %v4757 = vadd.f32 %v4716, %v4756
    %v4758 = vpop.f32.mrb[0].mxu0
    %v4759 = vpop.f32.mrb[0].mxu0
    %4760 = vdwg.mxu0
    %4761 = vmatprep.subr.bf16.mxu0 %v3760
    %4762 = vmatpush1.bf16.msra.mxu0 %v3759
    %4763 = vmatprep.subr.bf16.mxu0 %v3776
    %4764 = vmatpush1.bf16.msra.mxu0 %v3775
    %4765 = vmatprep.subr.bf16.mxu0 %v3792
    %4766 = vmatpush1.bf16.msra.mxu0 %v3791
    %4767 = vmatprep.subr.bf16.mxu0 %v3808
    %4768 = vmatpush1.bf16.msra.mxu0 %v3807
    %4769 = vmatprep.subr.bf16.mxu0 %v3824
    %4770 = vmatpush1.bf16.msra.mxu0 %v3823
    %4771 = vmatprep.subr.bf16.mxu0 %v3840
    %4772 = vmatpush1.bf16.msra.mxu0 %v3839
    %4773 = vmatprep.subr.bf16.mxu0 %v3856
    %4774 = vmatpush1.bf16.msra.mxu0 %v3855
    %4775 = vmatprep.subr.bf16.mxu0 %v3872
    %4776 = vmatpush1.bf16.msra.mxu0 %v3871
    %4777 = vmatprep.subr.bf16.mxu0 %v3888
    %4778 = vmatpush1.bf16.msra.mxu0 %v3887
    %4779 = vmatprep.subr.bf16.mxu0 %v3904
    %4780 = vmatpush1.bf16.msra.mxu0 %v3903
    %4781 = vmatprep.subr.bf16.mxu0 %v3920
    %4782 = vmatpush1.bf16.msra.mxu0 %v3919
    %4783 = vmatprep.subr.bf16.mxu0 %v3936
    %4784 = vmatpush1.bf16.msra.mxu0 %v3935
    %4785 = vmatprep.subr.bf16.mxu0 %v3952
    %4786 = vmatpush1.bf16.msra.mxu0 %v3951
    %4787 = vmatprep.subr.bf16.mxu0 %v3968
    %4788 = vmatpush1.bf16.msra.mxu0 %v3967
    %4789 = vmatprep.subr.bf16.mxu0 %v3984
    %4790 = vmatpush1.bf16.msra.mxu0 %v3983
    %4791 = vmatprep.subr.bf16.mxu0 %v4000
    %4792 = vmatpush1.bf16.msra.mxu0 %v3999
    %4793 = vmatprep.mubr.bf16.mxu0 %v3236
    %4794 = vmatmul.mubr.bf16.gmra.mrb[0].mxu0 %v3235
    %v4795 = vpop.f32.mrb[0].mxu0
    %v4796 = vadd.f32 %v4755, %v4795
    %v4797 = vpop.f32.mrb[0].mxu0
    %v4798 = vadd.f32 %v4757, %v4797
    %v4799 = vpop.f32.mrb[0].mxu0
    %v4800 = vpop.f32.mrb[0].mxu0
    %4801 = vdwg.mxu0
    %4802 = vmatprep.subr.bf16.mxu0 %v4016
    %4803 = vmatpush1.bf16.msra.mxu0 %v4015
    %4804 = vmatprep.subr.bf16.mxu0 %v4032
    %4805 = vmatpush1.bf16.msra.mxu0 %v4031
    %4806 = vmatprep.subr.bf16.mxu0 %v4048
    %4807 = vmatpush1.bf16.msra.mxu0 %v4047
    %4808 = vmatprep.subr.bf16.mxu0 %v4064
    %4809 = vmatpush1.bf16.msra.mxu0 %v4063
    %4810 = vmatprep.subr.bf16.mxu0 %v4080
    %4811 = vmatpush1.bf16.msra.mxu0 %v4079
    %4812 = vmatprep.subr.bf16.mxu0 %v4096
    %4813 = vmatpush1.bf16.msra.mxu0 %v4095
    %4814 = vmatprep.subr.bf16.mxu0 %v4112
    %4815 = vmatpush1.bf16.msra.mxu0 %v4111
    %4816 = vmatprep.subr.bf16.mxu0 %v4128
    %4817 = vmatpush1.bf16.msra.mxu0 %v4127
    %4818 = vmatprep.subr.bf16.mxu0 %v4144
    %4819 = vmatpush1.bf16.msra.mxu0 %v4143
    %4820 = vmatprep.subr.bf16.mxu0 %v4160
    %4821 = vmatpush1.bf16.msra.mxu0 %v4159
    %4822 = vmatprep.subr.bf16.mxu0 %v4176
    %4823 = vmatpush1.bf16.msra.mxu0 %v4175
    %4824 = vmatprep.subr.bf16.mxu0 %v4192
    %4825 = vmatpush1.bf16.msra.mxu0 %v4191
    %4826 = vmatprep.subr.bf16.mxu0 %v4208
    %4827 = vmatpush1.bf16.msra.mxu0 %v4207
    %4828 = vmatprep.subr.bf16.mxu0 %v4224
    %4829 = vmatpush1.bf16.msra.mxu0 %v4223
    %4830 = vmatprep.subr.bf16.mxu0 %v4240
    %4831 = vmatpush1.bf16.msra.mxu0 %v4239
    %4832 = vmatprep.subr.bf16.mxu0 %v4256
    %4833 = vmatpush1.bf16.msra.mxu0 %v4255
    %4834 = vmatprep.mubr.bf16.mxu0 %v3238
    %4835 = vmatmul.mubr.bf16.gmra.mrb[0].mxu0 %v3237
    %v4836 = vpop.f32.mrb[0].mxu0
    %v4837 = vadd.f32 %v4796, %v4836
    %v4838 = vpop.f32.mrb[0].mxu0
    %v4839 = vadd.f32 %v4798, %v4838
    %v4840 = vpop.f32.mrb[0].mxu0
    %v4841 = vpop.f32.mrb[0].mxu0
    %4842 = vdwg.mxu0
    %4843 = vmatprep.subr.bf16.mxu0 %v3250
    %4844 = vmatpush1.bf16.msra.mxu0 %v3249
    %4845 = vmatprep.subr.bf16.mxu0 %v3266
    %4846 = vmatpush1.bf16.msra.mxu0 %v3265
    %4847 = vmatprep.subr.bf16.mxu0 %v3282
    %4848 = vmatpush1.bf16.msra.mxu0 %v3281
    %4849 = vmatprep.subr.bf16.mxu0 %v3298
    %4850 = vmatpush1.bf16.msra.mxu0 %v3297
    %4851 = vmatprep.subr.bf16.mxu0 %v3314
    %4852 = vmatpush1.bf16.msra.mxu0 %v3313
    %4853 = vmatprep.subr.bf16.mxu0 %v3330
    %4854 = vmatpush1.bf16.msra.mxu0 %v3329
    %4855 = vmatprep.subr.bf16.mxu0 %v3346
    %4856 = vmatpush1.bf16.msra.mxu0 %v3345
    %4857 = vmatprep.subr.bf16.mxu0 %v3362
    %4858 = vmatpush1.bf16.msra.mxu0 %v3361
    %4859 = vmatprep.subr.bf16.mxu0 %v3378
    %4860 = vmatpush1.bf16.msra.mxu0 %v3377
    %4861 = vmatprep.subr.bf16.mxu0 %v3394
    %4862 = vmatpush1.bf16.msra.mxu0 %v3393
    %4863 = vmatprep.subr.bf16.mxu0 %v3410
    %4864 = vmatpush1.bf16.msra.mxu0 %v3409
    %4865 = vmatprep.subr.bf16.mxu0 %v3426
    %4866 = vmatpush1.bf16.msra.mxu0 %v3425
    %4867 = vmatprep.subr.bf16.mxu0 %v3442
    %4868 = vmatpush1.bf16.msra.mxu0 %v3441
    %4869 = vmatprep.subr.bf16.mxu0 %v3458
    %4870 = vmatpush1.bf16.msra.mxu0 %v3457
    %4871 = vmatprep.subr.bf16.mxu0 %v3474
    %4872 = vmatpush1.bf16.msra.mxu0 %v3473
    %4873 = vmatprep.subr.bf16.mxu0 %v3490
    %4874 = vmatpush1.bf16.msra.mxu0 %v3489
    %4875 = vmatprep.mubr.bf16.mxu0 %v3232
    %4876 = vmatmul.mubr.bf16.gmra.mrb[0].mxu0 %v3231
    %v4877 = vpop.f32.mrb[0].mxu0
    %v4878 = vadd.f32 %v4298, %v4877
    %v4879 = vpop.f32.mrb[0].mxu0
    %v4880 = vadd.f32 %v4302, %v4879
    %v4881 = vpop.f32.mrb[0].mxu0
    %v4882 = vpop.f32.mrb[0].mxu0
    %4883 = vdwg.mxu0
    %4884 = vmatprep.subr.bf16.mxu0 %v3506
    %4885 = vmatpush1.bf16.msra.mxu0 %v3505
    %4886 = vmatprep.subr.bf16.mxu0 %v3522
    %4887 = vmatpush1.bf16.msra.mxu0 %v3521
    %4888 = vmatprep.subr.bf16.mxu0 %v3538
    %4889 = vmatpush1.bf16.msra.mxu0 %v3537
    %4890 = vmatprep.subr.bf16.mxu0 %v3554
    %4891 = vmatpush1.bf16.msra.mxu0 %v3553
    %4892 = vmatprep.subr.bf16.mxu0 %v3570
    %4893 = vmatpush1.bf16.msra.mxu0 %v3569
    %4894 = vmatprep.subr.bf16.mxu0 %v3586
    %4895 = vmatpush1.bf16.msra.mxu0 %v3585
    %4896 = vmatprep.subr.bf16.mxu0 %v3602
    %4897 = vmatpush1.bf16.msra.mxu0 %v3601
    %4898 = vmatprep.subr.bf16.mxu0 %v3618
    %4899 = vmatpush1.bf16.msra.mxu0 %v3617
    %4900 = vmatprep.subr.bf16.mxu0 %v3634
    %4901 = vmatpush1.bf16.msra.mxu0 %v3633
    %4902 = vmatprep.subr.bf16.mxu0 %v3650
    %4903 = vmatpush1.bf16.msra.mxu0 %v3649
    %4904 = vmatprep.subr.bf16.mxu0 %v3666
    %4905 = vmatpush1.bf16.msra.mxu0 %v3665
    %4906 = vmatprep.subr.bf16.mxu0 %v3682
    %4907 = vmatpush1.bf16.msra.mxu0 %v3681
    %4908 = vmatprep.subr.bf16.mxu0 %v3698
    %4909 = vmatpush1.bf16.msra.mxu0 %v3697
    %4910 = vmatprep.subr.bf16.mxu0 %v3714
    %4911 = vmatpush1.bf16.msra.mxu0 %v3713
    %4912 = vmatprep.subr.bf16.mxu0 %v3730
    %4913 = vmatpush1.bf16.msra.mxu0 %v3729
    %4914 = vmatprep.subr.bf16.mxu0 %v3746
    %4915 = vmatpush1.bf16.msra.mxu0 %v3745
    %4916 = vmatprep.mubr.bf16.mxu0 %v3234
    %4917 = vmatmul.mubr.bf16.gmra.mrb[0].mxu0 %v3233
    %v4918 = vpop.f32.mrb[0].mxu0
    %v4919 = vadd.f32 %v4878, %v4918
    %v4920 = vpop.f32.mrb[0].mxu0
    %v4921 = vadd.f32 %v4880, %v4920
    %v4922 = vpop.f32.mrb[0].mxu0
    %v4923 = vpop.f32.mrb[0].mxu0
    %4924 = vdwg.mxu0
    %4925 = vmatprep.subr.bf16.mxu0 %v3762
    %4926 = vmatpush1.bf16.msra.mxu0 %v3761
    %4927 = vmatprep.subr.bf16.mxu0 %v3778
    %4928 = vmatpush1.bf16.msra.mxu0 %v3777
    %4929 = vmatprep.subr.bf16.mxu0 %v3794
    %4930 = vmatpush1.bf16.msra.mxu0 %v3793
    %4931 = vmatprep.subr.bf16.mxu0 %v3810
    %4932 = vmatpush1.bf16.msra.mxu0 %v3809
    %4933 = vmatprep.subr.bf16.mxu0 %v3826
    %4934 = vmatpush1.bf16.msra.mxu0 %v3825
    %4935 = vmatprep.subr.bf16.mxu0 %v3842
    %4936 = vmatpush1.bf16.msra.mxu0 %v3841
    %4937 = vmatprep.subr.bf16.mxu0 %v3858
    %4938 = vmatpush1.bf16.msra.mxu0 %v3857
    %4939 = vmatprep.subr.bf16.mxu0 %v3874
    %4940 = vmatpush1.bf16.msra.mxu0 %v3873
    %4941 = vmatprep.subr.bf16.mxu0 %v3890
    %4942 = vmatpush1.bf16.msra.mxu0 %v3889
    %4943 = vmatprep.subr.bf16.mxu0 %v3906
    %4944 = vmatpush1.bf16.msra.mxu0 %v3905
    %4945 = vmatprep.subr.bf16.mxu0 %v3922
    %4946 = vmatpush1.bf16.msra.mxu0 %v3921
    %4947 = vmatprep.subr.bf16.mxu0 %v3938
    %4948 = vmatpush1.bf16.msra.mxu0 %v3937
    %4949 = vmatprep.subr.bf16.mxu0 %v3954
    %4950 = vmatpush1.bf16.msra.mxu0 %v3953
    %4951 = vmatprep.subr.bf16.mxu0 %v3970
    %4952 = vmatpush1.bf16.msra.mxu0 %v3969
    %4953 = vmatprep.subr.bf16.mxu0 %v3986
    %4954 = vmatpush1.bf16.msra.mxu0 %v3985
    %4955 = vmatprep.subr.bf16.mxu0 %v4002
    %4956 = vmatpush1.bf16.msra.mxu0 %v4001
    %4957 = vmatprep.mubr.bf16.mxu0 %v3236
    %4958 = vmatmul.mubr.bf16.gmra.mrb[0].mxu0 %v3235
    %v4959 = vpop.f32.mrb[0].mxu0
    %v4960 = vadd.f32 %v4919, %v4959
    %v4961 = vpop.f32.mrb[0].mxu0
    %v4962 = vadd.f32 %v4921, %v4961
    %v4963 = vpop.f32.mrb[0].mxu0
    %v4964 = vpop.f32.mrb[0].mxu0
    %4965 = vdwg.mxu0
    %4966 = vmatprep.subr.bf16.mxu0 %v4018
    %4967 = vmatpush1.bf16.msra.mxu0 %v4017
    %4968 = vmatprep.subr.bf16.mxu0 %v4034
    %4969 = vmatpush1.bf16.msra.mxu0 %v4033
    %4970 = vmatprep.subr.bf16.mxu0 %v4050
    %4971 = vmatpush1.bf16.msra.mxu0 %v4049
    %4972 = vmatprep.subr.bf16.mxu0 %v4066
    %4973 = vmatpush1.bf16.msra.mxu0 %v4065
    %4974 = vmatprep.subr.bf16.mxu0 %v4082
    %4975 = vmatpush1.bf16.msra.mxu0 %v4081
    %4976 = vmatprep.subr.bf16.mxu0 %v4098
    %4977 = vmatpush1.bf16.msra.mxu0 %v4097
    %4978 = vmatprep.subr.bf16.mxu0 %v4114
    %4979 = vmatpush1.bf16.msra.mxu0 %v4113
    %4980 = vmatprep.subr.bf16.mxu0 %v4130
    %4981 = vmatpush1.bf16.msra.mxu0 %v4129
    %4982 = vmatprep.subr.bf16.mxu0 %v4146
    %4983 = vmatpush1.bf16.msra.mxu0 %v4145
    %4984 = vmatprep.subr.bf16.mxu0 %v4162
    %4985 = vmatpush1.bf16.msra.mxu0 %v4161
    %4986 = vmatprep.subr.bf16.mxu0 %v4178
    %4987 = vmatpush1.bf16.msra.mxu0 %v4177
    %4988 = vmatprep.subr.bf16.mxu0 %v4194
    %4989 = vmatpush1.bf16.msra.mxu0 %v4193
    %4990 = vmatprep.subr.bf16.mxu0 %v4210
    %4991 = vmatpush1.bf16.msra.mxu0 %v4209
    %4992 = vmatprep.subr.bf16.mxu0 %v4226
    %4993 = vmatpush1.bf16.msra.mxu0 %v4225
    %4994 = vmatprep.subr.bf16.mxu0 %v4242
    %4995 = vmatpush1.bf16.msra.mxu0 %v4241
    %4996 = vmatprep.subr.bf16.mxu0 %v4258
    %4997 = vmatpush1.bf16.msra.mxu0 %v4257
    %4998 = vmatprep.mubr.bf16.mxu0 %v3238
    %4999 = vmatmul.mubr.bf16.gmra.mrb[0].mxu0 %v3237
    %v5000 = vpop.f32.mrb[0].mxu0
    %v5001 = vadd.f32 %v4960, %v5000
    %v5002 = vpop.f32.mrb[0].mxu0
    %v5003 = vadd.f32 %v4962, %v5002
    %v5004 = vpop.f32.mrb[0].mxu0
    %v5005 = vpop.f32.mrb[0].mxu0
    %5006 = vdwg.mxu0
    %5007 = vmatprep.subr.bf16.mxu0 %v3252
    %5008 = vmatpush1.bf16.msra.mxu0 %v3251
    %5009 = vmatprep.subr.bf16.mxu0 %v3268
    %5010 = vmatpush1.bf16.msra.mxu0 %v3267
    %5011 = vmatprep.subr.bf16.mxu0 %v3284
    %5012 = vmatpush1.bf16.msra.mxu0 %v3283
    %5013 = vmatprep.subr.bf16.mxu0 %v3300
    %5014 = vmatpush1.bf16.msra.mxu0 %v3299
    %5015 = vmatprep.subr.bf16.mxu0 %v3316
    %5016 = vmatpush1.bf16.msra.mxu0 %v3315
    %5017 = vmatprep.subr.bf16.mxu0 %v3332
    %5018 = vmatpush1.bf16.msra.mxu0 %v3331
    %5019 = vmatprep.subr.bf16.mxu0 %v3348
    %5020 = vmatpush1.bf16.msra.mxu0 %v3347
    %5021 = vmatprep.subr.bf16.mxu0 %v3364
    %5022 = vmatpush1.bf16.msra.mxu0 %v3363
    %5023 = vmatprep.subr.bf16.mxu0 %v3380
    %5024 = vmatpush1.bf16.msra.mxu0 %v3379
    %5025 = vmatprep.subr.bf16.mxu0 %v3396
    %5026 = vmatpush1.bf16.msra.mxu0 %v3395
    %5027 = vmatprep.subr.bf16.mxu0 %v3412
    %5028 = vmatpush1.bf16.msra.mxu0 %v3411
    %5029 = vmatprep.subr.bf16.mxu0 %v3428
    %5030 = vmatpush1.bf16.msra.mxu0 %v3427
    %5031 = vmatprep.subr.bf16.mxu0 %v3444
    %5032 = vmatpush1.bf16.msra.mxu0 %v3443
    %5033 = vmatprep.subr.bf16.mxu0 %v3460
    %5034 = vmatpush1.bf16.msra.mxu0 %v3459
    %5035 = vmatprep.subr.bf16.mxu0 %v3476
    %5036 = vmatpush1.bf16.msra.mxu0 %v3475
    %5037 = vmatprep.subr.bf16.mxu0 %v3492
    %5038 = vmatpush1.bf16.msra.mxu0 %v3491
    %5039 = vmatprep.mubr.bf16.mxu0 %v3232
    %5040 = vmatmul.mubr.bf16.gmra.mrb[0].mxu0 %v3231
    %v5041 = vpop.f32.mrb[0].mxu0
    %v5042 = vadd.f32 %v4306, %v5041
    %v5043 = vpop.f32.mrb[0].mxu0
    %v5044 = vadd.f32 %v4310, %v5043
    %v5045 = vpop.f32.mrb[0].mxu0
    %v5046 = vpop.f32.mrb[0].mxu0
    %5047 = vdwg.mxu0
    %5048 = vmatprep.subr.bf16.mxu0 %v3508
    %5049 = vmatpush1.bf16.msra.mxu0 %v3507
    %5050 = vmatprep.subr.bf16.mxu0 %v3524
    %5051 = vmatpush1.bf16.msra.mxu0 %v3523
    %5052 = vmatprep.subr.bf16.mxu0 %v3540
    %5053 = vmatpush1.bf16.msra.mxu0 %v3539
    %5054 = vmatprep.subr.bf16.mxu0 %v3556
    %5055 = vmatpush1.bf16.msra.mxu0 %v3555
    %5056 = vmatprep.subr.bf16.mxu0 %v3572
    %5057 = vmatpush1.bf16.msra.mxu0 %v3571
    %5058 = vmatprep.subr.bf16.mxu0 %v3588
    %5059 = vmatpush1.bf16.msra.mxu0 %v3587
    %5060 = vmatprep.subr.bf16.mxu0 %v3604
    %5061 = vmatpush1.bf16.msra.mxu0 %v3603
    %5062 = vmatprep.subr.bf16.mxu0 %v3620
    %5063 = vmatpush1.bf16.msra.mxu0 %v3619
    %5064 = vmatprep.subr.bf16.mxu0 %v3636
    %5065 = vmatpush1.bf16.msra.mxu0 %v3635
    %5066 = vmatprep.subr.bf16.mxu0 %v3652
    %5067 = vmatpush1.bf16.msra.mxu0 %v3651
    %5068 = vmatprep.subr.bf16.mxu0 %v3668
    %5069 = vmatpush1.bf16.msra.mxu0 %v3667
    %5070 = vmatprep.subr.bf16.mxu0 %v3684
    %5071 = vmatpush1.bf16.msra.mxu0 %v3683
    %5072 = vmatprep.subr.bf16.mxu0 %v3700
    %5073 = vmatpush1.bf16.msra.mxu0 %v3699
    %5074 = vmatprep.subr.bf16.mxu0 %v3716
    %5075 = vmatpush1.bf16.msra.mxu0 %v3715
    %5076 = vmatprep.subr.bf16.mxu0 %v3732
    %5077 = vmatpush1.bf16.msra.mxu0 %v3731
    %5078 = vmatprep.subr.bf16.mxu0 %v3748
    %5079 = vmatpush1.bf16.msra.mxu0 %v3747
    %5080 = vmatprep.mubr.bf16.mxu0 %v3234
    %5081 = vmatmul.mubr.bf16.gmra.mrb[0].mxu0 %v3233
    %v5082 = vpop.f32.mrb[0].mxu0
    %v5083 = vadd.f32 %v5042, %v5082
    %v5084 = vpop.f32.mrb[0].mxu0
    %v5085 = vadd.f32 %v5044, %v5084
    %v5086 = vpop.f32.mrb[0].mxu0
    %v5087 = vpop.f32.mrb[0].mxu0
    %5088 = vdwg.mxu0
    %5089 = vmatprep.subr.bf16.mxu0 %v3764
    %5090 = vmatpush1.bf16.msra.mxu0 %v3763
    %5091 = vmatprep.subr.bf16.mxu0 %v3780
    %5092 = vmatpush1.bf16.msra.mxu0 %v3779
    %5093 = vmatprep.subr.bf16.mxu0 %v3796
    %5094 = vmatpush1.bf16.msra.mxu0 %v3795
    %5095 = vmatprep.subr.bf16.mxu0 %v3812
    %5096 = vmatpush1.bf16.msra.mxu0 %v3811
    %5097 = vmatprep.subr.bf16.mxu0 %v3828
    %5098 = vmatpush1.bf16.msra.mxu0 %v3827
    %5099 = vmatprep.subr.bf16.mxu0 %v3844
    %5100 = vmatpush1.bf16.msra.mxu0 %v3843
    %5101 = vmatprep.subr.bf16.mxu0 %v3860
    %5102 = vmatpush1.bf16.msra.mxu0 %v3859
    %5103 = vmatprep.subr.bf16.mxu0 %v3876
    %5104 = vmatpush1.bf16.msra.mxu0 %v3875
    %5105 = vmatprep.subr.bf16.mxu0 %v3892
    %5106 = vmatpush1.bf16.msra.mxu0 %v3891
    %5107 = vmatprep.subr.bf16.mxu0 %v3908
    %5108 = vmatpush1.bf16.msra.mxu0 %v3907
    %5109 = vmatprep.subr.bf16.mxu0 %v3924
    %5110 = vmatpush1.bf16.msra.mxu0 %v3923
    %5111 = vmatprep.subr.bf16.mxu0 %v3940
    %5112 = vmatpush1.bf16.msra.mxu0 %v3939
    %5113 = vmatprep.subr.bf16.mxu0 %v3956
    %5114 = vmatpush1.bf16.msra.mxu0 %v3955
    %5115 = vmatprep.subr.bf16.mxu0 %v3972
    %5116 = vmatpush1.bf16.msra.mxu0 %v3971
    %5117 = vmatprep.subr.bf16.mxu0 %v3988
    %5118 = vmatpush1.bf16.msra.mxu0 %v3987
    %5119 = vmatprep.subr.bf16.mxu0 %v4004
    %5120 = vmatpush1.bf16.msra.mxu0 %v4003
    %5121 = vmatprep.mubr.bf16.mxu0 %v3236
    %5122 = vmatmul.mubr.bf16.gmra.mrb[0].mxu0 %v3235
    %v5123 = vpop.f32.mrb[0].mxu0
    %v5124 = vadd.f32 %v5083, %v5123
    %v5125 = vpop.f32.mrb[0].mxu0
    %v5126 = vadd.f32 %v5085, %v5125
    %v5127 = vpop.f32.mrb[0].mxu0
    %v5128 = vpop.f32.mrb[0].mxu0
    %5129 = vdwg.mxu0
    %5130 = vmatprep.subr.bf16.mxu0 %v4020
    %5131 = vmatpush1.bf16.msra.mxu0 %v4019
    %5132 = vmatprep.subr.bf16.mxu0 %v4036
    %5133 = vmatpush1.bf16.msra.mxu0 %v4035
    %5134 = vmatprep.subr.bf16.mxu0 %v4052
    %5135 = vmatpush1.bf16.msra.mxu0 %v4051
    %5136 = vmatprep.subr.bf16.mxu0 %v4068
    %5137 = vmatpush1.bf16.msra.mxu0 %v4067
    %5138 = vmatprep.subr.bf16.mxu0 %v4084
    %5139 = vmatpush1.bf16.msra.mxu0 %v4083
    %5140 = vmatprep.subr.bf16.mxu0 %v4100
    %5141 = vmatpush1.bf16.msra.mxu0 %v4099
    %5142 = vmatprep.subr.bf16.mxu0 %v4116
    %5143 = vmatpush1.bf16.msra.mxu0 %v4115
    %5144 = vmatprep.subr.bf16.mxu0 %v4132
    %5145 = vmatpush1.bf16.msra.mxu0 %v4131
    %5146 = vmatprep.subr.bf16.mxu0 %v4148
    %5147 = vmatpush1.bf16.msra.mxu0 %v4147
    %5148 = vmatprep.subr.bf16.mxu0 %v4164
    %5149 = vmatpush1.bf16.msra.mxu0 %v4163
    %5150 = vmatprep.subr.bf16.mxu0 %v4180
    %5151 = vmatpush1.bf16.msra.mxu0 %v4179
    %5152 = vmatprep.subr.bf16.mxu0 %v4196
    %5153 = vmatpush1.bf16.msra.mxu0 %v4195
    %5154 = vmatprep.subr.bf16.mxu0 %v4212
    %5155 = vmatpush1.bf16.msra.mxu0 %v4211
    %5156 = vmatprep.subr.bf16.mxu0 %v4228
    %5157 = vmatpush1.bf16.msra.mxu0 %v4227
    %5158 = vmatprep.subr.bf16.mxu0 %v4244
    %5159 = vmatpush1.bf16.msra.mxu0 %v4243
    %5160 = vmatprep.subr.bf16.mxu0 %v4260
    %5161 = vmatpush1.bf16.msra.mxu0 %v4259
    %5162 = vmatprep.mubr.bf16.mxu0 %v3238
    %5163 = vmatmul.mubr.bf16.gmra.mrb[0].mxu0 %v3237
    %v5164 = vpop.f32.mrb[0].mxu0
    %v5165 = vadd.f32 %v5124, %v5164
    %v5166 = vpop.f32.mrb[0].mxu0
    %v5167 = vadd.f32 %v5126, %v5166
    %v5168 = vpop.f32.mrb[0].mxu0
    %v5169 = vpop.f32.mrb[0].mxu0
    %5170 = vdwg.mxu0
    %5171 = vmatprep.subr.bf16.mxu0 %v3254
    %5172 = vmatpush1.bf16.msra.mxu0 %v3253
    %5173 = vmatprep.subr.bf16.mxu0 %v3270
    %5174 = vmatpush1.bf16.msra.mxu0 %v3269
    %5175 = vmatprep.subr.bf16.mxu0 %v3286
    %5176 = vmatpush1.bf16.msra.mxu0 %v3285
    %5177 = vmatprep.subr.bf16.mxu0 %v3302
    %5178 = vmatpush1.bf16.msra.mxu0 %v3301
    %5179 = vmatprep.subr.bf16.mxu0 %v3318
    %5180 = vmatpush1.bf16.msra.mxu0 %v3317
    %5181 = vmatprep.subr.bf16.mxu0 %v3334
    %5182 = vmatpush1.bf16.msra.mxu0 %v3333
    %5183 = vmatprep.subr.bf16.mxu0 %v3350
    %5184 = vmatpush1.bf16.msra.mxu0 %v3349
    %5185 = vmatprep.subr.bf16.mxu0 %v3366
    %5186 = vmatpush1.bf16.msra.mxu0 %v3365
    %5187 = vmatprep.subr.bf16.mxu0 %v3382
    %5188 = vmatpush1.bf16.msra.mxu0 %v3381
    %5189 = vmatprep.subr.bf16.mxu0 %v3398
    %5190 = vmatpush1.bf16.msra.mxu0 %v3397
    %5191 = vmatprep.subr.bf16.mxu0 %v3414
    %5192 = vmatpush1.bf16.msra.mxu0 %v3413
    %5193 = vmatprep.subr.bf16.mxu0 %v3430
    %5194 = vmatpush1.bf16.msra.mxu0 %v3429
    %5195 = vmatprep.subr.bf16.mxu0 %v3446
    %5196 = vmatpush1.bf16.msra.mxu0 %v3445
    %5197 = vmatprep.subr.bf16.mxu0 %v3462
    %5198 = vmatpush1.bf16.msra.mxu0 %v3461
    %5199 = vmatprep.subr.bf16.mxu0 %v3478
    %5200 = vmatpush1.bf16.msra.mxu0 %v3477
    %5201 = vmatprep.subr.bf16.mxu0 %v3494
    %5202 = vmatpush1.bf16.msra.mxu0 %v3493
    %5203 = vmatprep.mubr.bf16.mxu0 %v3232
    %5204 = vmatmul.mubr.bf16.gmra.mrb[0].mxu0 %v3231
    %v5205 = vpop.f32.mrb[0].mxu0
    %v5206 = vadd.f32 %v4314, %v5205
    %v5207 = vpop.f32.mrb[0].mxu0
    %v5208 = vadd.f32 %v4318, %v5207
    %v5209 = vpop.f32.mrb[0].mxu0
    %v5210 = vpop.f32.mrb[0].mxu0
    %5211 = vdwg.mxu0
    %5212 = vmatprep.subr.bf16.mxu0 %v3510
    %5213 = vmatpush1.bf16.msra.mxu0 %v3509
    %5214 = vmatprep.subr.bf16.mxu0 %v3526
    %5215 = vmatpush1.bf16.msra.mxu0 %v3525
    %5216 = vmatprep.subr.bf16.mxu0 %v3542
    %5217 = vmatpush1.bf16.msra.mxu0 %v3541
    %5218 = vmatprep.subr.bf16.mxu0 %v3558
    %5219 = vmatpush1.bf16.msra.mxu0 %v3557
    %5220 = vmatprep.subr.bf16.mxu0 %v3574
    %5221 = vmatpush1.bf16.msra.mxu0 %v3573
    %5222 = vmatprep.subr.bf16.mxu0 %v3590
    %5223 = vmatpush1.bf16.msra.mxu0 %v3589
    %5224 = vmatprep.subr.bf16.mxu0 %v3606
    %5225 = vmatpush1.bf16.msra.mxu0 %v3605
    %5226 = vmatprep.subr.bf16.mxu0 %v3622
    %5227 = vmatpush1.bf16.msra.mxu0 %v3621
    %5228 = vmatprep.subr.bf16.mxu0 %v3638
    %5229 = vmatpush1.bf16.msra.mxu0 %v3637
    %5230 = vmatprep.subr.bf16.mxu0 %v3654
    %5231 = vmatpush1.bf16.msra.mxu0 %v3653
    %5232 = vmatprep.subr.bf16.mxu0 %v3670
    %5233 = vmatpush1.bf16.msra.mxu0 %v3669
    %5234 = vmatprep.subr.bf16.mxu0 %v3686
    %5235 = vmatpush1.bf16.msra.mxu0 %v3685
    %5236 = vmatprep.subr.bf16.mxu0 %v3702
    %5237 = vmatpush1.bf16.msra.mxu0 %v3701
    %5238 = vmatprep.subr.bf16.mxu0 %v3718
    %5239 = vmatpush1.bf16.msra.mxu0 %v3717
    %5240 = vmatprep.subr.bf16.mxu0 %v3734
    %5241 = vmatpush1.bf16.msra.mxu0 %v3733
    %5242 = vmatprep.subr.bf16.mxu0 %v3750
    %5243 = vmatpush1.bf16.msra.mxu0 %v3749
    %5244 = vmatprep.mubr.bf16.mxu0 %v3234
    %5245 = vmatmul.mubr.bf16.gmra.mrb[0].mxu0 %v3233
    %v5246 = vpop.f32.mrb[0].mxu0
    %v5247 = vadd.f32 %v5206, %v5246
    %v5248 = vpop.f32.mrb[0].mxu0
    %v5249 = vadd.f32 %v5208, %v5248
    %v5250 = vpop.f32.mrb[0].mxu0
    %v5251 = vpop.f32.mrb[0].mxu0
    %5252 = vdwg.mxu0
    %5253 = vmatprep.subr.bf16.mxu0 %v3766
    %5254 = vmatpush1.bf16.msra.mxu0 %v3765
    %5255 = vmatprep.subr.bf16.mxu0 %v3782
    %5256 = vmatpush1.bf16.msra.mxu0 %v3781
    %5257 = vmatprep.subr.bf16.mxu0 %v3798
    %5258 = vmatpush1.bf16.msra.mxu0 %v3797
    %5259 = vmatprep.subr.bf16.mxu0 %v3814
    %5260 = vmatpush1.bf16.msra.mxu0 %v3813
    %5261 = vmatprep.subr.bf16.mxu0 %v3830
    %5262 = vmatpush1.bf16.msra.mxu0 %v3829
    %5263 = vmatprep.subr.bf16.mxu0 %v3846
    %5264 = vmatpush1.bf16.msra.mxu0 %v3845
    %5265 = vmatprep.subr.bf16.mxu0 %v3862
    %5266 = vmatpush1.bf16.msra.mxu0 %v3861
    %5267 = vmatprep.subr.bf16.mxu0 %v3878
    %5268 = vmatpush1.bf16.msra.mxu0 %v3877
    %5269 = vmatprep.subr.bf16.mxu0 %v3894
    %5270 = vmatpush1.bf16.msra.mxu0 %v3893
    %5271 = vmatprep.subr.bf16.mxu0 %v3910
    %5272 = vmatpush1.bf16.msra.mxu0 %v3909
    %5273 = vmatprep.subr.bf16.mxu0 %v3926
    %5274 = vmatpush1.bf16.msra.mxu0 %v3925
    %5275 = vmatprep.subr.bf16.mxu0 %v3942
    %5276 = vmatpush1.bf16.msra.mxu0 %v3941
    %5277 = vmatprep.subr.bf16.mxu0 %v3958
    %5278 = vmatpush1.bf16.msra.mxu0 %v3957
    %5279 = vmatprep.subr.bf16.mxu0 %v3974
    %5280 = vmatpush1.bf16.msra.mxu0 %v3973
    %5281 = vmatprep.subr.bf16.mxu0 %v3990
    %5282 = vmatpush1.bf16.msra.mxu0 %v3989
    %5283 = vmatprep.subr.bf16.mxu0 %v4006
    %5284 = vmatpush1.bf16.msra.mxu0 %v4005
    %5285 = vmatprep.mubr.bf16.mxu0 %v3236
    %5286 = vmatmul.mubr.bf16.gmra.mrb[0].mxu0 %v3235
    %v5287 = vpop.f32.mrb[0].mxu0
    %v5288 = vadd.f32 %v5247, %v5287
    %v5289 = vpop.f32.mrb[0].mxu0
    %v5290 = vadd.f32 %v5249, %v5289
    %v5291 = vpop.f32.mrb[0].mxu0
    %v5292 = vpop.f32.mrb[0].mxu0
    %5293 = vdwg.mxu0
    %5294 = vmatprep.subr.bf16.mxu0 %v4022
    %5295 = vmatpush1.bf16.msra.mxu0 %v4021
    %5296 = vmatprep.subr.bf16.mxu0 %v4038
    %5297 = vmatpush1.bf16.msra.mxu0 %v4037
    %5298 = vmatprep.subr.bf16.mxu0 %v4054
    %5299 = vmatpush1.bf16.msra.mxu0 %v4053
    %5300 = vmatprep.subr.bf16.mxu0 %v4070
    %5301 = vmatpush1.bf16.msra.mxu0 %v4069
    %5302 = vmatprep.subr.bf16.mxu0 %v4086
    %5303 = vmatpush1.bf16.msra.mxu0 %v4085
    %5304 = vmatprep.subr.bf16.mxu0 %v4102
    %5305 = vmatpush1.bf16.msra.mxu0 %v4101
    %5306 = vmatprep.subr.bf16.mxu0 %v4118
    %5307 = vmatpush1.bf16.msra.mxu0 %v4117
    %5308 = vmatprep.subr.bf16.mxu0 %v4134
    %5309 = vmatpush1.bf16.msra.mxu0 %v4133
    %5310 = vmatprep.subr.bf16.mxu0 %v4150
    %5311 = vmatpush1.bf16.msra.mxu0 %v4149
    %5312 = vmatprep.subr.bf16.mxu0 %v4166
    %5313 = vmatpush1.bf16.msra.mxu0 %v4165
    %5314 = vmatprep.subr.bf16.mxu0 %v4182
    %5315 = vmatpush1.bf16.msra.mxu0 %v4181
    %5316 = vmatprep.subr.bf16.mxu0 %v4198
    %5317 = vmatpush1.bf16.msra.mxu0 %v4197
    %5318 = vmatprep.subr.bf16.mxu0 %v4214
    %5319 = vmatpush1.bf16.msra.mxu0 %v4213
    %5320 = vmatprep.subr.bf16.mxu0 %v4230
    %5321 = vmatpush1.bf16.msra.mxu0 %v4229
    %5322 = vmatprep.subr.bf16.mxu0 %v4246
    %5323 = vmatpush1.bf16.msra.mxu0 %v4245
    %5324 = vmatprep.subr.bf16.mxu0 %v4262
    %5325 = vmatpush1.bf16.msra.mxu0 %v4261
    %5326 = vmatprep.mubr.bf16.mxu0 %v3238
    %5327 = vmatmul.mubr.bf16.gmra.mrb[0].mxu0 %v3237
    %v5328 = vpop.f32.mrb[0].mxu0
    %v5329 = vadd.f32 %v5288, %v5328
    %v5330 = vpop.f32.mrb[0].mxu0
    %v5331 = vadd.f32 %v5290, %v5330
    %v5332 = vpop.f32.mrb[0].mxu0
    %v5333 = vpop.f32.mrb[0].mxu0
    %5334 = vdwg.mxu0
    %5335 = vmatprep.subr.bf16.mxu0 %v3256
    %5336 = vmatpush1.bf16.msra.mxu0 %v3255
    %5337 = vmatprep.subr.bf16.mxu0 %v3272
    %5338 = vmatpush1.bf16.msra.mxu0 %v3271
    %5339 = vmatprep.subr.bf16.mxu0 %v3288
    %5340 = vmatpush1.bf16.msra.mxu0 %v3287
    %5341 = vmatprep.subr.bf16.mxu0 %v3304
    %5342 = vmatpush1.bf16.msra.mxu0 %v3303
    %5343 = vmatprep.subr.bf16.mxu0 %v3320
    %5344 = vmatpush1.bf16.msra.mxu0 %v3319
    %5345 = vmatprep.subr.bf16.mxu0 %v3336
    %5346 = vmatpush1.bf16.msra.mxu0 %v3335
    %5347 = vmatprep.subr.bf16.mxu0 %v3352
    %5348 = vmatpush1.bf16.msra.mxu0 %v3351
    %5349 = vmatprep.subr.bf16.mxu0 %v3368
    %5350 = vmatpush1.bf16.msra.mxu0 %v3367
    %5351 = vmatprep.subr.bf16.mxu0 %v3384
    %5352 = vmatpush1.bf16.msra.mxu0 %v3383
    %5353 = vmatprep.subr.bf16.mxu0 %v3400
    %5354 = vmatpush1.bf16.msra.mxu0 %v3399
    %5355 = vmatprep.subr.bf16.mxu0 %v3416
    %5356 = vmatpush1.bf16.msra.mxu0 %v3415
    %5357 = vmatprep.subr.bf16.mxu0 %v3432
    %5358 = vmatpush1.bf16.msra.mxu0 %v3431
    %5359 = vmatprep.subr.bf16.mxu0 %v3448
    %5360 = vmatpush1.bf16.msra.mxu0 %v3447
    %5361 = vmatprep.subr.bf16.mxu0 %v3464
    %5362 = vmatpush1.bf16.msra.mxu0 %v3463
    %5363 = vmatprep.subr.bf16.mxu0 %v3480
    %5364 = vmatpush1.bf16.msra.mxu0 %v3479
    %5365 = vmatprep.subr.bf16.mxu0 %v3496
    %5366 = vmatpush1.bf16.msra.mxu0 %v3495
    %5367 = vmatprep.mubr.bf16.mxu0 %v3232
    %5368 = vmatmul.mubr.bf16.gmra.mrb[0].mxu0 %v3231
    %v5369 = vpop.f32.mrb[0].mxu0
    %v5370 = vadd.f32 %v4322, %v5369
    %v5371 = vpop.f32.mrb[0].mxu0
    %v5372 = vadd.f32 %v4326, %v5371
    %v5373 = vpop.f32.mrb[0].mxu0
    %v5374 = vpop.f32.mrb[0].mxu0
    %5375 = vdwg.mxu0
    %5376 = vmatprep.subr.bf16.mxu0 %v3512
    %5377 = vmatpush1.bf16.msra.mxu0 %v3511
    %5378 = vmatprep.subr.bf16.mxu0 %v3528
    %5379 = vmatpush1.bf16.msra.mxu0 %v3527
    %5380 = vmatprep.subr.bf16.mxu0 %v3544
    %5381 = vmatpush1.bf16.msra.mxu0 %v3543
    %5382 = vmatprep.subr.bf16.mxu0 %v3560
    %5383 = vmatpush1.bf16.msra.mxu0 %v3559
    %5384 = vmatprep.subr.bf16.mxu0 %v3576
    %5385 = vmatpush1.bf16.msra.mxu0 %v3575
    %5386 = vmatprep.subr.bf16.mxu0 %v3592
    %5387 = vmatpush1.bf16.msra.mxu0 %v3591
    %5388 = vmatprep.subr.bf16.mxu0 %v3608
    %5389 = vmatpush1.bf16.msra.mxu0 %v3607
    %5390 = vmatprep.subr.bf16.mxu0 %v3624
    %5391 = vmatpush1.bf16.msra.mxu0 %v3623
    %5392 = vmatprep.subr.bf16.mxu0 %v3640
    %5393 = vmatpush1.bf16.msra.mxu0 %v3639
    %5394 = vmatprep.subr.bf16.mxu0 %v3656
    %5395 = vmatpush1.bf16.msra.mxu0 %v3655
    %5396 = vmatprep.subr.bf16.mxu0 %v3672
    %5397 = vmatpush1.bf16.msra.mxu0 %v3671
    %5398 = vmatprep.subr.bf16.mxu0 %v3688
    %5399 = vmatpush1.bf16.msra.mxu0 %v3687
    %5400 = vmatprep.subr.bf16.mxu0 %v3704
    %5401 = vmatpush1.bf16.msra.mxu0 %v3703
    %5402 = vmatprep.subr.bf16.mxu0 %v3720
    %5403 = vmatpush1.bf16.msra.mxu0 %v3719
    %5404 = vmatprep.subr.bf16.mxu0 %v3736
    %5405 = vmatpush1.bf16.msra.mxu0 %v3735
    %5406 = vmatprep.subr.bf16.mxu0 %v3752
    %5407 = vmatpush1.bf16.msra.mxu0 %v3751
    %5408 = vmatprep.mubr.bf16.mxu0 %v3234
    %5409 = vmatmul.mubr.bf16.gmra.mrb[0].mxu0 %v3233
    %v5410 = vpop.f32.mrb[0].mxu0
    %v5411 = vadd.f32 %v5370, %v5410
    %v5412 = vpop.f32.mrb[0].mxu0
    %v5413 = vadd.f32 %v5372, %v5412
    %v5414 = vpop.f32.mrb[0].mxu0
    %v5415 = vpop.f32.mrb[0].mxu0
    %5416 = vdwg.mxu0
    %5417 = vmatprep.subr.bf16.mxu0 %v3768
    %5418 = vmatpush1.bf16.msra.mxu0 %v3767
    %5419 = vmatprep.subr.bf16.mxu0 %v3784
    %5420 = vmatpush1.bf16.msra.mxu0 %v3783
    %5421 = vmatprep.subr.bf16.mxu0 %v3800
    %5422 = vmatpush1.bf16.msra.mxu0 %v3799
    %5423 = vmatprep.subr.bf16.mxu0 %v3816
    %5424 = vmatpush1.bf16.msra.mxu0 %v3815
    %5425 = vmatprep.subr.bf16.mxu0 %v3832
    %5426 = vmatpush1.bf16.msra.mxu0 %v3831
    %5427 = vmatprep.subr.bf16.mxu0 %v3848
    %5428 = vmatpush1.bf16.msra.mxu0 %v3847
    %5429 = vmatprep.subr.bf16.mxu0 %v3864
    %5430 = vmatpush1.bf16.msra.mxu0 %v3863
    %5431 = vmatprep.subr.bf16.mxu0 %v3880
    %5432 = vmatpush1.bf16.msra.mxu0 %v3879
    %5433 = vmatprep.subr.bf16.mxu0 %v3896
    %5434 = vmatpush1.bf16.msra.mxu0 %v3895
    %5435 = vmatprep.subr.bf16.mxu0 %v3912
    %5436 = vmatpush1.bf16.msra.mxu0 %v3911
    %5437 = vmatprep.subr.bf16.mxu0 %v3928
    %5438 = vmatpush1.bf16.msra.mxu0 %v3927
    %5439 = vmatprep.subr.bf16.mxu0 %v3944
    %5440 = vmatpush1.bf16.msra.mxu0 %v3943
    %5441 = vmatprep.subr.bf16.mxu0 %v3960
    %5442 = vmatpush1.bf16.msra.mxu0 %v3959
    %5443 = vmatprep.subr.bf16.mxu0 %v3976
    %5444 = vmatpush1.bf16.msra.mxu0 %v3975
    %5445 = vmatprep.subr.bf16.mxu0 %v3992
    %5446 = vmatpush1.bf16.msra.mxu0 %v3991
    %5447 = vmatprep.subr.bf16.mxu0 %v4008
    %5448 = vmatpush1.bf16.msra.mxu0 %v4007
    %5449 = vmatprep.mubr.bf16.mxu0 %v3236
    %5450 = vmatmul.mubr.bf16.gmra.mrb[0].mxu0 %v3235
    %v5451 = vpop.f32.mrb[0].mxu0
    %v5452 = vadd.f32 %v5411, %v5451
    %v5453 = vpop.f32.mrb[0].mxu0
    %v5454 = vadd.f32 %v5413, %v5453
    %v5455 = vpop.f32.mrb[0].mxu0
    %v5456 = vpop.f32.mrb[0].mxu0
    %5457 = vdwg.mxu0
    %5458 = vmatprep.subr.bf16.mxu0 %v4024
    %5459 = vmatpush1.bf16.msra.mxu0 %v4023
    %5460 = vmatprep.subr.bf16.mxu0 %v4040
    %5461 = vmatpush1.bf16.msra.mxu0 %v4039
    %5462 = vmatprep.subr.bf16.mxu0 %v4056
    %5463 = vmatpush1.bf16.msra.mxu0 %v4055
    %5464 = vmatprep.subr.bf16.mxu0 %v4072
    %5465 = vmatpush1.bf16.msra.mxu0 %v4071
    %5466 = vmatprep.subr.bf16.mxu0 %v4088
    %5467 = vmatpush1.bf16.msra.mxu0 %v4087
    %5468 = vmatprep.subr.bf16.mxu0 %v4104
    %5469 = vmatpush1.bf16.msra.mxu0 %v4103
    %5470 = vmatprep.subr.bf16.mxu0 %v4120
    %5471 = vmatpush1.bf16.msra.mxu0 %v4119
    %5472 = vmatprep.subr.bf16.mxu0 %v4136
    %5473 = vmatpush1.bf16.msra.mxu0 %v4135
    %5474 = vmatprep.subr.bf16.mxu0 %v4152
    %5475 = vmatpush1.bf16.msra.mxu0 %v4151
    %5476 = vmatprep.subr.bf16.mxu0 %v4168
    %5477 = vmatpush1.bf16.msra.mxu0 %v4167
    %5478 = vmatprep.subr.bf16.mxu0 %v4184
    %5479 = vmatpush1.bf16.msra.mxu0 %v4183
    %5480 = vmatprep.subr.bf16.mxu0 %v4200
    %5481 = vmatpush1.bf16.msra.mxu0 %v4199
    %5482 = vmatprep.subr.bf16.mxu0 %v4216
    %5483 = vmatpush1.bf16.msra.mxu0 %v4215
    %5484 = vmatprep.subr.bf16.mxu0 %v4232
    %5485 = vmatpush1.bf16.msra.mxu0 %v4231
    %5486 = vmatprep.subr.bf16.mxu0 %v4248
    %5487 = vmatpush1.bf16.msra.mxu0 %v4247
    %5488 = vmatprep.subr.bf16.mxu0 %v4264
    %5489 = vmatpush1.bf16.msra.mxu0 %v4263
    %5490 = vmatprep.mubr.bf16.mxu0 %v3238
    %5491 = vmatmul.mubr.bf16.gmra.mrb[0].mxu0 %v3237
    %v5492 = vpop.f32.mrb[0].mxu0
    %v5493 = vadd.f32 %v5452, %v5492
    %v5494 = vpop.f32.mrb[0].mxu0
    %v5495 = vadd.f32 %v5454, %v5494
    %v5496 = vpop.f32.mrb[0].mxu0
    %v5497 = vpop.f32.mrb[0].mxu0
    %5498 = vdwg.mxu0
    %5499 = vmatprep.subr.bf16.mxu0 %v3258
    %5500 = vmatpush1.bf16.msra.mxu0 %v3257
    %5501 = vmatprep.subr.bf16.mxu0 %v3274
    %5502 = vmatpush1.bf16.msra.mxu0 %v3273
    %5503 = vmatprep.subr.bf16.mxu0 %v3290
    %5504 = vmatpush1.bf16.msra.mxu0 %v3289
    %5505 = vmatprep.subr.bf16.mxu0 %v3306
    %5506 = vmatpush1.bf16.msra.mxu0 %v3305
    %5507 = vmatprep.subr.bf16.mxu0 %v3322
    %5508 = vmatpush1.bf16.msra.mxu0 %v3321
    %5509 = vmatprep.subr.bf16.mxu0 %v3338
    %5510 = vmatpush1.bf16.msra.mxu0 %v3337
    %5511 = vmatprep.subr.bf16.mxu0 %v3354
    %5512 = vmatpush1.bf16.msra.mxu0 %v3353
    %5513 = vmatprep.subr.bf16.mxu0 %v3370
    %5514 = vmatpush1.bf16.msra.mxu0 %v3369
    %5515 = vmatprep.subr.bf16.mxu0 %v3386
    %5516 = vmatpush1.bf16.msra.mxu0 %v3385
    %5517 = vmatprep.subr.bf16.mxu0 %v3402
    %5518 = vmatpush1.bf16.msra.mxu0 %v3401
    %5519 = vmatprep.subr.bf16.mxu0 %v3418
    %5520 = vmatpush1.bf16.msra.mxu0 %v3417
    %5521 = vmatprep.subr.bf16.mxu0 %v3434
    %5522 = vmatpush1.bf16.msra.mxu0 %v3433
    %5523 = vmatprep.subr.bf16.mxu0 %v3450
    %5524 = vmatpush1.bf16.msra.mxu0 %v3449
    %5525 = vmatprep.subr.bf16.mxu0 %v3466
    %5526 = vmatpush1.bf16.msra.mxu0 %v3465
    %5527 = vmatprep.subr.bf16.mxu0 %v3482
    %5528 = vmatpush1.bf16.msra.mxu0 %v3481
    %5529 = vmatprep.subr.bf16.mxu0 %v3498
    %5530 = vmatpush1.bf16.msra.mxu0 %v3497
    %5531 = vmatprep.mubr.bf16.mxu0 %v3232
    %5532 = vmatmul.mubr.bf16.gmra.mrb[0].mxu0 %v3231
    %v5533 = vpop.f32.mrb[0].mxu0
    %v5534 = vadd.f32 %v4330, %v5533
    %v5535 = vpop.f32.mrb[0].mxu0
    %v5536 = vadd.f32 %v4334, %v5535
    %v5537 = vpop.f32.mrb[0].mxu0
    %v5538 = vpop.f32.mrb[0].mxu0
    %5539 = vdwg.mxu0
    %5540 = vmatprep.subr.bf16.mxu0 %v3514
    %5541 = vmatpush1.bf16.msra.mxu0 %v3513
    %5542 = vmatprep.subr.bf16.mxu0 %v3530
    %5543 = vmatpush1.bf16.msra.mxu0 %v3529
    %5544 = vmatprep.subr.bf16.mxu0 %v3546
    %5545 = vmatpush1.bf16.msra.mxu0 %v3545
    %5546 = vmatprep.subr.bf16.mxu0 %v3562
    %5547 = vmatpush1.bf16.msra.mxu0 %v3561
    %5548 = vmatprep.subr.bf16.mxu0 %v3578
    %5549 = vmatpush1.bf16.msra.mxu0 %v3577
    %5550 = vmatprep.subr.bf16.mxu0 %v3594
    %5551 = vmatpush1.bf16.msra.mxu0 %v3593
    %5552 = vmatprep.subr.bf16.mxu0 %v3610
    %5553 = vmatpush1.bf16.msra.mxu0 %v3609
    %5554 = vmatprep.subr.bf16.mxu0 %v3626
    %5555 = vmatpush1.bf16.msra.mxu0 %v3625
    %5556 = vmatprep.subr.bf16.mxu0 %v3642
    %5557 = vmatpush1.bf16.msra.mxu0 %v3641
    %5558 = vmatprep.subr.bf16.mxu0 %v3658
    %5559 = vmatpush1.bf16.msra.mxu0 %v3657
    %5560 = vmatprep.subr.bf16.mxu0 %v3674
    %5561 = vmatpush1.bf16.msra.mxu0 %v3673
    %5562 = vmatprep.subr.bf16.mxu0 %v3690
    %5563 = vmatpush1.bf16.msra.mxu0 %v3689
    %5564 = vmatprep.subr.bf16.mxu0 %v3706
    %5565 = vmatpush1.bf16.msra.mxu0 %v3705
    %5566 = vmatprep.subr.bf16.mxu0 %v3722
    %5567 = vmatpush1.bf16.msra.mxu0 %v3721
    %5568 = vmatprep.subr.bf16.mxu0 %v3738
    %5569 = vmatpush1.bf16.msra.mxu0 %v3737
    %5570 = vmatprep.subr.bf16.mxu0 %v3754
    %5571 = vmatpush1.bf16.msra.mxu0 %v3753
    %5572 = vmatprep.mubr.bf16.mxu0 %v3234
    %5573 = vmatmul.mubr.bf16.gmra.mrb[0].mxu0 %v3233
    %v5574 = vpop.f32.mrb[0].mxu0
    %v5575 = vadd.f32 %v5534, %v5574
    %v5576 = vpop.f32.mrb[0].mxu0
    %v5577 = vadd.f32 %v5536, %v5576
    %v5578 = vpop.f32.mrb[0].mxu0
    %v5579 = vpop.f32.mrb[0].mxu0
    %5580 = vdwg.mxu0
    %5581 = vmatprep.subr.bf16.mxu0 %v3770
    %5582 = vmatpush1.bf16.msra.mxu0 %v3769
    %5583 = vmatprep.subr.bf16.mxu0 %v3786
    %5584 = vmatpush1.bf16.msra.mxu0 %v3785
    %5585 = vmatprep.subr.bf16.mxu0 %v3802
    %5586 = vmatpush1.bf16.msra.mxu0 %v3801
    %5587 = vmatprep.subr.bf16.mxu0 %v3818
    %5588 = vmatpush1.bf16.msra.mxu0 %v3817
    %5589 = vmatprep.subr.bf16.mxu0 %v3834
    %5590 = vmatpush1.bf16.msra.mxu0 %v3833
    %5591 = vmatprep.subr.bf16.mxu0 %v3850
    %5592 = vmatpush1.bf16.msra.mxu0 %v3849
    %5593 = vmatprep.subr.bf16.mxu0 %v3866
    %5594 = vmatpush1.bf16.msra.mxu0 %v3865
    %5595 = vmatprep.subr.bf16.mxu0 %v3882
    %5596 = vmatpush1.bf16.msra.mxu0 %v3881
    %5597 = vmatprep.subr.bf16.mxu0 %v3898
    %5598 = vmatpush1.bf16.msra.mxu0 %v3897
    %5599 = vmatprep.subr.bf16.mxu0 %v3914
    %5600 = vmatpush1.bf16.msra.mxu0 %v3913
    %5601 = vmatprep.subr.bf16.mxu0 %v3930
    %5602 = vmatpush1.bf16.msra.mxu0 %v3929
    %5603 = vmatprep.subr.bf16.mxu0 %v3946
    %5604 = vmatpush1.bf16.msra.mxu0 %v3945
    %5605 = vmatprep.subr.bf16.mxu0 %v3962
    %5606 = vmatpush1.bf16.msra.mxu0 %v3961
    %5607 = vmatprep.subr.bf16.mxu0 %v3978
    %5608 = vmatpush1.bf16.msra.mxu0 %v3977
    %5609 = vmatprep.subr.bf16.mxu0 %v3994
    %5610 = vmatpush1.bf16.msra.mxu0 %v3993
    %5611 = vmatprep.subr.bf16.mxu0 %v4010
    %5612 = vmatpush1.bf16.msra.mxu0 %v4009
    %5613 = vmatprep.mubr.bf16.mxu0 %v3236
    %5614 = vmatmul.mubr.bf16.gmra.mrb[0].mxu0 %v3235
    %v5615 = vpop.f32.mrb[0].mxu0
    %v5616 = vadd.f32 %v5575, %v5615
    %v5617 = vpop.f32.mrb[0].mxu0
    %v5618 = vadd.f32 %v5577, %v5617
    %v5619 = vpop.f32.mrb[0].mxu0
    %v5620 = vpop.f32.mrb[0].mxu0
    %5621 = vdwg.mxu0
    %5622 = vmatprep.subr.bf16.mxu0 %v4026
    %5623 = vmatpush1.bf16.msra.mxu0 %v4025
    %5624 = vmatprep.subr.bf16.mxu0 %v4042
    %5625 = vmatpush1.bf16.msra.mxu0 %v4041
    %5626 = vmatprep.subr.bf16.mxu0 %v4058
    %5627 = vmatpush1.bf16.msra.mxu0 %v4057
    %5628 = vmatprep.subr.bf16.mxu0 %v4074
    %5629 = vmatpush1.bf16.msra.mxu0 %v4073
    %5630 = vmatprep.subr.bf16.mxu0 %v4090
    %5631 = vmatpush1.bf16.msra.mxu0 %v4089
    %5632 = vmatprep.subr.bf16.mxu0 %v4106
    %5633 = vmatpush1.bf16.msra.mxu0 %v4105
    %5634 = vmatprep.subr.bf16.mxu0 %v4122
    %5635 = vmatpush1.bf16.msra.mxu0 %v4121
    %5636 = vmatprep.subr.bf16.mxu0 %v4138
    %5637 = vmatpush1.bf16.msra.mxu0 %v4137
    %5638 = vmatprep.subr.bf16.mxu0 %v4154
    %5639 = vmatpush1.bf16.msra.mxu0 %v4153
    %5640 = vmatprep.subr.bf16.mxu0 %v4170
    %5641 = vmatpush1.bf16.msra.mxu0 %v4169
    %5642 = vmatprep.subr.bf16.mxu0 %v4186
    %5643 = vmatpush1.bf16.msra.mxu0 %v4185
    %5644 = vmatprep.subr.bf16.mxu0 %v4202
    %5645 = vmatpush1.bf16.msra.mxu0 %v4201
    %5646 = vmatprep.subr.bf16.mxu0 %v4218
    %5647 = vmatpush1.bf16.msra.mxu0 %v4217
    %5648 = vmatprep.subr.bf16.mxu0 %v4234
    %5649 = vmatpush1.bf16.msra.mxu0 %v4233
    %5650 = vmatprep.subr.bf16.mxu0 %v4250
    %5651 = vmatpush1.bf16.msra.mxu0 %v4249
    %5652 = vmatprep.subr.bf16.mxu0 %v4266
    %5653 = vmatpush1.bf16.msra.mxu0 %v4265
    %5654 = vmatprep.mubr.bf16.mxu0 %v3238
    %5655 = vmatmul.mubr.bf16.gmra.mrb[0].mxu0 %v3237
    %v5656 = vpop.f32.mrb[0].mxu0
    %v5657 = vadd.f32 %v5616, %v5656
    %v5658 = vpop.f32.mrb[0].mxu0
    %v5659 = vadd.f32 %v5618, %v5658
    %v5660 = vpop.f32.mrb[0].mxu0
    %v5661 = vpop.f32.mrb[0].mxu0
    %5662 = vdwg.mxu0
    %v5663 = vmax.f32 %v4509, 0.0
    %v5664 = vmax.f32 %v4511, 0.0
    %v5665 = vmax.f32 %v4673, 0.0
    %v5666 = vmax.f32 %v4675, 0.0
    %v5667 = vmax.f32 %v4837, 0.0
    %v5668 = vmax.f32 %v4839, 0.0
    %v5669 = vmax.f32 %v5001, 0.0
    %v5670 = vmax.f32 %v5003, 0.0
    %v5671 = vmax.f32 %v5165, 0.0
    %v5672 = vmax.f32 %v5167, 0.0
    %v5673 = vmax.f32 %v5329, 0.0
    %v5674 = vmax.f32 %v5331, 0.0
    %v5675 = vmax.f32 %v5493, 0.0
    %v5676 = vmax.f32 %v5495, 0.0
    %v5677 = vmax.f32 %v5657, 0.0
    %v5678 = vmax.f32 %v5659, 0.0
    %v5679 = vpack.c.bf16 %v5663, %v5663
    %v5680 = vpack.c.bf16 %v5664, %v5664
    %v5681 = vpack.c.bf16 %v5665, %v5665
    %v5682 = vpack.c.bf16 %v5666, %v5666
    %v5683 = vpack.c.bf16 %v5667, %v5667
    %v5684 = vpack.c.bf16 %v5668, %v5668
    %v5685 = vpack.c.bf16 %v5669, %v5669
    %v5686 = vpack.c.bf16 %v5670, %v5670
    %v5687 = vpack.c.bf16 %v5671, %v5671
    %v5688 = vpack.c.bf16 %v5672, %v5672
    %v5689 = vpack.c.bf16 %v5673, %v5673
    %v5690 = vpack.c.bf16 %v5674, %v5674
    %v5691 = vpack.c.bf16 %v5675, %v5675
    %v5692 = vpack.c.bf16 %v5676, %v5676
    %v5693 = vpack.c.bf16 %v5677, %v5677
    %v5694 = vpack.c.bf16 %v5678, %v5678
    %s5695 = smul.u32 %s841, 4
    %s5696 = sshll.u32 %s5695, 4
    %5697 = dma.done %s193, %s5696
    %v5698 = vld [vmem:[#allocation5] sm:$0xff]
    %v5699 = vld [vmem:[#allocation5 + $0x8] sm:$0xff]
    %v5700 = vld [vmem:[#allocation5 + $0x10] sm:$0xff]
    %v5701 = vld [vmem:[#allocation5 + $0x18] sm:$0xff]
    %v5702 = vld [vmem:[#allocation5 + $0x20] sm:$0xff]
    %v5703 = vld [vmem:[#allocation5 + $0x28] sm:$0xff]
    %v5704 = vld [vmem:[#allocation5 + $0x30] sm:$0xff]
    %v5705 = vld [vmem:[#allocation5 + $0x38] sm:$0xff]
    %v5706 = vld [vmem:[#allocation5 + $0x40] sm:$0xff]
    %v5707 = vld [vmem:[#allocation5 + $0x48] sm:$0xff]
    %v5708 = vld [vmem:[#allocation5 + $0x50] sm:$0xff]
    %v5709 = vld [vmem:[#allocation5 + $0x58] sm:$0xff]
    %v5710 = vld [vmem:[#allocation5 + $0x60] sm:$0xff]
    %v5711 = vld [vmem:[#allocation5 + $0x68] sm:$0xff]
    %v5712 = vld [vmem:[#allocation5 + $0x70] sm:$0xff]
    %v5713 = vld [vmem:[#allocation5 + $0x78] sm:$0xff]
    %v5714 = vld [vmem:[#allocation5 + $0x80] sm:$0xff]
    %v5715 = vld [vmem:[#allocation5 + $0x88] sm:$0xff]
    %v5716 = vld [vmem:[#allocation5 + $0x90] sm:$0xff]
    %v5717 = vld [vmem:[#allocation5 + $0x98] sm:$0xff]
    %v5718 = vld [vmem:[#allocation5 + $0xa0] sm:$0xff]
    %v5719 = vld [vmem:[#allocation5 + $0xa8] sm:$0xff]
    %v5720 = vld [vmem:[#allocation5 + $0xb0] sm:$0xff]
    %v5721 = vld [vmem:[#allocation5 + $0xb8] sm:$0xff]
    %v5722 = vld [vmem:[#allocation5 + $0xc0] sm:$0xff]
    %v5723 = vld [vmem:[#allocation5 + $0xc8] sm:$0xff]
    %v5724 = vld [vmem:[#allocation5 + $0xd0] sm:$0xff]
    %v5725 = vld [vmem:[#allocation5 + $0xd8] sm:$0xff]
    %v5726 = vld [vmem:[#allocation5 + $0xe0] sm:$0xff]
    %v5727 = vld [vmem:[#allocation5 + $0xe8] sm:$0xff]
    %v5728 = vld [vmem:[#allocation5 + $0xf0] sm:$0xff]
    %v5729 = vld [vmem:[#allocation5 + $0xf8] sm:$0xff]
    %v5730 = vld [vmem:[#allocation5 + $0x100] sm:$0xff]
    %v5731 = vld [vmem:[#allocation5 + $0x108] sm:$0xff]
    %v5732 = vld [vmem:[#allocation5 + $0x110] sm:$0xff]
    %v5733 = vld [vmem:[#allocation5 + $0x118] sm:$0xff]
    %v5734 = vld [vmem:[#allocation5 + $0x120] sm:$0xff]
    %v5735 = vld [vmem:[#allocation5 + $0x128] sm:$0xff]
    %v5736 = vld [vmem:[#allocation5 + $0x130] sm:$0xff]
    %v5737 = vld [vmem:[#allocation5 + $0x138] sm:$0xff]
    %v5738 = vld [vmem:[#allocation5 + $0x140] sm:$0xff]
    %v5739 = vld [vmem:[#allocation5 + $0x148] sm:$0xff]
    %v5740 = vld [vmem:[#allocation5 + $0x150] sm:$0xff]
    %v5741 = vld [vmem:[#allocation5 + $0x158] sm:$0xff]
    %v5742 = vld [vmem:[#allocation5 + $0x160] sm:$0xff]
    %v5743 = vld [vmem:[#allocation5 + $0x168] sm:$0xff]
    %v5744 = vld [vmem:[#allocation5 + $0x170] sm:$0xff]
    %v5745 = vld [vmem:[#allocation5 + $0x178] sm:$0xff]
    %v5746 = vld [vmem:[#allocation5 + $0x180] sm:$0xff]
    %v5747 = vld [vmem:[#allocation5 + $0x188] sm:$0xff]
    %v5748 = vld [vmem:[#allocation5 + $0x190] sm:$0xff]
    %v5749 = vld [vmem:[#allocation5 + $0x198] sm:$0xff]
    %v5750 = vld [vmem:[#allocation5 + $0x1a0] sm:$0xff]
    %v5751 = vld [vmem:[#allocation5 + $0x1a8] sm:$0xff]
    %v5752 = vld [vmem:[#allocation5 + $0x1b0] sm:$0xff]
    %v5753 = vld [vmem:[#allocation5 + $0x1b8] sm:$0xff]
    %v5754 = vld [vmem:[#allocation5 + $0x1c0] sm:$0xff]
    %v5755 = vld [vmem:[#allocation5 + $0x1c8] sm:$0xff]
    %v5756 = vld [vmem:[#allocation5 + $0x1d0] sm:$0xff]
    %v5757 = vld [vmem:[#allocation5 + $0x1d8] sm:$0xff]
    %v5758 = vld [vmem:[#allocation5 + $0x1e0] sm:$0xff]
    %v5759 = vld [vmem:[#allocation5 + $0x1e8] sm:$0xff]
    %v5760 = vld [vmem:[#allocation5 + $0x1f0] sm:$0xff]
    %v5761 = vld [vmem:[#allocation5 + $0x1f8] sm:$0xff]
    %v5762 = vld [vmem:[#allocation5 + $0x200] sm:$0xff]
    %v5763 = vld [vmem:[#allocation5 + $0x208] sm:$0xff]
    %v5764 = vld [vmem:[#allocation5 + $0x210] sm:$0xff]
    %v5765 = vld [vmem:[#allocation5 + $0x218] sm:$0xff]
    %v5766 = vld [vmem:[#allocation5 + $0x220] sm:$0xff]
    %v5767 = vld [vmem:[#allocation5 + $0x228] sm:$0xff]
    %v5768 = vld [vmem:[#allocation5 + $0x230] sm:$0xff]
    %v5769 = vld [vmem:[#allocation5 + $0x238] sm:$0xff]
    %v5770 = vld [vmem:[#allocation5 + $0x240] sm:$0xff]
    %v5771 = vld [vmem:[#allocation5 + $0x248] sm:$0xff]
    %v5772 = vld [vmem:[#allocation5 + $0x250] sm:$0xff]
    %v5773 = vld [vmem:[#allocation5 + $0x258] sm:$0xff]
    %v5774 = vld [vmem:[#allocation5 + $0x260] sm:$0xff]
    %v5775 = vld [vmem:[#allocation5 + $0x268] sm:$0xff]
    %v5776 = vld [vmem:[#allocation5 + $0x270] sm:$0xff]
    %v5777 = vld [vmem:[#allocation5 + $0x278] sm:$0xff]
    %v5778 = vld [vmem:[#allocation5 + $0x280] sm:$0xff]
    %v5779 = vld [vmem:[#allocation5 + $0x288] sm:$0xff]
    %v5780 = vld [vmem:[#allocation5 + $0x290] sm:$0xff]
    %v5781 = vld [vmem:[#allocation5 + $0x298] sm:$0xff]
    %v5782 = vld [vmem:[#allocation5 + $0x2a0] sm:$0xff]
    %v5783 = vld [vmem:[#allocation5 + $0x2a8] sm:$0xff]
    %v5784 = vld [vmem:[#allocation5 + $0x2b0] sm:$0xff]
    %v5785 = vld [vmem:[#allocation5 + $0x2b8] sm:$0xff]
    %v5786 = vld [vmem:[#allocation5 + $0x2c0] sm:$0xff]
    %v5787 = vld [vmem:[#allocation5 + $0x2c8] sm:$0xff]
    %v5788 = vld [vmem:[#allocation5 + $0x2d0] sm:$0xff]
    %v5789 = vld [vmem:[#allocation5 + $0x2d8] sm:$0xff]
    %v5790 = vld [vmem:[#allocation5 + $0x2e0] sm:$0xff]
    %v5791 = vld [vmem:[#allocation5 + $0x2e8] sm:$0xff]
    %v5792 = vld [vmem:[#allocation5 + $0x2f0] sm:$0xff]
    %v5793 = vld [vmem:[#allocation5 + $0x2f8] sm:$0xff]
    %v5794 = vld [vmem:[#allocation5 + $0x300] sm:$0xff]
    %v5795 = vld [vmem:[#allocation5 + $0x308] sm:$0xff]
    %v5796 = vld [vmem:[#allocation5 + $0x310] sm:$0xff]
    %v5797 = vld [vmem:[#allocation5 + $0x318] sm:$0xff]
    %v5798 = vld [vmem:[#allocation5 + $0x320] sm:$0xff]
    %v5799 = vld [vmem:[#allocation5 + $0x328] sm:$0xff]
    %v5800 = vld [vmem:[#allocation5 + $0x330] sm:$0xff]
    %v5801 = vld [vmem:[#allocation5 + $0x338] sm:$0xff]
    %v5802 = vld [vmem:[#allocation5 + $0x340] sm:$0xff]
    %v5803 = vld [vmem:[#allocation5 + $0x348] sm:$0xff]
    %v5804 = vld [vmem:[#allocation5 + $0x350] sm:$0xff]
    %v5805 = vld [vmem:[#allocation5 + $0x358] sm:$0xff]
    %v5806 = vld [vmem:[#allocation5 + $0x360] sm:$0xff]
    %v5807 = vld [vmem:[#allocation5 + $0x368] sm:$0xff]
    %v5808 = vld [vmem:[#allocation5 + $0x370] sm:$0xff]
    %v5809 = vld [vmem:[#allocation5 + $0x378] sm:$0xff]
    %v5810 = vld [vmem:[#allocation5 + $0x380] sm:$0xff]
    %v5811 = vld [vmem:[#allocation5 + $0x388] sm:$0xff]
    %v5812 = vld [vmem:[#allocation5 + $0x390] sm:$0xff]
    %v5813 = vld [vmem:[#allocation5 + $0x398] sm:$0xff]
    %v5814 = vld [vmem:[#allocation5 + $0x3a0] sm:$0xff]
    %v5815 = vld [vmem:[#allocation5 + $0x3a8] sm:$0xff]
    %v5816 = vld [vmem:[#allocation5 + $0x3b0] sm:$0xff]
    %v5817 = vld [vmem:[#allocation5 + $0x3b8] sm:$0xff]
    %v5818 = vld [vmem:[#allocation5 + $0x3c0] sm:$0xff]
    %v5819 = vld [vmem:[#allocation5 + $0x3c8] sm:$0xff]
    %v5820 = vld [vmem:[#allocation5 + $0x3d0] sm:$0xff]
    %v5821 = vld [vmem:[#allocation5 + $0x3d8] sm:$0xff]
    %v5822 = vld [vmem:[#allocation5 + $0x3e0] sm:$0xff]
    %v5823 = vld [vmem:[#allocation5 + $0x3e8] sm:$0xff]
    %v5824 = vld [vmem:[#allocation5 + $0x3f0] sm:$0xff]
    %v5825 = vld [vmem:[#allocation5 + $0x3f8] sm:$0xff]
    %v5826 = vld [vmem:[#allocation5 + $0x400] sm:$0xff]
    %v5827 = vld [vmem:[#allocation5 + $0x408] sm:$0xff]
    %v5828 = vld [vmem:[#allocation5 + $0x410] sm:$0xff]
    %v5829 = vld [vmem:[#allocation5 + $0x418] sm:$0xff]
    %v5830 = vld [vmem:[#allocation5 + $0x420] sm:$0xff]
    %v5831 = vld [vmem:[#allocation5 + $0x428] sm:$0xff]
    %v5832 = vld [vmem:[#allocation5 + $0x430] sm:$0xff]
    %v5833 = vld [vmem:[#allocation5 + $0x438] sm:$0xff]
    %v5834 = vld [vmem:[#allocation5 + $0x440] sm:$0xff]
    %v5835 = vld [vmem:[#allocation5 + $0x448] sm:$0xff]
    %v5836 = vld [vmem:[#allocation5 + $0x450] sm:$0xff]
    %v5837 = vld [vmem:[#allocation5 + $0x458] sm:$0xff]
    %v5838 = vld [vmem:[#allocation5 + $0x460] sm:$0xff]
    %v5839 = vld [vmem:[#allocation5 + $0x468] sm:$0xff]
    %v5840 = vld [vmem:[#allocation5 + $0x470] sm:$0xff]
    %v5841 = vld [vmem:[#allocation5 + $0x478] sm:$0xff]
    %v5842 = vld [vmem:[#allocation5 + $0x480] sm:$0xff]
    %v5843 = vld [vmem:[#allocation5 + $0x488] sm:$0xff]
    %v5844 = vld [vmem:[#allocation5 + $0x490] sm:$0xff]
    %v5845 = vld [vmem:[#allocation5 + $0x498] sm:$0xff]
    %v5846 = vld [vmem:[#allocation5 + $0x4a0] sm:$0xff]
    %v5847 = vld [vmem:[#allocation5 + $0x4a8] sm:$0xff]
    %v5848 = vld [vmem:[#allocation5 + $0x4b0] sm:$0xff]
    %v5849 = vld [vmem:[#allocation5 + $0x4b8] sm:$0xff]
    %v5850 = vld [vmem:[#allocation5 + $0x4c0] sm:$0xff]
    %v5851 = vld [vmem:[#allocation5 + $0x4c8] sm:$0xff]
    %v5852 = vld [vmem:[#allocation5 + $0x4d0] sm:$0xff]
    %v5853 = vld [vmem:[#allocation5 + $0x4d8] sm:$0xff]
    %v5854 = vld [vmem:[#allocation5 + $0x4e0] sm:$0xff]
    %v5855 = vld [vmem:[#allocation5 + $0x4e8] sm:$0xff]
    %v5856 = vld [vmem:[#allocation5 + $0x4f0] sm:$0xff]
    %v5857 = vld [vmem:[#allocation5 + $0x4f8] sm:$0xff]
    %v5858 = vld [vmem:[#allocation5 + $0x500] sm:$0xff]
    %v5859 = vld [vmem:[#allocation5 + $0x508] sm:$0xff]
    %v5860 = vld [vmem:[#allocation5 + $0x510] sm:$0xff]
    %v5861 = vld [vmem:[#allocation5 + $0x518] sm:$0xff]
    %v5862 = vld [vmem:[#allocation5 + $0x520] sm:$0xff]
    %v5863 = vld [vmem:[#allocation5 + $0x528] sm:$0xff]
    %v5864 = vld [vmem:[#allocation5 + $0x530] sm:$0xff]
    %v5865 = vld [vmem:[#allocation5 + $0x538] sm:$0xff]
    %v5866 = vld [vmem:[#allocation5 + $0x540] sm:$0xff]
    %v5867 = vld [vmem:[#allocation5 + $0x548] sm:$0xff]
    %v5868 = vld [vmem:[#allocation5 + $0x550] sm:$0xff]
    %v5869 = vld [vmem:[#allocation5 + $0x558] sm:$0xff]
    %v5870 = vld [vmem:[#allocation5 + $0x560] sm:$0xff]
    %v5871 = vld [vmem:[#allocation5 + $0x568] sm:$0xff]
    %v5872 = vld [vmem:[#allocation5 + $0x570] sm:$0xff]
    %v5873 = vld [vmem:[#allocation5 + $0x578] sm:$0xff]
    %v5874 = vld [vmem:[#allocation5 + $0x580] sm:$0xff]
    %v5875 = vld [vmem:[#allocation5 + $0x588] sm:$0xff]
    %v5876 = vld [vmem:[#allocation5 + $0x590] sm:$0xff]
    %v5877 = vld [vmem:[#allocation5 + $0x598] sm:$0xff]
    %v5878 = vld [vmem:[#allocation5 + $0x5a0] sm:$0xff]
    %v5879 = vld [vmem:[#allocation5 + $0x5a8] sm:$0xff]
    %v5880 = vld [vmem:[#allocation5 + $0x5b0] sm:$0xff]
    %v5881 = vld [vmem:[#allocation5 + $0x5b8] sm:$0xff]
    %v5882 = vld [vmem:[#allocation5 + $0x5c0] sm:$0xff]
    %v5883 = vld [vmem:[#allocation5 + $0x5c8] sm:$0xff]
    %v5884 = vld [vmem:[#allocation5 + $0x5d0] sm:$0xff]
    %v5885 = vld [vmem:[#allocation5 + $0x5d8] sm:$0xff]
    %v5886 = vld [vmem:[#allocation5 + $0x5e0] sm:$0xff]
    %v5887 = vld [vmem:[#allocation5 + $0x5e8] sm:$0xff]
    %v5888 = vld [vmem:[#allocation5 + $0x5f0] sm:$0xff]
    %v5889 = vld [vmem:[#allocation5 + $0x5f8] sm:$0xff]
    %v5890 = vld [vmem:[#allocation5 + $0x600] sm:$0xff]
    %v5891 = vld [vmem:[#allocation5 + $0x608] sm:$0xff]
    %v5892 = vld [vmem:[#allocation5 + $0x610] sm:$0xff]
    %v5893 = vld [vmem:[#allocation5 + $0x618] sm:$0xff]
    %v5894 = vld [vmem:[#allocation5 + $0x620] sm:$0xff]
    %v5895 = vld [vmem:[#allocation5 + $0x628] sm:$0xff]
    %v5896 = vld [vmem:[#allocation5 + $0x630] sm:$0xff]
    %v5897 = vld [vmem:[#allocation5 + $0x638] sm:$0xff]
    %v5898 = vld [vmem:[#allocation5 + $0x640] sm:$0xff]
    %v5899 = vld [vmem:[#allocation5 + $0x648] sm:$0xff]
    %v5900 = vld [vmem:[#allocation5 + $0x650] sm:$0xff]
    %v5901 = vld [vmem:[#allocation5 + $0x658] sm:$0xff]
    %v5902 = vld [vmem:[#allocation5 + $0x660] sm:$0xff]
    %v5903 = vld [vmem:[#allocation5 + $0x668] sm:$0xff]
    %v5904 = vld [vmem:[#allocation5 + $0x670] sm:$0xff]
    %v5905 = vld [vmem:[#allocation5 + $0x678] sm:$0xff]
    %v5906 = vld [vmem:[#allocation5 + $0x680] sm:$0xff]
    %v5907 = vld [vmem:[#allocation5 + $0x688] sm:$0xff]
    %v5908 = vld [vmem:[#allocation5 + $0x690] sm:$0xff]
    %v5909 = vld [vmem:[#allocation5 + $0x698] sm:$0xff]
    %v5910 = vld [vmem:[#allocation5 + $0x6a0] sm:$0xff]
    %v5911 = vld [vmem:[#allocation5 + $0x6a8] sm:$0xff]
    %v5912 = vld [vmem:[#allocation5 + $0x6b0] sm:$0xff]
    %v5913 = vld [vmem:[#allocation5 + $0x6b8] sm:$0xff]
    %v5914 = vld [vmem:[#allocation5 + $0x6c0] sm:$0xff]
    %v5915 = vld [vmem:[#allocation5 + $0x6c8] sm:$0xff]
    %v5916 = vld [vmem:[#allocation5 + $0x6d0] sm:$0xff]
    %v5917 = vld [vmem:[#allocation5 + $0x6d8] sm:$0xff]
    %v5918 = vld [vmem:[#allocation5 + $0x6e0] sm:$0xff]
    %v5919 = vld [vmem:[#allocation5 + $0x6e8] sm:$0xff]
    %v5920 = vld [vmem:[#allocation5 + $0x6f0] sm:$0xff]
    %v5921 = vld [vmem:[#allocation5 + $0x6f8] sm:$0xff]
    %v5922 = vld [vmem:[#allocation5 + $0x700] sm:$0xff]
    %v5923 = vld [vmem:[#allocation5 + $0x708] sm:$0xff]
    %v5924 = vld [vmem:[#allocation5 + $0x710] sm:$0xff]
    %v5925 = vld [vmem:[#allocation5 + $0x718] sm:$0xff]
    %v5926 = vld [vmem:[#allocation5 + $0x720] sm:$0xff]
    %v5927 = vld [vmem:[#allocation5 + $0x728] sm:$0xff]
    %v5928 = vld [vmem:[#allocation5 + $0x730] sm:$0xff]
    %v5929 = vld [vmem:[#allocation5 + $0x738] sm:$0xff]
    %v5930 = vld [vmem:[#allocation5 + $0x740] sm:$0xff]
    %v5931 = vld [vmem:[#allocation5 + $0x748] sm:$0xff]
    %v5932 = vld [vmem:[#allocation5 + $0x750] sm:$0xff]
    %v5933 = vld [vmem:[#allocation5 + $0x758] sm:$0xff]
    %v5934 = vld [vmem:[#allocation5 + $0x760] sm:$0xff]
    %v5935 = vld [vmem:[#allocation5 + $0x768] sm:$0xff]
    %v5936 = vld [vmem:[#allocation5 + $0x770] sm:$0xff]
    %v5937 = vld [vmem:[#allocation5 + $0x778] sm:$0xff]
    %v5938 = vld [vmem:[#allocation5 + $0x780] sm:$0xff]
    %v5939 = vld [vmem:[#allocation5 + $0x788] sm:$0xff]
    %v5940 = vld [vmem:[#allocation5 + $0x790] sm:$0xff]
    %v5941 = vld [vmem:[#allocation5 + $0x798] sm:$0xff]
    %v5942 = vld [vmem:[#allocation5 + $0x7a0] sm:$0xff]
    %v5943 = vld [vmem:[#allocation5 + $0x7a8] sm:$0xff]
    %v5944 = vld [vmem:[#allocation5 + $0x7b0] sm:$0xff]
    %v5945 = vld [vmem:[#allocation5 + $0x7b8] sm:$0xff]
    %v5946 = vld [vmem:[#allocation5 + $0x7c0] sm:$0xff]
    %v5947 = vld [vmem:[#allocation5 + $0x7c8] sm:$0xff]
    %v5948 = vld [vmem:[#allocation5 + $0x7d0] sm:$0xff]
    %v5949 = vld [vmem:[#allocation5 + $0x7d8] sm:$0xff]
    %v5950 = vld [vmem:[#allocation5 + $0x7e0] sm:$0xff]
    %v5951 = vld [vmem:[#allocation5 + $0x7e8] sm:$0xff]
    %v5952 = vld [vmem:[#allocation5 + $0x7f0] sm:$0xff]
    %v5953 = vld [vmem:[#allocation5 + $0x7f8] sm:$0xff]
    %v5954 = vld [vmem:[#allocation5 + $0x800] sm:$0xff]
    %v5955 = vld [vmem:[#allocation5 + $0x808] sm:$0xff]
    %v5956 = vld [vmem:[#allocation5 + $0x810] sm:$0xff]
    %v5957 = vld [vmem:[#allocation5 + $0x818] sm:$0xff]
    %v5958 = vld [vmem:[#allocation5 + $0x820] sm:$0xff]
    %v5959 = vld [vmem:[#allocation5 + $0x828] sm:$0xff]
    %v5960 = vld [vmem:[#allocation5 + $0x830] sm:$0xff]
    %v5961 = vld [vmem:[#allocation5 + $0x838] sm:$0xff]
    %v5962 = vld [vmem:[#allocation5 + $0x840] sm:$0xff]
    %v5963 = vld [vmem:[#allocation5 + $0x848] sm:$0xff]
    %v5964 = vld [vmem:[#allocation5 + $0x850] sm:$0xff]
    %v5965 = vld [vmem:[#allocation5 + $0x858] sm:$0xff]
    %v5966 = vld [vmem:[#allocation5 + $0x860] sm:$0xff]
    %v5967 = vld [vmem:[#allocation5 + $0x868] sm:$0xff]
    %v5968 = vld [vmem:[#allocation5 + $0x870] sm:$0xff]
    %v5969 = vld [vmem:[#allocation5 + $0x878] sm:$0xff]
    %v5970 = vld [vmem:[#allocation5 + $0x880] sm:$0xff]
    %v5971 = vld [vmem:[#allocation5 + $0x888] sm:$0xff]
    %v5972 = vld [vmem:[#allocation5 + $0x890] sm:$0xff]
    %v5973 = vld [vmem:[#allocation5 + $0x898] sm:$0xff]
    %v5974 = vld [vmem:[#allocation5 + $0x8a0] sm:$0xff]
    %v5975 = vld [vmem:[#allocation5 + $0x8a8] sm:$0xff]
    %v5976 = vld [vmem:[#allocation5 + $0x8b0] sm:$0xff]
    %v5977 = vld [vmem:[#allocation5 + $0x8b8] sm:$0xff]
    %v5978 = vld [vmem:[#allocation5 + $0x8c0] sm:$0xff]
    %v5979 = vld [vmem:[#allocation5 + $0x8c8] sm:$0xff]
    %v5980 = vld [vmem:[#allocation5 + $0x8d0] sm:$0xff]
    %v5981 = vld [vmem:[#allocation5 + $0x8d8] sm:$0xff]
    %v5982 = vld [vmem:[#allocation5 + $0x8e0] sm:$0xff]
    %v5983 = vld [vmem:[#allocation5 + $0x8e8] sm:$0xff]
    %v5984 = vld [vmem:[#allocation5 + $0x8f0] sm:$0xff]
    %v5985 = vld [vmem:[#allocation5 + $0x8f8] sm:$0xff]
    %v5986 = vld [vmem:[#allocation5 + $0x900] sm:$0xff]
    %v5987 = vld [vmem:[#allocation5 + $0x908] sm:$0xff]
    %v5988 = vld [vmem:[#allocation5 + $0x910] sm:$0xff]
    %v5989 = vld [vmem:[#allocation5 + $0x918] sm:$0xff]
    %v5990 = vld [vmem:[#allocation5 + $0x920] sm:$0xff]
    %v5991 = vld [vmem:[#allocation5 + $0x928] sm:$0xff]
    %v5992 = vld [vmem:[#allocation5 + $0x930] sm:$0xff]
    %v5993 = vld [vmem:[#allocation5 + $0x938] sm:$0xff]
    %v5994 = vld [vmem:[#allocation5 + $0x940] sm:$0xff]
    %v5995 = vld [vmem:[#allocation5 + $0x948] sm:$0xff]
    %v5996 = vld [vmem:[#allocation5 + $0x950] sm:$0xff]
    %v5997 = vld [vmem:[#allocation5 + $0x958] sm:$0xff]
    %v5998 = vld [vmem:[#allocation5 + $0x960] sm:$0xff]
    %v5999 = vld [vmem:[#allocation5 + $0x968] sm:$0xff]
    %v6000 = vld [vmem:[#allocation5 + $0x970] sm:$0xff]
    %v6001 = vld [vmem:[#allocation5 + $0x978] sm:$0xff]
    %v6002 = vld [vmem:[#allocation5 + $0x980] sm:$0xff]
    %v6003 = vld [vmem:[#allocation5 + $0x988] sm:$0xff]
    %v6004 = vld [vmem:[#allocation5 + $0x990] sm:$0xff]
    %v6005 = vld [vmem:[#allocation5 + $0x998] sm:$0xff]
    %v6006 = vld [vmem:[#allocation5 + $0x9a0] sm:$0xff]
    %v6007 = vld [vmem:[#allocation5 + $0x9a8] sm:$0xff]
    %v6008 = vld [vmem:[#allocation5 + $0x9b0] sm:$0xff]
    %v6009 = vld [vmem:[#allocation5 + $0x9b8] sm:$0xff]
    %v6010 = vld [vmem:[#allocation5 + $0x9c0] sm:$0xff]
    %v6011 = vld [vmem:[#allocation5 + $0x9c8] sm:$0xff]
    %v6012 = vld [vmem:[#allocation5 + $0x9d0] sm:$0xff]
    %v6013 = vld [vmem:[#allocation5 + $0x9d8] sm:$0xff]
    %v6014 = vld [vmem:[#allocation5 + $0x9e0] sm:$0xff]
    %v6015 = vld [vmem:[#allocation5 + $0x9e8] sm:$0xff]
    %v6016 = vld [vmem:[#allocation5 + $0x9f0] sm:$0xff]
    %v6017 = vld [vmem:[#allocation5 + $0x9f8] sm:$0xff]
    %v6018 = vld [vmem:[#allocation5 + $0xa00] sm:$0xff]
    %v6019 = vld [vmem:[#allocation5 + $0xa08] sm:$0xff]
    %v6020 = vld [vmem:[#allocation5 + $0xa10] sm:$0xff]
    %v6021 = vld [vmem:[#allocation5 + $0xa18] sm:$0xff]
    %v6022 = vld [vmem:[#allocation5 + $0xa20] sm:$0xff]
    %v6023 = vld [vmem:[#allocation5 + $0xa28] sm:$0xff]
    %v6024 = vld [vmem:[#allocation5 + $0xa30] sm:$0xff]
    %v6025 = vld [vmem:[#allocation5 + $0xa38] sm:$0xff]
    %v6026 = vld [vmem:[#allocation5 + $0xa40] sm:$0xff]
    %v6027 = vld [vmem:[#allocation5 + $0xa48] sm:$0xff]
    %v6028 = vld [vmem:[#allocation5 + $0xa50] sm:$0xff]
    %v6029 = vld [vmem:[#allocation5 + $0xa58] sm:$0xff]
    %v6030 = vld [vmem:[#allocation5 + $0xa60] sm:$0xff]
    %v6031 = vld [vmem:[#allocation5 + $0xa68] sm:$0xff]
    %v6032 = vld [vmem:[#allocation5 + $0xa70] sm:$0xff]
    %v6033 = vld [vmem:[#allocation5 + $0xa78] sm:$0xff]
    %v6034 = vld [vmem:[#allocation5 + $0xa80] sm:$0xff]
    %v6035 = vld [vmem:[#allocation5 + $0xa88] sm:$0xff]
    %v6036 = vld [vmem:[#allocation5 + $0xa90] sm:$0xff]
    %v6037 = vld [vmem:[#allocation5 + $0xa98] sm:$0xff]
    %v6038 = vld [vmem:[#allocation5 + $0xaa0] sm:$0xff]
    %v6039 = vld [vmem:[#allocation5 + $0xaa8] sm:$0xff]
    %v6040 = vld [vmem:[#allocation5 + $0xab0] sm:$0xff]
    %v6041 = vld [vmem:[#allocation5 + $0xab8] sm:$0xff]
    %v6042 = vld [vmem:[#allocation5 + $0xac0] sm:$0xff]
    %v6043 = vld [vmem:[#allocation5 + $0xac8] sm:$0xff]
    %v6044 = vld [vmem:[#allocation5 + $0xad0] sm:$0xff]
    %v6045 = vld [vmem:[#allocation5 + $0xad8] sm:$0xff]
    %v6046 = vld [vmem:[#allocation5 + $0xae0] sm:$0xff]
    %v6047 = vld [vmem:[#allocation5 + $0xae8] sm:$0xff]
    %v6048 = vld [vmem:[#allocation5 + $0xaf0] sm:$0xff]
    %v6049 = vld [vmem:[#allocation5 + $0xaf8] sm:$0xff]
    %v6050 = vld [vmem:[#allocation5 + $0xb00] sm:$0xff]
    %v6051 = vld [vmem:[#allocation5 + $0xb08] sm:$0xff]
    %v6052 = vld [vmem:[#allocation5 + $0xb10] sm:$0xff]
    %v6053 = vld [vmem:[#allocation5 + $0xb18] sm:$0xff]
    %v6054 = vld [vmem:[#allocation5 + $0xb20] sm:$0xff]
    %v6055 = vld [vmem:[#allocation5 + $0xb28] sm:$0xff]
    %v6056 = vld [vmem:[#allocation5 + $0xb30] sm:$0xff]
    %v6057 = vld [vmem:[#allocation5 + $0xb38] sm:$0xff]
    %v6058 = vld [vmem:[#allocation5 + $0xb40] sm:$0xff]
    %v6059 = vld [vmem:[#allocation5 + $0xb48] sm:$0xff]
    %v6060 = vld [vmem:[#allocation5 + $0xb50] sm:$0xff]
    %v6061 = vld [vmem:[#allocation5 + $0xb58] sm:$0xff]
    %v6062 = vld [vmem:[#allocation5 + $0xb60] sm:$0xff]
    %v6063 = vld [vmem:[#allocation5 + $0xb68] sm:$0xff]
    %v6064 = vld [vmem:[#allocation5 + $0xb70] sm:$0xff]
    %v6065 = vld [vmem:[#allocation5 + $0xb78] sm:$0xff]
    %v6066 = vld [vmem:[#allocation5 + $0xb80] sm:$0xff]
    %v6067 = vld [vmem:[#allocation5 + $0xb88] sm:$0xff]
    %v6068 = vld [vmem:[#allocation5 + $0xb90] sm:$0xff]
    %v6069 = vld [vmem:[#allocation5 + $0xb98] sm:$0xff]
    %v6070 = vld [vmem:[#allocation5 + $0xba0] sm:$0xff]
    %v6071 = vld [vmem:[#allocation5 + $0xba8] sm:$0xff]
    %v6072 = vld [vmem:[#allocation5 + $0xbb0] sm:$0xff]
    %v6073 = vld [vmem:[#allocation5 + $0xbb8] sm:$0xff]
    %v6074 = vld [vmem:[#allocation5 + $0xbc0] sm:$0xff]
    %v6075 = vld [vmem:[#allocation5 + $0xbc8] sm:$0xff]
    %v6076 = vld [vmem:[#allocation5 + $0xbd0] sm:$0xff]
    %v6077 = vld [vmem:[#allocation5 + $0xbd8] sm:$0xff]
    %v6078 = vld [vmem:[#allocation5 + $0xbe0] sm:$0xff]
    %v6079 = vld [vmem:[#allocation5 + $0xbe8] sm:$0xff]
    %v6080 = vld [vmem:[#allocation5 + $0xbf0] sm:$0xff]
    %v6081 = vld [vmem:[#allocation5 + $0xbf8] sm:$0xff]
    %v6082 = vld [vmem:[#allocation5 + $0xc00] sm:$0xff]
    %v6083 = vld [vmem:[#allocation5 + $0xc08] sm:$0xff]
    %v6084 = vld [vmem:[#allocation5 + $0xc10] sm:$0xff]
    %v6085 = vld [vmem:[#allocation5 + $0xc18] sm:$0xff]
    %v6086 = vld [vmem:[#allocation5 + $0xc20] sm:$0xff]
    %v6087 = vld [vmem:[#allocation5 + $0xc28] sm:$0xff]
    %v6088 = vld [vmem:[#allocation5 + $0xc30] sm:$0xff]
    %v6089 = vld [vmem:[#allocation5 + $0xc38] sm:$0xff]
    %v6090 = vld [vmem:[#allocation5 + $0xc40] sm:$0xff]
    %v6091 = vld [vmem:[#allocation5 + $0xc48] sm:$0xff]
    %v6092 = vld [vmem:[#allocation5 + $0xc50] sm:$0xff]
    %v6093 = vld [vmem:[#allocation5 + $0xc58] sm:$0xff]
    %v6094 = vld [vmem:[#allocation5 + $0xc60] sm:$0xff]
    %v6095 = vld [vmem:[#allocation5 + $0xc68] sm:$0xff]
    %v6096 = vld [vmem:[#allocation5 + $0xc70] sm:$0xff]
    %v6097 = vld [vmem:[#allocation5 + $0xc78] sm:$0xff]
    %v6098 = vld [vmem:[#allocation5 + $0xc80] sm:$0xff]
    %v6099 = vld [vmem:[#allocation5 + $0xc88] sm:$0xff]
    %v6100 = vld [vmem:[#allocation5 + $0xc90] sm:$0xff]
    %v6101 = vld [vmem:[#allocation5 + $0xc98] sm:$0xff]
    %v6102 = vld [vmem:[#allocation5 + $0xca0] sm:$0xff]
    %v6103 = vld [vmem:[#allocation5 + $0xca8] sm:$0xff]
    %v6104 = vld [vmem:[#allocation5 + $0xcb0] sm:$0xff]
    %v6105 = vld [vmem:[#allocation5 + $0xcb8] sm:$0xff]
    %v6106 = vld [vmem:[#allocation5 + $0xcc0] sm:$0xff]
    %v6107 = vld [vmem:[#allocation5 + $0xcc8] sm:$0xff]
    %v6108 = vld [vmem:[#allocation5 + $0xcd0] sm:$0xff]
    %v6109 = vld [vmem:[#allocation5 + $0xcd8] sm:$0xff]
    %v6110 = vld [vmem:[#allocation5 + $0xce0] sm:$0xff]
    %v6111 = vld [vmem:[#allocation5 + $0xce8] sm:$0xff]
    %v6112 = vld [vmem:[#allocation5 + $0xcf0] sm:$0xff]
    %v6113 = vld [vmem:[#allocation5 + $0xcf8] sm:$0xff]
    %v6114 = vld [vmem:[#allocation5 + $0xd00] sm:$0xff]
    %v6115 = vld [vmem:[#allocation5 + $0xd08] sm:$0xff]
    %v6116 = vld [vmem:[#allocation5 + $0xd10] sm:$0xff]
    %v6117 = vld [vmem:[#allocation5 + $0xd18] sm:$0xff]
    %v6118 = vld [vmem:[#allocation5 + $0xd20] sm:$0xff]
    %v6119 = vld [vmem:[#allocation5 + $0xd28] sm:$0xff]
    %v6120 = vld [vmem:[#allocation5 + $0xd30] sm:$0xff]
    %v6121 = vld [vmem:[#allocation5 + $0xd38] sm:$0xff]
    %v6122 = vld [vmem:[#allocation5 + $0xd40] sm:$0xff]
    %v6123 = vld [vmem:[#allocation5 + $0xd48] sm:$0xff]
    %v6124 = vld [vmem:[#allocation5 + $0xd50] sm:$0xff]
    %v6125 = vld [vmem:[#allocation5 + $0xd58] sm:$0xff]
    %v6126 = vld [vmem:[#allocation5 + $0xd60] sm:$0xff]
    %v6127 = vld [vmem:[#allocation5 + $0xd68] sm:$0xff]
    %v6128 = vld [vmem:[#allocation5 + $0xd70] sm:$0xff]
    %v6129 = vld [vmem:[#allocation5 + $0xd78] sm:$0xff]
    %v6130 = vld [vmem:[#allocation5 + $0xd80] sm:$0xff]
    %v6131 = vld [vmem:[#allocation5 + $0xd88] sm:$0xff]
    %v6132 = vld [vmem:[#allocation5 + $0xd90] sm:$0xff]
    %v6133 = vld [vmem:[#allocation5 + $0xd98] sm:$0xff]
    %v6134 = vld [vmem:[#allocation5 + $0xda0] sm:$0xff]
    %v6135 = vld [vmem:[#allocation5 + $0xda8] sm:$0xff]
    %v6136 = vld [vmem:[#allocation5 + $0xdb0] sm:$0xff]
    %v6137 = vld [vmem:[#allocation5 + $0xdb8] sm:$0xff]
    %v6138 = vld [vmem:[#allocation5 + $0xdc0] sm:$0xff]
    %v6139 = vld [vmem:[#allocation5 + $0xdc8] sm:$0xff]
    %v6140 = vld [vmem:[#allocation5 + $0xdd0] sm:$0xff]
    %v6141 = vld [vmem:[#allocation5 + $0xdd8] sm:$0xff]
    %v6142 = vld [vmem:[#allocation5 + $0xde0] sm:$0xff]
    %v6143 = vld [vmem:[#allocation5 + $0xde8] sm:$0xff]
    %v6144 = vld [vmem:[#allocation5 + $0xdf0] sm:$0xff]
    %v6145 = vld [vmem:[#allocation5 + $0xdf8] sm:$0xff]
    %v6146 = vld [vmem:[#allocation5 + $0xe00] sm:$0xff]
    %v6147 = vld [vmem:[#allocation5 + $0xe08] sm:$0xff]
    %v6148 = vld [vmem:[#allocation5 + $0xe10] sm:$0xff]
    %v6149 = vld [vmem:[#allocation5 + $0xe18] sm:$0xff]
    %v6150 = vld [vmem:[#allocation5 + $0xe20] sm:$0xff]
    %v6151 = vld [vmem:[#allocation5 + $0xe28] sm:$0xff]
    %v6152 = vld [vmem:[#allocation5 + $0xe30] sm:$0xff]
    %v6153 = vld [vmem:[#allocation5 + $0xe38] sm:$0xff]
    %v6154 = vld [vmem:[#allocation5 + $0xe40] sm:$0xff]
    %v6155 = vld [vmem:[#allocation5 + $0xe48] sm:$0xff]
    %v6156 = vld [vmem:[#allocation5 + $0xe50] sm:$0xff]
    %v6157 = vld [vmem:[#allocation5 + $0xe58] sm:$0xff]
    %v6158 = vld [vmem:[#allocation5 + $0xe60] sm:$0xff]
    %v6159 = vld [vmem:[#allocation5 + $0xe68] sm:$0xff]
    %v6160 = vld [vmem:[#allocation5 + $0xe70] sm:$0xff]
    %v6161 = vld [vmem:[#allocation5 + $0xe78] sm:$0xff]
    %v6162 = vld [vmem:[#allocation5 + $0xe80] sm:$0xff]
    %v6163 = vld [vmem:[#allocation5 + $0xe88] sm:$0xff]
    %v6164 = vld [vmem:[#allocation5 + $0xe90] sm:$0xff]
    %v6165 = vld [vmem:[#allocation5 + $0xe98] sm:$0xff]
    %v6166 = vld [vmem:[#allocation5 + $0xea0] sm:$0xff]
    %v6167 = vld [vmem:[#allocation5 + $0xea8] sm:$0xff]
    %v6168 = vld [vmem:[#allocation5 + $0xeb0] sm:$0xff]
    %v6169 = vld [vmem:[#allocation5 + $0xeb8] sm:$0xff]
    %v6170 = vld [vmem:[#allocation5 + $0xec0] sm:$0xff]
    %v6171 = vld [vmem:[#allocation5 + $0xec8] sm:$0xff]
    %v6172 = vld [vmem:[#allocation5 + $0xed0] sm:$0xff]
    %v6173 = vld [vmem:[#allocation5 + $0xed8] sm:$0xff]
    %v6174 = vld [vmem:[#allocation5 + $0xee0] sm:$0xff]
    %v6175 = vld [vmem:[#allocation5 + $0xee8] sm:$0xff]
    %v6176 = vld [vmem:[#allocation5 + $0xef0] sm:$0xff]
    %v6177 = vld [vmem:[#allocation5 + $0xef8] sm:$0xff]
    %v6178 = vld [vmem:[#allocation5 + $0xf00] sm:$0xff]
    %v6179 = vld [vmem:[#allocation5 + $0xf08] sm:$0xff]
    %v6180 = vld [vmem:[#allocation5 + $0xf10] sm:$0xff]
    %v6181 = vld [vmem:[#allocation5 + $0xf18] sm:$0xff]
    %v6182 = vld [vmem:[#allocation5 + $0xf20] sm:$0xff]
    %v6183 = vld [vmem:[#allocation5 + $0xf28] sm:$0xff]
    %v6184 = vld [vmem:[#allocation5 + $0xf30] sm:$0xff]
    %v6185 = vld [vmem:[#allocation5 + $0xf38] sm:$0xff]
    %v6186 = vld [vmem:[#allocation5 + $0xf40] sm:$0xff]
    %v6187 = vld [vmem:[#allocation5 + $0xf48] sm:$0xff]
    %v6188 = vld [vmem:[#allocation5 + $0xf50] sm:$0xff]
    %v6189 = vld [vmem:[#allocation5 + $0xf58] sm:$0xff]
    %v6190 = vld [vmem:[#allocation5 + $0xf60] sm:$0xff]
    %v6191 = vld [vmem:[#allocation5 + $0xf68] sm:$0xff]
    %v6192 = vld [vmem:[#allocation5 + $0xf70] sm:$0xff]
    %v6193 = vld [vmem:[#allocation5 + $0xf78] sm:$0xff]
    %v6194 = vld [vmem:[#allocation5 + $0xf80] sm:$0xff]
    %v6195 = vld [vmem:[#allocation5 + $0xf88] sm:$0xff]
    %v6196 = vld [vmem:[#allocation5 + $0xf90] sm:$0xff]
    %v6197 = vld [vmem:[#allocation5 + $0xf98] sm:$0xff]
    %v6198 = vld [vmem:[#allocation5 + $0xfa0] sm:$0xff]
    %v6199 = vld [vmem:[#allocation5 + $0xfa8] sm:$0xff]
    %v6200 = vld [vmem:[#allocation5 + $0xfb0] sm:$0xff]
    %v6201 = vld [vmem:[#allocation5 + $0xfb8] sm:$0xff]
    %v6202 = vld [vmem:[#allocation5 + $0xfc0] sm:$0xff]
    %v6203 = vld [vmem:[#allocation5 + $0xfc8] sm:$0xff]
    %v6204 = vld [vmem:[#allocation5 + $0xfd0] sm:$0xff]
    %v6205 = vld [vmem:[#allocation5 + $0xfd8] sm:$0xff]
    %v6206 = vld [vmem:[#allocation5 + $0xfe0] sm:$0xff]
    %v6207 = vld [vmem:[#allocation5 + $0xfe8] sm:$0xff]
    %v6208 = vld [vmem:[#allocation5 + $0xff0] sm:$0xff]
    %v6209 = vld [vmem:[#allocation5 + $0xff8] sm:$0xff]
    %v6210 = vld [vmem:[#allocation14] sm:$0xf]
    %v6212 = vlaneseq
    %v6213 = vshrl.u32 %v6212, 7
    %v6214 = vsub.s32 0, %v6213
    %v6215 = vrot.slane %v6210, %v6214
    %v6216 = vlaneseq
    %v6217 = vshrl.u32 %v6216, 7
    %v6218 = vsub.s32 1, %v6217
    %v6219 = vrot.slane %v6210, %v6218
    %v6220 = vlaneseq
    %v6221 = vshrl.u32 %v6220, 7
    %v6222 = vsub.s32 2, %v6221
    %v6223 = vrot.slane %v6210, %v6222
    %v6224 = vlaneseq
    %v6225 = vshrl.u32 %v6224, 7
    %v6226 = vsub.s32 3, %v6225
    %v6227 = vrot.slane %v6210, %v6226
    %6232 = vmatprep.subr.bf16.mxu0 %v5699
    %6233 = vmatpush1.bf16.msra.mxu0 %v5698
    %6234 = vmatprep.subr.bf16.mxu0 %v5703
    %6235 = vmatpush1.bf16.msra.mxu0 %v5702
    %6236 = vmatprep.subr.bf16.mxu0 %v5707
    %6237 = vmatpush1.bf16.msra.mxu0 %v5706
    %6238 = vmatprep.subr.bf16.mxu0 %v5711
    %6239 = vmatpush1.bf16.msra.mxu0 %v5710
    %6240 = vmatprep.subr.bf16.mxu0 %v5715
    %6241 = vmatpush1.bf16.msra.mxu0 %v5714
    %6242 = vmatprep.subr.bf16.mxu0 %v5719
    %6243 = vmatpush1.bf16.msra.mxu0 %v5718
    %6244 = vmatprep.subr.bf16.mxu0 %v5723
    %6245 = vmatpush1.bf16.msra.mxu0 %v5722
    %6246 = vmatprep.subr.bf16.mxu0 %v5727
    %6247 = vmatpush1.bf16.msra.mxu0 %v5726
    %6248 = vmatprep.subr.bf16.mxu0 %v5731
    %6249 = vmatpush1.bf16.msra.mxu0 %v5730
    %6250 = vmatprep.subr.bf16.mxu0 %v5735
    %6251 = vmatpush1.bf16.msra.mxu0 %v5734
    %6252 = vmatprep.subr.bf16.mxu0 %v5739
    %6253 = vmatpush1.bf16.msra.mxu0 %v5738
    %6254 = vmatprep.subr.bf16.mxu0 %v5743
    %6255 = vmatpush1.bf16.msra.mxu0 %v5742
    %6256 = vmatprep.subr.bf16.mxu0 %v5747
    %6257 = vmatpush1.bf16.msra.mxu0 %v5746
    %6258 = vmatprep.subr.bf16.mxu0 %v5751
    %6259 = vmatpush1.bf16.msra.mxu0 %v5750
    %6260 = vmatprep.subr.bf16.mxu0 %v5755
    %6261 = vmatpush1.bf16.msra.mxu0 %v5754
    %6262 = vmatprep.subr.bf16.mxu0 %v5759
    %6263 = vmatpush1.bf16.msra.mxu0 %v5758
    %6264 = vmatprep.mubr.bf16.mxu0 %v5680
    %6265 = vmatmul.mubr.bf16.gmra.mrb[0].mxu0 %v5679
    %v6266 = vpop.f32.mrb[0].mxu0
    %v6267 = vadd.f32 %v6215, %v6266
    %v6268 = vpop.f32.mrb[0].mxu0
    %v6269 = vadd.f32 %v6219, %v6268
    %v6270 = vpop.f32.mrb[0].mxu0
    %v6271 = vpop.f32.mrb[0].mxu0
    %6272 = vdwg.mxu0
    %6273 = vmatprep.subr.bf16.mxu0 %v5763
    %6274 = vmatpush1.bf16.msra.mxu0 %v5762
    %6275 = vmatprep.subr.bf16.mxu0 %v5767
    %6276 = vmatpush1.bf16.msra.mxu0 %v5766
    %6277 = vmatprep.subr.bf16.mxu0 %v5771
    %6278 = vmatpush1.bf16.msra.mxu0 %v5770
    %6279 = vmatprep.subr.bf16.mxu0 %v5775
    %6280 = vmatpush1.bf16.msra.mxu0 %v5774
    %6281 = vmatprep.subr.bf16.mxu0 %v5779
    %6282 = vmatpush1.bf16.msra.mxu0 %v5778
    %6283 = vmatprep.subr.bf16.mxu0 %v5783
    %6284 = vmatpush1.bf16.msra.mxu0 %v5782
    %6285 = vmatprep.subr.bf16.mxu0 %v5787
    %6286 = vmatpush1.bf16.msra.mxu0 %v5786
    %6287 = vmatprep.subr.bf16.mxu0 %v5791
    %6288 = vmatpush1.bf16.msra.mxu0 %v5790
    %6289 = vmatprep.subr.bf16.mxu0 %v5795
    %6290 = vmatpush1.bf16.msra.mxu0 %v5794
    %6291 = vmatprep.subr.bf16.mxu0 %v5799
    %6292 = vmatpush1.bf16.msra.mxu0 %v5798
    %6293 = vmatprep.subr.bf16.mxu0 %v5803
    %6294 = vmatpush1.bf16.msra.mxu0 %v5802
    %6295 = vmatprep.subr.bf16.mxu0 %v5807
    %6296 = vmatpush1.bf16.msra.mxu0 %v5806
    %6297 = vmatprep.subr.bf16.mxu0 %v5811
    %6298 = vmatpush1.bf16.msra.mxu0 %v5810
    %6299 = vmatprep.subr.bf16.mxu0 %v5815
    %6300 = vmatpush1.bf16.msra.mxu0 %v5814
    %6301 = vmatprep.subr.bf16.mxu0 %v5819
    %6302 = vmatpush1.bf16.msra.mxu0 %v5818
    %6303 = vmatprep.subr.bf16.mxu0 %v5823
    %6304 = vmatpush1.bf16.msra.mxu0 %v5822
    %6305 = vmatprep.mubr.bf16.mxu0 %v5682
    %6306 = vmatmul.mubr.bf16.gmra.mrb[0].mxu0 %v5681
    %v6307 = vpop.f32.mrb[0].mxu0
    %v6308 = vadd.f32 %v6267, %v6307
    %v6309 = vpop.f32.mrb[0].mxu0
    %v6310 = vadd.f32 %v6269, %v6309
    %v6311 = vpop.f32.mrb[0].mxu0
    %v6312 = vpop.f32.mrb[0].mxu0
    %6313 = vdwg.mxu0
    %6314 = vmatprep.subr.bf16.mxu0 %v5827
    %6315 = vmatpush1.bf16.msra.mxu0 %v5826
    %6316 = vmatprep.subr.bf16.mxu0 %v5831
    %6317 = vmatpush1.bf16.msra.mxu0 %v5830
    %6318 = vmatprep.subr.bf16.mxu0 %v5835
    %6319 = vmatpush1.bf16.msra.mxu0 %v5834
    %6320 = vmatprep.subr.bf16.mxu0 %v5839
    %6321 = vmatpush1.bf16.msra.mxu0 %v5838
    %6322 = vmatprep.subr.bf16.mxu0 %v5843
    %6323 = vmatpush1.bf16.msra.mxu0 %v5842
    %6324 = vmatprep.subr.bf16.mxu0 %v5847
    %6325 = vmatpush1.bf16.msra.mxu0 %v5846
    %6326 = vmatprep.subr.bf16.mxu0 %v5851
    %6327 = vmatpush1.bf16.msra.mxu0 %v5850
    %6328 = vmatprep.subr.bf16.mxu0 %v5855
    %6329 = vmatpush1.bf16.msra.mxu0 %v5854
    %6330 = vmatprep.subr.bf16.mxu0 %v5859
    %6331 = vmatpush1.bf16.msra.mxu0 %v5858
    %6332 = vmatprep.subr.bf16.mxu0 %v5863
    %6333 = vmatpush1.bf16.msra.mxu0 %v5862
    %6334 = vmatprep.subr.bf16.mxu0 %v5867
    %6335 = vmatpush1.bf16.msra.mxu0 %v5866
    %6336 = vmatprep.subr.bf16.mxu0 %v5871
    %6337 = vmatpush1.bf16.msra.mxu0 %v5870
    %6338 = vmatprep.subr.bf16.mxu0 %v5875
    %6339 = vmatpush1.bf16.msra.mxu0 %v5874
    %6340 = vmatprep.subr.bf16.mxu0 %v5879
    %6341 = vmatpush1.bf16.msra.mxu0 %v5878
    %6342 = vmatprep.subr.bf16.mxu0 %v5883
    %6343 = vmatpush1.bf16.msra.mxu0 %v5882
    %6344 = vmatprep.subr.bf16.mxu0 %v5887
    %6345 = vmatpush1.bf16.msra.mxu0 %v5886
    %6346 = vmatprep.mubr.bf16.mxu0 %v5684
    %6347 = vmatmul.mubr.bf16.gmra.mrb[0].mxu0 %v5683
    %v6348 = vpop.f32.mrb[0].mxu0
    %v6349 = vadd.f32 %v6308, %v6348
    %v6350 = vpop.f32.mrb[0].mxu0
    %v6351 = vadd.f32 %v6310, %v6350
    %v6352 = vpop.f32.mrb[0].mxu0
    %v6353 = vpop.f32.mrb[0].mxu0
    %6354 = vdwg.mxu0
    %6355 = vmatprep.subr.bf16.mxu0 %v5891
    %6356 = vmatpush1.bf16.msra.mxu0 %v5890
    %6357 = vmatprep.subr.bf16.mxu0 %v5895
    %6358 = vmatpush1.bf16.msra.mxu0 %v5894
    %6359 = vmatprep.subr.bf16.mxu0 %v5899
    %6360 = vmatpush1.bf16.msra.mxu0 %v5898
    %6361 = vmatprep.subr.bf16.mxu0 %v5903
    %6362 = vmatpush1.bf16.msra.mxu0 %v5902
    %6363 = vmatprep.subr.bf16.mxu0 %v5907
    %6364 = vmatpush1.bf16.msra.mxu0 %v5906
    %6365 = vmatprep.subr.bf16.mxu0 %v5911
    %6366 = vmatpush1.bf16.msra.mxu0 %v5910
    %6367 = vmatprep.subr.bf16.mxu0 %v5915
    %6368 = vmatpush1.bf16.msra.mxu0 %v5914
    %6369 = vmatprep.subr.bf16.mxu0 %v5919
    %6370 = vmatpush1.bf16.msra.mxu0 %v5918
    %6371 = vmatprep.subr.bf16.mxu0 %v5923
    %6372 = vmatpush1.bf16.msra.mxu0 %v5922
    %6373 = vmatprep.subr.bf16.mxu0 %v5927
    %6374 = vmatpush1.bf16.msra.mxu0 %v5926
    %6375 = vmatprep.subr.bf16.mxu0 %v5931
    %6376 = vmatpush1.bf16.msra.mxu0 %v5930
    %6377 = vmatprep.subr.bf16.mxu0 %v5935
    %6378 = vmatpush1.bf16.msra.mxu0 %v5934
    %6379 = vmatprep.subr.bf16.mxu0 %v5939
    %6380 = vmatpush1.bf16.msra.mxu0 %v5938
    %6381 = vmatprep.subr.bf16.mxu0 %v5943
    %6382 = vmatpush1.bf16.msra.mxu0 %v5942
    %6383 = vmatprep.subr.bf16.mxu0 %v5947
    %6384 = vmatpush1.bf16.msra.mxu0 %v5946
    %6385 = vmatprep.subr.bf16.mxu0 %v5951
    %6386 = vmatpush1.bf16.msra.mxu0 %v5950
    %6387 = vmatprep.mubr.bf16.mxu0 %v5686
    %6388 = vmatmul.mubr.bf16.gmra.mrb[0].mxu0 %v5685
    %v6389 = vpop.f32.mrb[0].mxu0
    %v6390 = vadd.f32 %v6349, %v6389
    %v6391 = vpop.f32.mrb[0].mxu0
    %v6392 = vadd.f32 %v6351, %v6391
    %v6393 = vpop.f32.mrb[0].mxu0
    %v6394 = vpop.f32.mrb[0].mxu0
    %6395 = vdwg.mxu0
    %6396 = vmatprep.subr.bf16.mxu0 %v5955
    %6397 = vmatpush1.bf16.msra.mxu0 %v5954
    %6398 = vmatprep.subr.bf16.mxu0 %v5959
    %6399 = vmatpush1.bf16.msra.mxu0 %v5958
    %6400 = vmatprep.subr.bf16.mxu0 %v5963
    %6401 = vmatpush1.bf16.msra.mxu0 %v5962
    %6402 = vmatprep.subr.bf16.mxu0 %v5967
    %6403 = vmatpush1.bf16.msra.mxu0 %v5966
    %6404 = vmatprep.subr.bf16.mxu0 %v5971
    %6405 = vmatpush1.bf16.msra.mxu0 %v5970
    %6406 = vmatprep.subr.bf16.mxu0 %v5975
    %6407 = vmatpush1.bf16.msra.mxu0 %v5974
    %6408 = vmatprep.subr.bf16.mxu0 %v5979
    %6409 = vmatpush1.bf16.msra.mxu0 %v5978
    %6410 = vmatprep.subr.bf16.mxu0 %v5983
    %6411 = vmatpush1.bf16.msra.mxu0 %v5982
    %6412 = vmatprep.subr.bf16.mxu0 %v5987
    %6413 = vmatpush1.bf16.msra.mxu0 %v5986
    %6414 = vmatprep.subr.bf16.mxu0 %v5991
    %6415 = vmatpush1.bf16.msra.mxu0 %v5990
    %6416 = vmatprep.subr.bf16.mxu0 %v5995
    %6417 = vmatpush1.bf16.msra.mxu0 %v5994
    %6418 = vmatprep.subr.bf16.mxu0 %v5999
    %6419 = vmatpush1.bf16.msra.mxu0 %v5998
    %6420 = vmatprep.subr.bf16.mxu0 %v6003
    %6421 = vmatpush1.bf16.msra.mxu0 %v6002
    %6422 = vmatprep.subr.bf16.mxu0 %v6007
    %6423 = vmatpush1.bf16.msra.mxu0 %v6006
    %6424 = vmatprep.subr.bf16.mxu0 %v6011
    %6425 = vmatpush1.bf16.msra.mxu0 %v6010
    %6426 = vmatprep.subr.bf16.mxu0 %v6015
    %6427 = vmatpush1.bf16.msra.mxu0 %v6014
    %6428 = vmatprep.mubr.bf16.mxu0 %v5688
    %6429 = vmatmul.mubr.bf16.gmra.mrb[0].mxu0 %v5687
    %v6430 = vpop.f32.mrb[0].mxu0
    %v6431 = vadd.f32 %v6390, %v6430
    %v6432 = vpop.f32.mrb[0].mxu0
    %v6433 = vadd.f32 %v6392, %v6432
    %v6434 = vpop.f32.mrb[0].mxu0
    %v6435 = vpop.f32.mrb[0].mxu0
    %6436 = vdwg.mxu0
    %6437 = vmatprep.subr.bf16.mxu0 %v6019
    %6438 = vmatpush1.bf16.msra.mxu0 %v6018
    %6439 = vmatprep.subr.bf16.mxu0 %v6023
    %6440 = vmatpush1.bf16.msra.mxu0 %v6022
    %6441 = vmatprep.subr.bf16.mxu0 %v6027
    %6442 = vmatpush1.bf16.msra.mxu0 %v6026
    %6443 = vmatprep.subr.bf16.mxu0 %v6031
    %6444 = vmatpush1.bf16.msra.mxu0 %v6030
    %6445 = vmatprep.subr.bf16.mxu0 %v6035
    %6446 = vmatpush1.bf16.msra.mxu0 %v6034
    %6447 = vmatprep.subr.bf16.mxu0 %v6039
    %6448 = vmatpush1.bf16.msra.mxu0 %v6038
    %6449 = vmatprep.subr.bf16.mxu0 %v6043
    %6450 = vmatpush1.bf16.msra.mxu0 %v6042
    %6451 = vmatprep.subr.bf16.mxu0 %v6047
    %6452 = vmatpush1.bf16.msra.mxu0 %v6046
    %6453 = vmatprep.subr.bf16.mxu0 %v6051
    %6454 = vmatpush1.bf16.msra.mxu0 %v6050
    %6455 = vmatprep.subr.bf16.mxu0 %v6055
    %6456 = vmatpush1.bf16.msra.mxu0 %v6054
    %6457 = vmatprep.subr.bf16.mxu0 %v6059
    %6458 = vmatpush1.bf16.msra.mxu0 %v6058
    %6459 = vmatprep.subr.bf16.mxu0 %v6063
    %6460 = vmatpush1.bf16.msra.mxu0 %v6062
    %6461 = vmatprep.subr.bf16.mxu0 %v6067
    %6462 = vmatpush1.bf16.msra.mxu0 %v6066
    %6463 = vmatprep.subr.bf16.mxu0 %v6071
    %6464 = vmatpush1.bf16.msra.mxu0 %v6070
    %6465 = vmatprep.subr.bf16.mxu0 %v6075
    %6466 = vmatpush1.bf16.msra.mxu0 %v6074
    %6467 = vmatprep.subr.bf16.mxu0 %v6079
    %6468 = vmatpush1.bf16.msra.mxu0 %v6078
    %6469 = vmatprep.mubr.bf16.mxu0 %v5690
    %6470 = vmatmul.mubr.bf16.gmra.mrb[0].mxu0 %v5689
    %v6471 = vpop.f32.mrb[0].mxu0
    %v6472 = vadd.f32 %v6431, %v6471
    %v6473 = vpop.f32.mrb[0].mxu0
    %v6474 = vadd.f32 %v6433, %v6473
    %v6475 = vpop.f32.mrb[0].mxu0
    %v6476 = vpop.f32.mrb[0].mxu0
    %6477 = vdwg.mxu0
    %6478 = vmatprep.subr.bf16.mxu0 %v6083
    %6479 = vmatpush1.bf16.msra.mxu0 %v6082
    %6480 = vmatprep.subr.bf16.mxu0 %v6087
    %6481 = vmatpush1.bf16.msra.mxu0 %v6086
    %6482 = vmatprep.subr.bf16.mxu0 %v6091
    %6483 = vmatpush1.bf16.msra.mxu0 %v6090
    %6484 = vmatprep.subr.bf16.mxu0 %v6095
    %6485 = vmatpush1.bf16.msra.mxu0 %v6094
    %6486 = vmatprep.subr.bf16.mxu0 %v6099
    %6487 = vmatpush1.bf16.msra.mxu0 %v6098
    %6488 = vmatprep.subr.bf16.mxu0 %v6103
    %6489 = vmatpush1.bf16.msra.mxu0 %v6102
    %6490 = vmatprep.subr.bf16.mxu0 %v6107
    %6491 = vmatpush1.bf16.msra.mxu0 %v6106
    %6492 = vmatprep.subr.bf16.mxu0 %v6111
    %6493 = vmatpush1.bf16.msra.mxu0 %v6110
    %6494 = vmatprep.subr.bf16.mxu0 %v6115
    %6495 = vmatpush1.bf16.msra.mxu0 %v6114
    %6496 = vmatprep.subr.bf16.mxu0 %v6119
    %6497 = vmatpush1.bf16.msra.mxu0 %v6118
    %6498 = vmatprep.subr.bf16.mxu0 %v6123
    %6499 = vmatpush1.bf16.msra.mxu0 %v6122
    %6500 = vmatprep.subr.bf16.mxu0 %v6127
    %6501 = vmatpush1.bf16.msra.mxu0 %v6126
    %6502 = vmatprep.subr.bf16.mxu0 %v6131
    %6503 = vmatpush1.bf16.msra.mxu0 %v6130
    %6504 = vmatprep.subr.bf16.mxu0 %v6135
    %6505 = vmatpush1.bf16.msra.mxu0 %v6134
    %6506 = vmatprep.subr.bf16.mxu0 %v6139
    %6507 = vmatpush1.bf16.msra.mxu0 %v6138
    %6508 = vmatprep.subr.bf16.mxu0 %v6143
    %6509 = vmatpush1.bf16.msra.mxu0 %v6142
    %6510 = vmatprep.mubr.bf16.mxu0 %v5692
    %6511 = vmatmul.mubr.bf16.gmra.mrb[0].mxu0 %v5691
    %v6512 = vpop.f32.mrb[0].mxu0
    %v6513 = vadd.f32 %v6472, %v6512
    %v6514 = vpop.f32.mrb[0].mxu0
    %v6515 = vadd.f32 %v6474, %v6514
    %v6516 = vpop.f32.mrb[0].mxu0
    %v6517 = vpop.f32.mrb[0].mxu0
    %6518 = vdwg.mxu0
    %6519 = vmatprep.subr.bf16.mxu0 %v6147
    %6520 = vmatpush1.bf16.msra.mxu0 %v6146
    %6521 = vmatprep.subr.bf16.mxu0 %v6151
    %6522 = vmatpush1.bf16.msra.mxu0 %v6150
    %6523 = vmatprep.subr.bf16.mxu0 %v6155
    %6524 = vmatpush1.bf16.msra.mxu0 %v6154
    %6525 = vmatprep.subr.bf16.mxu0 %v6159
    %6526 = vmatpush1.bf16.msra.mxu0 %v6158
    %6527 = vmatprep.subr.bf16.mxu0 %v6163
    %6528 = vmatpush1.bf16.msra.mxu0 %v6162
    %6529 = vmatprep.subr.bf16.mxu0 %v6167
    %6530 = vmatpush1.bf16.msra.mxu0 %v6166
    %6531 = vmatprep.subr.bf16.mxu0 %v6171
    %6532 = vmatpush1.bf16.msra.mxu0 %v6170
    %6533 = vmatprep.subr.bf16.mxu0 %v6175
    %6534 = vmatpush1.bf16.msra.mxu0 %v6174
    %6535 = vmatprep.subr.bf16.mxu0 %v6179
    %6536 = vmatpush1.bf16.msra.mxu0 %v6178
    %6537 = vmatprep.subr.bf16.mxu0 %v6183
    %6538 = vmatpush1.bf16.msra.mxu0 %v6182
    %6539 = vmatprep.subr.bf16.mxu0 %v6187
    %6540 = vmatpush1.bf16.msra.mxu0 %v6186
    %6541 = vmatprep.subr.bf16.mxu0 %v6191
    %6542 = vmatpush1.bf16.msra.mxu0 %v6190
    %6543 = vmatprep.subr.bf16.mxu0 %v6195
    %6544 = vmatpush1.bf16.msra.mxu0 %v6194
    %6545 = vmatprep.subr.bf16.mxu0 %v6199
    %6546 = vmatpush1.bf16.msra.mxu0 %v6198
    %6547 = vmatprep.subr.bf16.mxu0 %v6203
    %6548 = vmatpush1.bf16.msra.mxu0 %v6202
    %6549 = vmatprep.subr.bf16.mxu0 %v6207
    %6550 = vmatpush1.bf16.msra.mxu0 %v6206
    %6551 = vmatprep.mubr.bf16.mxu0 %v5694
    %6552 = vmatmul.mubr.bf16.gmra.mrb[0].mxu0 %v5693
    %v6553 = vpop.f32.mrb[0].mxu0
    %v6554 = vadd.f32 %v6513, %v6553
    %v6555 = vpop.f32.mrb[0].mxu0
    %v6556 = vadd.f32 %v6515, %v6555
    %v6557 = vpop.f32.mrb[0].mxu0
    %v6558 = vpop.f32.mrb[0].mxu0
    %6559 = vdwg.mxu0
    %6560 = vmatprep.subr.bf16.mxu0 %v5701
    %6561 = vmatpush1.bf16.msra.mxu0 %v5700
    %6562 = vmatprep.subr.bf16.mxu0 %v5705
    %6563 = vmatpush1.bf16.msra.mxu0 %v5704
    %6564 = vmatprep.subr.bf16.mxu0 %v5709
    %6565 = vmatpush1.bf16.msra.mxu0 %v5708
    %6566 = vmatprep.subr.bf16.mxu0 %v5713
    %6567 = vmatpush1.bf16.msra.mxu0 %v5712
    %6568 = vmatprep.subr.bf16.mxu0 %v5717
    %6569 = vmatpush1.bf16.msra.mxu0 %v5716
    %6570 = vmatprep.subr.bf16.mxu0 %v5721
    %6571 = vmatpush1.bf16.msra.mxu0 %v5720
    %6572 = vmatprep.subr.bf16.mxu0 %v5725
    %6573 = vmatpush1.bf16.msra.mxu0 %v5724
    %6574 = vmatprep.subr.bf16.mxu0 %v5729
    %6575 = vmatpush1.bf16.msra.mxu0 %v5728
    %6576 = vmatprep.subr.bf16.mxu0 %v5733
    %6577 = vmatpush1.bf16.msra.mxu0 %v5732
    %6578 = vmatprep.subr.bf16.mxu0 %v5737
    %6579 = vmatpush1.bf16.msra.mxu0 %v5736
    %6580 = vmatprep.subr.bf16.mxu0 %v5741
    %6581 = vmatpush1.bf16.msra.mxu0 %v5740
    %6582 = vmatprep.subr.bf16.mxu0 %v5745
    %6583 = vmatpush1.bf16.msra.mxu0 %v5744
    %6584 = vmatprep.subr.bf16.mxu0 %v5749
    %6585 = vmatpush1.bf16.msra.mxu0 %v5748
    %6586 = vmatprep.subr.bf16.mxu0 %v5753
    %6587 = vmatpush1.bf16.msra.mxu0 %v5752
    %6588 = vmatprep.subr.bf16.mxu0 %v5757
    %6589 = vmatpush1.bf16.msra.mxu0 %v5756
    %6590 = vmatprep.subr.bf16.mxu0 %v5761
    %6591 = vmatpush1.bf16.msra.mxu0 %v5760
    %6592 = vmatprep.mubr.bf16.mxu0 %v5680
    %6593 = vmatmul.mubr.bf16.gmra.mrb[0].mxu0 %v5679
    %v6594 = vpop.f32.mrb[0].mxu0
    %v6595 = vadd.f32 %v6223, %v6594
    %v6596 = vpop.f32.mrb[0].mxu0
    %v6597 = vadd.f32 %v6227, %v6596
    %v6598 = vpop.f32.mrb[0].mxu0
    %v6599 = vpop.f32.mrb[0].mxu0
    %6600 = vdwg.mxu0
    %6601 = vmatprep.subr.bf16.mxu0 %v5765
    %6602 = vmatpush1.bf16.msra.mxu0 %v5764
    %6603 = vmatprep.subr.bf16.mxu0 %v5769
    %6604 = vmatpush1.bf16.msra.mxu0 %v5768
    %6605 = vmatprep.subr.bf16.mxu0 %v5773
    %6606 = vmatpush1.bf16.msra.mxu0 %v5772
    %6607 = vmatprep.subr.bf16.mxu0 %v5777
    %6608 = vmatpush1.bf16.msra.mxu0 %v5776
    %6609 = vmatprep.subr.bf16.mxu0 %v5781
    %6610 = vmatpush1.bf16.msra.mxu0 %v5780
    %6611 = vmatprep.subr.bf16.mxu0 %v5785
    %6612 = vmatpush1.bf16.msra.mxu0 %v5784
    %6613 = vmatprep.subr.bf16.mxu0 %v5789
    %6614 = vmatpush1.bf16.msra.mxu0 %v5788
    %6615 = vmatprep.subr.bf16.mxu0 %v5793
    %6616 = vmatpush1.bf16.msra.mxu0 %v5792
    %6617 = vmatprep.subr.bf16.mxu0 %v5797
    %6618 = vmatpush1.bf16.msra.mxu0 %v5796
    %6619 = vmatprep.subr.bf16.mxu0 %v5801
    %6620 = vmatpush1.bf16.msra.mxu0 %v5800
    %6621 = vmatprep.subr.bf16.mxu0 %v5805
    %6622 = vmatpush1.bf16.msra.mxu0 %v5804
    %6623 = vmatprep.subr.bf16.mxu0 %v5809
    %6624 = vmatpush1.bf16.msra.mxu0 %v5808
    %6625 = vmatprep.subr.bf16.mxu0 %v5813
    %6626 = vmatpush1.bf16.msra.mxu0 %v5812
    %6627 = vmatprep.subr.bf16.mxu0 %v5817
    %6628 = vmatpush1.bf16.msra.mxu0 %v5816
    %6629 = vmatprep.subr.bf16.mxu0 %v5821
    %6630 = vmatpush1.bf16.msra.mxu0 %v5820
    %6631 = vmatprep.subr.bf16.mxu0 %v5825
    %6632 = vmatpush1.bf16.msra.mxu0 %v5824
    %6633 = vmatprep.mubr.bf16.mxu0 %v5682
    %6634 = vmatmul.mubr.bf16.gmra.mrb[0].mxu0 %v5681
    %v6635 = vpop.f32.mrb[0].mxu0
    %v6636 = vadd.f32 %v6595, %v6635
    %v6637 = vpop.f32.mrb[0].mxu0
    %v6638 = vadd.f32 %v6597, %v6637
    %v6639 = vpop.f32.mrb[0].mxu0
    %v6640 = vpop.f32.mrb[0].mxu0
    %6641 = vdwg.mxu0
    %6642 = vmatprep.subr.bf16.mxu0 %v5829
    %6643 = vmatpush1.bf16.msra.mxu0 %v5828
    %6644 = vmatprep.subr.bf16.mxu0 %v5833
    %6645 = vmatpush1.bf16.msra.mxu0 %v5832
    %6646 = vmatprep.subr.bf16.mxu0 %v5837
    %6647 = vmatpush1.bf16.msra.mxu0 %v5836
    %6648 = vmatprep.subr.bf16.mxu0 %v5841
    %6649 = vmatpush1.bf16.msra.mxu0 %v5840
    %6650 = vmatprep.subr.bf16.mxu0 %v5845
    %6651 = vmatpush1.bf16.msra.mxu0 %v5844
    %6652 = vmatprep.subr.bf16.mxu0 %v5849
    %6653 = vmatpush1.bf16.msra.mxu0 %v5848
    %6654 = vmatprep.subr.bf16.mxu0 %v5853
    %6655 = vmatpush1.bf16.msra.mxu0 %v5852
    %6656 = vmatprep.subr.bf16.mxu0 %v5857
    %6657 = vmatpush1.bf16.msra.mxu0 %v5856
    %6658 = vmatprep.subr.bf16.mxu0 %v5861
    %6659 = vmatpush1.bf16.msra.mxu0 %v5860
    %6660 = vmatprep.subr.bf16.mxu0 %v5865
    %6661 = vmatpush1.bf16.msra.mxu0 %v5864
    %6662 = vmatprep.subr.bf16.mxu0 %v5869
    %6663 = vmatpush1.bf16.msra.mxu0 %v5868
    %6664 = vmatprep.subr.bf16.mxu0 %v5873
    %6665 = vmatpush1.bf16.msra.mxu0 %v5872
    %6666 = vmatprep.subr.bf16.mxu0 %v5877
    %6667 = vmatpush1.bf16.msra.mxu0 %v5876
    %6668 = vmatprep.subr.bf16.mxu0 %v5881
    %6669 = vmatpush1.bf16.msra.mxu0 %v5880
    %6670 = vmatprep.subr.bf16.mxu0 %v5885
    %6671 = vmatpush1.bf16.msra.mxu0 %v5884
    %6672 = vmatprep.subr.bf16.mxu0 %v5889
    %6673 = vmatpush1.bf16.msra.mxu0 %v5888
    %6674 = vmatprep.mubr.bf16.mxu0 %v5684
    %6675 = vmatmul.mubr.bf16.gmra.mrb[0].mxu0 %v5683
    %v6676 = vpop.f32.mrb[0].mxu0
    %v6677 = vadd.f32 %v6636, %v6676
    %v6678 = vpop.f32.mrb[0].mxu0
    %v6679 = vadd.f32 %v6638, %v6678
    %v6680 = vpop.f32.mrb[0].mxu0
    %v6681 = vpop.f32.mrb[0].mxu0
    %6682 = vdwg.mxu0
    %6683 = vmatprep.subr.bf16.mxu0 %v5893
    %6684 = vmatpush1.bf16.msra.mxu0 %v5892
    %6685 = vmatprep.subr.bf16.mxu0 %v5897
    %6686 = vmatpush1.bf16.msra.mxu0 %v5896
    %6687 = vmatprep.subr.bf16.mxu0 %v5901
    %6688 = vmatpush1.bf16.msra.mxu0 %v5900
    %6689 = vmatprep.subr.bf16.mxu0 %v5905
    %6690 = vmatpush1.bf16.msra.mxu0 %v5904
    %6691 = vmatprep.subr.bf16.mxu0 %v5909
    %6692 = vmatpush1.bf16.msra.mxu0 %v5908
    %6693 = vmatprep.subr.bf16.mxu0 %v5913
    %6694 = vmatpush1.bf16.msra.mxu0 %v5912
    %6695 = vmatprep.subr.bf16.mxu0 %v5917
    %6696 = vmatpush1.bf16.msra.mxu0 %v5916
    %6697 = vmatprep.subr.bf16.mxu0 %v5921
    %6698 = vmatpush1.bf16.msra.mxu0 %v5920
    %6699 = vmatprep.subr.bf16.mxu0 %v5925
    %6700 = vmatpush1.bf16.msra.mxu0 %v5924
    %6701 = vmatprep.subr.bf16.mxu0 %v5929
    %6702 = vmatpush1.bf16.msra.mxu0 %v5928
    %6703 = vmatprep.subr.bf16.mxu0 %v5933
    %6704 = vmatpush1.bf16.msra.mxu0 %v5932
    %6705 = vmatprep.subr.bf16.mxu0 %v5937
    %6706 = vmatpush1.bf16.msra.mxu0 %v5936
    %6707 = vmatprep.subr.bf16.mxu0 %v5941
    %6708 = vmatpush1.bf16.msra.mxu0 %v5940
    %6709 = vmatprep.subr.bf16.mxu0 %v5945
    %6710 = vmatpush1.bf16.msra.mxu0 %v5944
    %6711 = vmatprep.subr.bf16.mxu0 %v5949
    %6712 = vmatpush1.bf16.msra.mxu0 %v5948
    %6713 = vmatprep.subr.bf16.mxu0 %v5953
    %6714 = vmatpush1.bf16.msra.mxu0 %v5952
    %6715 = vmatprep.mubr.bf16.mxu0 %v5686
    %6716 = vmatmul.mubr.bf16.gmra.mrb[0].mxu0 %v5685
    %v6717 = vpop.f32.mrb[0].mxu0
    %v6718 = vadd.f32 %v6677, %v6717
    %v6719 = vpop.f32.mrb[0].mxu0
    %v6720 = vadd.f32 %v6679, %v6719
    %v6721 = vpop.f32.mrb[0].mxu0
    %v6722 = vpop.f32.mrb[0].mxu0
    %6723 = vdwg.mxu0
    %6724 = vmatprep.subr.bf16.mxu0 %v5957
    %6725 = vmatpush1.bf16.msra.mxu0 %v5956
    %6726 = vmatprep.subr.bf16.mxu0 %v5961
    %6727 = vmatpush1.bf16.msra.mxu0 %v5960
    %6728 = vmatprep.subr.bf16.mxu0 %v5965
    %6729 = vmatpush1.bf16.msra.mxu0 %v5964
    %6730 = vmatprep.subr.bf16.mxu0 %v5969
    %6731 = vmatpush1.bf16.msra.mxu0 %v5968
    %6732 = vmatprep.subr.bf16.mxu0 %v5973
    %6733 = vmatpush1.bf16.msra.mxu0 %v5972
    %6734 = vmatprep.subr.bf16.mxu0 %v5977
    %6735 = vmatpush1.bf16.msra.mxu0 %v5976
    %6736 = vmatprep.subr.bf16.mxu0 %v5981
    %6737 = vmatpush1.bf16.msra.mxu0 %v5980
    %6738 = vmatprep.subr.bf16.mxu0 %v5985
    %6739 = vmatpush1.bf16.msra.mxu0 %v5984
    %6740 = vmatprep.subr.bf16.mxu0 %v5989
    %6741 = vmatpush1.bf16.msra.mxu0 %v5988
    %6742 = vmatprep.subr.bf16.mxu0 %v5993
    %6743 = vmatpush1.bf16.msra.mxu0 %v5992
    %6744 = vmatprep.subr.bf16.mxu0 %v5997
    %6745 = vmatpush1.bf16.msra.mxu0 %v5996
    %6746 = vmatprep.subr.bf16.mxu0 %v6001
    %6747 = vmatpush1.bf16.msra.mxu0 %v6000
    %6748 = vmatprep.subr.bf16.mxu0 %v6005
    %6749 = vmatpush1.bf16.msra.mxu0 %v6004
    %6750 = vmatprep.subr.bf16.mxu0 %v6009
    %6751 = vmatpush1.bf16.msra.mxu0 %v6008
    %6752 = vmatprep.subr.bf16.mxu0 %v6013
    %6753 = vmatpush1.bf16.msra.mxu0 %v6012
    %6754 = vmatprep.subr.bf16.mxu0 %v6017
    %6755 = vmatpush1.bf16.msra.mxu0 %v6016
    %6756 = vmatprep.mubr.bf16.mxu0 %v5688
    %6757 = vmatmul.mubr.bf16.gmra.mrb[0].mxu0 %v5687
    %v6758 = vpop.f32.mrb[0].mxu0
    %v6759 = vadd.f32 %v6718, %v6758
    %v6760 = vpop.f32.mrb[0].mxu0
    %v6761 = vadd.f32 %v6720, %v6760
    %v6762 = vpop.f32.mrb[0].mxu0
    %v6763 = vpop.f32.mrb[0].mxu0
    %6764 = vdwg.mxu0
    %6765 = vmatprep.subr.bf16.mxu0 %v6021
    %6766 = vmatpush1.bf16.msra.mxu0 %v6020
    %6767 = vmatprep.subr.bf16.mxu0 %v6025
    %6768 = vmatpush1.bf16.msra.mxu0 %v6024
    %6769 = vmatprep.subr.bf16.mxu0 %v6029
    %6770 = vmatpush1.bf16.msra.mxu0 %v6028
    %6771 = vmatprep.subr.bf16.mxu0 %v6033
    %6772 = vmatpush1.bf16.msra.mxu0 %v6032
    %6773 = vmatprep.subr.bf16.mxu0 %v6037
    %6774 = vmatpush1.bf16.msra.mxu0 %v6036
    %6775 = vmatprep.subr.bf16.mxu0 %v6041
    %6776 = vmatpush1.bf16.msra.mxu0 %v6040
    %6777 = vmatprep.subr.bf16.mxu0 %v6045
    %6778 = vmatpush1.bf16.msra.mxu0 %v6044
    %6779 = vmatprep.subr.bf16.mxu0 %v6049
    %6780 = vmatpush1.bf16.msra.mxu0 %v6048
    %6781 = vmatprep.subr.bf16.mxu0 %v6053
    %6782 = vmatpush1.bf16.msra.mxu0 %v6052
    %6783 = vmatprep.subr.bf16.mxu0 %v6057
    %6784 = vmatpush1.bf16.msra.mxu0 %v6056
    %6785 = vmatprep.subr.bf16.mxu0 %v6061
    %6786 = vmatpush1.bf16.msra.mxu0 %v6060
    %6787 = vmatprep.subr.bf16.mxu0 %v6065
    %6788 = vmatpush1.bf16.msra.mxu0 %v6064
    %6789 = vmatprep.subr.bf16.mxu0 %v6069
    %6790 = vmatpush1.bf16.msra.mxu0 %v6068
    %6791 = vmatprep.subr.bf16.mxu0 %v6073
    %6792 = vmatpush1.bf16.msra.mxu0 %v6072
    %6793 = vmatprep.subr.bf16.mxu0 %v6077
    %6794 = vmatpush1.bf16.msra.mxu0 %v6076
    %6795 = vmatprep.subr.bf16.mxu0 %v6081
    %6796 = vmatpush1.bf16.msra.mxu0 %v6080
    %6797 = vmatprep.mubr.bf16.mxu0 %v5690
    %6798 = vmatmul.mubr.bf16.gmra.mrb[0].mxu0 %v5689
    %v6799 = vpop.f32.mrb[0].mxu0
    %v6800 = vadd.f32 %v6759, %v6799
    %v6801 = vpop.f32.mrb[0].mxu0
    %v6802 = vadd.f32 %v6761, %v6801
    %v6803 = vpop.f32.mrb[0].mxu0
    %v6804 = vpop.f32.mrb[0].mxu0
    %6805 = vdwg.mxu0
    %6806 = vmatprep.subr.bf16.mxu0 %v6085
    %6807 = vmatpush1.bf16.msra.mxu0 %v6084
    %6808 = vmatprep.subr.bf16.mxu0 %v6089
    %6809 = vmatpush1.bf16.msra.mxu0 %v6088
    %6810 = vmatprep.subr.bf16.mxu0 %v6093
    %6811 = vmatpush1.bf16.msra.mxu0 %v6092
    %6812 = vmatprep.subr.bf16.mxu0 %v6097
    %6813 = vmatpush1.bf16.msra.mxu0 %v6096
    %6814 = vmatprep.subr.bf16.mxu0 %v6101
    %6815 = vmatpush1.bf16.msra.mxu0 %v6100
    %6816 = vmatprep.subr.bf16.mxu0 %v6105
    %6817 = vmatpush1.bf16.msra.mxu0 %v6104
    %6818 = vmatprep.subr.bf16.mxu0 %v6109
    %6819 = vmatpush1.bf16.msra.mxu0 %v6108
    %6820 = vmatprep.subr.bf16.mxu0 %v6113
    %6821 = vmatpush1.bf16.msra.mxu0 %v6112
    %6822 = vmatprep.subr.bf16.mxu0 %v6117
    %6823 = vmatpush1.bf16.msra.mxu0 %v6116
    %6824 = vmatprep.subr.bf16.mxu0 %v6121
    %6825 = vmatpush1.bf16.msra.mxu0 %v6120
    %6826 = vmatprep.subr.bf16.mxu0 %v6125
    %6827 = vmatpush1.bf16.msra.mxu0 %v6124
    %6828 = vmatprep.subr.bf16.mxu0 %v6129
    %6829 = vmatpush1.bf16.msra.mxu0 %v6128
    %6830 = vmatprep.subr.bf16.mxu0 %v6133
    %6831 = vmatpush1.bf16.msra.mxu0 %v6132
    %6832 = vmatprep.subr.bf16.mxu0 %v6137
    %6833 = vmatpush1.bf16.msra.mxu0 %v6136
    %6834 = vmatprep.subr.bf16.mxu0 %v6141
    %6835 = vmatpush1.bf16.msra.mxu0 %v6140
    %6836 = vmatprep.subr.bf16.mxu0 %v6145
    %6837 = vmatpush1.bf16.msra.mxu0 %v6144
    %6838 = vmatprep.mubr.bf16.mxu0 %v5692
    %6839 = vmatmul.mubr.bf16.gmra.mrb[0].mxu0 %v5691
    %v6840 = vpop.f32.mrb[0].mxu0
    %v6841 = vadd.f32 %v6800, %v6840
    %v6842 = vpop.f32.mrb[0].mxu0
    %v6843 = vadd.f32 %v6802, %v6842
    %v6844 = vpop.f32.mrb[0].mxu0
    %v6845 = vpop.f32.mrb[0].mxu0
    %6846 = vdwg.mxu0
    %6847 = vmatprep.subr.bf16.mxu0 %v6149
    %6848 = vmatpush1.bf16.msra.mxu0 %v6148
    %6849 = vmatprep.subr.bf16.mxu0 %v6153
    %6850 = vmatpush1.bf16.msra.mxu0 %v6152
    %6851 = vmatprep.subr.bf16.mxu0 %v6157
    %6852 = vmatpush1.bf16.msra.mxu0 %v6156
    %6853 = vmatprep.subr.bf16.mxu0 %v6161
    %6854 = vmatpush1.bf16.msra.mxu0 %v6160
    %6855 = vmatprep.subr.bf16.mxu0 %v6165
    %6856 = vmatpush1.bf16.msra.mxu0 %v6164
    %6857 = vmatprep.subr.bf16.mxu0 %v6169
    %6858 = vmatpush1.bf16.msra.mxu0 %v6168
    %6859 = vmatprep.subr.bf16.mxu0 %v6173
    %6860 = vmatpush1.bf16.msra.mxu0 %v6172
    %6861 = vmatprep.subr.bf16.mxu0 %v6177
    %6862 = vmatpush1.bf16.msra.mxu0 %v6176
    %6863 = vmatprep.subr.bf16.mxu0 %v6181
    %6864 = vmatpush1.bf16.msra.mxu0 %v6180
    %6865 = vmatprep.subr.bf16.mxu0 %v6185
    %6866 = vmatpush1.bf16.msra.mxu0 %v6184
    %6867 = vmatprep.subr.bf16.mxu0 %v6189
    %6868 = vmatpush1.bf16.msra.mxu0 %v6188
    %6869 = vmatprep.subr.bf16.mxu0 %v6193
    %6870 = vmatpush1.bf16.msra.mxu0 %v6192
    %6871 = vmatprep.subr.bf16.mxu0 %v6197
    %6872 = vmatpush1.bf16.msra.mxu0 %v6196
    %6873 = vmatprep.subr.bf16.mxu0 %v6201
    %6874 = vmatpush1.bf16.msra.mxu0 %v6200
    %6875 = vmatprep.subr.bf16.mxu0 %v6205
    %6876 = vmatpush1.bf16.msra.mxu0 %v6204
    %6877 = vmatprep.subr.bf16.mxu0 %v6209
    %6878 = vmatpush1.bf16.msra.mxu0 %v6208
    %6879 = vmatprep.mubr.bf16.mxu0 %v5694
    %6880 = vmatmul.mubr.bf16.gmra.mrb[0].mxu0 %v5693
    %v6881 = vpop.f32.mrb[0].mxu0
    %v6882 = vadd.f32 %v6841, %v6881
    %v6883 = vpop.f32.mrb[0].mxu0
    %v6884 = vadd.f32 %v6843, %v6883
    %v6885 = vpop.f32.mrb[0].mxu0
    %v6886 = vpop.f32.mrb[0].mxu0
    %6887 = vdwg.mxu0
    %v6888 = vmax.f32 %v6554, 0.0
    %v6889 = vmax.f32 %v6556, 0.0
    %v6890 = vmax.f32 %v6882, 0.0
    %v6891 = vmax.f32 %v6884, 0.0
    %v6892 = vpack.c.bf16 %v6888, %v6888
    %v6893 = vpack.c.bf16 %v6889, %v6889
    %v6894 = vpack.c.bf16 %v6890, %v6890
    %v6895 = vpack.c.bf16 %v6891, %v6891
    %s6896 = smul.u32 4, 64
    %s6897 = smul.u32 %s6896, 4
    %s6898 = sshll.u32 %s6897, 4
    %6899 = dma.done %s228, %s6898
    %v6900 = vld [vmem:[#allocation6] sm:$0xff]
    %v6901 = vld [vmem:[#allocation6 + $0x8] sm:$0xff]
    %v6902 = vld [vmem:[#allocation6 + $0x10] sm:$0xff]
    %v6903 = vld [vmem:[#allocation6 + $0x18] sm:$0xff]
    %v6904 = vld [vmem:[#allocation6 + $0x20] sm:$0xff]
    %v6905 = vld [vmem:[#allocation6 + $0x28] sm:$0xff]
    %v6906 = vld [vmem:[#allocation6 + $0x30] sm:$0xff]
    %v6907 = vld [vmem:[#allocation6 + $0x38] sm:$0xff]
    %v6908 = vld [vmem:[#allocation6 + $0x40] sm:$0xff]
    %v6909 = vld [vmem:[#allocation6 + $0x48] sm:$0xff]
    %v6910 = vld [vmem:[#allocation6 + $0x50] sm:$0xff]
    %v6911 = vld [vmem:[#allocation6 + $0x58] sm:$0xff]
    %v6912 = vld [vmem:[#allocation6 + $0x60] sm:$0xff]
    %v6913 = vld [vmem:[#allocation6 + $0x68] sm:$0xff]
    %v6914 = vld [vmem:[#allocation6 + $0x70] sm:$0xff]
    %v6915 = vld [vmem:[#allocation6 + $0x78] sm:$0xff]
    %v6916 = vld [vmem:[#allocation6 + $0x80] sm:$0xff]
    %v6917 = vld [vmem:[#allocation6 + $0x88] sm:$0xff]
    %v6918 = vld [vmem:[#allocation6 + $0x90] sm:$0xff]
    %v6919 = vld [vmem:[#allocation6 + $0x98] sm:$0xff]
    %v6920 = vld [vmem:[#allocation6 + $0xa0] sm:$0xff]
    %v6921 = vld [vmem:[#allocation6 + $0xa8] sm:$0xff]
    %v6922 = vld [vmem:[#allocation6 + $0xb0] sm:$0xff]
    %v6923 = vld [vmem:[#allocation6 + $0xb8] sm:$0xff]
    %v6924 = vld [vmem:[#allocation6 + $0xc0] sm:$0xff]
    %v6925 = vld [vmem:[#allocation6 + $0xc8] sm:$0xff]
    %v6926 = vld [vmem:[#allocation6 + $0xd0] sm:$0xff]
    %v6927 = vld [vmem:[#allocation6 + $0xd8] sm:$0xff]
    %v6928 = vld [vmem:[#allocation6 + $0xe0] sm:$0xff]
    %v6929 = vld [vmem:[#allocation6 + $0xe8] sm:$0xff]
    %v6930 = vld [vmem:[#allocation6 + $0xf0] sm:$0xff]
    %v6931 = vld [vmem:[#allocation6 + $0xf8] sm:$0xff]
    %v6932 = vld [vmem:[#allocation6 + $0x100] sm:$0xff]
    %v6933 = vld [vmem:[#allocation6 + $0x108] sm:$0xff]
    %v6934 = vld [vmem:[#allocation6 + $0x110] sm:$0xff]
    %v6935 = vld [vmem:[#allocation6 + $0x118] sm:$0xff]
    %v6936 = vld [vmem:[#allocation6 + $0x120] sm:$0xff]
    %v6937 = vld [vmem:[#allocation6 + $0x128] sm:$0xff]
    %v6938 = vld [vmem:[#allocation6 + $0x130] sm:$0xff]
    %v6939 = vld [vmem:[#allocation6 + $0x138] sm:$0xff]
    %v6940 = vld [vmem:[#allocation6 + $0x140] sm:$0xff]
    %v6941 = vld [vmem:[#allocation6 + $0x148] sm:$0xff]
    %v6942 = vld [vmem:[#allocation6 + $0x150] sm:$0xff]
    %v6943 = vld [vmem:[#allocation6 + $0x158] sm:$0xff]
    %v6944 = vld [vmem:[#allocation6 + $0x160] sm:$0xff]
    %v6945 = vld [vmem:[#allocation6 + $0x168] sm:$0xff]
    %v6946 = vld [vmem:[#allocation6 + $0x170] sm:$0xff]
    %v6947 = vld [vmem:[#allocation6 + $0x178] sm:$0xff]
    %v6948 = vld [vmem:[#allocation6 + $0x180] sm:$0xff]
    %v6949 = vld [vmem:[#allocation6 + $0x188] sm:$0xff]
    %v6950 = vld [vmem:[#allocation6 + $0x190] sm:$0xff]
    %v6951 = vld [vmem:[#allocation6 + $0x198] sm:$0xff]
    %v6952 = vld [vmem:[#allocation6 + $0x1a0] sm:$0xff]
    %v6953 = vld [vmem:[#allocation6 + $0x1a8] sm:$0xff]
    %v6954 = vld [vmem:[#allocation6 + $0x1b0] sm:$0xff]
    %v6955 = vld [vmem:[#allocation6 + $0x1b8] sm:$0xff]
    %v6956 = vld [vmem:[#allocation6 + $0x1c0] sm:$0xff]
    %v6957 = vld [vmem:[#allocation6 + $0x1c8] sm:$0xff]
    %v6958 = vld [vmem:[#allocation6 + $0x1d0] sm:$0xff]
    %v6959 = vld [vmem:[#allocation6 + $0x1d8] sm:$0xff]
    %v6960 = vld [vmem:[#allocation6 + $0x1e0] sm:$0xff]
    %v6961 = vld [vmem:[#allocation6 + $0x1e8] sm:$0xff]
    %v6962 = vld [vmem:[#allocation6 + $0x1f0] sm:$0xff]
    %v6963 = vld [vmem:[#allocation6 + $0x1f8] sm:$0xff]
    %v6964 = vld [vmem:[#allocation6 + $0x200] sm:$0xff]
    %v6965 = vld [vmem:[#allocation6 + $0x208] sm:$0xff]
    %v6966 = vld [vmem:[#allocation6 + $0x210] sm:$0xff]
    %v6967 = vld [vmem:[#allocation6 + $0x218] sm:$0xff]
    %v6968 = vld [vmem:[#allocation6 + $0x220] sm:$0xff]
    %v6969 = vld [vmem:[#allocation6 + $0x228] sm:$0xff]
    %v6970 = vld [vmem:[#allocation6 + $0x230] sm:$0xff]
    %v6971 = vld [vmem:[#allocation6 + $0x238] sm:$0xff]
    %v6972 = vld [vmem:[#allocation6 + $0x240] sm:$0xff]
    %v6973 = vld [vmem:[#allocation6 + $0x248] sm:$0xff]
    %v6974 = vld [vmem:[#allocation6 + $0x250] sm:$0xff]
    %v6975 = vld [vmem:[#allocation6 + $0x258] sm:$0xff]
    %v6976 = vld [vmem:[#allocation6 + $0x260] sm:$0xff]
    %v6977 = vld [vmem:[#allocation6 + $0x268] sm:$0xff]
    %v6978 = vld [vmem:[#allocation6 + $0x270] sm:$0xff]
    %v6979 = vld [vmem:[#allocation6 + $0x278] sm:$0xff]
    %v6980 = vld [vmem:[#allocation6 + $0x280] sm:$0xff]
    %v6981 = vld [vmem:[#allocation6 + $0x288] sm:$0xff]
    %v6982 = vld [vmem:[#allocation6 + $0x290] sm:$0xff]
    %v6983 = vld [vmem:[#allocation6 + $0x298] sm:$0xff]
    %v6984 = vld [vmem:[#allocation6 + $0x2a0] sm:$0xff]
    %v6985 = vld [vmem:[#allocation6 + $0x2a8] sm:$0xff]
    %v6986 = vld [vmem:[#allocation6 + $0x2b0] sm:$0xff]
    %v6987 = vld [vmem:[#allocation6 + $0x2b8] sm:$0xff]
    %v6988 = vld [vmem:[#allocation6 + $0x2c0] sm:$0xff]
    %v6989 = vld [vmem:[#allocation6 + $0x2c8] sm:$0xff]
    %v6990 = vld [vmem:[#allocation6 + $0x2d0] sm:$0xff]
    %v6991 = vld [vmem:[#allocation6 + $0x2d8] sm:$0xff]
    %v6992 = vld [vmem:[#allocation6 + $0x2e0] sm:$0xff]
    %v6993 = vld [vmem:[#allocation6 + $0x2e8] sm:$0xff]
    %v6994 = vld [vmem:[#allocation6 + $0x2f0] sm:$0xff]
    %v6995 = vld [vmem:[#allocation6 + $0x2f8] sm:$0xff]
    %v6996 = vld [vmem:[#allocation6 + $0x300] sm:$0xff]
    %v6997 = vld [vmem:[#allocation6 + $0x308] sm:$0xff]
    %v6998 = vld [vmem:[#allocation6 + $0x310] sm:$0xff]
    %v6999 = vld [vmem:[#allocation6 + $0x318] sm:$0xff]
    %v7000 = vld [vmem:[#allocation6 + $0x320] sm:$0xff]
    %v7001 = vld [vmem:[#allocation6 + $0x328] sm:$0xff]
    %v7002 = vld [vmem:[#allocation6 + $0x330] sm:$0xff]
    %v7003 = vld [vmem:[#allocation6 + $0x338] sm:$0xff]
    %v7004 = vld [vmem:[#allocation6 + $0x340] sm:$0xff]
    %v7005 = vld [vmem:[#allocation6 + $0x348] sm:$0xff]
    %v7006 = vld [vmem:[#allocation6 + $0x350] sm:$0xff]
    %v7007 = vld [vmem:[#allocation6 + $0x358] sm:$0xff]
    %v7008 = vld [vmem:[#allocation6 + $0x360] sm:$0xff]
    %v7009 = vld [vmem:[#allocation6 + $0x368] sm:$0xff]
    %v7010 = vld [vmem:[#allocation6 + $0x370] sm:$0xff]
    %v7011 = vld [vmem:[#allocation6 + $0x378] sm:$0xff]
    %v7012 = vld [vmem:[#allocation6 + $0x380] sm:$0xff]
    %v7013 = vld [vmem:[#allocation6 + $0x388] sm:$0xff]
    %v7014 = vld [vmem:[#allocation6 + $0x390] sm:$0xff]
    %v7015 = vld [vmem:[#allocation6 + $0x398] sm:$0xff]
    %v7016 = vld [vmem:[#allocation6 + $0x3a0] sm:$0xff]
    %v7017 = vld [vmem:[#allocation6 + $0x3a8] sm:$0xff]
    %v7018 = vld [vmem:[#allocation6 + $0x3b0] sm:$0xff]
    %v7019 = vld [vmem:[#allocation6 + $0x3b8] sm:$0xff]
    %v7020 = vld [vmem:[#allocation6 + $0x3c0] sm:$0xff]
    %v7021 = vld [vmem:[#allocation6 + $0x3c8] sm:$0xff]
    %v7022 = vld [vmem:[#allocation6 + $0x3d0] sm:$0xff]
    %v7023 = vld [vmem:[#allocation6 + $0x3d8] sm:$0xff]
    %v7024 = vld [vmem:[#allocation6 + $0x3e0] sm:$0xff]
    %v7025 = vld [vmem:[#allocation6 + $0x3e8] sm:$0xff]
    %v7026 = vld [vmem:[#allocation6 + $0x3f0] sm:$0xff]
    %v7027 = vld [vmem:[#allocation6 + $0x3f8] sm:$0xff]
    %v7028 = vld [vmem:[#allocation16] sm:$0xf]
    %v7030 = vlaneseq
    %v7031 = vshrl.u32 %v7030, 7
    %v7032 = vsub.s32 0, %v7031
    %v7033 = vrot.slane %v7028, %v7032
    %v7034 = vlaneseq
    %v7035 = vshrl.u32 %v7034, 7
    %v7036 = vsub.s32 1, %v7035
    %v7037 = vrot.slane %v7028, %v7036
    %v7038 = vlaneseq
    %v7039 = vshrl.u32 %v7038, 7
    %v7040 = vsub.s32 2, %v7039
    %v7041 = vrot.slane %v7028, %v7040
    %v7042 = vlaneseq
    %v7043 = vshrl.u32 %v7042, 7
    %v7044 = vsub.s32 3, %v7043
    %v7045 = vrot.slane %v7028, %v7044
    %7050 = vmatprep.subr.bf16.mxu0 %v6901
    %7051 = vmatpush1.bf16.msra.mxu0 %v6900
    %7052 = vmatprep.subr.bf16.mxu0 %v6905
    %7053 = vmatpush1.bf16.msra.mxu0 %v6904
    %7054 = vmatprep.subr.bf16.mxu0 %v6909
    %7055 = vmatpush1.bf16.msra.mxu0 %v6908
    %7056 = vmatprep.subr.bf16.mxu0 %v6913
    %7057 = vmatpush1.bf16.msra.mxu0 %v6912
    %7058 = vmatprep.subr.bf16.mxu0 %v6917
    %7059 = vmatpush1.bf16.msra.mxu0 %v6916
    %7060 = vmatprep.subr.bf16.mxu0 %v6921
    %7061 = vmatpush1.bf16.msra.mxu0 %v6920
    %7062 = vmatprep.subr.bf16.mxu0 %v6925
    %7063 = vmatpush1.bf16.msra.mxu0 %v6924
    %7064 = vmatprep.subr.bf16.mxu0 %v6929
    %7065 = vmatpush1.bf16.msra.mxu0 %v6928
    %7066 = vmatprep.subr.bf16.mxu0 %v6933
    %7067 = vmatpush1.bf16.msra.mxu0 %v6932
    %7068 = vmatprep.subr.bf16.mxu0 %v6937
    %7069 = vmatpush1.bf16.msra.mxu0 %v6936
    %7070 = vmatprep.subr.bf16.mxu0 %v6941
    %7071 = vmatpush1.bf16.msra.mxu0 %v6940
    %7072 = vmatprep.subr.bf16.mxu0 %v6945
    %7073 = vmatpush1.bf16.msra.mxu0 %v6944
    %7074 = vmatprep.subr.bf16.mxu0 %v6949
    %7075 = vmatpush1.bf16.msra.mxu0 %v6948
    %7076 = vmatprep.subr.bf16.mxu0 %v6953
    %7077 = vmatpush1.bf16.msra.mxu0 %v6952
    %7078 = vmatprep.subr.bf16.mxu0 %v6957
    %7079 = vmatpush1.bf16.msra.mxu0 %v6956
    %7080 = vmatprep.subr.bf16.mxu0 %v6961
    %7081 = vmatpush1.bf16.msra.mxu0 %v6960
    %7082 = vmatprep.mubr.bf16.mxu0 %v6893
    %7083 = vmatmul.mubr.bf16.gmra.mrb[0].mxu0 %v6892
    %v7084 = vpop.f32.mrb[0].mxu0
    %v7085 = vadd.f32 %v7033, %v7084
    %v7086 = vpop.f32.mrb[0].mxu0
    %v7087 = vadd.f32 %v7037, %v7086
    %v7088 = vpop.f32.mrb[0].mxu0
    %v7089 = vpop.f32.mrb[0].mxu0
    %7090 = vdwg.mxu0
    %7091 = vmatprep.subr.bf16.mxu0 %v6965
    %7092 = vmatpush1.bf16.msra.mxu0 %v6964
    %7093 = vmatprep.subr.bf16.mxu0 %v6969
    %7094 = vmatpush1.bf16.msra.mxu0 %v6968
    %7095 = vmatprep.subr.bf16.mxu0 %v6973
    %7096 = vmatpush1.bf16.msra.mxu0 %v6972
    %7097 = vmatprep.subr.bf16.mxu0 %v6977
    %7098 = vmatpush1.bf16.msra.mxu0 %v6976
    %7099 = vmatprep.subr.bf16.mxu0 %v6981
    %7100 = vmatpush1.bf16.msra.mxu0 %v6980
    %7101 = vmatprep.subr.bf16.mxu0 %v6985
    %7102 = vmatpush1.bf16.msra.mxu0 %v6984
    %7103 = vmatprep.subr.bf16.mxu0 %v6989
    %7104 = vmatpush1.bf16.msra.mxu0 %v6988
    %7105 = vmatprep.subr.bf16.mxu0 %v6993
    %7106 = vmatpush1.bf16.msra.mxu0 %v6992
    %7107 = vmatprep.subr.bf16.mxu0 %v6997
    %7108 = vmatpush1.bf16.msra.mxu0 %v6996
    %7109 = vmatprep.subr.bf16.mxu0 %v7001
    %7110 = vmatpush1.bf16.msra.mxu0 %v7000
    %7111 = vmatprep.subr.bf16.mxu0 %v7005
    %7112 = vmatpush1.bf16.msra.mxu0 %v7004
    %7113 = vmatprep.subr.bf16.mxu0 %v7009
    %7114 = vmatpush1.bf16.msra.mxu0 %v7008
    %7115 = vmatprep.subr.bf16.mxu0 %v7013
    %7116 = vmatpush1.bf16.msra.mxu0 %v7012
    %7117 = vmatprep.subr.bf16.mxu0 %v7017
    %7118 = vmatpush1.bf16.msra.mxu0 %v7016
    %7119 = vmatprep.subr.bf16.mxu0 %v7021
    %7120 = vmatpush1.bf16.msra.mxu0 %v7020
    %7121 = vmatprep.subr.bf16.mxu0 %v7025
    %7122 = vmatpush1.bf16.msra.mxu0 %v7024
    %7123 = vmatprep.mubr.bf16.mxu0 %v6895
    %7124 = vmatmul.mubr.bf16.gmra.mrb[0].mxu0 %v6894
    %v7125 = vpop.f32.mrb[0].mxu0
    %v7126 = vadd.f32 %v7085, %v7125
    %v7127 = vpop.f32.mrb[0].mxu0
    %v7128 = vadd.f32 %v7087, %v7127
    %v7129 = vpop.f32.mrb[0].mxu0
    %v7130 = vpop.f32.mrb[0].mxu0
    %7131 = vdwg.mxu0
    %7132 = vmatprep.subr.bf16.mxu0 %v6903
    %7133 = vmatpush1.bf16.msra.mxu0 %v6902
    %7134 = vmatprep.subr.bf16.mxu0 %v6907
    %7135 = vmatpush1.bf16.msra.mxu0 %v6906
    %7136 = vmatprep.subr.bf16.mxu0 %v6911
    %7137 = vmatpush1.bf16.msra.mxu0 %v6910
    %7138 = vmatprep.subr.bf16.mxu0 %v6915
    %7139 = vmatpush1.bf16.msra.mxu0 %v6914
    %7140 = vmatprep.subr.bf16.mxu0 %v6919
    %7141 = vmatpush1.bf16.msra.mxu0 %v6918
    %7142 = vmatprep.subr.bf16.mxu0 %v6923
    %7143 = vmatpush1.bf16.msra.mxu0 %v6922
    %7144 = vmatprep.subr.bf16.mxu0 %v6927
    %7145 = vmatpush1.bf16.msra.mxu0 %v6926
    %7146 = vmatprep.subr.bf16.mxu0 %v6931
    %7147 = vmatpush1.bf16.msra.mxu0 %v6930
    %7148 = vmatprep.subr.bf16.mxu0 %v6935
    %7149 = vmatpush1.bf16.msra.mxu0 %v6934
    %7150 = vmatprep.subr.bf16.mxu0 %v6939
    %7151 = vmatpush1.bf16.msra.mxu0 %v6938
    %7152 = vmatprep.subr.bf16.mxu0 %v6943
    %7153 = vmatpush1.bf16.msra.mxu0 %v6942
    %7154 = vmatprep.subr.bf16.mxu0 %v6947
    %7155 = vmatpush1.bf16.msra.mxu0 %v6946
    %7156 = vmatprep.subr.bf16.mxu0 %v6951
    %7157 = vmatpush1.bf16.msra.mxu0 %v6950
    %7158 = vmatprep.subr.bf16.mxu0 %v6955
    %7159 = vmatpush1.bf16.msra.mxu0 %v6954
    %7160 = vmatprep.subr.bf16.mxu0 %v6959
    %7161 = vmatpush1.bf16.msra.mxu0 %v6958
    %7162 = vmatprep.subr.bf16.mxu0 %v6963
    %7163 = vmatpush1.bf16.msra.mxu0 %v6962
    %7164 = vmatprep.mubr.bf16.mxu0 %v6893
    %7165 = vmatmul.mubr.bf16.gmra.mrb[0].mxu0 %v6892
    %v7166 = vpop.f32.mrb[0].mxu0
    %v7167 = vadd.f32 %v7041, %v7166
    %v7168 = vpop.f32.mrb[0].mxu0
    %v7169 = vadd.f32 %v7045, %v7168
    %v7170 = vpop.f32.mrb[0].mxu0
    %v7171 = vpop.f32.mrb[0].mxu0
    %7172 = vdwg.mxu0
    %7173 = vmatprep.subr.bf16.mxu0 %v6967
    %7174 = vmatpush1.bf16.msra.mxu0 %v6966
    %7175 = vmatprep.subr.bf16.mxu0 %v6971
    %7176 = vmatpush1.bf16.msra.mxu0 %v6970
    %7177 = vmatprep.subr.bf16.mxu0 %v6975
    %7178 = vmatpush1.bf16.msra.mxu0 %v6974
    %7179 = vmatprep.subr.bf16.mxu0 %v6979
    %7180 = vmatpush1.bf16.msra.mxu0 %v6978
    %7181 = vmatprep.subr.bf16.mxu0 %v6983
    %7182 = vmatpush1.bf16.msra.mxu0 %v6982
    %7183 = vmatprep.subr.bf16.mxu0 %v6987
    %7184 = vmatpush1.bf16.msra.mxu0 %v6986
    %7185 = vmatprep.subr.bf16.mxu0 %v6991
    %7186 = vmatpush1.bf16.msra.mxu0 %v6990
    %7187 = vmatprep.subr.bf16.mxu0 %v6995
    %7188 = vmatpush1.bf16.msra.mxu0 %v6994
    %7189 = vmatprep.subr.bf16.mxu0 %v6999
    %7190 = vmatpush1.bf16.msra.mxu0 %v6998
    %7191 = vmatprep.subr.bf16.mxu0 %v7003
    %7192 = vmatpush1.bf16.msra.mxu0 %v7002
    %7193 = vmatprep.subr.bf16.mxu0 %v7007
    %7194 = vmatpush1.bf16.msra.mxu0 %v7006
    %7195 = vmatprep.subr.bf16.mxu0 %v7011
    %7196 = vmatpush1.bf16.msra.mxu0 %v7010
    %7197 = vmatprep.subr.bf16.mxu0 %v7015
    %7198 = vmatpush1.bf16.msra.mxu0 %v7014
    %7199 = vmatprep.subr.bf16.mxu0 %v7019
    %7200 = vmatpush1.bf16.msra.mxu0 %v7018
    %7201 = vmatprep.subr.bf16.mxu0 %v7023
    %7202 = vmatpush1.bf16.msra.mxu0 %v7022
    %7203 = vmatprep.subr.bf16.mxu0 %v7027
    %7204 = vmatpush1.bf16.msra.mxu0 %v7026
    %7205 = vmatprep.mubr.bf16.mxu0 %v6895
    %7206 = vmatmul.mubr.bf16.gmra.mrb[0].mxu0 %v6894
    %v7207 = vpop.f32.mrb[0].mxu0
    %v7208 = vadd.f32 %v7167, %v7207
    %v7209 = vpop.f32.mrb[0].mxu0
    %v7210 = vadd.f32 %v7169, %v7209
    %v7211 = vpop.f32.mrb[0].mxu0
    %v7212 = vpop.f32.mrb[0].mxu0
    %7213 = vdwg.mxu0
    %v7214 = vmul.f32 %v7126, %v7126
    %v7215 = vmul.f32 %v7128, %v7128
    %v7216 = vmul.f32 %v7208, %v7208
    %v7217 = vmul.f32 %v7210, %v7210
    %v7218 = vadd.f32 %v7214, %v7215
    %v7219 = vadd.f32 %v7218, %v7216
    %v7220 = vadd.f32 %v7219, %v7217
    %7221 = vadd.xlane.f32.xlu0 %v7220
    %v7222 = vpop.xlane.xlu0 %7221
    %v7223 = vrsqrt.pop %v7222
    %v7224 = vmul.f32 %v7222, %v7223
    %vm7225 = vcmp.eq.f32.partialorder %v7222, inf
    %v7226 = vsel %vm7225, %v7222, %v7224
    %vm7227 = vcmp.eq.f32.partialorder %v7222, 0.0
    %v7228 = vand.u32 %v7222, 2147483648
    %v7229 = vsel %vm7227, %v7228, %v7226
    %v7230 = vmax.f32 %v7229, 1e-12
    %v7231 = vrcp.pop %v7230
    %v7232 = vmul.f32 %v7126, %v7231
    %v7233 = vmul.f32 %v7128, %v7231
    %v7234 = vmul.f32 %v7208, %v7231
    %v7235 = vmul.f32 %v7210, %v7231
    %7236 = vst [vmem:[#allocation17] sm:$0xff] %v7232
    %7237 = vst [vmem:[#allocation17 + $0x8] sm:$0xff] %v7233
    %7238 = vst [vmem:[#allocation17 + $0x10] sm:$0xff] %v7234
    %7239 = vst [vmem:[#allocation17 + $0x18] sm:$0xff] %v7235
    // Predicated region
    $region46: #{sample_cnn_mlp_forward.1} parent=1 // pred_check
      _
    $region47: #{sample_cnn_mlp_forward.1} parent=1 // pred_check_branch
      %7241 = sbr.rel (0) target = $region49
    $region48: #{sample_cnn_mlp_forward.1} parent=1 // pred_region
      %s7243 = ssub.s32 512, 512
      %7244 = vsyncadd [#allocation10], %s7243
      %s7246 = sshll.u32 [#allocation17], 4
      %s7247 = int_to_ptr.vmem [resolvable:$true] %s7246
      %7249 = dma.vmem_to_hbm [thread:$0]  %s7247, 512, %s11, [#allocation10]
    $region49: #{sample_cnn_mlp_forward.1} parent=1 // pred_fallthru
      _
    // Predicated region
    $region50: #{sample_cnn_mlp_forward.1} parent=1 // pred_check
      _
    $region51: #{sample_cnn_mlp_forward.1} parent=1 // pred_check_branch
      %7251 = sbr.rel (0) target = $region53
    $region52: #{sample_cnn_mlp_forward.1} parent=1 // pred_region
      %7252 = dma.done [#allocation10], 512
    $region53: #{sample_cnn_mlp_forward.1} parent=1 // pred_fallthru
      _
    %7253 = vsyncpa [#allocation9], 1
    %7254 = vsyncpa [#allocation12], 1
    %7255 = vsyncpa [#allocation15], 1
    %7256 = vsyncpa [#allocation10], 1
  %7257 = vsyncmov [#allocation7]
  %s7258 = vpop.sfrf %7257
  %p7259 = scmp.eq.s32.totalorder %s7258, 0
  %p7260 = pneg %p7259
  %7262 = shalt.err (%p7260)
  %s7263 = scalar_lea.sflag [#allocation7], 1
  %7264 = vsyncmov %s7263
  %s7265 = vpop.sfrf %7264
  %p7266 = scmp.eq.s32.totalorder %s7265, 0
  %p7267 = pneg %p7266
  %7269 = shalt.err (%p7267)
  %s7270 = scalar_lea.sflag [#allocation7], 2
  %7271 = vsyncmov %s7270
  %s7272 = vpop.sfrf %7271
  %p7273 = scmp.eq.s32.totalorder %s7272, 0
  %p7274 = pneg %p7273
  %7276 = shalt.err (%p7274)
  %s7277 = scalar_lea.sflag [#allocation7], 3
  %7278 = vsyncmov %s7277
  %s7279 = vpop.sfrf %7278
  %p7280 = scmp.eq.s32.totalorder %s7279, 0
  %p7281 = pneg %p7280
  %7283 = shalt.err (%p7281)
  %s7284 = scalar_lea.sflag [#allocation7], 4
  %7285 = vsyncmov %s7284
  %s7286 = vpop.sfrf %7285
  %p7287 = scmp.eq.s32.totalorder %s7286, 0
  %p7288 = pneg %p7287
  %7290 = shalt.err (%p7288)

</llo_original>
